<compile_context>
chip_gen: v6e
topology: v6e:2x2x1
jax: 0.10.0
libtpu: 0.0.40
codegen_flags: <defaults>
</compile_context>

<pallas_src>
import functools

import numpy as np

import jax
import jax.numpy as jnp
from jax.experimental import pallas as pl
from jax.experimental.pallas import tpu as pltpu


# ---------------------------------------------------------------------------
# Fused transposed matmul (Pallas MXU kernel, bias + activation epilogue)
# ---------------------------------------------------------------------------
def _round_up(x, m):
    return (x + m - 1) // m * m


def _apply_act(r, act):
    if act == 'relu':
        return jnp.maximum(r, 0.0)
    if act == 'leaky':
        return jnp.where(r >= 0.0, r, 0.2 * r)      # nn.LeakyReLU(0.2)
    if act == 'sigmoid':
        return jax.nn.sigmoid(r)                    # exp/recip -> EUP slot
    return r                                        # 'none'


def _mm_t_kernel(w_ref, x_ref, bias_ref, o_ref, *, act):
    """o(Cout, tm) = act( w(Cout, K) @ x(K, tm) + bias(Cout, 1) ).

    bf16 operands, f32 accumulation, epilogue in f32.  Lane axis of both the
    big input block and the output block is tm (multiple of 128) -> dense
    vld / vst; Cout only occupies sublanes.
    """
    r = jnp.dot(w_ref[...], x_ref[...], preferred_element_type=jnp.float32)
    r = r + bias_ref[...]                           # lane-broadcast of (Cout,1)
    o_ref[...] = _apply_act(r, act).astype(o_ref.dtype)


_PALLAS_MIN_M = 128     # below this (GAM stats, bottleneck 2x2, fc head) use XLA dot


def pallas_matmul_t(w, x, bias, act, out_dtype):
    """act( w(Cout,K) @ x(K,M) + bias ) -> (Cout, M), lanes = M."""
    Cout, K = w.shape
    K2, M = x.shape
    assert K == K2
    w = w.astype(jnp.bfloat16)
    x = x.astype(jnp.bfloat16)
    if bias is None:
        bias = jnp.zeros((Cout,), jnp.float32)
    bias2 = bias.astype(jnp.float32).reshape(Cout, 1)

    # Sublane (Cout) tile: full-dim block when it fits; round tiny Cout (=3)
    # up to 8 for clean sublane tiling.
    tc = min(128, _round_up(Cout, 8))
    Cp = _round_up(Cout, tc)
    if Cp != Cout:
        w = jnp.pad(w, ((0, Cp - Cout), (0, 0)))
        bias2 = jnp.pad(bias2, ((0, Cp - Cout), (0, 0)))

    # Lane (M) tile: cap at 256 so M=512 still yields >=2 grid steps (v7x
    # megacore); every buffer stays well under the scoped-VMEM default.
    tm = min(256, _round_up(M, 128))
    Mp = _round_up(M, tm)
    if Mp != M:
        x = jnp.pad(x, ((0, 0), (0, Mp - M)))

    cost = pl.CostEstimate(
        flops=2 * Cp * K * Mp,
        transcendentals=(Cp * Mp if act == 'sigmoid' else 0),
        bytes_accessed=(Cp * K + K * Mp) * 2 + Cp * Mp * jnp.dtype(out_dtype).itemsize,
    )

    out = pl.pallas_call(
        functools.partial(_mm_t_kernel, act=act),
        out_shape=jax.ShapeDtypeStruct((Cp, Mp), out_dtype),
        grid_spec=pltpu.PrefetchScalarGridSpec(
            num_scalar_prefetch=0,
            grid=(Cp // tc, Mp // tm),
            in_specs=[
                pl.BlockSpec((tc, K), lambda c, i: (c, 0)),   # weights (resident)
                pl.BlockSpec((K, tm), lambda c, i: (0, i)),   # data, lane-dense
                pl.BlockSpec((tc, 1), lambda c, i: (c, 0)),   # bias
            ],
            out_specs=pl.BlockSpec((tc, tm), lambda c, i: (c, i)),
        ),
        compiler_params=pltpu.CompilerParams(
            dimension_semantics=("parallel", "parallel")),
        cost_estimate=cost,
    )(w, x, bias2)

    if Cp != Cout or Mp != M:
        out = out[:Cout, :M]
    return out


def fused_matmul_t(w, x, bias, act='none', out_dtype=jnp.float32):
    """Dispatch: tiny-M matmuls (GAM stats, 2x2 bottleneck, fc head) go to a
    fused XLA dot (avoids pallas_call launch + grid-step overhead)."""
    M = x.shape[1]
    if M < _PALLAS_MIN_M:
        r = jnp.dot(w.astype(jnp.bfloat16), x.astype(jnp.bfloat16),
                    preferred_element_type=jnp.float32)
        if bias is not None:
            r = r + bias.astype(jnp.float32)[:, None]
        return _apply_act(r, act).astype(out_dtype)
    return pallas_matmul_t(w, x, bias, act, out_dtype)


# ---------------------------------------------------------------------------
# Glue (channel-major (C, N, H, W)): im2col, reflect pad, upsample, GAM, norm
# ---------------------------------------------------------------------------
def _im2col_cmajor(xp, kh, kw, stride, k_pad):
    """xp: (C, N, Hp, Wp) already padded -> colsT (k_pad, N*Ho*Wo), Ho, Wo.

    K ordering is (ki, kj, c); zero rows appended (in the same concat, no
    extra pass) so K matches the zero-padded packed weight."""
    C, N, Hp, Wp = xp.shape
    Ho = (Hp - kh) // stride + 1
    Wo = (Wp - kw) // stride + 1
    patches = [xp[:, :, ki:ki + stride * Ho:stride, kj:kj + stride * Wo:stride]
               for ki in range(kh) for kj in range(kw)]
    K = kh * kw * C
    if k_pad > K:
        patches.append(jnp.zeros((k_pad - K, N, Ho, Wo), xp.dtype))
    cols = jnp.concatenate(patches, axis=0)          # (k_pad, N, Ho, Wo)
    return cols.reshape(k_pad, N * Ho * Wo), Ho, Wo


def conv_block(x, prm, k, stride, act, out_dtype=jnp.bfloat16):
    """ReflectionPad + kxk conv + activation, channel-major."""
    pad = (k - 1) // 2                               # k, stride are Python ints
    if pad > 0:
        x = jnp.pad(x, ((0, 0), (0, 0), (pad, pad), (pad, pad)), mode='reflect')
    colsT, Ho, Wo = _im2col_cmajor(x, k, k, stride, k_pad=prm['w'].shape[1])
    out = fused_matmul_t(prm['w'], colsT, prm['b'], act=act, out_dtype=out_dtype)
    N = x.shape[1]
    return out.reshape(prm['w'].shape[0], N, Ho, Wo)


def conv1x1(x, w, b, act='none', out_dtype=jnp.bfloat16):
    """1x1 conv == matmul on the channel axis (zero-copy reshape)."""
    C, N, H, W = x.shape
    out = fused_matmul_t(w, x.reshape(C, N * H * W), b, act=act, out_dtype=out_dtype)
    return out.reshape(w.shape[0], N, H, W)


def _interp_matrix(n_in, n_out):
    """(n_out, n_in) bilinear weights, align_corners=True.  Built in numpy at
    trace time (shapes are static) -> the upsample is two matmuls, no gathers."""
    m = np.zeros((n_out, n_in), np.float32)
    if n_in == 1:
        m[:, 0] = 1.0
        return m
    src = np.arange(n_out, dtype=np.float64) * (n_in - 1) / (n_out - 1)
    i0 = np.floor(src).astype(np.int64)
    i1 = np.minimum(i0 + 1, n_in - 1)
    f = (src - i0).astype(np.float32)
    m[np.arange(n_out), i0] += 1.0 - f
    m[np.arange(n_out), i1] += f
    return m


def bilinear_x2(x):
    """F.interpolate(scale_factor=2, mode='bilinear', align_corners=True)."""
    C, N, H, W = x.shape
    R = jnp.asarray(_interp_matrix(H, 2 * H))
    Cm = jnp.asarray(_interp_matrix(W, 2 * W))
    out = jnp.einsum('ph,cnhw,qw->cnpq', R, x.astype(jnp.float32), Cm)
    return out.astype(jnp.bfloat16)


def instance_norm_cf(x, eps=1e-5):
    """InstanceNorm2d (affine=False), channel-major; biased var like PyTorch."""
    m = x.mean(axis=(2, 3), keepdims=True)
    v = x.var(axis=(2, 3), keepdims=True)
    return (x - m) * jax.lax.rsqrt(v + eps)


def gam_forward(x, p):
    """Global attention module (norm=True), channel-major.  Stats in f32."""
    C, N, H, W = x.shape
    xf = x.astype(jnp.float32).reshape(C, N, H * W)
    mean = xf.mean(axis=2)                              # (C, N)
    var = xf.var(axis=2, ddof=1) + 1e-5                 # torch .var() unbiased
    std = jnp.sqrt(var)
    stat = jnp.concatenate([mean, std], axis=0)         # (2C, N)

    # 1x1 conv stack on 1x1 spatial == tiny matmuls (bias=False) -> XLA path.
    h = fused_matmul_t(p['w1'], stat, None, act='relu')
    o = fused_matmul_t(p['w2'], h, None, act='none')    # (C, N)
    o_e = jnp.broadcast_to(o[:, :, None, None], (C, N, H, W)).astype(x.dtype)

    cat = jnp.concatenate([x, o_e], axis=0)             # (2C, N, H, W)
    fused = fused_matmul_t(p['wf'], cat.reshape(2 * C, N * H * W), p['bf'],
                           act='none', out_dtype=jnp.float32)
    fused = fused.reshape(C, N, H, W)
    return instance_norm_cf(fused).astype(jnp.bfloat16)


# ---------------------------------------------------------------------------
# Parameter construction (deterministic, pre-packed (Cout, K) bf16 weights)
# ---------------------------------------------------------------------------
def init_params(key, conv_dim, fc_in):
    cd = conv_dim
    keys = iter(jax.random.split(key, 512))

    def conv(cin, cout, k):
        K = k * k * cin
        Kp = _round_up(K, 16)                       # bf16 sublane packing
        w = jax.random.normal(next(keys), (cout, K), jnp.float32) / np.sqrt(K)
        w = jnp.pad(w, ((0, 0), (0, Kp - K))).astype(jnp.bfloat16)
        b = 0.01 * jax.random.normal(next(keys), (cout,), jnp.float32)
        return {'w': w, 'b': b}

    def gam(in_nc):
        red = max(in_nc // 8, 1)
        w1 = (jax.random.normal(next(keys), (red, 2 * in_nc), jnp.float32)
              / np.sqrt(2 * in_nc)).astype(jnp.bfloat16)
        w2 = (jax.random.normal(next(keys), (in_nc, red), jnp.float32)
              / np.sqrt(red)).astype(jnp.bfloat16)
        wf = (jax.random.normal(next(keys), (in_nc, 2 * in_nc), jnp.float32)
              / np.sqrt(2 * in_nc)).astype(jnp.bfloat16)
        bf_ = 0.01 * jax.random.normal(next(keys), (in_nc,), jnp.float32)
        return {'w1': w1, 'w2': w2, 'wf': wf, 'bf': bf_}

    p = {}
    p['enc1'] = conv(3, cd, 7)
    p['enc2'] = conv(cd, cd * 2, 3)
    p['enc3'] = conv(cd * 2, cd * 4, 3)
    p['enc4'] = conv(cd * 4, cd * 8, 3)
    p['enc5'] = conv(cd * 8, cd * 16, 3)
    p['ga5'] = gam(cd * 16)

    # upsample1 / upsample21 share the same input (x5): merge along Cout so
    # one matmul with doubled lane fill replaces two launches.
    u1a, u1b = conv(cd * 16, cd * 8, 1), conv(cd * 16, cd * 8, 1)
    p['up1_both'] = {'w': jnp.concatenate([u1a['w'], u1b['w']], axis=0),
                     'b': jnp.concatenate([u1a['b'], u1b['b']], axis=0)}

    for tag in ('', '2'):
        p['up%s2' % tag] = conv(cd * 8, cd * 4, 1)
        p['up%s3' % tag] = conv(cd * 4, cd * 2, 1)
        p['up%s4' % tag] = conv(cd * 2, cd * 1, 1)
        p['dec%s1' % tag] = conv(cd * 16, cd * 8, 3)
        p['dec%s2' % tag] = conv(cd * 8, cd * 4, 3)
        p['dec%s3' % tag] = conv(cd * 4, cd * 2, 3)
        p['dec%s4' % tag] = conv(cd * 2, cd * 1, 3)
        p['dec%s5a' % tag] = conv(cd * 1, cd * 1, 3)
        p['dec%s5b' % tag] = conv(cd * 1, 3, 7)
        p['ga%s4' % tag] = gam(cd * 8)
        p['ga%s3' % tag] = gam(cd * 4)
        p['ga%s2' % tag] = gam(cd * 2)
        p['ga%s1' % tag] = gam(cd * 1)

    p['fc1'] = {'w': (jax.random.normal(next(keys), (512, fc_in), jnp.float32)
                      / np.sqrt(fc_in)).astype(jnp.bfloat16),
                'b': jnp.zeros((512,), jnp.float32)}
    p['fc2'] = {'w': (jax.random.normal(next(keys), (1, 512), jnp.float32)
                      / np.sqrt(512)).astype(jnp.bfloat16),
                'b': jnp.zeros((1,), jnp.float32)}
    return p


# ---------------------------------------------------------------------------
# Generator forward (NCHW in / NCHW out; channel-major (C, N, H, W) inside)
# ---------------------------------------------------------------------------
def generator_forward(p, x_nchw):
    act = 'leaky'                                    # act_fun='LeakyReLU'(0.2)
    x = jnp.transpose(x_nchw, (1, 0, 2, 3)).astype(jnp.bfloat16)   # (C, N, H, W)

    x1 = conv_block(x,  p['enc1'], 7, 1, act)
    x2 = conv_block(x1, p['enc2'], 3, 2, act)
    x3 = conv_block(x2, p['enc3'], 3, 2, act)
    x4 = conv_block(x3, p['enc4'], 3, 2, act)
    x5 = conv_block(x4, p['enc5'], 3, 2, act)
    x5 = gam_forward(x5, p['ga5'])

    # Merged upsample1 / upsample21 (same input).
    ub = conv1x1(bilinear_x2(x5), p['up1_both']['w'], p['up1_both']['b'])
    half = ub.shape[0] // 2

    def decode(tag, y):
        y = jnp.concatenate([y, gam_forward(x4, p['ga%s4' % tag])], axis=0)
        y = conv_block(y, p['dec%s1' % tag], 3, 1, act)

        y = conv1x1(bilinear_x2(y), p['up%s2' % tag]['w'], p['up%s2' % tag]['b'])
        y = jnp.concatenate([y, gam_forward(x3, p['ga%s3' % tag])], axis=0)
        y = conv_block(y, p['dec%s2' % tag], 3, 1, act)

        y = conv1x1(bilinear_x2(y), p['up%s3' % tag]['w'], p['up%s3' % tag]['b'])
        y = jnp.concatenate([y, gam_forward(x2, p['ga%s2' % tag])], axis=0)
        y = conv_block(y, p['dec%s3' % tag], 3, 1, act)

        y = conv1x1(bilinear_x2(y), p['up%s4' % tag]['w'], p['up%s4' % tag]['b'])
        y = jnp.concatenate([y, gam_forward(x1, p['ga%s1' % tag])], axis=0)
        y = conv_block(y, p['dec%s4' % tag], 3, 1, act)

        m = y * x1                                   # y.mul(x1)
        m = conv_block(m, p['dec%s5a' % tag], 3, 1, 'none')
        m = conv_block(m, p['dec%s5b' % tag], 7, 1, 'sigmoid',
                       out_dtype=jnp.float32)        # fused nn.Sigmoid
        return jnp.transpose(m, (1, 0, 2, 3))        # back to NCHW at boundary

    mask1 = decode('', ub[:half])
    mask2 = decode('2', ub[half:])

    # fc head: torch flattens NCHW -> (N, C*H*W); keep that order (tiny tensor).
    C5, N5, H5, W5 = x5.shape
    y31t = jnp.transpose(x5, (0, 2, 3, 1)).reshape(C5 * H5 * W5, N5)   # (CHW, N)
    y32t = fused_matmul_t(p['fc1']['w'], y31t, p['fc1']['b'], act='relu')
    valt = fused_matmul_t(p['fc2']['w'], y32t, p['fc2']['b'], act='none')
    return mask1, mask2, valt.T                      # value: (N, 1)


# ---------------------------------------------------------------------------
if __name__ == "__main__":
    key = jax.random.PRNGKey(0)
    k_in, k_par = jax.random.split(key)

    batch, conv_dim, H, W = 2, 8, 32, 32             # small test shapes
    x = jax.random.normal(k_in, (batch, 3, H, W), jnp.float32)

    fc_in = conv_dim * 16 * (H // 16) * (W // 16)    # flattened 2x2 bottleneck
    params = init_params(k_par, conv_dim, fc_in)

    fwd = jax.jit(generator_forward)
    mask1, mask2, value = fwd(params, x)
    jax.block_until_ready((mask1, mask2, value))

    assert mask1.shape == (batch, 3, H, W), mask1.shape
    assert mask2.shape == (batch, 3, H, W), mask2.shape
    assert value.shape == (batch, 1), value.shape
    assert bool(jnp.isfinite(mask1).all())
    assert bool(jnp.isfinite(mask2).all())
    assert bool(jnp.isfinite(value).all())
    print("KERNEL_OK")
</pallas_src>

<mosaic_0001>
module attributes {stable_mosaic.version = 11 : i64} {
  func.func @_mm_t_kernel(%arg0: i32, %arg1: i32, %arg2: memref<8x160xbf16, #tpu.memory_space<vmem>>, %arg3: memref<160x256xbf16, #tpu.memory_space<vmem>>, %arg4: memref<8x1xf32, #tpu.memory_space<vmem>>, %arg5: memref<8x256xbf16, #tpu.memory_space<vmem>>) attributes {dimension_semantics = [#tpu.dimension_semantics<parallel>, #tpu.dimension_semantics<parallel>], iteration_bounds = array<i64: 1, 8>, scalar_prefetch = 0 : i64, scratch_operands = 0 : i64, tpu.core_type = #tpu.core_type<tc>, window_params = [{transform_indices = @transform_0, window_bounds = array<i64: 8, 160>}, {transform_indices = @transform_1, window_bounds = array<i64: 160, 256>}, {transform_indices = @transform_2, window_bounds = array<i64: 8, 1>}, {transform_indices = @transform_3, window_bounds = array<i64: 8, 256>}]} {
    %c0 = arith.constant 0 : index
    %c0_0 = arith.constant 0 : index
    %0 = vector.load %arg2[%c0, %c0_0] : memref<8x160xbf16, #tpu.memory_space<vmem>>, vector<8x160xbf16>
    %c0_1 = arith.constant 0 : index
    %c0_2 = arith.constant 0 : index
    %1 = vector.load %arg3[%c0_1, %c0_2] : memref<160x256xbf16, #tpu.memory_space<vmem>>, vector<160x256xbf16>
    %cst = arith.constant dense<0.000000e+00> : vector<8x256xf32>
    %2 = tpu.matmul %0, %1, %cst {dimension_numbers = #tpu.dot_dimension_numbers<[1], [0], [0], [1], [0, 0, 1, 1], [], []>} : vector<8x160xbf16>, vector<160x256xbf16>, vector<8x256xf32> -> vector<8x256xf32>
    %c0_3 = arith.constant 0 : index
    %c0_4 = arith.constant 0 : index
    %3 = vector.load %arg4[%c0_3, %c0_4] : memref<8x1xf32, #tpu.memory_space<vmem>>, vector<8x1xf32>
    %4 = vector.broadcast %3 : vector<8x1xf32> to vector<8x256xf32>
    %5 = arith.addf %2, %4 : vector<8x256xf32>
    %cst_5 = arith.constant 0.000000e+00 : f32
    %6 = vector.broadcast %cst_5 : f32 to vector<8x256xf32>
    %7 = arith.cmpf oge, %5, %6 : vector<8x256xf32>
    %cst_6 = arith.constant 2.000000e-01 : f32
    %8 = vector.broadcast %cst_6 : f32 to vector<8x256xf32>
    %9 = arith.mulf %8, %5 : vector<8x256xf32>
    %10 = arith.select %7, %5, %9 : vector<8x256xi1>, vector<8x256xf32>
    %11 = arith.truncf %10 : vector<8x256xf32> to vector<8x256xbf16>
    %c0_7 = arith.constant 0 : index
    %c0_8 = arith.constant 0 : index
    %12 = vector.load %arg5[%c0_7, %c0_8] : memref<8x256xbf16, #tpu.memory_space<vmem>>, vector<8x256xbf16>
    tpu.vector_store %arg5[%c0_7, %c0_8], %11 {strides = array<i32>} : memref<8x256xbf16, #tpu.memory_space<vmem>>, vector<8x256xbf16>,
    return
  }
  func.func @transform_0(%arg0: i32, %arg1: i32) -> (i32, i32) {
    %c0_i32 = arith.constant 0 : i32
    %c0_i32_0 = arith.constant 0 : i32
    return %arg0, %c0_i32 : i32, i32
  }
  func.func @transform_1(%arg0: i32, %arg1: i32) -> (i32, i32) {
    %c0_i32 = arith.constant 0 : i32
    %c0_i32_0 = arith.constant 0 : i32
    return %c0_i32, %arg1 : i32, i32
  }
  func.func @transform_2(%arg0: i32, %arg1: i32) -> (i32, i32) {
    %c0_i32 = arith.constant 0 : i32
    %c0_i32_0 = arith.constant 0 : i32
    return %arg0, %c0_i32 : i32, i32
  }
  func.func @transform_3(%arg0: i32, %arg1: i32) -> (i32, i32) {
    %c0_i32 = arith.constant 0 : i32
    return %arg0, %arg1 : i32, i32
  }
}

module attributes {stable_mosaic.version = 11 : i64} {
  func.func @_mm_t_kernel(%arg0: i32, %arg1: i32, %arg2: memref<16x80xbf16, #tpu.memory_space<vmem>>, %arg3: memref<80x256xbf16, #tpu.memory_space<vmem>>, %arg4: memref<16x1xf32, #tpu.memory_space<vmem>>, %arg5: memref<16x256xbf16, #tpu.memory_space<vmem>>) attributes {dimension_semantics = [#tpu.dimension_semantics<parallel>, #tpu.dimension_semantics<parallel>], iteration_bounds = array<i64: 1, 2>, scalar_prefetch = 0 : i64, scratch_operands = 0 : i64, tpu.core_type = #tpu.core_type<tc>, window_params = [{transform_indices = @transform_0, window_bounds = array<i64: 16, 80>}, {transform_indices = @transform_1, window_bounds = array<i64: 80, 256>}, {transform_indices = @transform_2, window_bounds = array<i64: 16, 1>}, {transform_indices = @transform_3, window_bounds = array<i64: 16, 256>}]} {
    %c0 = arith.constant 0 : index
    %c0_0 = arith.constant 0 : index
    %0 = vector.load %arg2[%c0, %c0_0] : memref<16x80xbf16, #tpu.memory_space<vmem>>, vector<16x80xbf16>
    %c0_1 = arith.constant 0 : index
    %c0_2 = arith.constant 0 : index
    %1 = vector.load %arg3[%c0_1, %c0_2] : memref<80x256xbf16, #tpu.memory_space<vmem>>, vector<80x256xbf16>
    %cst = arith.constant dense<0.000000e+00> : vector<16x256xf32>
    %2 = tpu.matmul %0, %1, %cst {dimension_numbers = #tpu.dot_dimension_numbers<[1], [0], [0], [1], [0, 0, 1, 1], [], []>} : vector<16x80xbf16>, vector<80x256xbf16>, vector<16x256xf32> -> vector<16x256xf32>
    %c0_3 = arith.constant 0 : index
    %c0_4 = arith.constant 0 : index
    %3 = vector.load %arg4[%c0_3, %c0_4] : memref<16x1xf32, #tpu.memory_space<vmem>>, vector<16x1xf32>
    %4 = vector.broadcast %3 : vector<16x1xf32> to vector<16x256xf32>
    %5 = arith.addf %2, %4 : vector<16x256xf32>
    %cst_5 = arith.constant 0.000000e+00 : f32
    %6 = vector.broadcast %cst_5 : f32 to vector<16x256xf32>
    %7 = arith.cmpf oge, %5, %6 : vector<16x256xf32>
    %cst_6 = arith.constant 2.000000e-01 : f32
    %8 = vector.broadcast %cst_6 : f32 to vector<16x256xf32>
    %9 = arith.mulf %8, %5 : vector<16x256xf32>
    %10 = arith.select %7, %5, %9 : vector<16x256xi1>, vector<16x256xf32>
    %11 = arith.truncf %10 : vector<16x256xf32> to vector<16x256xbf16>
    %c0_7 = arith.constant 0 : index
    %c0_8 = arith.constant 0 : index
    %12 = vector.load %arg5[%c0_7, %c0_8] : memref<16x256xbf16, #tpu.memory_space<vmem>>, vector<16x256xbf16>
    tpu.vector_store %arg5[%c0_7, %c0_8], %11 {strides = array<i32>} : memref<16x256xbf16, #tpu.memory_space<vmem>>, vector<16x256xbf16>,
    return
  }
  func.func @transform_0(%arg0: i32, %arg1: i32) -> (i32, i32) {
    %c0_i32 = arith.constant 0 : i32
    %c0_i32_0 = arith.constant 0 : i32
    return %arg0, %c0_i32 : i32, i32
  }
  func.func @transform_1(%arg0: i32, %arg1: i32) -> (i32, i32) {
    %c0_i32 = arith.constant 0 : i32
    %c0_i32_0 = arith.constant 0 : i32
    return %c0_i32, %arg1 : i32, i32
  }
  func.func @transform_2(%arg0: i32, %arg1: i32) -> (i32, i32) {
    %c0_i32 = arith.constant 0 : i32
    %c0_i32_0 = arith.constant 0 : i32
    return %arg0, %c0_i32 : i32, i32
  }
  func.func @transform_3(%arg0: i32, %arg1: i32) -> (i32, i32) {
    %c0_i32 = arith.constant 0 : i32
    return %arg0, %arg1 : i32, i32
  }
}

module attributes {stable_mosaic.version = 11 : i64} {
  func.func @_mm_t_kernel(%arg0: i32, %arg1: i32, %arg2: memref<32x144xbf16, #tpu.memory_space<vmem>>, %arg3: memref<144x128xbf16, #tpu.memory_space<vmem>>, %arg4: memref<32x1xf32, #tpu.memory_space<vmem>>, %arg5: memref<32x128xbf16, #tpu.memory_space<vmem>>) attributes {dimension_semantics = [#tpu.dimension_semantics<parallel>, #tpu.dimension_semantics<parallel>], iteration_bounds = array<i64: 1, 1>, scalar_prefetch = 0 : i64, scratch_operands = 0 : i64, tpu.core_type = #tpu.core_type<tc>, window_params = [{transform_indices = @transform_0, window_bounds = array<i64: 32, 144>}, {transform_indices = @transform_1, window_bounds = array<i64: 144, 128>}, {transform_indices = @transform_2, window_bounds = array<i64: 32, 1>}, {transform_indices = @transform_3, window_bounds = array<i64: 32, 128>}]} {
    %c0 = arith.constant 0 : index
    %c0_0 = arith.constant 0 : index
    %0 = vector.load %arg2[%c0, %c0_0] : memref<32x144xbf16, #tpu.memory_space<vmem>>, vector<32x144xbf16>
    %c0_1 = arith.constant 0 : index
    %c0_2 = arith.constant 0 : index
    %1 = vector.load %arg3[%c0_1, %c0_2] : memref<144x128xbf16, #tpu.memory_space<vmem>>, vector<144x128xbf16>
    %cst = arith.constant dense<0.000000e+00> : vector<32x128xf32>
    %2 = tpu.matmul %0, %1, %cst {dimension_numbers = #tpu.dot_dimension_numbers<[1], [0], [0], [1], [0, 0, 1, 1], [], []>} : vector<32x144xbf16>, vector<144x128xbf16>, vector<32x128xf32> -> vector<32x128xf32>
    %c0_3 = arith.constant 0 : index
    %c0_4 = arith.constant 0 : index
    %3 = vector.load %arg4[%c0_3, %c0_4] : memref<32x1xf32, #tpu.memory_space<vmem>>, vector<32x1xf32>
    %4 = vector.broadcast %3 : vector<32x1xf32> to vector<32x128xf32>
    %5 = arith.addf %2, %4 : vector<32x128xf32>
    %cst_5 = arith.constant 0.000000e+00 : f32
    %6 = vector.broadcast %cst_5 : f32 to vector<32x128xf32>
    %7 = arith.cmpf oge, %5, %6 : vector<32x128xf32>
    %cst_6 = arith.constant 2.000000e-01 : f32
    %8 = vector.broadcast %cst_6 : f32 to vector<32x128xf32>
    %9 = arith.mulf %8, %5 : vector<32x128xf32>
    %10 = arith.select %7, %5, %9 : vector<32x128xi1>, vector<32x128xf32>
    %11 = arith.truncf %10 : vector<32x128xf32> to vector<32x128xbf16>
    %c0_7 = arith.constant 0 : index
    %c0_8 = arith.constant 0 : index
    %12 = vector.load %arg5[%c0_7, %c0_8] : memref<32x128xbf16, #tpu.memory_space<vmem>>, vector<32x128xbf16>
    tpu.vector_store %arg5[%c0_7, %c0_8], %11 {strides = array<i32>} : memref<32x128xbf16, #tpu.memory_space<vmem>>, vector<32x128xbf16>,
    return
  }
  func.func @transform_0(%arg0: i32, %arg1: i32) -> (i32, i32) {
    %c0_i32 = arith.constant 0 : i32
    %c0_i32_0 = arith.constant 0 : i32
    return %arg0, %c0_i32 : i32, i32
  }
  func.func @transform_1(%arg0: i32, %arg1: i32) -> (i32, i32) {
    %c0_i32 = arith.constant 0 : i32
    %c0_i32_0 = arith.constant 0 : i32
    return %c0_i32, %arg1 : i32, i32
  }
  func.func @transform_2(%arg0: i32, %arg1: i32) -> (i32, i32) {
    %c0_i32 = arith.constant 0 : i32
    %c0_i32_0 = arith.constant 0 : i32
    return %arg0, %c0_i32 : i32, i32
  }
  func.func @transform_3(%arg0: i32, %arg1: i32) -> (i32, i32) {
    %c0_i32 = arith.constant 0 : i32
    return %arg0, %arg1 : i32, i32
  }
}

module attributes {stable_mosaic.version = 11 : i64} {
  func.func @_mm_t_kernel(%arg0: i32, %arg1: i32, %arg2: memref<32x64xbf16, #tpu.memory_space<vmem>>, %arg3: memref<64x128xbf16, #tpu.memory_space<vmem>>, %arg4: memref<32x1xf32, #tpu.memory_space<vmem>>, %arg5: memref<32x128xbf16, #tpu.memory_space<vmem>>) attributes {dimension_semantics = [#tpu.dimension_semantics<parallel>, #tpu.dimension_semantics<parallel>], iteration_bounds = array<i64: 1, 1>, scalar_prefetch = 0 : i64, scratch_operands = 0 : i64, tpu.core_type = #tpu.core_type<tc>, window_params = [{transform_indices = @transform_0, window_bounds = array<i64: 32, 64>}, {transform_indices = @transform_1, window_bounds = array<i64: 64, 128>}, {transform_indices = @transform_2, window_bounds = array<i64: 32, 1>}, {transform_indices = @transform_3, window_bounds = array<i64: 32, 128>}]} {
    %c0 = arith.constant 0 : index
    %c0_0 = arith.constant 0 : index
    %0 = vector.load %arg2[%c0, %c0_0] : memref<32x64xbf16, #tpu.memory_space<vmem>>, vector<32x64xbf16>
    %c0_1 = arith.constant 0 : index
    %c0_2 = arith.constant 0 : index
    %1 = vector.load %arg3[%c0_1, %c0_2] : memref<64x128xbf16, #tpu.memory_space<vmem>>, vector<64x128xbf16>
    %cst = arith.constant dense<0.000000e+00> : vector<32x128xf32>
    %2 = tpu.matmul %0, %1, %cst {dimension_numbers = #tpu.dot_dimension_numbers<[1], [0], [0], [1], [0, 0, 1, 1], [], []>} : vector<32x64xbf16>, vector<64x128xbf16>, vector<32x128xf32> -> vector<32x128xf32>
    %c0_3 = arith.constant 0 : index
    %c0_4 = arith.constant 0 : index
    %3 = vector.load %arg4[%c0_3, %c0_4] : memref<32x1xf32, #tpu.memory_space<vmem>>, vector<32x1xf32>
    %4 = vector.broadcast %3 : vector<32x1xf32> to vector<32x128xf32>
    %5 = arith.addf %2, %4 : vector<32x128xf32>
    %6 = arith.truncf %5 : vector<32x128xf32> to vector<32x128xbf16>
    %c0_5 = arith.constant 0 : index
    %c0_6 = arith.constant 0 : index
    %7 = vector.load %arg5[%c0_5, %c0_6] : memref<32x128xbf16, #tpu.memory_space<vmem>>, vector<32x128xbf16>
    tpu.vector_store %arg5[%c0_5, %c0_6], %6 {strides = array<i32>} : memref<32x128xbf16, #tpu.memory_space<vmem>>, vector<32x128xbf16>,
    return
  }
  func.func @transform_0(%arg0: i32, %arg1: i32) -> (i32, i32) {
    %c0_i32 = arith.constant 0 : i32
    %c0_i32_0 = arith.constant 0 : i32
    return %arg0, %c0_i32 : i32, i32
  }
  func.func @transform_1(%arg0: i32, %arg1: i32) -> (i32, i32) {
    %c0_i32 = arith.constant 0 : i32
    %c0_i32_0 = arith.constant 0 : i32
    return %c0_i32, %arg1 : i32, i32
  }
  func.func @transform_2(%arg0: i32, %arg1: i32) -> (i32, i32) {
    %c0_i32 = arith.constant 0 : i32
    %c0_i32_0 = arith.constant 0 : i32
    return %arg0, %c0_i32 : i32, i32
  }
  func.func @transform_3(%arg0: i32, %arg1: i32) -> (i32, i32) {
    %c0_i32 = arith.constant 0 : i32
    return %arg0, %arg1 : i32, i32
  }
}

module attributes {stable_mosaic.version = 11 : i64} {
  func.func @_mm_t_kernel(%arg0: i32, %arg1: i32, %arg2: memref<32x64xbf16, #tpu.memory_space<vmem>>, %arg3: memref<64x128xbf16, #tpu.memory_space<vmem>>, %arg4: memref<32x1xf32, #tpu.memory_space<vmem>>, %arg5: memref<32x128xf32, #tpu.memory_space<vmem>>) attributes {dimension_semantics = [#tpu.dimension_semantics<parallel>, #tpu.dimension_semantics<parallel>], iteration_bounds = array<i64: 1, 1>, scalar_prefetch = 0 : i64, scratch_operands = 0 : i64, tpu.core_type = #tpu.core_type<tc>, window_params = [{transform_indices = @transform_0, window_bounds = array<i64: 32, 64>}, {transform_indices = @transform_1, window_bounds = array<i64: 64, 128>}, {transform_indices = @transform_2, window_bounds = array<i64: 32, 1>}, {transform_indices = @transform_3, window_bounds = array<i64: 32, 128>}]} {
    %c0 = arith.constant 0 : index
    %c0_0 = arith.constant 0 : index
    %0 = vector.load %arg2[%c0, %c0_0] : memref<32x64xbf16, #tpu.memory_space<vmem>>, vector<32x64xbf16>
    %c0_1 = arith.constant 0 : index
    %c0_2 = arith.constant 0 : index
    %1 = vector.load %arg3[%c0_1, %c0_2] : memref<64x128xbf16, #tpu.memory_space<vmem>>, vector<64x128xbf16>
    %cst = arith.constant dense<0.000000e+00> : vector<32x128xf32>
    %2 = tpu.matmul %0, %1, %cst {dimension_numbers = #tpu.dot_dimension_numbers<[1], [0], [0], [1], [0, 0, 1, 1], [], []>} : vector<32x64xbf16>, vector<64x128xbf16>, vector<32x128xf32> -> vector<32x128xf32>
    %c0_3 = arith.constant 0 : index
    %c0_4 = arith.constant 0 : index
    %3 = vector.load %arg4[%c0_3, %c0_4] : memref<32x1xf32, #tpu.memory_space<vmem>>, vector<32x1xf32>
    %4 = vector.broadcast %3 : vector<32x1xf32> to vector<32x128xf32>
    %5 = arith.addf %2, %4 : vector<32x128xf32>
    %c0_5 = arith.constant 0 : index
    %c0_6 = arith.constant 0 : index
    %6 = vector.load %arg5[%c0_5, %c0_6] : memref<32x128xf32, #tpu.memory_space<vmem>>, vector<32x128xf32>
    tpu.vector_store %arg5[%c0_5, %c0_6], %5 {strides = array<i32>} : memref<32x128xf32, #tpu.memory_space<vmem>>, vector<32x128xf32>,
    return
  }
  func.func @transform_0(%arg0: i32, %arg1: i32) -> (i32, i32) {
    %c0_i32 = arith.constant 0 : i32
    %c0_i32_0 = arith.constant 0 : i32
    return %arg0, %c0_i32 : i32, i32
  }
  func.func @transform_1(%arg0: i32, %arg1: i32) -> (i32, i32) {
    %c0_i32 = arith.constant 0 : i32
    %c0_i32_0 = arith.constant 0 : i32
    return %c0_i32, %arg1 : i32, i32
  }
  func.func @transform_2(%arg0: i32, %arg1: i32) -> (i32, i32) {
    %c0_i32 = arith.constant 0 : i32
    %c0_i32_0 = arith.constant 0 : i32
    return %arg0, %c0_i32 : i32, i32
  }
  func.func @transform_3(%arg0: i32, %arg1: i32) -> (i32, i32) {
    %c0_i32 = arith.constant 0 : i32
    return %arg0, %arg1 : i32, i32
  }
}

module attributes {stable_mosaic.version = 11 : i64} {
  func.func @_mm_t_kernel(%arg0: i32, %arg1: i32, %arg2: memref<32x576xbf16, #tpu.memory_space<vmem>>, %arg3: memref<576x128xbf16, #tpu.memory_space<vmem>>, %arg4: memref<32x1xf32, #tpu.memory_space<vmem>>, %arg5: memref<32x128xbf16, #tpu.memory_space<vmem>>) attributes {dimension_semantics = [#tpu.dimension_semantics<parallel>, #tpu.dimension_semantics<parallel>], iteration_bounds = array<i64: 1, 1>, scalar_prefetch = 0 : i64, scratch_operands = 0 : i64, tpu.core_type = #tpu.core_type<tc>, window_params = [{transform_indices = @transform_0, window_bounds = array<i64: 32, 576>}, {transform_indices = @transform_1, window_bounds = array<i64: 576, 128>}, {transform_indices = @transform_2, window_bounds = array<i64: 32, 1>}, {transform_indices = @transform_3, window_bounds = array<i64: 32, 128>}]} {
    %c0 = arith.constant 0 : index
    %c0_0 = arith.constant 0 : index
    %0 = vector.load %arg2[%c0, %c0_0] : memref<32x576xbf16, #tpu.memory_space<vmem>>, vector<32x576xbf16>
    %c0_1 = arith.constant 0 : index
    %c0_2 = arith.constant 0 : index
    %1 = vector.load %arg3[%c0_1, %c0_2] : memref<576x128xbf16, #tpu.memory_space<vmem>>, vector<576x128xbf16>
    %cst = arith.constant dense<0.000000e+00> : vector<32x128xf32>
    %2 = tpu.matmul %0, %1, %cst {dimension_numbers = #tpu.dot_dimension_numbers<[1], [0], [0], [1], [0, 0, 1, 1], [], []>} : vector<32x576xbf16>, vector<576x128xbf16>, vector<32x128xf32> -> vector<32x128xf32>
    %c0_3 = arith.constant 0 : index
    %c0_4 = arith.constant 0 : index
    %3 = vector.load %arg4[%c0_3, %c0_4] : memref<32x1xf32, #tpu.memory_space<vmem>>, vector<32x1xf32>
    %4 = vector.broadcast %3 : vector<32x1xf32> to vector<32x128xf32>
    %5 = arith.addf %2, %4 : vector<32x128xf32>
    %cst_5 = arith.constant 0.000000e+00 : f32
    %6 = vector.broadcast %cst_5 : f32 to vector<32x128xf32>
    %7 = arith.cmpf oge, %5, %6 : vector<32x128xf32>
    %cst_6 = arith.constant 2.000000e-01 : f32
    %8 = vector.broadcast %cst_6 : f32 to vector<32x128xf32>
    %9 = arith.mulf %8, %5 : vector<32x128xf32>
    %10 = arith.select %7, %5, %9 : vector<32x128xi1>, vector<32x128xf32>
    %11 = arith.truncf %10 : vector<32x128xf32> to vector<32x128xbf16>
    %c0_7 = arith.constant 0 : index
    %c0_8 = arith.constant 0 : index
    %12 = vector.load %arg5[%c0_7, %c0_8] : memref<32x128xbf16, #tpu.memory_space<vmem>>, vector<32x128xbf16>
    tpu.vector_store %arg5[%c0_7, %c0_8], %11 {strides = array<i32>} : memref<32x128xbf16, #tpu.memory_space<vmem>>, vector<32x128xbf16>,
    return
  }
  func.func @transform_0(%arg0: i32, %arg1: i32) -> (i32, i32) {
    %c0_i32 = arith.constant 0 : i32
    %c0_i32_0 = arith.constant 0 : i32
    return %arg0, %c0_i32 : i32, i32
  }
  func.func @transform_1(%arg0: i32, %arg1: i32) -> (i32, i32) {
    %c0_i32 = arith.constant 0 : i32
    %c0_i32_0 = arith.constant 0 : i32
    return %c0_i32, %arg1 : i32, i32
  }
  func.func @transform_2(%arg0: i32, %arg1: i32) -> (i32, i32) {
    %c0_i32 = arith.constant 0 : i32
    %c0_i32_0 = arith.constant 0 : i32
    return %arg0, %c0_i32 : i32, i32
  }
  func.func @transform_3(%arg0: i32, %arg1: i32) -> (i32, i32) {
    %c0_i32 = arith.constant 0 : i32
    return %arg0, %arg1 : i32, i32
  }
}

module attributes {stable_mosaic.version = 11 : i64} {
  func.func @_mm_t_kernel(%arg0: i32, %arg1: i32, %arg2: memref<16x32xbf16, #tpu.memory_space<vmem>>, %arg3: memref<32x256xbf16, #tpu.memory_space<vmem>>, %arg4: memref<16x1xf32, #tpu.memory_space<vmem>>, %arg5: memref<16x256xbf16, #tpu.memory_space<vmem>>) attributes {dimension_semantics = [#tpu.dimension_semantics<parallel>, #tpu.dimension_semantics<parallel>], iteration_bounds = array<i64: 1, 2>, scalar_prefetch = 0 : i64, scratch_operands = 0 : i64, tpu.core_type = #tpu.core_type<tc>, window_params = [{transform_indices = @transform_0, window_bounds = array<i64: 16, 32>}, {transform_indices = @transform_1, window_bounds = array<i64: 32, 256>}, {transform_indices = @transform_2, window_bounds = array<i64: 16, 1>}, {transform_indices = @transform_3, window_bounds = array<i64: 16, 256>}]} {
    %c0 = arith.constant 0 : index
    %c0_0 = arith.constant 0 : index
    %0 = vector.load %arg2[%c0, %c0_0] : memref<16x32xbf16, #tpu.memory_space<vmem>>, vector<16x32xbf16>
    %c0_1 = arith.constant 0 : index
    %c0_2 = arith.constant 0 : index
    %1 = vector.load %arg3[%c0_1, %c0_2] : memref<32x256xbf16, #tpu.memory_space<vmem>>, vector<32x256xbf16>
    %cst = arith.constant dense<0.000000e+00> : vector<16x256xf32>
    %2 = tpu.matmul %0, %1, %cst {dimension_numbers = #tpu.dot_dimension_numbers<[1], [0], [0], [1], [0, 0, 1, 1], [], []>} : vector<16x32xbf16>, vector<32x256xbf16>, vector<16x256xf32> -> vector<16x256xf32>
    %c0_3 = arith.constant 0 : index
    %c0_4 = arith.constant 0 : index
    %3 = vector.load %arg4[%c0_3, %c0_4] : memref<16x1xf32, #tpu.memory_space<vmem>>, vector<16x1xf32>
    %4 = vector.broadcast %3 : vector<16x1xf32> to vector<16x256xf32>
    %5 = arith.addf %2, %4 : vector<16x256xf32>
    %6 = arith.truncf %5 : vector<16x256xf32> to vector<16x256xbf16>
    %c0_5 = arith.constant 0 : index
    %c0_6 = arith.constant 0 : index
    %7 = vector.load %arg5[%c0_5, %c0_6] : memref<16x256xbf16, #tpu.memory_space<vmem>>, vector<16x256xbf16>
    tpu.vector_store %arg5[%c0_5, %c0_6], %6 {strides = array<i32>} : memref<16x256xbf16, #tpu.memory_space<vmem>>, vector<16x256xbf16>,
    return
  }
  func.func @transform_0(%arg0: i32, %arg1: i32) -> (i32, i32) {
    %c0_i32 = arith.constant 0 : i32
    %c0_i32_0 = arith.constant 0 : i32
    return %arg0, %c0_i32 : i32, i32
  }
  func.func @transform_1(%arg0: i32, %arg1: i32) -> (i32, i32) {
    %c0_i32 = arith.constant 0 : i32
    %c0_i32_0 = arith.constant 0 : i32
    return %c0_i32, %arg1 : i32, i32
  }
  func.func @transform_2(%arg0: i32, %arg1: i32) -> (i32, i32) {
    %c0_i32 = arith.constant 0 : i32
    %c0_i32_0 = arith.constant 0 : i32
    return %arg0, %c0_i32 : i32, i32
  }
  func.func @transform_3(%arg0: i32, %arg1: i32) -> (i32, i32) {
    %c0_i32 = arith.constant 0 : i32
    return %arg0, %arg1 : i32, i32
  }
}

module attributes {stable_mosaic.version = 11 : i64} {
  func.func @_mm_t_kernel(%arg0: i32, %arg1: i32, %arg2: memref<16x32xbf16, #tpu.memory_space<vmem>>, %arg3: memref<32x256xbf16, #tpu.memory_space<vmem>>, %arg4: memref<16x1xf32, #tpu.memory_space<vmem>>, %arg5: memref<16x256xf32, #tpu.memory_space<vmem>>) attributes {dimension_semantics = [#tpu.dimension_semantics<parallel>, #tpu.dimension_semantics<parallel>], iteration_bounds = array<i64: 1, 2>, scalar_prefetch = 0 : i64, scratch_operands = 0 : i64, tpu.core_type = #tpu.core_type<tc>, window_params = [{transform_indices = @transform_0, window_bounds = array<i64: 16, 32>}, {transform_indices = @transform_1, window_bounds = array<i64: 32, 256>}, {transform_indices = @transform_2, window_bounds = array<i64: 16, 1>}, {transform_indices = @transform_3, window_bounds = array<i64: 16, 256>}]} {
    %c0 = arith.constant 0 : index
    %c0_0 = arith.constant 0 : index
    %0 = vector.load %arg2[%c0, %c0_0] : memref<16x32xbf16, #tpu.memory_space<vmem>>, vector<16x32xbf16>
    %c0_1 = arith.constant 0 : index
    %c0_2 = arith.constant 0 : index
    %1 = vector.load %arg3[%c0_1, %c0_2] : memref<32x256xbf16, #tpu.memory_space<vmem>>, vector<32x256xbf16>
    %cst = arith.constant dense<0.000000e+00> : vector<16x256xf32>
    %2 = tpu.matmul %0, %1, %cst {dimension_numbers = #tpu.dot_dimension_numbers<[1], [0], [0], [1], [0, 0, 1, 1], [], []>} : vector<16x32xbf16>, vector<32x256xbf16>, vector<16x256xf32> -> vector<16x256xf32>
    %c0_3 = arith.constant 0 : index
    %c0_4 = arith.constant 0 : index
    %3 = vector.load %arg4[%c0_3, %c0_4] : memref<16x1xf32, #tpu.memory_space<vmem>>, vector<16x1xf32>
    %4 = vector.broadcast %3 : vector<16x1xf32> to vector<16x256xf32>
    %5 = arith.addf %2, %4 : vector<16x256xf32>
    %c0_5 = arith.constant 0 : index
    %c0_6 = arith.constant 0 : index
    %6 = vector.load %arg5[%c0_5, %c0_6] : memref<16x256xf32, #tpu.memory_space<vmem>>, vector<16x256xf32>
    tpu.vector_store %arg5[%c0_5, %c0_6], %5 {strides = array<i32>} : memref<16x256xf32, #tpu.memory_space<vmem>>, vector<16x256xf32>,
    return
  }
  func.func @transform_0(%arg0: i32, %arg1: i32) -> (i32, i32) {
    %c0_i32 = arith.constant 0 : i32
    %c0_i32_0 = arith.constant 0 : i32
    return %arg0, %c0_i32 : i32, i32
  }
  func.func @transform_1(%arg0: i32, %arg1: i32) -> (i32, i32) {
    %c0_i32 = arith.constant 0 : i32
    %c0_i32_0 = arith.constant 0 : i32
    return %c0_i32, %arg1 : i32, i32
  }
  func.func @transform_2(%arg0: i32, %arg1: i32) -> (i32, i32) {
    %c0_i32 = arith.constant 0 : i32
    %c0_i32_0 = arith.constant 0 : i32
    return %arg0, %c0_i32 : i32, i32
  }
  func.func @transform_3(%arg0: i32, %arg1: i32) -> (i32, i32) {
    %c0_i32 = arith.constant 0 : i32
    return %arg0, %arg1 : i32, i32
  }
}

module attributes {stable_mosaic.version = 11 : i64} {
  func.func @_mm_t_kernel(%arg0: i32, %arg1: i32, %arg2: memref<16x288xbf16, #tpu.memory_space<vmem>>, %arg3: memref<288x256xbf16, #tpu.memory_space<vmem>>, %arg4: memref<16x1xf32, #tpu.memory_space<vmem>>, %arg5: memref<16x256xbf16, #tpu.memory_space<vmem>>) attributes {dimension_semantics = [#tpu.dimension_semantics<parallel>, #tpu.dimension_semantics<parallel>], iteration_bounds = array<i64: 1, 2>, scalar_prefetch = 0 : i64, scratch_operands = 0 : i64, tpu.core_type = #tpu.core_type<tc>, window_params = [{transform_indices = @transform_0, window_bounds = array<i64: 16, 288>}, {transform_indices = @transform_1, window_bounds = array<i64: 288, 256>}, {transform_indices = @transform_2, window_bounds = array<i64: 16, 1>}, {transform_indices = @transform_3, window_bounds = array<i64: 16, 256>}]} {
    %c0 = arith.constant 0 : index
    %c0_0 = arith.constant 0 : index
    %0 = vector.load %arg2[%c0, %c0_0] : memref<16x288xbf16, #tpu.memory_space<vmem>>, vector<16x288xbf16>
    %c0_1 = arith.constant 0 : index
    %c0_2 = arith.constant 0 : index
    %1 = vector.load %arg3[%c0_1, %c0_2] : memref<288x256xbf16, #tpu.memory_space<vmem>>, vector<288x256xbf16>
    %cst = arith.constant dense<0.000000e+00> : vector<16x256xf32>
    %2 = tpu.matmul %0, %1, %cst {dimension_numbers = #tpu.dot_dimension_numbers<[1], [0], [0], [1], [0, 0, 1, 1], [], []>} : vector<16x288xbf16>, vector<288x256xbf16>, vector<16x256xf32> -> vector<16x256xf32>
    %c0_3 = arith.constant 0 : index
    %c0_4 = arith.constant 0 : index
    %3 = vector.load %arg4[%c0_3, %c0_4] : memref<16x1xf32, #tpu.memory_space<vmem>>, vector<16x1xf32>
    %4 = vector.broadcast %3 : vector<16x1xf32> to vector<16x256xf32>
    %5 = arith.addf %2, %4 : vector<16x256xf32>
    %cst_5 = arith.constant 0.000000e+00 : f32
    %6 = vector.broadcast %cst_5 : f32 to vector<16x256xf32>
    %7 = arith.cmpf oge, %5, %6 : vector<16x256xf32>
    %cst_6 = arith.constant 2.000000e-01 : f32
    %8 = vector.broadcast %cst_6 : f32 to vector<16x256xf32>
    %9 = arith.mulf %8, %5 : vector<16x256xf32>
    %10 = arith.select %7, %5, %9 : vector<16x256xi1>, vector<16x256xf32>
    %11 = arith.truncf %10 : vector<16x256xf32> to vector<16x256xbf16>
    %c0_7 = arith.constant 0 : index
    %c0_8 = arith.constant 0 : index
    %12 = vector.load %arg5[%c0_7, %c0_8] : memref<16x256xbf16, #tpu.memory_space<vmem>>, vector<16x256xbf16>
    tpu.vector_store %arg5[%c0_7, %c0_8], %11 {strides = array<i32>} : memref<16x256xbf16, #tpu.memory_space<vmem>>, vector<16x256xbf16>,
    return
  }
  func.func @transform_0(%arg0: i32, %arg1: i32) -> (i32, i32) {
    %c0_i32 = arith.constant 0 : i32
    %c0_i32_0 = arith.constant 0 : i32
    return %arg0, %c0_i32 : i32, i32
  }
  func.func @transform_1(%arg0: i32, %arg1: i32) -> (i32, i32) {
    %c0_i32 = arith.constant 0 : i32
    %c0_i32_0 = arith.constant 0 : i32
    return %c0_i32, %arg1 : i32, i32
  }
  func.func @transform_2(%arg0: i32, %arg1: i32) -> (i32, i32) {
    %c0_i32 = arith.constant 0 : i32
    %c0_i32_0 = arith.constant 0 : i32
    return %arg0, %c0_i32 : i32, i32
  }
  func.func @transform_3(%arg0: i32, %arg1: i32) -> (i32, i32) {
    %c0_i32 = arith.constant 0 : i32
    return %arg0, %arg1 : i32, i32
  }
}

module attributes {stable_mosaic.version = 11 : i64} {
  func.func @_mm_t_kernel(%arg0: i32, %arg1: i32, %arg2: memref<8x16xbf16, #tpu.memory_space<vmem>>, %arg3: memref<16x256xbf16, #tpu.memory_space<vmem>>, %arg4: memref<8x1xf32, #tpu.memory_space<vmem>>, %arg5: memref<8x256xbf16, #tpu.memory_space<vmem>>) attributes {dimension_semantics = [#tpu.dimension_semantics<parallel>, #tpu.dimension_semantics<parallel>], iteration_bounds = array<i64: 1, 8>, scalar_prefetch = 0 : i64, scratch_operands = 0 : i64, tpu.core_type = #tpu.core_type<tc>, window_params = [{transform_indices = @transform_0, window_bounds = array<i64: 8, 16>}, {transform_indices = @transform_1, window_bounds = array<i64: 16, 256>}, {transform_indices = @transform_2, window_bounds = array<i64: 8, 1>}, {transform_indices = @transform_3, window_bounds = array<i64: 8, 256>}]} {
    %c0 = arith.constant 0 : index
    %c0_0 = arith.constant 0 : index
    %0 = vector.load %arg2[%c0, %c0_0] : memref<8x16xbf16, #tpu.memory_space<vmem>>, vector<8x16xbf16>
    %c0_1 = arith.constant 0 : index
    %c0_2 = arith.constant 0 : index
    %1 = vector.load %arg3[%c0_1, %c0_2] : memref<16x256xbf16, #tpu.memory_space<vmem>>, vector<16x256xbf16>
    %cst = arith.constant dense<0.000000e+00> : vector<8x256xf32>
    %2 = tpu.matmul %0, %1, %cst {dimension_numbers = #tpu.dot_dimension_numbers<[1], [0], [0], [1], [0, 0, 1, 1], [], []>} : vector<8x16xbf16>, vector<16x256xbf16>, vector<8x256xf32> -> vector<8x256xf32>
    %c0_3 = arith.constant 0 : index
    %c0_4 = arith.constant 0 : index
    %3 = vector.load %arg4[%c0_3, %c0_4] : memref<8x1xf32, #tpu.memory_space<vmem>>, vector<8x1xf32>
    %4 = vector.broadcast %3 : vector<8x1xf32> to vector<8x256xf32>
    %5 = arith.addf %2, %4 : vector<8x256xf32>
    %6 = arith.truncf %5 : vector<8x256xf32> to vector<8x256xbf16>
    %c0_5 = arith.constant 0 : index
    %c0_6 = arith.constant 0 : index
    %7 = vector.load %arg5[%c0_5, %c0_6] : memref<8x256xbf16, #tpu.memory_space<vmem>>, vector<8x256xbf16>
    tpu.vector_store %arg5[%c0_5, %c0_6], %6 {strides = array<i32>} : memref<8x256xbf16, #tpu.memory_space<vmem>>, vector<8x256xbf16>,
    return
  }
  func.func @transform_0(%arg0: i32, %arg1: i32) -> (i32, i32) {
    %c0_i32 = arith.constant 0 : i32
    %c0_i32_0 = arith.constant 0 : i32
    return %arg0, %c0_i32 : i32, i32
  }
  func.func @transform_1(%arg0: i32, %arg1: i32) -> (i32, i32) {
    %c0_i32 = arith.constant 0 : i32
    %c0_i32_0 = arith.constant 0 : i32
    return %c0_i32, %arg1 : i32, i32
  }
  func.func @transform_2(%arg0: i32, %arg1: i32) -> (i32, i32) {
    %c0_i32 = arith.constant 0 : i32
    %c0_i32_0 = arith.constant 0 : i32
    return %arg0, %c0_i32 : i32, i32
  }
  func.func @transform_3(%arg0: i32, %arg1: i32) -> (i32, i32) {
    %c0_i32 = arith.constant 0 : i32
    return %arg0, %arg1 : i32, i32
  }
}

module attributes {stable_mosaic.version = 11 : i64} {
  func.func @_mm_t_kernel(%arg0: i32, %arg1: i32, %arg2: memref<8x16xbf16, #tpu.memory_space<vmem>>, %arg3: memref<16x256xbf16, #tpu.memory_space<vmem>>, %arg4: memref<8x1xf32, #tpu.memory_space<vmem>>, %arg5: memref<8x256xf32, #tpu.memory_space<vmem>>) attributes {dimension_semantics = [#tpu.dimension_semantics<parallel>, #tpu.dimension_semantics<parallel>], iteration_bounds = array<i64: 1, 8>, scalar_prefetch = 0 : i64, scratch_operands = 0 : i64, tpu.core_type = #tpu.core_type<tc>, window_params = [{transform_indices = @transform_0, window_bounds = array<i64: 8, 16>}, {transform_indices = @transform_1, window_bounds = array<i64: 16, 256>}, {transform_indices = @transform_2, window_bounds = array<i64: 8, 1>}, {transform_indices = @transform_3, window_bounds = array<i64: 8, 256>}]} {
    %c0 = arith.constant 0 : index
    %c0_0 = arith.constant 0 : index
    %0 = vector.load %arg2[%c0, %c0_0] : memref<8x16xbf16, #tpu.memory_space<vmem>>, vector<8x16xbf16>
    %c0_1 = arith.constant 0 : index
    %c0_2 = arith.constant 0 : index
    %1 = vector.load %arg3[%c0_1, %c0_2] : memref<16x256xbf16, #tpu.memory_space<vmem>>, vector<16x256xbf16>
    %cst = arith.constant dense<0.000000e+00> : vector<8x256xf32>
    %2 = tpu.matmul %0, %1, %cst {dimension_numbers = #tpu.dot_dimension_numbers<[1], [0], [0], [1], [0, 0, 1, 1], [], []>} : vector<8x16xbf16>, vector<16x256xbf16>, vector<8x256xf32> -> vector<8x256xf32>
    %c0_3 = arith.constant 0 : index
    %c0_4 = arith.constant 0 : index
    %3 = vector.load %arg4[%c0_3, %c0_4] : memref<8x1xf32, #tpu.memory_space<vmem>>, vector<8x1xf32>
    %4 = vector.broadcast %3 : vector<8x1xf32> to vector<8x256xf32>
    %5 = arith.addf %2, %4 : vector<8x256xf32>
    %c0_5 = arith.constant 0 : index
    %c0_6 = arith.constant 0 : index
    %6 = vector.load %arg5[%c0_5, %c0_6] : memref<8x256xf32, #tpu.memory_space<vmem>>, vector<8x256xf32>
    tpu.vector_store %arg5[%c0_5, %c0_6], %5 {strides = array<i32>} : memref<8x256xf32, #tpu.memory_space<vmem>>, vector<8x256xf32>,
    return
  }
  func.func @transform_0(%arg0: i32, %arg1: i32) -> (i32, i32) {
    %c0_i32 = arith.constant 0 : i32
    %c0_i32_0 = arith.constant 0 : i32
    return %arg0, %c0_i32 : i32, i32
  }
  func.func @transform_1(%arg0: i32, %arg1: i32) -> (i32, i32) {
    %c0_i32 = arith.constant 0 : i32
    %c0_i32_0 = arith.constant 0 : i32
    return %c0_i32, %arg1 : i32, i32
  }
  func.func @transform_2(%arg0: i32, %arg1: i32) -> (i32, i32) {
    %c0_i32 = arith.constant 0 : i32
    %c0_i32_0 = arith.constant 0 : i32
    return %arg0, %c0_i32 : i32, i32
  }
  func.func @transform_3(%arg0: i32, %arg1: i32) -> (i32, i32) {
    %c0_i32 = arith.constant 0 : i32
    return %arg0, %arg1 : i32, i32
  }
}

module attributes {stable_mosaic.version = 11 : i64} {
  func.func @_mm_t_kernel(%arg0: i32, %arg1: i32, %arg2: memref<8x144xbf16, #tpu.memory_space<vmem>>, %arg3: memref<144x256xbf16, #tpu.memory_space<vmem>>, %arg4: memref<8x1xf32, #tpu.memory_space<vmem>>, %arg5: memref<8x256xbf16, #tpu.memory_space<vmem>>) attributes {dimension_semantics = [#tpu.dimension_semantics<parallel>, #tpu.dimension_semantics<parallel>], iteration_bounds = array<i64: 1, 8>, scalar_prefetch = 0 : i64, scratch_operands = 0 : i64, tpu.core_type = #tpu.core_type<tc>, window_params = [{transform_indices = @transform_0, window_bounds = array<i64: 8, 144>}, {transform_indices = @transform_1, window_bounds = array<i64: 144, 256>}, {transform_indices = @transform_2, window_bounds = array<i64: 8, 1>}, {transform_indices = @transform_3, window_bounds = array<i64: 8, 256>}]} {
    %c0 = arith.constant 0 : index
    %c0_0 = arith.constant 0 : index
    %0 = vector.load %arg2[%c0, %c0_0] : memref<8x144xbf16, #tpu.memory_space<vmem>>, vector<8x144xbf16>
    %c0_1 = arith.constant 0 : index
    %c0_2 = arith.constant 0 : index
    %1 = vector.load %arg3[%c0_1, %c0_2] : memref<144x256xbf16, #tpu.memory_space<vmem>>, vector<144x256xbf16>
    %cst = arith.constant dense<0.000000e+00> : vector<8x256xf32>
    %2 = tpu.matmul %0, %1, %cst {dimension_numbers = #tpu.dot_dimension_numbers<[1], [0], [0], [1], [0, 0, 1, 1], [], []>} : vector<8x144xbf16>, vector<144x256xbf16>, vector<8x256xf32> -> vector<8x256xf32>
    %c0_3 = arith.constant 0 : index
    %c0_4 = arith.constant 0 : index
    %3 = vector.load %arg4[%c0_3, %c0_4] : memref<8x1xf32, #tpu.memory_space<vmem>>, vector<8x1xf32>
    %4 = vector.broadcast %3 : vector<8x1xf32> to vector<8x256xf32>
    %5 = arith.addf %2, %4 : vector<8x256xf32>
    %cst_5 = arith.constant 0.000000e+00 : f32
    %6 = vector.broadcast %cst_5 : f32 to vector<8x256xf32>
    %7 = arith.cmpf oge, %5, %6 : vector<8x256xf32>
    %cst_6 = arith.constant 2.000000e-01 : f32
    %8 = vector.broadcast %cst_6 : f32 to vector<8x256xf32>
    %9 = arith.mulf %8, %5 : vector<8x256xf32>
    %10 = arith.select %7, %5, %9 : vector<8x256xi1>, vector<8x256xf32>
    %11 = arith.truncf %10 : vector<8x256xf32> to vector<8x256xbf16>
    %c0_7 = arith.constant 0 : index
    %c0_8 = arith.constant 0 : index
    %12 = vector.load %arg5[%c0_7, %c0_8] : memref<8x256xbf16, #tpu.memory_space<vmem>>, vector<8x256xbf16>
    tpu.vector_store %arg5[%c0_7, %c0_8], %11 {strides = array<i32>} : memref<8x256xbf16, #tpu.memory_space<vmem>>, vector<8x256xbf16>,
    return
  }
  func.func @transform_0(%arg0: i32, %arg1: i32) -> (i32, i32) {
    %c0_i32 = arith.constant 0 : i32
    %c0_i32_0 = arith.constant 0 : i32
    return %arg0, %c0_i32 : i32, i32
  }
  func.func @transform_1(%arg0: i32, %arg1: i32) -> (i32, i32) {
    %c0_i32 = arith.constant 0 : i32
    %c0_i32_0 = arith.constant 0 : i32
    return %c0_i32, %arg1 : i32, i32
  }
  func.func @transform_2(%arg0: i32, %arg1: i32) -> (i32, i32) {
    %c0_i32 = arith.constant 0 : i32
    %c0_i32_0 = arith.constant 0 : i32
    return %arg0, %c0_i32 : i32, i32
  }
  func.func @transform_3(%arg0: i32, %arg1: i32) -> (i32, i32) {
    %c0_i32 = arith.constant 0 : i32
    return %arg0, %arg1 : i32, i32
  }
}

module attributes {stable_mosaic.version = 11 : i64} {
  func.func @_mm_t_kernel(%arg0: i32, %arg1: i32, %arg2: memref<8x80xbf16, #tpu.memory_space<vmem>>, %arg3: memref<80x256xbf16, #tpu.memory_space<vmem>>, %arg4: memref<8x1xf32, #tpu.memory_space<vmem>>, %arg5: memref<8x256xbf16, #tpu.memory_space<vmem>>) attributes {dimension_semantics = [#tpu.dimension_semantics<parallel>, #tpu.dimension_semantics<parallel>], iteration_bounds = array<i64: 1, 8>, scalar_prefetch = 0 : i64, scratch_operands = 0 : i64, tpu.core_type = #tpu.core_type<tc>, window_params = [{transform_indices = @transform_0, window_bounds = array<i64: 8, 80>}, {transform_indices = @transform_1, window_bounds = array<i64: 80, 256>}, {transform_indices = @transform_2, window_bounds = array<i64: 8, 1>}, {transform_indices = @transform_3, window_bounds = array<i64: 8, 256>}]} {
    %c0 = arith.constant 0 : index
    %c0_0 = arith.constant 0 : index
    %0 = vector.load %arg2[%c0, %c0_0] : memref<8x80xbf16, #tpu.memory_space<vmem>>, vector<8x80xbf16>
    %c0_1 = arith.constant 0 : index
    %c0_2 = arith.constant 0 : index
    %1 = vector.load %arg3[%c0_1, %c0_2] : memref<80x256xbf16, #tpu.memory_space<vmem>>, vector<80x256xbf16>
    %cst = arith.constant dense<0.000000e+00> : vector<8x256xf32>
    %2 = tpu.matmul %0, %1, %cst {dimension_numbers = #tpu.dot_dimension_numbers<[1], [0], [0], [1], [0, 0, 1, 1], [], []>} : vector<8x80xbf16>, vector<80x256xbf16>, vector<8x256xf32> -> vector<8x256xf32>
    %c0_3 = arith.constant 0 : index
    %c0_4 = arith.constant 0 : index
    %3 = vector.load %arg4[%c0_3, %c0_4] : memref<8x1xf32, #tpu.memory_space<vmem>>, vector<8x1xf32>
    %4 = vector.broadcast %3 : vector<8x1xf32> to vector<8x256xf32>
    %5 = arith.addf %2, %4 : vector<8x256xf32>
    %6 = arith.truncf %5 : vector<8x256xf32> to vector<8x256xbf16>
    %c0_5 = arith.constant 0 : index
    %c0_6 = arith.constant 0 : index
    %7 = vector.load %arg5[%c0_5, %c0_6] : memref<8x256xbf16, #tpu.memory_space<vmem>>, vector<8x256xbf16>
    tpu.vector_store %arg5[%c0_5, %c0_6], %6 {strides = array<i32>} : memref<8x256xbf16, #tpu.memory_space<vmem>>, vector<8x256xbf16>,
    return
  }
  func.func @transform_0(%arg0: i32, %arg1: i32) -> (i32, i32) {
    %c0_i32 = arith.constant 0 : i32
    %c0_i32_0 = arith.constant 0 : i32
    return %arg0, %c0_i32 : i32, i32
  }
  func.func @transform_1(%arg0: i32, %arg1: i32) -> (i32, i32) {
    %c0_i32 = arith.constant 0 : i32
    %c0_i32_0 = arith.constant 0 : i32
    return %c0_i32, %arg1 : i32, i32
  }
  func.func @transform_2(%arg0: i32, %arg1: i32) -> (i32, i32) {
    %c0_i32 = arith.constant 0 : i32
    %c0_i32_0 = arith.constant 0 : i32
    return %arg0, %c0_i32 : i32, i32
  }
  func.func @transform_3(%arg0: i32, %arg1: i32) -> (i32, i32) {
    %c0_i32 = arith.constant 0 : i32
    return %arg0, %arg1 : i32, i32
  }
}

module attributes {stable_mosaic.version = 11 : i64} {
  func.func @_mm_t_kernel(%arg0: i32, %arg1: i32, %arg2: memref<8x400xbf16, #tpu.memory_space<vmem>>, %arg3: memref<400x256xbf16, #tpu.memory_space<vmem>>, %arg4: memref<8x1xf32, #tpu.memory_space<vmem>>, %arg5: memref<8x256xf32, #tpu.memory_space<vmem>>) attributes {dimension_semantics = [#tpu.dimension_semantics<parallel>, #tpu.dimension_semantics<parallel>], iteration_bounds = array<i64: 1, 8>, scalar_prefetch = 0 : i64, scratch_operands = 0 : i64, tpu.core_type = #tpu.core_type<tc>, window_params = [{transform_indices = @transform_0, window_bounds = array<i64: 8, 400>}, {transform_indices = @transform_1, window_bounds = array<i64: 400, 256>}, {transform_indices = @transform_2, window_bounds = array<i64: 8, 1>}, {transform_indices = @transform_3, window_bounds = array<i64: 8, 256>}]} {
    %c0 = arith.constant 0 : index
    %c0_0 = arith.constant 0 : index
    %0 = vector.load %arg2[%c0, %c0_0] : memref<8x400xbf16, #tpu.memory_space<vmem>>, vector<8x400xbf16>
    %c0_1 = arith.constant 0 : index
    %c0_2 = arith.constant 0 : index
    %1 = vector.load %arg3[%c0_1, %c0_2] : memref<400x256xbf16, #tpu.memory_space<vmem>>, vector<400x256xbf16>
    %cst = arith.constant dense<0.000000e+00> : vector<8x256xf32>
    %2 = tpu.matmul %0, %1, %cst {dimension_numbers = #tpu.dot_dimension_numbers<[1], [0], [0], [1], [0, 0, 1, 1], [], []>} : vector<8x400xbf16>, vector<400x256xbf16>, vector<8x256xf32> -> vector<8x256xf32>
    %c0_3 = arith.constant 0 : index
    %c0_4 = arith.constant 0 : index
    %3 = vector.load %arg4[%c0_3, %c0_4] : memref<8x1xf32, #tpu.memory_space<vmem>>, vector<8x1xf32>
    %4 = vector.broadcast %3 : vector<8x1xf32> to vector<8x256xf32>
    %5 = arith.addf %2, %4 : vector<8x256xf32>
    %6 = arith.negf %5 : vector<8x256xf32>
    %7 = math.exp %6 : vector<8x256xf32>
    %cst_5 = arith.constant 1.000000e+00 : f32
    %8 = vector.broadcast %cst_5 : f32 to vector<8x256xf32>
    %9 = arith.addf %8, %7 : vector<8x256xf32>
    %10 = arith.divf %8, %9 : vector<8x256xf32>
    %c0_6 = arith.constant 0 : index
    %c0_7 = arith.constant 0 : index
    %11 = vector.load %arg5[%c0_6, %c0_7] : memref<8x256xf32, #tpu.memory_space<vmem>>, vector<8x256xf32>
    tpu.vector_store %arg5[%c0_6, %c0_7], %10 {strides = array<i32>} : memref<8x256xf32, #tpu.memory_space<vmem>>, vector<8x256xf32>,
    return
  }
  func.func @transform_0(%arg0: i32, %arg1: i32) -> (i32, i32) {
    %c0_i32 = arith.constant 0 : i32
    %c0_i32_0 = arith.constant 0 : i32
    return %arg0, %c0_i32 : i32, i32
  }
  func.func @transform_1(%arg0: i32, %arg1: i32) -> (i32, i32) {
    %c0_i32 = arith.constant 0 : i32
    %c0_i32_0 = arith.constant 0 : i32
    return %c0_i32, %arg1 : i32, i32
  }
  func.func @transform_2(%arg0: i32, %arg1: i32) -> (i32, i32) {
    %c0_i32 = arith.constant 0 : i32
    %c0_i32_0 = arith.constant 0 : i32
    return %arg0, %c0_i32 : i32, i32
  }
  func.func @transform_3(%arg0: i32, %arg1: i32) -> (i32, i32) {
    %c0_i32 = arith.constant 0 : i32
    return %arg0, %arg1 : i32, i32
  }
}

</mosaic_0001>

<llo_original>
// kernel: generator_forward.25
$region0: #{generator_forward.25}
  #allocation0 [shape = 'u32[]', space=smem, size = 0x4, offset = 0x4, fixed_abs, tag = 'smem constant byte address 0x4 - core index']
  #allocation1 [shape = 'u32[144,128]{1,0:T(1,128)}', space=vmem, size = 0x12000, scoped, tag = 'internal scratch']
  %s0 = inlined_call_operand.vmem [shape: bf16[8,160], index: 0, kind: input, shape index: {}]
  %s1 = inlined_call_operand.vmem [shape: bf16[160,2048], index: 1, kind: input, shape index: {}]
  %s2 = inlined_call_operand.vmem [shape: f32[8,1], index: 2, kind: input, shape index: {}]
  %s3 = inlined_call_operand.vmem [shape: bf16[8,2048], index: 3, kind: output, shape index: {}]
  %s4 = sld [smem:[#allocation0]]
  $region83: #{generator_forward.25} parent=0
    _
  %s6 = ssub.s32 1, %s4
  %s7 = scalar_select 0, %s6, %s4
  $region1: #{generator_forward.25} parent=0
    #allocation2 [shape = 'u8[163840]{0}', space=vmem, size = 0x28000, scoped, tag = 'input window, operand 1']
    loop: start=0, step=1, limit=10
    $region2: #{generator_forward.25} parent=1 // loop_pre_header
      _
    $region3: #{generator_forward.25} parent=1 // loop_header
      %s9 = sphi 0, %s13
      %p10 = scmp.ge.s32.totalorder %s9, 10
      %s16 = sphi 0, %s28
      %s17 = sphi 0, %s24
      %s18 = sphi 0, %s16
      %s19 = sphi 0, %s17
      %s20 = sphi 0, %s18
      %s21 = sphi 0, %s19
      %s31 = sphi 0, %s33
      %s34 = sphi 0, %s31
      %s35 = sphi 0, %s34
      %s51 = sphi 0, %s35
      %s57 = sphi 0, %s59
      %s60 = sphi 0, %s57
      %s61 = sphi 0, %s60
      %s77 = sphi 0, %s61
      %s83 = sphi 0, %s85
      %s86 = sphi 0, %s83
      %s87 = sphi 0, %s86
      %s103 = sphi 0, %s87
      %s111 = sphi 0, %s113
      %s114 = sphi 0, %s111
      %s115 = sphi 0, %s114
      %s131 = sphi 0, %s115
    $region4: #{generator_forward.25} parent=1 // loop_header_branch
      %12 = sbr.rel (%p10) target = $region8
    $region5: #{generator_forward.25} parent=1 // loop_body
      %s14 = ssub.s32 %s9, 1
      %s15 = ssub.s32 %s9, 2
      %s22 = sadd.s32 1, %s17
      %p23 = scmp.ge.s32.totalorder %s22, 8
      %s24 = scalar_select %p23, 0, %s22
      %s25 = sadd.s32 1, %s16
      %s26 = scalar_select %p23, %s25, %s16
      %p27 = scmp.ge.s32.totalorder %s26, 1
      %s28 = scalar_select %p27, 0, %s26
      %s29 = ssub.s32 %s16, %s28
      %p30 = scmp.eq.s32.totalorder %s29, 0
      %s32 = sadd.s32 %s31, 1
      %s33 = scalar_select %p30, %s31, %s32
      %p36 = pneg %p30
      %p37 = scmp.eq.s32.totalorder %s9, 7
      %p38 = por %p36, %p37
      %p39 = scmp.ne.s32.totalorder %s31, %s34
      %p40 = scmp.eq.s32.totalorder %s9, 0
      %p41 = por %p39, %p40
      %p42 = scmp.ne.s32.totalorder %s31, %s34
      %p43 = scmp.eq.s32.totalorder %s14, 7
      %p44 = por %p42, %p43
      %p45 = scmp.ne.s32.totalorder %s34, %s35
      %p46 = scmp.eq.s32.totalorder %s14, 0
      %p47 = por %p45, %p46
      %p48 = scmp.ne.s32.totalorder %s34, %s35
      %p49 = scmp.eq.s32.totalorder %s15, 7
      %p50 = por %p48, %p49
      %p52 = scmp.ne.s32.totalorder %s35, %s51
      %p53 = scmp.eq.s32.totalorder %s15, 0
      %p54 = por %p52, %p53
      %s55 = ssub.s32 %s17, %s24
      %p56 = scmp.eq.s32.totalorder %s55, 0
      %s58 = sadd.s32 %s57, 1
      %s59 = scalar_select %p56, %s57, %s58
      %p62 = pneg %p56
      %p63 = scmp.eq.s32.totalorder %s9, 7
      %p64 = por %p62, %p63
      %p65 = scmp.ne.s32.totalorder %s57, %s60
      %p66 = scmp.eq.s32.totalorder %s9, 0
      %p67 = por %p65, %p66
      %p68 = scmp.ne.s32.totalorder %s57, %s60
      %p69 = scmp.eq.s32.totalorder %s14, 7
      %p70 = por %p68, %p69
      %p71 = scmp.ne.s32.totalorder %s60, %s61
      %p72 = scmp.eq.s32.totalorder %s14, 0
      %p73 = por %p71, %p72
      %p74 = scmp.ne.s32.totalorder %s60, %s61
      %p75 = scmp.eq.s32.totalorder %s15, 7
      %p76 = por %p74, %p75
      %p78 = scmp.ne.s32.totalorder %s61, %s77
      %p79 = scmp.eq.s32.totalorder %s15, 0
      %p80 = por %p78, %p79
      %s81 = ssub.s32 %s16, %s28
      %p82 = scmp.eq.s32.totalorder %s81, 0
      %s84 = sadd.s32 %s83, 1
      %s85 = scalar_select %p82, %s83, %s84
      %p88 = pneg %p82
      %p89 = scmp.eq.s32.totalorder %s9, 7
      %p90 = por %p88, %p89
      %p91 = scmp.ne.s32.totalorder %s83, %s86
      %p92 = scmp.eq.s32.totalorder %s9, 0
      %p93 = por %p91, %p92
      %p94 = scmp.ne.s32.totalorder %s83, %s86
      %p95 = scmp.eq.s32.totalorder %s14, 7
      %p96 = por %p94, %p95
      %p97 = scmp.ne.s32.totalorder %s86, %s87
      %p98 = scmp.eq.s32.totalorder %s14, 0
      %p99 = por %p97, %p98
      %p100 = scmp.ne.s32.totalorder %s86, %s87
      %p101 = scmp.eq.s32.totalorder %s15, 7
      %p102 = por %p100, %p101
      %p104 = scmp.ne.s32.totalorder %s87, %s103
      %p105 = scmp.eq.s32.totalorder %s15, 0
      %p106 = por %p104, %p105
      %s107 = ssub.s32 %s16, %s28
      %s108 = ssub.s32 %s17, %s24
      %s109 = sor.u32 %s107, %s108
      %p110 = scmp.eq.s32.totalorder %s109, 0
      %s112 = sadd.s32 %s111, 1
      %s113 = scalar_select %p110, %s111, %s112
      %p116 = pneg %p110
      %p117 = scmp.eq.s32.totalorder %s9, 7
      %p118 = por %p116, %p117
      %p119 = scmp.ne.s32.totalorder %s111, %s114
      %p120 = scmp.eq.s32.totalorder %s9, 0
      %p121 = por %p119, %p120
      %p122 = scmp.ne.s32.totalorder %s111, %s114
      %p123 = scmp.eq.s32.totalorder %s14, 7
      %p124 = por %p122, %p123
      %p125 = scmp.ne.s32.totalorder %s114, %s115
      %p126 = scmp.eq.s32.totalorder %s14, 0
      %p127 = por %p125, %p126
      %p128 = scmp.ne.s32.totalorder %s114, %s115
      %p129 = scmp.eq.s32.totalorder %s15, 7
      %p130 = por %p128, %p129
      %p132 = scmp.ne.s32.totalorder %s115, %s131
      %p133 = scmp.eq.s32.totalorder %s15, 0
      %p134 = por %p132, %p133
      %p135 = scmp.le.s32.totalorder 1, %s9
      %p136 = scmp.lt.s32.totalorder %s9, 9
      %p137 = pnand %p135, %p136
      %p138 = pneg %p137
      // Predicated region
      $region9: #{generator_forward.25} parent=5 // pred_check
        _
      $region10: #{generator_forward.25} parent=5 // pred_check_branch
        %140 = sbr.rel (%p137) target = $region12
      $region11: #{generator_forward.25} parent=5 // pred_region
        %s141 = ssub.s32 %s9, 1
        // Predicated region
        $region13: #{generator_forward.25} parent=11 // pred_check
          %p142 = pneg %p47
        $region14: #{generator_forward.25} parent=11 // pred_check_branch
          %144 = sbr.rel (%p142) target = $region16
        $region15: #{generator_forward.25} parent=11 // pred_region
          %p145 = scmp.lt.s32.totalorder %s18, 0
          %s146 = scalar_select %p145, %s18, 0
          %s147 = smul.addr %s146, 2
          %s148 = smul.addr %s147, 4
          %s149 = scalar_lea.vmem %s0, %s148
        $region16: #{generator_forward.25} parent=11 // pred_fallthru
          _
        // Predicated region
        $region17: #{generator_forward.25} parent=11 // pred_check
          %p150 = pneg %p99
        $region18: #{generator_forward.25} parent=11 // pred_check_branch
          %152 = sbr.rel (%p150) target = $region20
        $region19: #{generator_forward.25} parent=11 // pred_region
          %p153 = scmp.lt.s32.totalorder %s18, 0
          %s154 = scalar_select %p153, %s18, 0
          %s155 = smul.addr %s154, 8
          %s156 = scalar_lea.vmem %s2, %s155
        $region20: #{generator_forward.25} parent=11 // pred_fallthru
          _
      $region12: #{generator_forward.25} parent=5 // pred_fallthru
        _
      %p157 = scmp.lt.s32.totalorder %s9, 8
      // Predicated region
      $region21: #{generator_forward.25} parent=5 // pred_check
        %p158 = pneg %p157
      $region22: #{generator_forward.25} parent=5 // pred_check_branch
        %160 = sbr.rel (%p158) target = $region24
      $region23: #{generator_forward.25} parent=5 // pred_region
        // Predicated region
        $region25: #{generator_forward.25} parent=23 // pred_check
          %p161 = pneg %p67
        $region26: #{generator_forward.25} parent=23 // pred_check_branch
          %163 = sbr.rel (%p161) target = $region28
        $region27: #{generator_forward.25} parent=23 // pred_region
          %s164 = sand.u32 %s57, 1
          %s165 = sand.u32 %s57, 1
          %s166 = smul.addr %s165, 160
          %s167 = scalar_lea.vmem [#allocation2], %s166
          %s168 = smul.u32 2, %s17
          %s169 = smul.addr %s168, 4
          %s170 = scalar_lea.vmem %s1, %s169
          // Predicated region
          $region29: #{generator_forward.25} parent=27 // pred_check
            _
          $region30: #{generator_forward.25} parent=27 // pred_check_branch
            %172 = sbr.rel (0) target = $region32
          $region31: #{generator_forward.25} parent=27 // pred_region
            // Predicated region
            $region33: #{generator_forward.25} parent=31 // pred_check
              _
            $region34: #{generator_forward.25} parent=31 // pred_check_branch
              %174 = sbr.rel (0) target = $region36
            $region35: #{generator_forward.25} parent=31 // pred_region
              // Predicated region
              $region48: #{generator_forward.25} parent=35 // pred_check
                _
              $region49: #{generator_forward.25} parent=35 // pred_check_branch
                %228 = sbr.rel (0) target = $region51
              $region50: #{generator_forward.25} parent=35 // pred_region
                loop: start=0, step=1, limit=1
                $region52: #{generator_forward.25} parent=50 // loop_pre_header
                  _
                $region53: #{generator_forward.25} parent=50 // loop_header
                  %s230 = sphi 0, %s234
                  %p231 = scmp.ge.s32.totalorder %s230, 1
                  %s235 = sphi %s170, %s170
                  %s236 = sphi %s167, %s167
                $region54: #{generator_forward.25} parent=50 // loop_header_branch
                  %233 = sbr.rel (%p231) target = $region58
                $region55: #{generator_forward.25} parent=50 // loop_body
                  %v237 = vld [vmem:[%s235] sm:$0xff]
                  %238 = vst [vmem:[%s236] sm:$0xff] %v237
                  %v239 = vld [vmem:[%s235 + $0x40] sm:$0xff]
                  %240 = vst [vmem:[%s236 + $0x8] sm:$0xff] %v239
                  %v241 = vld [vmem:[%s235 + $0x80] sm:$0xff]
                  %242 = vst [vmem:[%s236 + $0x10] sm:$0xff] %v241
                  %v243 = vld [vmem:[%s235 + $0xc0] sm:$0xff]
                  %244 = vst [vmem:[%s236 + $0x18] sm:$0xff] %v243
                  %v245 = vld [vmem:[%s235 + $0x100] sm:$0xff]
                  %246 = vst [vmem:[%s236 + $0x20] sm:$0xff] %v245
                  %v247 = vld [vmem:[%s235 + $0x140] sm:$0xff]
                  %248 = vst [vmem:[%s236 + $0x28] sm:$0xff] %v247
                  %v249 = vld [vmem:[%s235 + $0x180] sm:$0xff]
                  %250 = vst [vmem:[%s236 + $0x30] sm:$0xff] %v249
                  %v251 = vld [vmem:[%s235 + $0x1c0] sm:$0xff]
                  %252 = vst [vmem:[%s236 + $0x38] sm:$0xff] %v251
                  %v253 = vld [vmem:[%s235 + $0x200] sm:$0xff]
                  %254 = vst [vmem:[%s236 + $0x40] sm:$0xff] %v253
                  %v255 = vld [vmem:[%s235 + $0x240] sm:$0xff]
                  %256 = vst [vmem:[%s236 + $0x48] sm:$0xff] %v255
                  %v257 = vld [vmem:[%s235 + $0x280] sm:$0xff]
                  %258 = vst [vmem:[%s236 + $0x50] sm:$0xff] %v257
                  %v259 = vld [vmem:[%s235 + $0x2c0] sm:$0xff]
                  %260 = vst [vmem:[%s236 + $0x58] sm:$0xff] %v259
                  %v261 = vld [vmem:[%s235 + $0x300] sm:$0xff]
                  %262 = vst [vmem:[%s236 + $0x60] sm:$0xff] %v261
                  %v263 = vld [vmem:[%s235 + $0x340] sm:$0xff]
                  %264 = vst [vmem:[%s236 + $0x68] sm:$0xff] %v263
                  %v265 = vld [vmem:[%s235 + $0x380] sm:$0xff]
                  %266 = vst [vmem:[%s236 + $0x70] sm:$0xff] %v265
                  %v267 = vld [vmem:[%s235 + $0x3c0] sm:$0xff]
                  %268 = vst [vmem:[%s236 + $0x78] sm:$0xff] %v267
                  %v269 = vld [vmem:[%s235 + $0x400] sm:$0xff]
                  %270 = vst [vmem:[%s236 + $0x80] sm:$0xff] %v269
                  %v271 = vld [vmem:[%s235 + $0x440] sm:$0xff]
                  %272 = vst [vmem:[%s236 + $0x88] sm:$0xff] %v271
                  %v273 = vld [vmem:[%s235 + $0x480] sm:$0xff]
                  %274 = vst [vmem:[%s236 + $0x90] sm:$0xff] %v273
                  %v275 = vld [vmem:[%s235 + $0x4c0] sm:$0xff]
                  %276 = vst [vmem:[%s236 + $0x98] sm:$0xff] %v275
                $region56: #{generator_forward.25} parent=50 // loop_footer
                  %s234 = sadd.s32 1, %s230
                $region57: #{generator_forward.25} parent=50 // loop_footer_branch
                  %229 = sbr.rel target = $region53
                $region58: #{generator_forward.25} parent=50 // loop_exit
                  _
              $region51: #{generator_forward.25} parent=35 // pred_fallthru
                _
              // Predicated region
              $region59: #{generator_forward.25} parent=35 // pred_check
                _
              $region60: #{generator_forward.25} parent=35 // pred_check_branch
                %278 = sbr.rel target = $region62
              $region61: #{generator_forward.25} parent=35 // pred_region
                _
              $region62: #{generator_forward.25} parent=35 // pred_fallthru
                _
            $region36: #{generator_forward.25} parent=31 // pred_fallthru
              _
            // Predicated region
            $region37: #{generator_forward.25} parent=31 // pred_check
              _
            $region38: #{generator_forward.25} parent=31 // pred_check_branch
              %176 = sbr.rel target = $region40
            $region39: #{generator_forward.25} parent=31 // pred_region
              %s178 = ssub.s32 256, 1
              loop: start=0, step=1, limit=1
              $region41: #{generator_forward.25} parent=39 // loop_pre_header
                _
              $region42: #{generator_forward.25} parent=39 // loop_header
                %s180 = sphi 0, %s184
                %p181 = scmp.ge.s32.totalorder %s180, 1
                %s185 = sphi %s170, %s170
                %s186 = sphi %s167, %s167
              $region43: #{generator_forward.25} parent=39 // loop_header_branch
                %183 = sbr.rel (%p181) target = $region47
              $region44: #{generator_forward.25} parent=39 // loop_body
                %v187 = vld [vmem:[%s185] sm:%s178]
                %188 = vst [vmem:[%s186] sm:%s178] %v187
                %v189 = vld [vmem:[%s185 + $0x40] sm:%s178]
                %190 = vst [vmem:[%s186 + $0x8] sm:%s178] %v189
                %v191 = vld [vmem:[%s185 + $0x80] sm:%s178]
                %192 = vst [vmem:[%s186 + $0x10] sm:%s178] %v191
                %v193 = vld [vmem:[%s185 + $0xc0] sm:%s178]
                %194 = vst [vmem:[%s186 + $0x18] sm:%s178] %v193
                %v195 = vld [vmem:[%s185 + $0x100] sm:%s178]
                %196 = vst [vmem:[%s186 + $0x20] sm:%s178] %v195
                %v197 = vld [vmem:[%s185 + $0x140] sm:%s178]
                %198 = vst [vmem:[%s186 + $0x28] sm:%s178] %v197
                %v199 = vld [vmem:[%s185 + $0x180] sm:%s178]
                %200 = vst [vmem:[%s186 + $0x30] sm:%s178] %v199
                %v201 = vld [vmem:[%s185 + $0x1c0] sm:%s178]
                %202 = vst [vmem:[%s186 + $0x38] sm:%s178] %v201
                %v203 = vld [vmem:[%s185 + $0x200] sm:%s178]
                %204 = vst [vmem:[%s186 + $0x40] sm:%s178] %v203
                %v205 = vld [vmem:[%s185 + $0x240] sm:%s178]
                %206 = vst [vmem:[%s186 + $0x48] sm:%s178] %v205
                %v207 = vld [vmem:[%s185 + $0x280] sm:%s178]
                %208 = vst [vmem:[%s186 + $0x50] sm:%s178] %v207
                %v209 = vld [vmem:[%s185 + $0x2c0] sm:%s178]
                %210 = vst [vmem:[%s186 + $0x58] sm:%s178] %v209
                %v211 = vld [vmem:[%s185 + $0x300] sm:%s178]
                %212 = vst [vmem:[%s186 + $0x60] sm:%s178] %v211
                %v213 = vld [vmem:[%s185 + $0x340] sm:%s178]
                %214 = vst [vmem:[%s186 + $0x68] sm:%s178] %v213
                %v215 = vld [vmem:[%s185 + $0x380] sm:%s178]
                %216 = vst [vmem:[%s186 + $0x70] sm:%s178] %v215
                %v217 = vld [vmem:[%s185 + $0x3c0] sm:%s178]
                %218 = vst [vmem:[%s186 + $0x78] sm:%s178] %v217
                %v219 = vld [vmem:[%s185 + $0x400] sm:%s178]
                %220 = vst [vmem:[%s186 + $0x80] sm:%s178] %v219
                %v221 = vld [vmem:[%s185 + $0x440] sm:%s178]
                %222 = vst [vmem:[%s186 + $0x88] sm:%s178] %v221
                %v223 = vld [vmem:[%s185 + $0x480] sm:%s178]
                %224 = vst [vmem:[%s186 + $0x90] sm:%s178] %v223
                %v225 = vld [vmem:[%s185 + $0x4c0] sm:%s178]
                %226 = vst [vmem:[%s186 + $0x98] sm:%s178] %v225
              $region45: #{generator_forward.25} parent=39 // loop_footer
                %s184 = sadd.s32 1, %s180
              $region46: #{generator_forward.25} parent=39 // loop_footer_branch
                %179 = sbr.rel target = $region42
              $region47: #{generator_forward.25} parent=39 // loop_exit
                _
            $region40: #{generator_forward.25} parent=31 // pred_fallthru
              _
          $region32: #{generator_forward.25} parent=27 // pred_fallthru
            _
          %279 = vnop
        $region28: #{generator_forward.25} parent=23 // pred_fallthru
          _
      $region24: #{generator_forward.25} parent=5 // pred_fallthru
        _
      %p280 = scmp.le.s32.totalorder 1, %s9
      %p281 = scmp.lt.s32.totalorder %s9, 9
      %p282 = pnand %p280, %p281
      %p283 = pneg %p282
      // Predicated region
      $region63: #{generator_forward.25} parent=5 // pred_check
        _
      $region64: #{generator_forward.25} parent=5 // pred_check_branch
        %285 = sbr.rel (%p282) target = $region66
      $region65: #{generator_forward.25} parent=5 // pred_region
        %s286 = ssub.s32 %s9, 1
        %s287 = sand.u32 %s60, 1
        %s288 = sand.u32 %s60, 1
        %s289 = smul.addr %s288, 160
        %s290 = scalar_lea.vmem [#allocation2], %s289
        // Predicated region
        $region67: #{generator_forward.25} parent=65 // pred_check
          %p291 = pneg %p73
        $region68: #{generator_forward.25} parent=65 // pred_check_branch
          %293 = sbr.rel (%p291) target = $region70
        $region69: #{generator_forward.25} parent=65 // pred_region
          _
        $region70: #{generator_forward.25} parent=65 // pred_fallthru
          _
        %p294 = scmp.lt.s32.totalorder %s18, 0
        %s295 = scalar_select %p294, %s18, 0
        %s296 = smul.addr %s295, 2
        %s297 = smul.addr %s296, 4
        %s298 = scalar_lea.vmem %s0, %s297
        %p299 = pneg %p47
        %p300 = pneg %p44
        %s301 = sand.u32 %s60, 1
        %s302 = sand.u32 %s60, 1
        %s303 = smul.addr %s302, 160
        %s304 = scalar_lea.vmem [#allocation2], %s303
        %p305 = pneg %p73
        %p306 = pneg %p70
        %p307 = scmp.lt.s32.totalorder %s18, 0
        %s308 = scalar_select %p307, %s18, 0
        %s309 = smul.addr %s308, 8
        %s310 = scalar_lea.vmem %s2, %s309
        %p311 = pneg %p99
        %p312 = pneg %p96
        %p313 = pneg %p127
        %p314 = pneg %p124
        %s315 = smul.u32 2, %s19
        %p316 = scmp.lt.s32.totalorder %s18, 0
        %s317 = scalar_select %p316, %s18, 0
        %p318 = scmp.lt.s32.totalorder %s315, 15
        %s319 = scalar_select %p318, %s315, 15
        %s320 = smul.addr %s317, 16
        %s321 = sadd.s32 %s319, %s320
        %s322 = smul.addr %s321, 4
        %s323 = scalar_lea.vmem %s3, %s322
        %p324 = scmp.lt.s32.totalorder %s18, 0
        %s325 = scalar_select %p324, %s18, 0
        %s326 = smul.addr %s325, 2
        %s327 = smul.addr %s326, 4
        %s328 = scalar_lea.vmem %s0, %s327
        %s329 = smul.u32 2, %s19
        %p330 = scmp.lt.s32.totalorder %s18, 0
        %s331 = scalar_select %p330, %s18, 0
        %s332 = smul.addr %s331, 8
        %s333 = scalar_lea.vmem %s2, %s332
        %s334 = smul.u32 2, %s19
        %p335 = scmp.lt.s32.totalorder %s18, 0
        %s336 = scalar_select %p335, %s18, 0
        %p337 = scmp.lt.s32.totalorder %s334, 15
        %s338 = scalar_select %p337, %s334, 15
        %s339 = smul.addr %s336, 16
        %s340 = sadd.s32 %s338, %s339
        %s341 = smul.addr %s340, 4
        %s342 = scalar_lea.vmem %s3, %s341
        %s343 = smul.u32 2, %s19
        %v345 = vld [vmem:[%s328] sm:$0xff]
        %v346 = vld [vmem:[%s290] sm:$0xff]
        %v347 = vld [vmem:[%s290 + $0x8] sm:$0xff]
        %v348 = vld [vmem:[%s290 + $0x10] sm:$0xff]
        %v349 = vld [vmem:[%s290 + $0x18] sm:$0xff]
        %v350 = vld [vmem:[%s290 + $0x20] sm:$0xff]
        %v351 = vld [vmem:[%s290 + $0x28] sm:$0xff]
        %v352 = vld [vmem:[%s290 + $0x30] sm:$0xff]
        %v353 = vld [vmem:[%s290 + $0x38] sm:$0xff]
        %v354 = vld [vmem:[%s290 + $0x40] sm:$0xff]
        %v355 = vld [vmem:[%s290 + $0x48] sm:$0xff]
        %v356 = vld [vmem:[%s290 + $0x50] sm:$0xff]
        %v357 = vld [vmem:[%s290 + $0x58] sm:$0xff]
        %v358 = vld [vmem:[%s290 + $0x60] sm:$0xff]
        %v359 = vld [vmem:[%s290 + $0x68] sm:$0xff]
        %v360 = vld [vmem:[%s290 + $0x70] sm:$0xff]
        %v361 = vld [vmem:[%s290 + $0x78] sm:$0xff]
        %v362 = vld [vmem:[%s290 + $0x80] sm:$0xff]
        %v363 = vld [vmem:[%s290 + $0x88] sm:$0xff]
        %v364 = vld [vmem:[%s290 + $0x90] sm:$0xff]
        %v365 = vld [vmem:[%s290 + $0x98] sm:$0xff]
        %v366 = vld [vmem:[%s333] sm:$0xff]
        %368 = vset.pattern.permute.xlu0 0
        %369 = vperm.xlu0 %368, %v366
        %v370 = vpop.permute.xlu0 %369
        %v373 = vunpack.c.l.b16 %v345
        %v374 = vunpack.c.h.b16 %v345
        %v375 = vpack.c.b16 %v373, %v373
        %v376 = vpack.c.b16 %v374, %v374
        %v398 = vunpack.c.l.b16 %v346
        %v399 = vunpack.c.h.b16 %v346
        %v400 = vunpack.c.l.b16 %v347
        %v401 = vunpack.c.h.b16 %v347
        %v402 = vunpack.c.l.b16 %v348
        %v403 = vunpack.c.h.b16 %v348
        %v404 = vunpack.c.l.b16 %v349
        %v405 = vunpack.c.h.b16 %v349
        %v406 = vunpack.c.l.b16 %v350
        %v407 = vunpack.c.h.b16 %v350
        %v408 = vunpack.c.l.b16 %v351
        %v409 = vunpack.c.h.b16 %v351
        %v410 = vunpack.c.l.b16 %v352
        %v411 = vunpack.c.h.b16 %v352
        %v412 = vunpack.c.l.b16 %v353
        %v413 = vunpack.c.h.b16 %v353
        %v414 = vunpack.c.l.b16 %v354
        %v415 = vunpack.c.h.b16 %v354
        %v416 = vunpack.c.l.b16 %v355
        %v417 = vunpack.c.h.b16 %v355
        %v418 = vunpack.c.l.b16 %v356
        %v419 = vunpack.c.h.b16 %v356
        %v420 = vunpack.c.l.b16 %v357
        %v421 = vunpack.c.h.b16 %v357
        %v422 = vunpack.c.l.b16 %v358
        %v423 = vunpack.c.h.b16 %v358
        %v424 = vunpack.c.l.b16 %v359
        %v425 = vunpack.c.h.b16 %v359
        %v426 = vunpack.c.l.b16 %v360
        %v427 = vunpack.c.h.b16 %v360
        %v428 = vunpack.c.l.b16 %v361
        %v429 = vunpack.c.h.b16 %v361
        %v430 = vunpack.c.l.b16 %v362
        %v431 = vunpack.c.h.b16 %v362
        %v432 = vunpack.c.l.b16 %v363
        %v433 = vunpack.c.h.b16 %v363
        %v434 = vunpack.c.l.b16 %v364
        %v435 = vunpack.c.h.b16 %v364
        %v436 = vunpack.c.l.b16 %v365
        %v437 = vunpack.c.h.b16 %v365
        %v438 = vpack.c.b16 %v400, %v398
        %v439 = vpack.c.b16 %v401, %v399
        %v440 = vpack.c.b16 %v404, %v402
        %v441 = vpack.c.b16 %v405, %v403
        %v442 = vpack.c.b16 %v408, %v406
        %v443 = vpack.c.b16 %v409, %v407
        %v444 = vpack.c.b16 %v412, %v410
        %v445 = vpack.c.b16 %v413, %v411
        %v446 = vpack.c.b16 %v416, %v414
        %v447 = vpack.c.b16 %v417, %v415
        %v448 = vpack.c.b16 %v420, %v418
        %v449 = vpack.c.b16 %v421, %v419
        %v450 = vpack.c.b16 %v424, %v422
        %v451 = vpack.c.b16 %v425, %v423
        %v452 = vpack.c.b16 %v428, %v426
        %v453 = vpack.c.b16 %v429, %v427
        %v454 = vpack.c.b16 %v432, %v430
        %v455 = vpack.c.b16 %v433, %v431
        %v456 = vpack.c.b16 %v436, %v434
        %v457 = vpack.c.b16 %v437, %v435
        %vm478 = vcmask 261120
        %v480 = vsel %vm478, %v376, 0
        %482 = vmatprep.subr.bf16.mxu0 %v453
        %483 = vmatpush1.bf16.msra.mxu0 %v452
        %484 = vmatprep.subr.bf16.mxu0 %v451
        %485 = vmatpush1.bf16.msra.mxu0 %v450
        %486 = vmatprep.subr.bf16.mxu0 %v449
        %487 = vmatpush1.bf16.msra.mxu0 %v448
        %488 = vmatprep.subr.bf16.mxu0 %v447
        %489 = vmatpush1.bf16.msra.mxu0 %v446
        %490 = vmatprep.subr.bf16.mxu0 %v445
        %491 = vmatpush1.bf16.msra.mxu0 %v444
        %492 = vmatprep.subr.bf16.mxu0 %v443
        %493 = vmatpush1.bf16.msra.mxu0 %v442
        %494 = vmatprep.subr.bf16.mxu0 %v441
        %495 = vmatpush1.bf16.msra.mxu0 %v440
        %496 = vmatprep.subr.bf16.mxu0 %v439
        %497 = vmatpush1.bf16.msra.mxu0 %v438
        %498 = vmatprep.subr.bf16.mxu0 0
        %499 = vmatpush2.bf16.msra.mxu0 0
        %500 = vmatprep.subr.bf16.mxu0 0
        %501 = vmatpush2.bf16.msra.mxu0 0
        %502 = vmatprep.subr.bf16.mxu0 0
        %503 = vmatpush2.bf16.msra.mxu0 0
        %504 = vmatprep.subr.bf16.mxu0 0
        %505 = vmatpush2.bf16.msra.mxu0 0
        %506 = vmatprep.subr.bf16.mxu0 0
        %507 = vmatpush2.bf16.msra.mxu0 0
        %508 = vmatprep.subr.bf16.mxu0 0
        %509 = vmatpush2.bf16.msra.mxu0 0
        %510 = vmatprep.subr.bf16.mxu0 %v457
        %511 = vmatpush2.bf16.msra.mxu0 %v456
        %512 = vmatprep.subr.bf16.mxu0 %v455
        %513 = vmatpush2.bf16.msra.mxu0 %v454
        %514 = vmatprep.mubr.bf16.mxu0 %v480
        %515 = vmatmul.mubr.bf16.gmra.mxu0 %v375
        %v516 = vpop.f32.mrf.mxu0
        %v517 = vadd.f32 %v370, %v516
        %v518 = vpop.f32.mrf.mxu0
        %v519 = vadd.f32 %v370, %v518
        %v520 = vpop.f32.mrf.mxu0
        %v521 = vpop.f32.mrf.mxu0
        %522 = vdwg.mxu0
        %vm523 = vcmp.ge.f32.partialorder %v517, 0.0
        %vm524 = vcmp.ge.f32.partialorder %v519, 0.0
        %v525 = vmul.f32 %v517, 0.2
        %v526 = vmul.f32 %v519, 0.2
        %v527 = vsel %vm523, %v517, %v525
        %v528 = vsel %vm524, %v519, %v526
        %v529 = vpack.c.bf16 %v527, %v527
        %v530 = vpack.c.bf16 %v528, %v528
        %v533 = vunpack.c.l.b16 %v529
        %v534 = vunpack.c.l.b16 %v530
        %v535 = vpack.c.b16 %v534, %v533
        %537 = vst [vmem:[%s342] sm:$0xff] %v535
        %s538 = smul.u32 2, %s19
        %p539 = scmp.lt.s32.totalorder %s18, 0
        %s540 = scalar_select %p539, %s18, 0
        %p541 = scmp.lt.s32.totalorder %s538, 15
        %s542 = scalar_select %p541, %s538, 15
        %s543 = smul.addr %s540, 16
        %s544 = sadd.s32 %s542, %s543
        %s545 = smul.addr %s544, 4
        %s546 = scalar_lea.vmem %s3, %s545
        // Predicated region
        $region71: #{generator_forward.25} parent=65 // pred_check
          %p547 = pneg %p124
        $region72: #{generator_forward.25} parent=65 // pred_check_branch
          %549 = sbr.rel (%p547) target = $region74
        $region73: #{generator_forward.25} parent=65 // pred_region
          %s550 = smul.u32 2, %s19
        $region74: #{generator_forward.25} parent=65 // pred_fallthru
          _
      $region66: #{generator_forward.25} parent=5 // pred_fallthru
        _
      %p551 = scmp.le.s32.totalorder 2, %s9
      // Predicated region
      $region75: #{generator_forward.25} parent=5 // pred_check
        %p552 = pneg %p551
      $region76: #{generator_forward.25} parent=5 // pred_check_branch
        %554 = sbr.rel (%p552) target = $region78
      $region77: #{generator_forward.25} parent=5 // pred_region
        %s555 = ssub.s32 %s9, 2
        // Predicated region
        $region79: #{generator_forward.25} parent=77 // pred_check
          %p556 = pneg %p130
        $region80: #{generator_forward.25} parent=77 // pred_check_branch
          %558 = sbr.rel (%p556) target = $region82
        $region81: #{generator_forward.25} parent=77 // pred_region
          %s559 = smul.u32 2, %s21
          %p560 = scmp.lt.s32.totalorder %s20, 0
          %s561 = scalar_select %p560, %s20, 0
          %p562 = scmp.lt.s32.totalorder %s559, 15
          %s563 = scalar_select %p562, %s559, 15
          %s564 = smul.addr %s561, 16
          %s565 = sadd.s32 %s563, %s564
          %s566 = smul.addr %s565, 4
          %s567 = scalar_lea.vmem %s3, %s566
        $region82: #{generator_forward.25} parent=77 // pred_fallthru
          _
      $region78: #{generator_forward.25} parent=5 // pred_fallthru
        _
    $region6: #{generator_forward.25} parent=1 // loop_footer
      %s13 = sadd.s32 1, %s9
    $region7: #{generator_forward.25} parent=1 // loop_footer_branch
      %8 = sbr.rel target = $region3
    $region8: #{generator_forward.25} parent=1 // loop_exit
      _

// kernel: generator_forward.26
$region0: #{generator_forward.26}
  #allocation0 [shape = 'u32[]', space=smem, size = 0x4, offset = 0x4, fixed_abs, tag = 'smem constant byte address 0x4 - core index']
  #allocation1 [shape = 'u32[144,128]{1,0:T(1,128)}', space=vmem, size = 0x12000, scoped, tag = 'internal scratch']
  %s0 = inlined_call_operand.vmem [shape: bf16[16,80], index: 0, kind: input, shape index: {}]
  %s1 = inlined_call_operand.vmem [shape: bf16[80,512], index: 1, kind: input, shape index: {}]
  %s2 = inlined_call_operand.vmem [shape: f32[16,1], index: 2, kind: input, shape index: {}]
  %s3 = inlined_call_operand.vmem [shape: bf16[16,512], index: 3, kind: output, shape index: {}]
  %s4 = sld [smem:[#allocation0]]
  $region117: #{generator_forward.26} parent=0
    _
  %s6 = ssub.s32 1, %s4
  %s7 = scalar_select 0, %s6, %s4
  $region1: #{generator_forward.26} parent=0
    #allocation2 [shape = 'u8[81920]{0}', space=vmem, size = 0x14000, scoped, tag = 'input window, operand 1']
    #allocation3 [shape = 'u8[16384]{0}', space=vmem, size = 0x4000, scoped, tag = 'output window, operand 0']
    loop: start=0, step=1, limit=4
    $region2: #{generator_forward.26} parent=1 // loop_pre_header
      _
    $region3: #{generator_forward.26} parent=1 // loop_header
      %s9 = sphi 0, %s13
      %p10 = scmp.ge.s32.totalorder %s9, 4
      %s16 = sphi 0, %s28
      %s17 = sphi 0, %s24
      %s18 = sphi 0, %s16
      %s19 = sphi 0, %s17
      %s20 = sphi 0, %s18
      %s21 = sphi 0, %s19
      %s31 = sphi 0, %s33
      %s34 = sphi 0, %s31
      %s35 = sphi 0, %s34
      %s51 = sphi 0, %s35
      %s57 = sphi 0, %s59
      %s60 = sphi 0, %s57
      %s61 = sphi 0, %s60
      %s77 = sphi 0, %s61
      %s83 = sphi 0, %s85
      %s86 = sphi 0, %s83
      %s87 = sphi 0, %s86
      %s103 = sphi 0, %s87
      %s111 = sphi 0, %s113
      %s114 = sphi 0, %s111
      %s115 = sphi 0, %s114
      %s131 = sphi 0, %s115
    $region4: #{generator_forward.26} parent=1 // loop_header_branch
      %12 = sbr.rel (%p10) target = $region8
    $region5: #{generator_forward.26} parent=1 // loop_body
      %s14 = ssub.s32 %s9, 1
      %s15 = ssub.s32 %s9, 2
      %s22 = sadd.s32 1, %s17
      %p23 = scmp.ge.s32.totalorder %s22, 2
      %s24 = scalar_select %p23, 0, %s22
      %s25 = sadd.s32 1, %s16
      %s26 = scalar_select %p23, %s25, %s16
      %p27 = scmp.ge.s32.totalorder %s26, 1
      %s28 = scalar_select %p27, 0, %s26
      %s29 = ssub.s32 %s16, %s28
      %p30 = scmp.eq.s32.totalorder %s29, 0
      %s32 = sadd.s32 %s31, 1
      %s33 = scalar_select %p30, %s31, %s32
      %p36 = pneg %p30
      %p37 = scmp.eq.s32.totalorder %s9, 1
      %p38 = por %p36, %p37
      %p39 = scmp.ne.s32.totalorder %s31, %s34
      %p40 = scmp.eq.s32.totalorder %s9, 0
      %p41 = por %p39, %p40
      %p42 = scmp.ne.s32.totalorder %s31, %s34
      %p43 = scmp.eq.s32.totalorder %s14, 1
      %p44 = por %p42, %p43
      %p45 = scmp.ne.s32.totalorder %s34, %s35
      %p46 = scmp.eq.s32.totalorder %s14, 0
      %p47 = por %p45, %p46
      %p48 = scmp.ne.s32.totalorder %s34, %s35
      %p49 = scmp.eq.s32.totalorder %s15, 1
      %p50 = por %p48, %p49
      %p52 = scmp.ne.s32.totalorder %s35, %s51
      %p53 = scmp.eq.s32.totalorder %s15, 0
      %p54 = por %p52, %p53
      %s55 = ssub.s32 %s17, %s24
      %p56 = scmp.eq.s32.totalorder %s55, 0
      %s58 = sadd.s32 %s57, 1
      %s59 = scalar_select %p56, %s57, %s58
      %p62 = pneg %p56
      %p63 = scmp.eq.s32.totalorder %s9, 1
      %p64 = por %p62, %p63
      %p65 = scmp.ne.s32.totalorder %s57, %s60
      %p66 = scmp.eq.s32.totalorder %s9, 0
      %p67 = por %p65, %p66
      %p68 = scmp.ne.s32.totalorder %s57, %s60
      %p69 = scmp.eq.s32.totalorder %s14, 1
      %p70 = por %p68, %p69
      %p71 = scmp.ne.s32.totalorder %s60, %s61
      %p72 = scmp.eq.s32.totalorder %s14, 0
      %p73 = por %p71, %p72
      %p74 = scmp.ne.s32.totalorder %s60, %s61
      %p75 = scmp.eq.s32.totalorder %s15, 1
      %p76 = por %p74, %p75
      %p78 = scmp.ne.s32.totalorder %s61, %s77
      %p79 = scmp.eq.s32.totalorder %s15, 0
      %p80 = por %p78, %p79
      %s81 = ssub.s32 %s16, %s28
      %p82 = scmp.eq.s32.totalorder %s81, 0
      %s84 = sadd.s32 %s83, 1
      %s85 = scalar_select %p82, %s83, %s84
      %p88 = pneg %p82
      %p89 = scmp.eq.s32.totalorder %s9, 1
      %p90 = por %p88, %p89
      %p91 = scmp.ne.s32.totalorder %s83, %s86
      %p92 = scmp.eq.s32.totalorder %s9, 0
      %p93 = por %p91, %p92
      %p94 = scmp.ne.s32.totalorder %s83, %s86
      %p95 = scmp.eq.s32.totalorder %s14, 1
      %p96 = por %p94, %p95
      %p97 = scmp.ne.s32.totalorder %s86, %s87
      %p98 = scmp.eq.s32.totalorder %s14, 0
      %p99 = por %p97, %p98
      %p100 = scmp.ne.s32.totalorder %s86, %s87
      %p101 = scmp.eq.s32.totalorder %s15, 1
      %p102 = por %p100, %p101
      %p104 = scmp.ne.s32.totalorder %s87, %s103
      %p105 = scmp.eq.s32.totalorder %s15, 0
      %p106 = por %p104, %p105
      %s107 = ssub.s32 %s16, %s28
      %s108 = ssub.s32 %s17, %s24
      %s109 = sor.u32 %s107, %s108
      %p110 = scmp.eq.s32.totalorder %s109, 0
      %s112 = sadd.s32 %s111, 1
      %s113 = scalar_select %p110, %s111, %s112
      %p116 = pneg %p110
      %p117 = scmp.eq.s32.totalorder %s9, 1
      %p118 = por %p116, %p117
      %p119 = scmp.ne.s32.totalorder %s111, %s114
      %p120 = scmp.eq.s32.totalorder %s9, 0
      %p121 = por %p119, %p120
      %p122 = scmp.ne.s32.totalorder %s111, %s114
      %p123 = scmp.eq.s32.totalorder %s14, 1
      %p124 = por %p122, %p123
      %p125 = scmp.ne.s32.totalorder %s114, %s115
      %p126 = scmp.eq.s32.totalorder %s14, 0
      %p127 = por %p125, %p126
      %p128 = scmp.ne.s32.totalorder %s114, %s115
      %p129 = scmp.eq.s32.totalorder %s15, 1
      %p130 = por %p128, %p129
      %p132 = scmp.ne.s32.totalorder %s115, %s131
      %p133 = scmp.eq.s32.totalorder %s15, 0
      %p134 = por %p132, %p133
      %p135 = scmp.le.s32.totalorder 1, %s9
      %p136 = scmp.lt.s32.totalorder %s9, 3
      %p137 = pnand %p135, %p136
      %p138 = pneg %p137
      // Predicated region
      $region9: #{generator_forward.26} parent=5 // pred_check
        _
      $region10: #{generator_forward.26} parent=5 // pred_check_branch
        %140 = sbr.rel (%p137) target = $region12
      $region11: #{generator_forward.26} parent=5 // pred_region
        %s141 = ssub.s32 %s9, 1
        // Predicated region
        $region13: #{generator_forward.26} parent=11 // pred_check
          %p142 = pneg %p47
        $region14: #{generator_forward.26} parent=11 // pred_check_branch
          %144 = sbr.rel (%p142) target = $region16
        $region15: #{generator_forward.26} parent=11 // pred_region
          %s145 = smul.u32 2, %s18
          %p146 = scmp.lt.s32.totalorder %s145, 1
          %s147 = scalar_select %p146, %s145, 1
          %s148 = smul.addr %s147, 4
          %s149 = scalar_lea.vmem %s0, %s148
          %s150 = smul.u32 2, %s18
        $region16: #{generator_forward.26} parent=11 // pred_fallthru
          _
        // Predicated region
        $region17: #{generator_forward.26} parent=11 // pred_check
          %p151 = pneg %p99
        $region18: #{generator_forward.26} parent=11 // pred_check_branch
          %153 = sbr.rel (%p151) target = $region20
        $region19: #{generator_forward.26} parent=11 // pred_region
          %s154 = smul.u32 2, %s18
          %p155 = scmp.lt.s32.totalorder %s154, 1
          %s156 = scalar_select %p155, %s154, 1
          %s157 = smul.addr %s156, 8
          %s158 = scalar_lea.vmem %s2, %s157
          %s159 = smul.u32 2, %s18
        $region20: #{generator_forward.26} parent=11 // pred_fallthru
          _
      $region12: #{generator_forward.26} parent=5 // pred_fallthru
        _
      %p160 = scmp.lt.s32.totalorder %s9, 2
      // Predicated region
      $region21: #{generator_forward.26} parent=5 // pred_check
        %p161 = pneg %p160
      $region22: #{generator_forward.26} parent=5 // pred_check_branch
        %163 = sbr.rel (%p161) target = $region24
      $region23: #{generator_forward.26} parent=5 // pred_region
        // Predicated region
        $region25: #{generator_forward.26} parent=23 // pred_check
          %p164 = pneg %p67
        $region26: #{generator_forward.26} parent=23 // pred_check_branch
          %166 = sbr.rel (%p164) target = $region28
        $region27: #{generator_forward.26} parent=23 // pred_region
          %s167 = sand.u32 %s57, 1
          %s168 = sand.u32 %s57, 1
          %s169 = smul.addr %s168, 80
          %s170 = scalar_lea.vmem [#allocation2], %s169
          %s171 = smul.u32 2, %s17
          %s172 = smul.addr %s171, 4
          %s173 = scalar_lea.vmem %s1, %s172
          // Predicated region
          $region29: #{generator_forward.26} parent=27 // pred_check
            _
          $region30: #{generator_forward.26} parent=27 // pred_check_branch
            %175 = sbr.rel (0) target = $region32
          $region31: #{generator_forward.26} parent=27 // pred_region
            // Predicated region
            $region33: #{generator_forward.26} parent=31 // pred_check
              _
            $region34: #{generator_forward.26} parent=31 // pred_check_branch
              %177 = sbr.rel (0) target = $region36
            $region35: #{generator_forward.26} parent=31 // pred_region
              // Predicated region
              $region48: #{generator_forward.26} parent=35 // pred_check
                _
              $region49: #{generator_forward.26} parent=35 // pred_check_branch
                %211 = sbr.rel (0) target = $region51
              $region50: #{generator_forward.26} parent=35 // pred_region
                loop: start=0, step=1, limit=1
                $region52: #{generator_forward.26} parent=50 // loop_pre_header
                  _
                $region53: #{generator_forward.26} parent=50 // loop_header
                  %s213 = sphi 0, %s217
                  %p214 = scmp.ge.s32.totalorder %s213, 1
                  %s218 = sphi %s173, %s173
                  %s219 = sphi %s170, %s170
                $region54: #{generator_forward.26} parent=50 // loop_header_branch
                  %216 = sbr.rel (%p214) target = $region58
                $region55: #{generator_forward.26} parent=50 // loop_body
                  %v220 = vld [vmem:[%s218] sm:$0xff]
                  %221 = vst [vmem:[%s219] sm:$0xff] %v220
                  %v222 = vld [vmem:[%s218 + $0x10] sm:$0xff]
                  %223 = vst [vmem:[%s219 + $0x8] sm:$0xff] %v222
                  %v224 = vld [vmem:[%s218 + $0x20] sm:$0xff]
                  %225 = vst [vmem:[%s219 + $0x10] sm:$0xff] %v224
                  %v226 = vld [vmem:[%s218 + $0x30] sm:$0xff]
                  %227 = vst [vmem:[%s219 + $0x18] sm:$0xff] %v226
                  %v228 = vld [vmem:[%s218 + $0x40] sm:$0xff]
                  %229 = vst [vmem:[%s219 + $0x20] sm:$0xff] %v228
                  %v230 = vld [vmem:[%s218 + $0x50] sm:$0xff]
                  %231 = vst [vmem:[%s219 + $0x28] sm:$0xff] %v230
                  %v232 = vld [vmem:[%s218 + $0x60] sm:$0xff]
                  %233 = vst [vmem:[%s219 + $0x30] sm:$0xff] %v232
                  %v234 = vld [vmem:[%s218 + $0x70] sm:$0xff]
                  %235 = vst [vmem:[%s219 + $0x38] sm:$0xff] %v234
                  %v236 = vld [vmem:[%s218 + $0x80] sm:$0xff]
                  %237 = vst [vmem:[%s219 + $0x40] sm:$0xff] %v236
                  %v238 = vld [vmem:[%s218 + $0x90] sm:$0xff]
                  %239 = vst [vmem:[%s219 + $0x48] sm:$0xff] %v238
                $region56: #{generator_forward.26} parent=50 // loop_footer
                  %s217 = sadd.s32 1, %s213
                $region57: #{generator_forward.26} parent=50 // loop_footer_branch
                  %212 = sbr.rel target = $region53
                $region58: #{generator_forward.26} parent=50 // loop_exit
                  _
              $region51: #{generator_forward.26} parent=35 // pred_fallthru
                _
              // Predicated region
              $region59: #{generator_forward.26} parent=35 // pred_check
                _
              $region60: #{generator_forward.26} parent=35 // pred_check_branch
                %241 = sbr.rel target = $region62
              $region61: #{generator_forward.26} parent=35 // pred_region
                _
              $region62: #{generator_forward.26} parent=35 // pred_fallthru
                _
            $region36: #{generator_forward.26} parent=31 // pred_fallthru
              _
            // Predicated region
            $region37: #{generator_forward.26} parent=31 // pred_check
              _
            $region38: #{generator_forward.26} parent=31 // pred_check_branch
              %179 = sbr.rel target = $region40
            $region39: #{generator_forward.26} parent=31 // pred_region
              %s181 = ssub.s32 256, 1
              loop: start=0, step=1, limit=1
              $region41: #{generator_forward.26} parent=39 // loop_pre_header
                _
              $region42: #{generator_forward.26} parent=39 // loop_header
                %s183 = sphi 0, %s187
                %p184 = scmp.ge.s32.totalorder %s183, 1
                %s188 = sphi %s173, %s173
                %s189 = sphi %s170, %s170
              $region43: #{generator_forward.26} parent=39 // loop_header_branch
                %186 = sbr.rel (%p184) target = $region47
              $region44: #{generator_forward.26} parent=39 // loop_body
                %v190 = vld [vmem:[%s188] sm:%s181]
                %191 = vst [vmem:[%s189] sm:%s181] %v190
                %v192 = vld [vmem:[%s188 + $0x10] sm:%s181]
                %193 = vst [vmem:[%s189 + $0x8] sm:%s181] %v192
                %v194 = vld [vmem:[%s188 + $0x20] sm:%s181]
                %195 = vst [vmem:[%s189 + $0x10] sm:%s181] %v194
                %v196 = vld [vmem:[%s188 + $0x30] sm:%s181]
                %197 = vst [vmem:[%s189 + $0x18] sm:%s181] %v196
                %v198 = vld [vmem:[%s188 + $0x40] sm:%s181]
                %199 = vst [vmem:[%s189 + $0x20] sm:%s181] %v198
                %v200 = vld [vmem:[%s188 + $0x50] sm:%s181]
                %201 = vst [vmem:[%s189 + $0x28] sm:%s181] %v200
                %v202 = vld [vmem:[%s188 + $0x60] sm:%s181]
                %203 = vst [vmem:[%s189 + $0x30] sm:%s181] %v202
                %v204 = vld [vmem:[%s188 + $0x70] sm:%s181]
                %205 = vst [vmem:[%s189 + $0x38] sm:%s181] %v204
                %v206 = vld [vmem:[%s188 + $0x80] sm:%s181]
                %207 = vst [vmem:[%s189 + $0x40] sm:%s181] %v206
                %v208 = vld [vmem:[%s188 + $0x90] sm:%s181]
                %209 = vst [vmem:[%s189 + $0x48] sm:%s181] %v208
              $region45: #{generator_forward.26} parent=39 // loop_footer
                %s187 = sadd.s32 1, %s183
              $region46: #{generator_forward.26} parent=39 // loop_footer_branch
                %182 = sbr.rel target = $region42
              $region47: #{generator_forward.26} parent=39 // loop_exit
                _
            $region40: #{generator_forward.26} parent=31 // pred_fallthru
              _
          $region32: #{generator_forward.26} parent=27 // pred_fallthru
            _
          %242 = vnop
        $region28: #{generator_forward.26} parent=23 // pred_fallthru
          _
      $region24: #{generator_forward.26} parent=5 // pred_fallthru
        _
      %p243 = scmp.le.s32.totalorder 1, %s9
      %p244 = scmp.lt.s32.totalorder %s9, 3
      %p245 = pnand %p243, %p244
      %p246 = pneg %p245
      // Predicated region
      $region63: #{generator_forward.26} parent=5 // pred_check
        _
      $region64: #{generator_forward.26} parent=5 // pred_check_branch
        %248 = sbr.rel (%p245) target = $region66
      $region65: #{generator_forward.26} parent=5 // pred_region
        %s249 = ssub.s32 %s9, 1
        %s250 = sand.u32 %s60, 1
        %s251 = sand.u32 %s60, 1
        %s252 = smul.addr %s251, 80
        %s253 = scalar_lea.vmem [#allocation2], %s252
        // Predicated region
        $region67: #{generator_forward.26} parent=65 // pred_check
          %p254 = pneg %p73
        $region68: #{generator_forward.26} parent=65 // pred_check_branch
          %256 = sbr.rel (%p254) target = $region70
        $region69: #{generator_forward.26} parent=65 // pred_region
          _
        $region70: #{generator_forward.26} parent=65 // pred_fallthru
          _
        %s257 = smul.u32 2, %s18
        %p258 = scmp.lt.s32.totalorder %s257, 1
        %s259 = scalar_select %p258, %s257, 1
        %s260 = smul.addr %s259, 4
        %s261 = scalar_lea.vmem %s0, %s260
        %p262 = pneg %p47
        %p263 = pneg %p44
        %s264 = sand.u32 %s60, 1
        %s265 = sand.u32 %s60, 1
        %s266 = smul.addr %s265, 80
        %s267 = scalar_lea.vmem [#allocation2], %s266
        %p268 = pneg %p73
        %p269 = pneg %p70
        %s270 = smul.u32 2, %s18
        %p271 = scmp.lt.s32.totalorder %s270, 1
        %s272 = scalar_select %p271, %s270, 1
        %s273 = smul.addr %s272, 8
        %s274 = scalar_lea.vmem %s2, %s273
        %p275 = pneg %p99
        %p276 = pneg %p96
        %p277 = pneg %p127
        %p278 = pneg %p124
        %s279 = sand.u32 %s114, 1
        %s280 = sand.u32 %s114, 1
        %s281 = smul.addr %s280, 16
        %s282 = scalar_lea.vmem [#allocation3], %s281
        %s283 = smul.u32 2, %s18
        %p284 = scmp.lt.s32.totalorder %s283, 1
        %s285 = scalar_select %p284, %s283, 1
        %s286 = smul.addr %s285, 4
        %s287 = scalar_lea.vmem %s0, %s286
        %s288 = smul.u32 2, %s18
        %s289 = smul.u32 2, %s19
        %s290 = smul.u32 2, %s18
        %p291 = scmp.lt.s32.totalorder %s290, 1
        %s292 = scalar_select %p291, %s290, 1
        %s293 = smul.addr %s292, 8
        %s294 = scalar_lea.vmem %s2, %s293
        %s295 = smul.u32 2, %s18
        %s296 = smul.u32 2, %s18
        %s297 = smul.u32 2, %s19
        %v299 = vld [vmem:[%s287] sm:$0xf]
        %v300 = vld [vmem:[%s287 + $0x4] sm:$0xf]
        %v301 = vld [vmem:[%s253] sm:$0xff]
        %v302 = vld [vmem:[%s253 + $0x8] sm:$0xff]
        %v303 = vld [vmem:[%s253 + $0x10] sm:$0xff]
        %v304 = vld [vmem:[%s253 + $0x18] sm:$0xff]
        %v305 = vld [vmem:[%s253 + $0x20] sm:$0xff]
        %v306 = vld [vmem:[%s253 + $0x28] sm:$0xff]
        %v307 = vld [vmem:[%s253 + $0x30] sm:$0xff]
        %v308 = vld [vmem:[%s253 + $0x38] sm:$0xff]
        %v309 = vld [vmem:[%s253 + $0x40] sm:$0xff]
        %v310 = vld [vmem:[%s253 + $0x48] sm:$0xff]
        %v311 = vld [vmem:[%s294] sm:$0xff]
        %v312 = vld [vmem:[%s294 + $0x8] sm:$0xff]
        %314 = vset.pattern.permute.xlu0 0
        %315 = vperm.xlu0 %314, %v311
        %v316 = vpop.permute.xlu0 %315
        %319 = vset.pattern.permute.xlu0 0
        %320 = vperm.xlu0 %319, %v312
        %v321 = vpop.permute.xlu0 %320
        %v325 = vunpack.c.l.b16 %v299
        %v326 = vunpack.c.l.b16 %v300
        %v327 = vpack.c.b16 %v326, %v325
        %v338 = vunpack.c.l.b16 %v301
        %v339 = vunpack.c.h.b16 %v301
        %v340 = vunpack.c.l.b16 %v302
        %v341 = vunpack.c.h.b16 %v302
        %v342 = vunpack.c.l.b16 %v303
        %v343 = vunpack.c.h.b16 %v303
        %v344 = vunpack.c.l.b16 %v304
        %v345 = vunpack.c.h.b16 %v304
        %v346 = vunpack.c.l.b16 %v305
        %v347 = vunpack.c.h.b16 %v305
        %v348 = vunpack.c.l.b16 %v306
        %v349 = vunpack.c.h.b16 %v306
        %v350 = vunpack.c.l.b16 %v307
        %v351 = vunpack.c.h.b16 %v307
        %v352 = vunpack.c.l.b16 %v308
        %v353 = vunpack.c.h.b16 %v308
        %v354 = vunpack.c.l.b16 %v309
        %v355 = vunpack.c.h.b16 %v309
        %v356 = vunpack.c.l.b16 %v310
        %v357 = vunpack.c.h.b16 %v310
        %v358 = vpack.c.b16 %v340, %v338
        %v359 = vpack.c.b16 %v341, %v339
        %v360 = vpack.c.b16 %v344, %v342
        %v361 = vpack.c.b16 %v345, %v343
        %v362 = vpack.c.b16 %v348, %v346
        %v363 = vpack.c.b16 %v349, %v347
        %v364 = vpack.c.b16 %v352, %v350
        %v365 = vpack.c.b16 %v353, %v351
        %v366 = vpack.c.b16 %v356, %v354
        %v367 = vpack.c.b16 %v357, %v355
        %vm378 = vcmask 654336
        %v380 = vsel %vm378, %v327, 0
        %382 = vmatprep.subr.bf16.mxu0 0
        %383 = vmatpush1.bf16.msra.mxu0 0
        %384 = vmatprep.subr.bf16.mxu0 0
        %385 = vmatpush1.bf16.msra.mxu0 0
        %386 = vmatprep.subr.bf16.mxu0 0
        %387 = vmatpush1.bf16.msra.mxu0 0
        %388 = vmatprep.subr.bf16.mxu0 %v367
        %389 = vmatpush1.bf16.msra.mxu0 %v366
        %390 = vmatprep.subr.bf16.mxu0 %v365
        %391 = vmatpush1.bf16.msra.mxu0 %v364
        %392 = vmatprep.subr.bf16.mxu0 %v363
        %393 = vmatpush1.bf16.msra.mxu0 %v362
        %394 = vmatprep.subr.bf16.mxu0 %v361
        %395 = vmatpush1.bf16.msra.mxu0 %v360
        %396 = vmatprep.subr.bf16.mxu0 %v359
        %397 = vmatpush1.bf16.msra.mxu0 %v358
        %398 = vmatprep.subr.bf16.mxu0 0
        %399 = vmatpush2.bf16.msra.mxu0 0
        %400 = vmatprep.subr.bf16.mxu0 0
        %401 = vmatpush2.bf16.msra.mxu0 0
        %402 = vmatprep.subr.bf16.mxu0 0
        %403 = vmatpush2.bf16.msra.mxu0 0
        %404 = vmatprep.subr.bf16.mxu0 0
        %405 = vmatpush2.bf16.msra.mxu0 0
        %406 = vmatprep.subr.bf16.mxu0 0
        %407 = vmatpush2.bf16.msra.mxu0 0
        %408 = vmatprep.subr.bf16.mxu0 0
        %409 = vmatpush2.bf16.msra.mxu0 0
        %410 = vmatprep.subr.bf16.mxu0 0
        %411 = vmatpush2.bf16.msra.mxu0 0
        %412 = vmatprep.subr.bf16.mxu0 0
        %413 = vmatpush2.bf16.msra.mxu0 0
        %414 = vmatprep.mubr.bf16.mxu0 0
        %415 = vmatmul.mubr.bf16.gmra.mxu0 %v380
        %v416 = vpop.f32.mrf.mxu0
        %v417 = vadd.f32 %v316, %v416
        %v418 = vpop.f32.mrf.mxu0
        %v419 = vadd.f32 %v316, %v418
        %v420 = vpop.f32.mrf.mxu0
        %v421 = vadd.f32 %v321, %v420
        %v422 = vpop.f32.mrf.mxu0
        %v423 = vadd.f32 %v321, %v422
        %424 = vdwg.mxu0
        %vm425 = vcmp.ge.f32.partialorder %v417, 0.0
        %vm426 = vcmp.ge.f32.partialorder %v419, 0.0
        %vm427 = vcmp.ge.f32.partialorder %v421, 0.0
        %vm428 = vcmp.ge.f32.partialorder %v423, 0.0
        %v429 = vmul.f32 %v417, 0.2
        %v430 = vmul.f32 %v419, 0.2
        %v431 = vmul.f32 %v421, 0.2
        %v432 = vmul.f32 %v423, 0.2
        %v433 = vsel %vm425, %v417, %v429
        %v434 = vsel %vm426, %v419, %v430
        %v435 = vsel %vm427, %v421, %v431
        %v436 = vsel %vm428, %v423, %v432
        %v437 = vpack.c.bf16 %v435, %v433
        %v438 = vpack.c.bf16 %v436, %v434
        %v441 = vunpack.c.l.b16 %v437
        %v442 = vunpack.c.l.b16 %v438
        %v443 = vunpack.c.h.b16 %v437
        %v444 = vunpack.c.h.b16 %v438
        %v445 = vpack.c.b16 %v442, %v441
        %v446 = vpack.c.b16 %v444, %v443
        %449 = vst [vmem:[%s282] sm:$0xff] %v445
        %450 = vst [vmem:[%s282 + $0x8] sm:$0xff] %v446
        %s451 = sand.u32 %s114, 1
        %s452 = sand.u32 %s114, 1
        %s453 = smul.addr %s452, 16
        %s454 = scalar_lea.vmem [#allocation3], %s453
        // Predicated region
        $region71: #{generator_forward.26} parent=65 // pred_check
          %p455 = pneg %p124
        $region72: #{generator_forward.26} parent=65 // pred_check_branch
          %457 = sbr.rel (%p455) target = $region74
        $region73: #{generator_forward.26} parent=65 // pred_region
          %s458 = smul.u32 2, %s18
          %s459 = smul.u32 2, %s19
          %s460 = smul.addr %s458, 4
          %s461 = sadd.s32 %s459, %s460
          %s462 = smul.addr %s461, 4
          %s463 = scalar_lea.vmem %s3, %s462
          // Predicated region
          $region75: #{generator_forward.26} parent=73 // pred_check
            _
          $region76: #{generator_forward.26} parent=73 // pred_check_branch
            %465 = sbr.rel (0) target = $region78
          $region77: #{generator_forward.26} parent=73 // pred_region
            // Predicated region
            $region79: #{generator_forward.26} parent=77 // pred_check
              _
            $region80: #{generator_forward.26} parent=77 // pred_check_branch
              %467 = sbr.rel (0) target = $region82
            $region81: #{generator_forward.26} parent=77 // pred_region
              // Predicated region
              $region94: #{generator_forward.26} parent=81 // pred_check
                _
              $region95: #{generator_forward.26} parent=81 // pred_check_branch
                %485 = sbr.rel (0) target = $region97
              $region96: #{generator_forward.26} parent=81 // pred_region
                loop: start=0, step=1, limit=1
                $region98: #{generator_forward.26} parent=96 // loop_pre_header
                  _
                $region99: #{generator_forward.26} parent=96 // loop_header
                  %s487 = sphi 0, %s491
                  %p488 = scmp.ge.s32.totalorder %s487, 1
                  %s492 = sphi %s454, %s454
                  %s493 = sphi %s463, %s463
                $region100: #{generator_forward.26} parent=96 // loop_header_branch
                  %490 = sbr.rel (%p488) target = $region104
                $region101: #{generator_forward.26} parent=96 // loop_body
                  %v494 = vld [vmem:[%s492] sm:$0xff]
                  %495 = vst [vmem:[%s493] sm:$0xff] %v494
                  %v496 = vld [vmem:[%s492 + $0x8] sm:$0xff]
                  %497 = vst [vmem:[%s493 + $0x10] sm:$0xff] %v496
                $region102: #{generator_forward.26} parent=96 // loop_footer
                  %s491 = sadd.s32 1, %s487
                $region103: #{generator_forward.26} parent=96 // loop_footer_branch
                  %486 = sbr.rel target = $region99
                $region104: #{generator_forward.26} parent=96 // loop_exit
                  _
              $region97: #{generator_forward.26} parent=81 // pred_fallthru
                _
              // Predicated region
              $region105: #{generator_forward.26} parent=81 // pred_check
                _
              $region106: #{generator_forward.26} parent=81 // pred_check_branch
                %499 = sbr.rel target = $region108
              $region107: #{generator_forward.26} parent=81 // pred_region
                _
              $region108: #{generator_forward.26} parent=81 // pred_fallthru
                _
            $region82: #{generator_forward.26} parent=77 // pred_fallthru
              _
            // Predicated region
            $region83: #{generator_forward.26} parent=77 // pred_check
              _
            $region84: #{generator_forward.26} parent=77 // pred_check_branch
              %469 = sbr.rel target = $region86
            $region85: #{generator_forward.26} parent=77 // pred_region
              %s471 = ssub.s32 256, 1
              loop: start=0, step=1, limit=1
              $region87: #{generator_forward.26} parent=85 // loop_pre_header
                _
              $region88: #{generator_forward.26} parent=85 // loop_header
                %s473 = sphi 0, %s477
                %p474 = scmp.ge.s32.totalorder %s473, 1
                %s478 = sphi %s454, %s454
                %s479 = sphi %s463, %s463
              $region89: #{generator_forward.26} parent=85 // loop_header_branch
                %476 = sbr.rel (%p474) target = $region93
              $region90: #{generator_forward.26} parent=85 // loop_body
                %v480 = vld [vmem:[%s478] sm:%s471]
                %481 = vst [vmem:[%s479] sm:%s471] %v480
                %v482 = vld [vmem:[%s478 + $0x8] sm:%s471]
                %483 = vst [vmem:[%s479 + $0x10] sm:%s471] %v482
              $region91: #{generator_forward.26} parent=85 // loop_footer
                %s477 = sadd.s32 1, %s473
              $region92: #{generator_forward.26} parent=85 // loop_footer_branch
                %472 = sbr.rel target = $region88
              $region93: #{generator_forward.26} parent=85 // loop_exit
                _
            $region86: #{generator_forward.26} parent=77 // pred_fallthru
              _
          $region78: #{generator_forward.26} parent=73 // pred_fallthru
            _
          %500 = vnop
        $region74: #{generator_forward.26} parent=65 // pred_fallthru
          _
      $region66: #{generator_forward.26} parent=5 // pred_fallthru
        _
      %p501 = scmp.le.s32.totalorder 2, %s9
      // Predicated region
      $region109: #{generator_forward.26} parent=5 // pred_check
        %p502 = pneg %p501
      $region110: #{generator_forward.26} parent=5 // pred_check_branch
        %504 = sbr.rel (%p502) target = $region112
      $region111: #{generator_forward.26} parent=5 // pred_region
        %s505 = ssub.s32 %s9, 2
        // Predicated region
        $region113: #{generator_forward.26} parent=111 // pred_check
          %p506 = pneg %p130
        $region114: #{generator_forward.26} parent=111 // pred_check_branch
          %508 = sbr.rel (%p506) target = $region116
        $region115: #{generator_forward.26} parent=111 // pred_region
          %s509 = sand.u32 %s115, 1
          %s510 = sand.u32 %s115, 1
          %s511 = smul.addr %s510, 16
          %s512 = scalar_lea.vmem [#allocation3], %s511
        $region116: #{generator_forward.26} parent=111 // pred_fallthru
          _
      $region112: #{generator_forward.26} parent=5 // pred_fallthru
        _
    $region6: #{generator_forward.26} parent=1 // loop_footer
      %s13 = sadd.s32 1, %s9
    $region7: #{generator_forward.26} parent=1 // loop_footer_branch
      %8 = sbr.rel target = $region3
    $region8: #{generator_forward.26} parent=1 // loop_exit
      _

// kernel: generator_forward.27
$region0: #{generator_forward.27}
  #allocation0 [shape = 'u32[]', space=smem, size = 0x4, offset = 0x4, fixed_abs, tag = 'smem constant byte address 0x4 - core index']
  #allocation1 [shape = 'u32[144,128]{1,0:T(1,128)}', space=vmem, size = 0x12000, scoped, tag = 'internal scratch']
  %s0 = inlined_call_operand.vmem [shape: bf16[32,144], index: 0, kind: input, shape index: {}]
  %s1 = inlined_call_operand.vmem [shape: bf16[144,128], index: 1, kind: input, shape index: {}]
  %s2 = inlined_call_operand.vmem [shape: f32[32,1], index: 2, kind: input, shape index: {}]
  %s3 = inlined_call_operand.vmem [shape: bf16[32,128], index: 3, kind: output, shape index: {}]
  %s4 = sld [smem:[#allocation0]]
  $region22: #{generator_forward.27} parent=0
    _
  %s6 = ssub.s32 1, %s4
  %s7 = scalar_select 0, %s6, %s4
  // Predicated region
  $region2: #{generator_forward.27} parent=0 // pred_check
    _
  $region3: #{generator_forward.27} parent=0 // pred_check_branch
    %9 = sbr.rel (0) target = $region5
  $region4: #{generator_forward.27} parent=0 // pred_region
    _
  $region5: #{generator_forward.27} parent=0 // pred_fallthru
    _
  // Predicated region
  $region6: #{generator_forward.27} parent=0 // pred_check
    _
  $region7: #{generator_forward.27} parent=0 // pred_check_branch
    %11 = sbr.rel (0) target = $region9
  $region8: #{generator_forward.27} parent=0 // pred_region
    _
  $region9: #{generator_forward.27} parent=0 // pred_fallthru
    _
  // Predicated region
  $region10: #{generator_forward.27} parent=0 // pred_check
    _
  $region11: #{generator_forward.27} parent=0 // pred_check_branch
    %13 = sbr.rel (0) target = $region13
  $region12: #{generator_forward.27} parent=0 // pred_region
    _
  $region13: #{generator_forward.27} parent=0 // pred_fallthru
    _
  %v15 = vld [vmem:[%s0] sm:$0xff]
  %v16 = vld [vmem:[%s0 + $0x8] sm:$0xff]
  %v17 = vld [vmem:[%s0 + $0x10] sm:$0xff]
  %v18 = vld [vmem:[%s0 + $0x18] sm:$0xff]
  %v19 = vld [vmem:[%s1] sm:$0xf]
  %v20 = vld [vmem:[%s1 + $0x4] sm:$0xf]
  %v21 = vld [vmem:[%s1 + $0x8] sm:$0xf]
  %v22 = vld [vmem:[%s1 + $0xc] sm:$0xf]
  %v23 = vld [vmem:[%s1 + $0x10] sm:$0xf]
  %v24 = vld [vmem:[%s1 + $0x14] sm:$0xf]
  %v25 = vld [vmem:[%s1 + $0x18] sm:$0xf]
  %v26 = vld [vmem:[%s1 + $0x1c] sm:$0xf]
  %v27 = vld [vmem:[%s1 + $0x20] sm:$0xf]
  %v28 = vld [vmem:[%s1 + $0x24] sm:$0xf]
  %v29 = vld [vmem:[%s1 + $0x28] sm:$0xf]
  %v30 = vld [vmem:[%s1 + $0x2c] sm:$0xf]
  %v31 = vld [vmem:[%s1 + $0x30] sm:$0xf]
  %v32 = vld [vmem:[%s1 + $0x34] sm:$0xf]
  %v33 = vld [vmem:[%s1 + $0x38] sm:$0xf]
  %v34 = vld [vmem:[%s1 + $0x3c] sm:$0xf]
  %v35 = vld [vmem:[%s1 + $0x40] sm:$0xf]
  %v36 = vld [vmem:[%s1 + $0x44] sm:$0xf]
  %v37 = vld [vmem:[%s2] sm:$0xff]
  %v38 = vld [vmem:[%s2 + $0x8] sm:$0xff]
  %v39 = vld [vmem:[%s2 + $0x10] sm:$0xff]
  %v40 = vld [vmem:[%s2 + $0x18] sm:$0xff]
  %42 = vset.pattern.permute.xlu0 0
  %43 = vperm.xlu0 %42, %v37
  %v44 = vpop.permute.xlu0 %43
  %47 = vset.pattern.permute.xlu0 0
  %48 = vperm.xlu0 %47, %v38
  %v49 = vpop.permute.xlu0 %48
  %52 = vset.pattern.permute.xlu0 0
  %53 = vperm.xlu0 %52, %v39
  %v54 = vpop.permute.xlu0 %53
  %57 = vset.pattern.permute.xlu0 0
  %58 = vperm.xlu0 %57, %v40
  %v59 = vpop.permute.xlu0 %58
  %v65 = vunpack.c.l.b16 %v15
  %v66 = vunpack.c.h.b16 %v15
  %v67 = vunpack.c.l.b16 %v16
  %v68 = vunpack.c.h.b16 %v16
  %v69 = vunpack.c.l.b16 %v17
  %v70 = vunpack.c.h.b16 %v17
  %v71 = vunpack.c.l.b16 %v18
  %v72 = vunpack.c.h.b16 %v18
  %v73 = vpack.c.b16 %v67, %v65
  %v74 = vpack.c.b16 %v68, %v66
  %v75 = vpack.c.b16 %v71, %v69
  %v76 = vpack.c.b16 %v72, %v70
  %v97 = vunpack.c.l.b16 %v19
  %v98 = vunpack.c.l.b16 %v20
  %v99 = vunpack.c.l.b16 %v21
  %v100 = vunpack.c.l.b16 %v22
  %v101 = vunpack.c.l.b16 %v23
  %v102 = vunpack.c.l.b16 %v24
  %v103 = vunpack.c.l.b16 %v25
  %v104 = vunpack.c.l.b16 %v26
  %v105 = vunpack.c.l.b16 %v27
  %v106 = vunpack.c.l.b16 %v28
  %v107 = vunpack.c.l.b16 %v29
  %v108 = vunpack.c.l.b16 %v30
  %v109 = vunpack.c.l.b16 %v31
  %v110 = vunpack.c.l.b16 %v32
  %v111 = vunpack.c.l.b16 %v33
  %v112 = vunpack.c.l.b16 %v34
  %v113 = vunpack.c.l.b16 %v35
  %v114 = vunpack.c.l.b16 %v36
  %v115 = vpack.c.b16 %v98, %v97
  %v116 = vpack.c.b16 %v100, %v99
  %v117 = vpack.c.b16 %v102, %v101
  %v118 = vpack.c.b16 %v104, %v103
  %v119 = vpack.c.b16 %v106, %v105
  %v120 = vpack.c.b16 %v108, %v107
  %v121 = vpack.c.b16 %v110, %v109
  %v122 = vpack.c.b16 %v112, %v111
  %v123 = vpack.c.b16 %v114, %v113
  %vm133 = vcmask 130048
  %v135 = vsel %vm133, %v74, 0
  %v138 = vsel %vm133, %v76, 0
  %140 = vmatprep.subr.bf16.mxu0 0
  %141 = vmatpush1.bf16.msra.mxu0 %v122
  %142 = vmatprep.subr.bf16.mxu0 0
  %143 = vmatpush1.bf16.msra.mxu0 %v121
  %144 = vmatprep.subr.bf16.mxu0 0
  %145 = vmatpush1.bf16.msra.mxu0 %v120
  %146 = vmatprep.subr.bf16.mxu0 0
  %147 = vmatpush1.bf16.msra.mxu0 %v119
  %148 = vmatprep.subr.bf16.mxu0 0
  %149 = vmatpush1.bf16.msra.mxu0 %v118
  %150 = vmatprep.subr.bf16.mxu0 0
  %151 = vmatpush1.bf16.msra.mxu0 %v117
  %152 = vmatprep.subr.bf16.mxu0 0
  %153 = vmatpush1.bf16.msra.mxu0 %v116
  %154 = vmatprep.subr.bf16.mxu0 0
  %155 = vmatpush1.bf16.msra.mxu0 %v115
  %156 = vmatprep.subr.bf16.mxu0 0
  %157 = vmatpush2.bf16.msra.mxu0 0
  %158 = vmatprep.subr.bf16.mxu0 0
  %159 = vmatpush2.bf16.msra.mxu0 0
  %160 = vmatprep.subr.bf16.mxu0 0
  %161 = vmatpush2.bf16.msra.mxu0 0
  %162 = vmatprep.subr.bf16.mxu0 0
  %163 = vmatpush2.bf16.msra.mxu0 0
  %164 = vmatprep.subr.bf16.mxu0 0
  %165 = vmatpush2.bf16.msra.mxu0 0
  %166 = vmatprep.subr.bf16.mxu0 0
  %167 = vmatpush2.bf16.msra.mxu0 0
  %168 = vmatprep.subr.bf16.mxu0 0
  %169 = vmatpush2.bf16.msra.mxu0 0
  %170 = vmatprep.subr.bf16.mxu0 0
  %171 = vmatpush2.bf16.msra.mxu0 %v123
  %172 = vmatprep.mubr.bf16.mxu0 %v135
  %173 = vmatmul.mubr.bf16.gmra.mxu0 %v73
  %v174 = vpop.f32.mrf.mxu0
  %v175 = vadd.f32 %v44, %v174
  %v176 = vpop.f32.mrf.mxu0
  %v177 = vpop.f32.mrf.mxu0
  %v178 = vadd.f32 %v49, %v177
  %v179 = vpop.f32.mrf.mxu0
  %180 = vmatprep.mubr.bf16.mxu0 %v138
  %181 = vmatmul.mubr.bf16.gmra.mxu0 %v75
  %v182 = vpop.f32.mrf.mxu0
  %v183 = vadd.f32 %v54, %v182
  %v184 = vpop.f32.mrf.mxu0
  %v185 = vpop.f32.mrf.mxu0
  %v186 = vadd.f32 %v59, %v185
  %v187 = vpop.f32.mrf.mxu0
  %188 = vdwg.mxu0
  %vm189 = vcmp.ge.f32.partialorder %v175, 0.0
  %vm190 = vcmp.ge.f32.partialorder %v178, 0.0
  %vm191 = vcmp.ge.f32.partialorder %v183, 0.0
  %vm192 = vcmp.ge.f32.partialorder %v186, 0.0
  %v193 = vmul.f32 %v175, 0.2
  %v194 = vmul.f32 %v178, 0.2
  %v195 = vmul.f32 %v183, 0.2
  %v196 = vmul.f32 %v186, 0.2
  %v197 = vsel %vm189, %v175, %v193
  %v198 = vsel %vm190, %v178, %v194
  %v199 = vsel %vm191, %v183, %v195
  %v200 = vsel %vm192, %v186, %v196
  %v201 = vpack.c.bf16 %v198, %v197
  %v202 = vpack.c.bf16 %v200, %v199
  %v205 = vunpack.c.l.b16 %v201
  %v206 = vunpack.c.h.b16 %v201
  %v207 = vunpack.c.l.b16 %v202
  %v208 = vunpack.c.h.b16 %v202
  %v209 = vpack.c.b16 %v205, %v205
  %v210 = vpack.c.b16 %v206, %v206
  %v211 = vpack.c.b16 %v207, %v207
  %v212 = vpack.c.b16 %v208, %v208
  %217 = vst [vmem:[%s3] sm:$0xf] %v209
  %218 = vst [vmem:[%s3 + $0x4] sm:$0xf] %v210
  %219 = vst [vmem:[%s3 + $0x8] sm:$0xf] %v211
  %220 = vst [vmem:[%s3 + $0xc] sm:$0xf] %v212
  // Predicated region
  $region14: #{generator_forward.27} parent=0 // pred_check
    _
  $region15: #{generator_forward.27} parent=0 // pred_check_branch
    %222 = sbr.rel (0) target = $region17
  $region16: #{generator_forward.27} parent=0 // pred_region
    _
  $region17: #{generator_forward.27} parent=0 // pred_fallthru
    _
  // Predicated region
  $region18: #{generator_forward.27} parent=0 // pred_check
    _
  $region19: #{generator_forward.27} parent=0 // pred_check_branch
    %224 = sbr.rel (0) target = $region21
  $region20: #{generator_forward.27} parent=0 // pred_region
    _
  $region21: #{generator_forward.27} parent=0 // pred_fallthru
    _

// kernel: mul.52
$region0: #{mul.52}
  #allocation0 [shape = 's32[1]{0}', space=sflag, size = 0x4, scoped, tag = 'scoped memory for mul.52']
  %s0 = inlined_call_operand.vmem [shape: f32[64,2], index: 0, kind: input, shape index: {}]
  %s1 = inlined_call_operand.vmem [shape: f32[64,2,4,4], index: 1, kind: output, shape index: {}]
  // Predicated region
  $region2: #{mul.52} parent=0 // pred_check
    _
  $region3: #{mul.52} parent=0 // pred_check_branch
    %3 = sbr.rel (0) target = $region5
  $region4: #{mul.52} parent=0 // pred_region
    _
  $region5: #{mul.52} parent=0 // pred_fallthru
    _
  %v4 = vld [vmem:[%s0] ss:$0 sm:$0xff]
  %5 = vst [vmem:[%s1] sm:$0xf] %v4
  %s6 = scalar_lea.vmem %s0, 1
  %v7 = vld [vmem:[%s6] ss:$0 sm:$0xff]
  %s8 = scalar_lea.vmem %s1, 16
  %9 = vst [vmem:[%s8] sm:$0xf] %v7
  %s10 = scalar_lea.vmem %s1, 4
  %11 = vst [vmem:[%s10] sm:$0xf] %v4
  %s12 = scalar_lea.vmem %s1, 20
  %13 = vst [vmem:[%s12] sm:$0xf] %v7
  %s14 = scalar_lea.vmem %s1, 8
  %15 = vst [vmem:[%s14] sm:$0xf] %v4
  %s16 = scalar_lea.vmem %s1, 24
  %17 = vst [vmem:[%s16] sm:$0xf] %v7
  %s18 = scalar_lea.vmem %s1, 12
  %19 = vst [vmem:[%s18] sm:$0xf] %v4
  %s20 = scalar_lea.vmem %s1, 28
  %21 = vst [vmem:[%s20] sm:$0xf] %v7

// kernel: generator_forward.28
$region0: #{generator_forward.28}
  #allocation0 [shape = 'u32[]', space=smem, size = 0x4, offset = 0x4, fixed_abs, tag = 'smem constant byte address 0x4 - core index']
  #allocation1 [shape = 'u32[144,128]{1,0:T(1,128)}', space=vmem, size = 0x12000, scoped, tag = 'internal scratch']
  %s0 = inlined_call_operand.vmem [shape: bf16[32,64], index: 0, kind: input, shape index: {}]
  %s1 = inlined_call_operand.vmem [shape: bf16[64,128], index: 1, kind: input, shape index: {}]
  %s2 = inlined_call_operand.vmem [shape: f32[32,1], index: 2, kind: input, shape index: {}]
  %s3 = inlined_call_operand.vmem [shape: bf16[32,128], index: 3, kind: output, shape index: {}]
  %s4 = sld [smem:[#allocation0]]
  $region22: #{generator_forward.28} parent=0
    _
  %s6 = ssub.s32 1, %s4
  %s7 = scalar_select 0, %s6, %s4
  // Predicated region
  $region2: #{generator_forward.28} parent=0 // pred_check
    _
  $region3: #{generator_forward.28} parent=0 // pred_check_branch
    %9 = sbr.rel (0) target = $region5
  $region4: #{generator_forward.28} parent=0 // pred_region
    _
  $region5: #{generator_forward.28} parent=0 // pred_fallthru
    _
  // Predicated region
  $region6: #{generator_forward.28} parent=0 // pred_check
    _
  $region7: #{generator_forward.28} parent=0 // pred_check_branch
    %11 = sbr.rel (0) target = $region9
  $region8: #{generator_forward.28} parent=0 // pred_region
    _
  $region9: #{generator_forward.28} parent=0 // pred_fallthru
    _
  // Predicated region
  $region10: #{generator_forward.28} parent=0 // pred_check
    _
  $region11: #{generator_forward.28} parent=0 // pred_check_branch
    %13 = sbr.rel (0) target = $region13
  $region12: #{generator_forward.28} parent=0 // pred_region
    _
  $region13: #{generator_forward.28} parent=0 // pred_fallthru
    _
  %v15 = vld [vmem:[%s0] sm:$0xf]
  %v16 = vld [vmem:[%s0 + $0x4] sm:$0xf]
  %v17 = vld [vmem:[%s0 + $0x8] sm:$0xf]
  %v18 = vld [vmem:[%s0 + $0xc] sm:$0xf]
  %v19 = vld [vmem:[%s1] sm:$0xf]
  %v20 = vld [vmem:[%s1 + $0x4] sm:$0xf]
  %v21 = vld [vmem:[%s1 + $0x8] sm:$0xf]
  %v22 = vld [vmem:[%s1 + $0xc] sm:$0xf]
  %v23 = vld [vmem:[%s1 + $0x10] sm:$0xf]
  %v24 = vld [vmem:[%s1 + $0x14] sm:$0xf]
  %v25 = vld [vmem:[%s1 + $0x18] sm:$0xf]
  %v26 = vld [vmem:[%s1 + $0x1c] sm:$0xf]
  %v27 = vld [vmem:[%s2] sm:$0xff]
  %v28 = vld [vmem:[%s2 + $0x8] sm:$0xff]
  %v29 = vld [vmem:[%s2 + $0x10] sm:$0xff]
  %v30 = vld [vmem:[%s2 + $0x18] sm:$0xff]
  %32 = vset.pattern.permute.xlu0 0
  %33 = vperm.xlu0 %32, %v27
  %v34 = vpop.permute.xlu0 %33
  %37 = vset.pattern.permute.xlu0 0
  %38 = vperm.xlu0 %37, %v28
  %v39 = vpop.permute.xlu0 %38
  %42 = vset.pattern.permute.xlu0 0
  %43 = vperm.xlu0 %42, %v29
  %v44 = vpop.permute.xlu0 %43
  %47 = vset.pattern.permute.xlu0 0
  %48 = vperm.xlu0 %47, %v30
  %v49 = vpop.permute.xlu0 %48
  %v55 = vunpack.c.l.b16 %v15
  %v56 = vunpack.c.l.b16 %v16
  %v57 = vunpack.c.l.b16 %v17
  %v58 = vunpack.c.l.b16 %v18
  %v59 = vpack.c.b16 %v56, %v55
  %v60 = vpack.c.b16 %v58, %v57
  %v69 = vunpack.c.l.b16 %v19
  %v70 = vunpack.c.l.b16 %v20
  %v71 = vunpack.c.l.b16 %v21
  %v72 = vunpack.c.l.b16 %v22
  %v73 = vunpack.c.l.b16 %v23
  %v74 = vunpack.c.l.b16 %v24
  %v75 = vunpack.c.l.b16 %v25
  %v76 = vunpack.c.l.b16 %v26
  %v77 = vpack.c.b16 %v70, %v69
  %v78 = vpack.c.b16 %v72, %v71
  %v79 = vpack.c.b16 %v74, %v73
  %v80 = vpack.c.b16 %v76, %v75
  %vm85 = vcmask 523264
  %v87 = vsel %vm85, %v59, 0
  %v90 = vsel %vm85, %v60, 0
  %92 = vmatprep.subr.bf16.mxu0 0
  %93 = vmatpush1.bf16.msra.mxu0 0
  %94 = vmatprep.subr.bf16.mxu0 0
  %95 = vmatpush1.bf16.msra.mxu0 0
  %96 = vmatprep.subr.bf16.mxu0 0
  %97 = vmatpush1.bf16.msra.mxu0 0
  %98 = vmatprep.subr.bf16.mxu0 0
  %99 = vmatpush1.bf16.msra.mxu0 0
  %100 = vmatprep.subr.bf16.mxu0 0
  %101 = vmatpush1.bf16.msra.mxu0 %v80
  %102 = vmatprep.subr.bf16.mxu0 0
  %103 = vmatpush1.bf16.msra.mxu0 %v79
  %104 = vmatprep.subr.bf16.mxu0 0
  %105 = vmatpush1.bf16.msra.mxu0 %v78
  %106 = vmatprep.subr.bf16.mxu0 0
  %107 = vmatpush1.bf16.msra.mxu0 %v77
  %108 = vmatprep.subr.bf16.mxu0 0
  %109 = vmatpush2.bf16.msra.mxu0 0
  %110 = vmatprep.subr.bf16.mxu0 0
  %111 = vmatpush2.bf16.msra.mxu0 0
  %112 = vmatprep.subr.bf16.mxu0 0
  %113 = vmatpush2.bf16.msra.mxu0 0
  %114 = vmatprep.subr.bf16.mxu0 0
  %115 = vmatpush2.bf16.msra.mxu0 0
  %116 = vmatprep.subr.bf16.mxu0 0
  %117 = vmatpush2.bf16.msra.mxu0 0
  %118 = vmatprep.subr.bf16.mxu0 0
  %119 = vmatpush2.bf16.msra.mxu0 0
  %120 = vmatprep.subr.bf16.mxu0 0
  %121 = vmatpush2.bf16.msra.mxu0 0
  %122 = vmatprep.subr.bf16.mxu0 0
  %123 = vmatpush2.bf16.msra.mxu0 0
  %124 = vmatprep.mubr.bf16.mxu0 0
  %125 = vmatmul.mubr.bf16.gmra.mxu0 %v87
  %v126 = vpop.f32.mrf.mxu0
  %v127 = vadd.f32 %v34, %v126
  %v128 = vpop.f32.mrf.mxu0
  %v129 = vpop.f32.mrf.mxu0
  %v130 = vadd.f32 %v39, %v129
  %v131 = vpop.f32.mrf.mxu0
  %132 = vmatprep.mubr.bf16.mxu0 0
  %133 = vmatmul.mubr.bf16.gmra.mxu0 %v90
  %v134 = vpop.f32.mrf.mxu0
  %v135 = vadd.f32 %v44, %v134
  %v136 = vpop.f32.mrf.mxu0
  %v137 = vpop.f32.mrf.mxu0
  %v138 = vadd.f32 %v49, %v137
  %v139 = vpop.f32.mrf.mxu0
  %140 = vdwg.mxu0
  %v141 = vpack.c.bf16 %v130, %v127
  %v142 = vpack.c.bf16 %v138, %v135
  %v145 = vunpack.c.l.b16 %v141
  %v146 = vunpack.c.h.b16 %v141
  %v147 = vunpack.c.l.b16 %v142
  %v148 = vunpack.c.h.b16 %v142
  %v149 = vpack.c.b16 %v145, %v145
  %v150 = vpack.c.b16 %v146, %v146
  %v151 = vpack.c.b16 %v147, %v147
  %v152 = vpack.c.b16 %v148, %v148
  %157 = vst [vmem:[%s3] sm:$0xf] %v149
  %158 = vst [vmem:[%s3 + $0x4] sm:$0xf] %v150
  %159 = vst [vmem:[%s3 + $0x8] sm:$0xf] %v151
  %160 = vst [vmem:[%s3 + $0xc] sm:$0xf] %v152
  // Predicated region
  $region14: #{generator_forward.28} parent=0 // pred_check
    _
  $region15: #{generator_forward.28} parent=0 // pred_check_branch
    %162 = sbr.rel (0) target = $region17
  $region16: #{generator_forward.28} parent=0 // pred_region
    _
  $region17: #{generator_forward.28} parent=0 // pred_fallthru
    _
  // Predicated region
  $region18: #{generator_forward.28} parent=0 // pred_check
    _
  $region19: #{generator_forward.28} parent=0 // pred_check_branch
    %164 = sbr.rel (0) target = $region21
  $region20: #{generator_forward.28} parent=0 // pred_region
    _
  $region21: #{generator_forward.28} parent=0 // pred_fallthru
    _

// kernel: mul.57
$region0: #{mul.57}
  #allocation0 [shape = 's32[1]{0}', space=sflag, size = 0x4, scoped, tag = 'scoped memory for mul.57']
  %s0 = inlined_call_operand.vmem [shape: f32[32,2], index: 0, kind: input, shape index: {}]
  %s1 = inlined_call_operand.vmem [shape: f32[32,2,8,8], index: 1, kind: output, shape index: {}]
  // Predicated region
  $region2: #{mul.57} parent=0 // pred_check
    _
  $region3: #{mul.57} parent=0 // pred_check_branch
    %3 = sbr.rel (0) target = $region5
  $region4: #{mul.57} parent=0 // pred_region
    _
  $region5: #{mul.57} parent=0 // pred_fallthru
    _
  %v4 = vld [vmem:[%s0] ss:$0 sm:$0xff]
  %5 = vst [vmem:[%s1] sm:$0xff] %v4
  %s6 = scalar_lea.vmem %s0, 1
  %v7 = vld [vmem:[%s6] ss:$0 sm:$0xff]
  %s8 = scalar_lea.vmem %s1, 64
  %9 = vst [vmem:[%s8] sm:$0xff] %v7
  %s10 = scalar_lea.vmem %s1, 8
  %11 = vst [vmem:[%s10] sm:$0xff] %v4
  %s12 = scalar_lea.vmem %s1, 72
  %13 = vst [vmem:[%s12] sm:$0xff] %v7
  %s14 = scalar_lea.vmem %s1, 16
  %15 = vst [vmem:[%s14] sm:$0xff] %v4
  %s16 = scalar_lea.vmem %s1, 80
  %17 = vst [vmem:[%s16] sm:$0xff] %v7
  %s18 = scalar_lea.vmem %s1, 24
  %19 = vst [vmem:[%s18] sm:$0xff] %v4
  %s20 = scalar_lea.vmem %s1, 88
  %21 = vst [vmem:[%s20] sm:$0xff] %v7
  %s22 = scalar_lea.vmem %s1, 32
  %23 = vst [vmem:[%s22] sm:$0xff] %v4
  %s24 = scalar_lea.vmem %s1, 96
  %25 = vst [vmem:[%s24] sm:$0xff] %v7
  %s26 = scalar_lea.vmem %s1, 40
  %27 = vst [vmem:[%s26] sm:$0xff] %v4
  %s28 = scalar_lea.vmem %s1, 104
  %29 = vst [vmem:[%s28] sm:$0xff] %v7
  %s30 = scalar_lea.vmem %s1, 48
  %31 = vst [vmem:[%s30] sm:$0xff] %v4
  %s32 = scalar_lea.vmem %s1, 112
  %33 = vst [vmem:[%s32] sm:$0xff] %v7
  %s34 = scalar_lea.vmem %s1, 56
  %35 = vst [vmem:[%s34] sm:$0xff] %v4
  %s36 = scalar_lea.vmem %s1, 120
  %37 = vst [vmem:[%s36] sm:$0xff] %v7

// kernel: generator_forward.29
$region0: #{generator_forward.29}
  #allocation0 [shape = 'u32[]', space=smem, size = 0x4, offset = 0x4, fixed_abs, tag = 'smem constant byte address 0x4 - core index']
  #allocation1 [shape = 'u32[144,128]{1,0:T(1,128)}', space=vmem, size = 0x12000, scoped, tag = 'internal scratch']
  %s0 = inlined_call_operand.vmem [shape: bf16[32,64], index: 0, kind: input, shape index: {}]
  %s1 = inlined_call_operand.vmem [shape: bf16[64,128], index: 1, kind: input, shape index: {}]
  %s2 = inlined_call_operand.vmem [shape: f32[32,1], index: 2, kind: input, shape index: {}]
  %s3 = inlined_call_operand.vmem [shape: f32[32,128], index: 3, kind: output, shape index: {}]
  %s4 = sld [smem:[#allocation0]]
  $region22: #{generator_forward.29} parent=0
    _
  %s6 = ssub.s32 1, %s4
  %s7 = scalar_select 0, %s6, %s4
  // Predicated region
  $region2: #{generator_forward.29} parent=0 // pred_check
    _
  $region3: #{generator_forward.29} parent=0 // pred_check_branch
    %9 = sbr.rel (0) target = $region5
  $region4: #{generator_forward.29} parent=0 // pred_region
    _
  $region5: #{generator_forward.29} parent=0 // pred_fallthru
    _
  // Predicated region
  $region6: #{generator_forward.29} parent=0 // pred_check
    _
  $region7: #{generator_forward.29} parent=0 // pred_check_branch
    %11 = sbr.rel (0) target = $region9
  $region8: #{generator_forward.29} parent=0 // pred_region
    _
  $region9: #{generator_forward.29} parent=0 // pred_fallthru
    _
  // Predicated region
  $region10: #{generator_forward.29} parent=0 // pred_check
    _
  $region11: #{generator_forward.29} parent=0 // pred_check_branch
    %13 = sbr.rel (0) target = $region13
  $region12: #{generator_forward.29} parent=0 // pred_region
    _
  $region13: #{generator_forward.29} parent=0 // pred_fallthru
    _
  %v15 = vld [vmem:[%s0] sm:$0xf]
  %v16 = vld [vmem:[%s0 + $0x4] sm:$0xf]
  %v17 = vld [vmem:[%s0 + $0x8] sm:$0xf]
  %v18 = vld [vmem:[%s0 + $0xc] sm:$0xf]
  %v19 = vld [vmem:[%s1] sm:$0xf]
  %v20 = vld [vmem:[%s1 + $0x4] sm:$0xf]
  %v21 = vld [vmem:[%s1 + $0x8] sm:$0xf]
  %v22 = vld [vmem:[%s1 + $0xc] sm:$0xf]
  %v23 = vld [vmem:[%s1 + $0x10] sm:$0xf]
  %v24 = vld [vmem:[%s1 + $0x14] sm:$0xf]
  %v25 = vld [vmem:[%s1 + $0x18] sm:$0xf]
  %v26 = vld [vmem:[%s1 + $0x1c] sm:$0xf]
  %v27 = vld [vmem:[%s2] sm:$0xff]
  %v28 = vld [vmem:[%s2 + $0x8] sm:$0xff]
  %v29 = vld [vmem:[%s2 + $0x10] sm:$0xff]
  %v30 = vld [vmem:[%s2 + $0x18] sm:$0xff]
  %32 = vset.pattern.permute.xlu0 0
  %33 = vperm.xlu0 %32, %v27
  %v34 = vpop.permute.xlu0 %33
  %37 = vset.pattern.permute.xlu0 0
  %38 = vperm.xlu0 %37, %v28
  %v39 = vpop.permute.xlu0 %38
  %42 = vset.pattern.permute.xlu0 0
  %43 = vperm.xlu0 %42, %v29
  %v44 = vpop.permute.xlu0 %43
  %47 = vset.pattern.permute.xlu0 0
  %48 = vperm.xlu0 %47, %v30
  %v49 = vpop.permute.xlu0 %48
  %v55 = vunpack.c.l.b16 %v15
  %v56 = vunpack.c.l.b16 %v16
  %v57 = vunpack.c.l.b16 %v17
  %v58 = vunpack.c.l.b16 %v18
  %v59 = vpack.c.b16 %v56, %v55
  %v60 = vpack.c.b16 %v58, %v57
  %v69 = vunpack.c.l.b16 %v19
  %v70 = vunpack.c.l.b16 %v20
  %v71 = vunpack.c.l.b16 %v21
  %v72 = vunpack.c.l.b16 %v22
  %v73 = vunpack.c.l.b16 %v23
  %v74 = vunpack.c.l.b16 %v24
  %v75 = vunpack.c.l.b16 %v25
  %v76 = vunpack.c.l.b16 %v26
  %v77 = vpack.c.b16 %v70, %v69
  %v78 = vpack.c.b16 %v72, %v71
  %v79 = vpack.c.b16 %v74, %v73
  %v80 = vpack.c.b16 %v76, %v75
  %vm85 = vcmask 523264
  %v87 = vsel %vm85, %v59, 0
  %v90 = vsel %vm85, %v60, 0
  %92 = vmatprep.subr.bf16.mxu0 0
  %93 = vmatpush1.bf16.msra.mxu0 0
  %94 = vmatprep.subr.bf16.mxu0 0
  %95 = vmatpush1.bf16.msra.mxu0 0
  %96 = vmatprep.subr.bf16.mxu0 0
  %97 = vmatpush1.bf16.msra.mxu0 0
  %98 = vmatprep.subr.bf16.mxu0 0
  %99 = vmatpush1.bf16.msra.mxu0 0
  %100 = vmatprep.subr.bf16.mxu0 0
  %101 = vmatpush1.bf16.msra.mxu0 %v80
  %102 = vmatprep.subr.bf16.mxu0 0
  %103 = vmatpush1.bf16.msra.mxu0 %v79
  %104 = vmatprep.subr.bf16.mxu0 0
  %105 = vmatpush1.bf16.msra.mxu0 %v78
  %106 = vmatprep.subr.bf16.mxu0 0
  %107 = vmatpush1.bf16.msra.mxu0 %v77
  %108 = vmatprep.subr.bf16.mxu0 0
  %109 = vmatpush2.bf16.msra.mxu0 0
  %110 = vmatprep.subr.bf16.mxu0 0
  %111 = vmatpush2.bf16.msra.mxu0 0
  %112 = vmatprep.subr.bf16.mxu0 0
  %113 = vmatpush2.bf16.msra.mxu0 0
  %114 = vmatprep.subr.bf16.mxu0 0
  %115 = vmatpush2.bf16.msra.mxu0 0
  %116 = vmatprep.subr.bf16.mxu0 0
  %117 = vmatpush2.bf16.msra.mxu0 0
  %118 = vmatprep.subr.bf16.mxu0 0
  %119 = vmatpush2.bf16.msra.mxu0 0
  %120 = vmatprep.subr.bf16.mxu0 0
  %121 = vmatpush2.bf16.msra.mxu0 0
  %122 = vmatprep.subr.bf16.mxu0 0
  %123 = vmatpush2.bf16.msra.mxu0 0
  %124 = vmatprep.mubr.bf16.mxu0 0
  %125 = vmatmul.mubr.bf16.gmra.mxu0 %v87
  %v126 = vpop.f32.mrf.mxu0
  %v127 = vadd.f32 %v34, %v126
  %v128 = vpop.f32.mrf.mxu0
  %v129 = vpop.f32.mrf.mxu0
  %v130 = vadd.f32 %v39, %v129
  %v131 = vpop.f32.mrf.mxu0
  %132 = vmatprep.mubr.bf16.mxu0 0
  %133 = vmatmul.mubr.bf16.gmra.mxu0 %v90
  %v134 = vpop.f32.mrf.mxu0
  %v135 = vadd.f32 %v44, %v134
  %v136 = vpop.f32.mrf.mxu0
  %v137 = vpop.f32.mrf.mxu0
  %v138 = vadd.f32 %v49, %v137
  %v139 = vpop.f32.mrf.mxu0
  %140 = vdwg.mxu0
  %141 = vst [vmem:[%s3] sm:$0xff] %v127
  %142 = vst [vmem:[%s3 + $0x8] sm:$0xff] %v130
  %143 = vst [vmem:[%s3 + $0x10] sm:$0xff] %v135
  %144 = vst [vmem:[%s3 + $0x18] sm:$0xff] %v138
  // Predicated region
  $region14: #{generator_forward.29} parent=0 // pred_check
    _
  $region15: #{generator_forward.29} parent=0 // pred_check_branch
    %146 = sbr.rel (0) target = $region17
  $region16: #{generator_forward.29} parent=0 // pred_region
    _
  $region17: #{generator_forward.29} parent=0 // pred_fallthru
    _
  // Predicated region
  $region18: #{generator_forward.29} parent=0 // pred_check
    _
  $region19: #{generator_forward.29} parent=0 // pred_check_branch
    %148 = sbr.rel (0) target = $region21
  $region20: #{generator_forward.29} parent=0 // pred_region
    _
  $region21: #{generator_forward.29} parent=0 // pred_fallthru
    _

// kernel: generator_forward.31
$region0: #{generator_forward.31}
  #allocation0 [shape = 'u32[]', space=smem, size = 0x4, offset = 0x4, fixed_abs, tag = 'smem constant byte address 0x4 - core index']
  #allocation1 [shape = 'u32[144,128]{1,0:T(1,128)}', space=vmem, size = 0x12000, scoped, tag = 'internal scratch']
  %s0 = inlined_call_operand.vmem [shape: bf16[16,32], index: 0, kind: input, shape index: {}]
  %s1 = inlined_call_operand.vmem [shape: bf16[32,512], index: 1, kind: input, shape index: {}]
  %s2 = inlined_call_operand.vmem [shape: f32[16,1], index: 2, kind: input, shape index: {}]
  %s3 = inlined_call_operand.vmem [shape: bf16[16,512], index: 3, kind: output, shape index: {}]
  %s4 = sld [smem:[#allocation0]]
  $region117: #{generator_forward.31} parent=0
    _
  %s6 = ssub.s32 1, %s4
  %s7 = scalar_select 0, %s6, %s4
  $region1: #{generator_forward.31} parent=0
    #allocation2 [shape = 'u8[32768]{0}', space=vmem, size = 0x8000, scoped, tag = 'input window, operand 1']
    #allocation3 [shape = 'u8[16384]{0}', space=vmem, size = 0x4000, scoped, tag = 'output window, operand 0']
    loop: start=0, step=1, limit=4
    $region2: #{generator_forward.31} parent=1 // loop_pre_header
      _
    $region3: #{generator_forward.31} parent=1 // loop_header
      %s9 = sphi 0, %s13
      %p10 = scmp.ge.s32.totalorder %s9, 4
      %s16 = sphi 0, %s28
      %s17 = sphi 0, %s24
      %s18 = sphi 0, %s16
      %s19 = sphi 0, %s17
      %s20 = sphi 0, %s18
      %s21 = sphi 0, %s19
      %s31 = sphi 0, %s33
      %s34 = sphi 0, %s31
      %s35 = sphi 0, %s34
      %s51 = sphi 0, %s35
      %s57 = sphi 0, %s59
      %s60 = sphi 0, %s57
      %s61 = sphi 0, %s60
      %s77 = sphi 0, %s61
      %s83 = sphi 0, %s85
      %s86 = sphi 0, %s83
      %s87 = sphi 0, %s86
      %s103 = sphi 0, %s87
      %s111 = sphi 0, %s113
      %s114 = sphi 0, %s111
      %s115 = sphi 0, %s114
      %s131 = sphi 0, %s115
    $region4: #{generator_forward.31} parent=1 // loop_header_branch
      %12 = sbr.rel (%p10) target = $region8
    $region5: #{generator_forward.31} parent=1 // loop_body
      %s14 = ssub.s32 %s9, 1
      %s15 = ssub.s32 %s9, 2
      %s22 = sadd.s32 1, %s17
      %p23 = scmp.ge.s32.totalorder %s22, 2
      %s24 = scalar_select %p23, 0, %s22
      %s25 = sadd.s32 1, %s16
      %s26 = scalar_select %p23, %s25, %s16
      %p27 = scmp.ge.s32.totalorder %s26, 1
      %s28 = scalar_select %p27, 0, %s26
      %s29 = ssub.s32 %s16, %s28
      %p30 = scmp.eq.s32.totalorder %s29, 0
      %s32 = sadd.s32 %s31, 1
      %s33 = scalar_select %p30, %s31, %s32
      %p36 = pneg %p30
      %p37 = scmp.eq.s32.totalorder %s9, 1
      %p38 = por %p36, %p37
      %p39 = scmp.ne.s32.totalorder %s31, %s34
      %p40 = scmp.eq.s32.totalorder %s9, 0
      %p41 = por %p39, %p40
      %p42 = scmp.ne.s32.totalorder %s31, %s34
      %p43 = scmp.eq.s32.totalorder %s14, 1
      %p44 = por %p42, %p43
      %p45 = scmp.ne.s32.totalorder %s34, %s35
      %p46 = scmp.eq.s32.totalorder %s14, 0
      %p47 = por %p45, %p46
      %p48 = scmp.ne.s32.totalorder %s34, %s35
      %p49 = scmp.eq.s32.totalorder %s15, 1
      %p50 = por %p48, %p49
      %p52 = scmp.ne.s32.totalorder %s35, %s51
      %p53 = scmp.eq.s32.totalorder %s15, 0
      %p54 = por %p52, %p53
      %s55 = ssub.s32 %s17, %s24
      %p56 = scmp.eq.s32.totalorder %s55, 0
      %s58 = sadd.s32 %s57, 1
      %s59 = scalar_select %p56, %s57, %s58
      %p62 = pneg %p56
      %p63 = scmp.eq.s32.totalorder %s9, 1
      %p64 = por %p62, %p63
      %p65 = scmp.ne.s32.totalorder %s57, %s60
      %p66 = scmp.eq.s32.totalorder %s9, 0
      %p67 = por %p65, %p66
      %p68 = scmp.ne.s32.totalorder %s57, %s60
      %p69 = scmp.eq.s32.totalorder %s14, 1
      %p70 = por %p68, %p69
      %p71 = scmp.ne.s32.totalorder %s60, %s61
      %p72 = scmp.eq.s32.totalorder %s14, 0
      %p73 = por %p71, %p72
      %p74 = scmp.ne.s32.totalorder %s60, %s61
      %p75 = scmp.eq.s32.totalorder %s15, 1
      %p76 = por %p74, %p75
      %p78 = scmp.ne.s32.totalorder %s61, %s77
      %p79 = scmp.eq.s32.totalorder %s15, 0
      %p80 = por %p78, %p79
      %s81 = ssub.s32 %s16, %s28
      %p82 = scmp.eq.s32.totalorder %s81, 0
      %s84 = sadd.s32 %s83, 1
      %s85 = scalar_select %p82, %s83, %s84
      %p88 = pneg %p82
      %p89 = scmp.eq.s32.totalorder %s9, 1
      %p90 = por %p88, %p89
      %p91 = scmp.ne.s32.totalorder %s83, %s86
      %p92 = scmp.eq.s32.totalorder %s9, 0
      %p93 = por %p91, %p92
      %p94 = scmp.ne.s32.totalorder %s83, %s86
      %p95 = scmp.eq.s32.totalorder %s14, 1
      %p96 = por %p94, %p95
      %p97 = scmp.ne.s32.totalorder %s86, %s87
      %p98 = scmp.eq.s32.totalorder %s14, 0
      %p99 = por %p97, %p98
      %p100 = scmp.ne.s32.totalorder %s86, %s87
      %p101 = scmp.eq.s32.totalorder %s15, 1
      %p102 = por %p100, %p101
      %p104 = scmp.ne.s32.totalorder %s87, %s103
      %p105 = scmp.eq.s32.totalorder %s15, 0
      %p106 = por %p104, %p105
      %s107 = ssub.s32 %s16, %s28
      %s108 = ssub.s32 %s17, %s24
      %s109 = sor.u32 %s107, %s108
      %p110 = scmp.eq.s32.totalorder %s109, 0
      %s112 = sadd.s32 %s111, 1
      %s113 = scalar_select %p110, %s111, %s112
      %p116 = pneg %p110
      %p117 = scmp.eq.s32.totalorder %s9, 1
      %p118 = por %p116, %p117
      %p119 = scmp.ne.s32.totalorder %s111, %s114
      %p120 = scmp.eq.s32.totalorder %s9, 0
      %p121 = por %p119, %p120
      %p122 = scmp.ne.s32.totalorder %s111, %s114
      %p123 = scmp.eq.s32.totalorder %s14, 1
      %p124 = por %p122, %p123
      %p125 = scmp.ne.s32.totalorder %s114, %s115
      %p126 = scmp.eq.s32.totalorder %s14, 0
      %p127 = por %p125, %p126
      %p128 = scmp.ne.s32.totalorder %s114, %s115
      %p129 = scmp.eq.s32.totalorder %s15, 1
      %p130 = por %p128, %p129
      %p132 = scmp.ne.s32.totalorder %s115, %s131
      %p133 = scmp.eq.s32.totalorder %s15, 0
      %p134 = por %p132, %p133
      %p135 = scmp.le.s32.totalorder 1, %s9
      %p136 = scmp.lt.s32.totalorder %s9, 3
      %p137 = pnand %p135, %p136
      %p138 = pneg %p137
      // Predicated region
      $region9: #{generator_forward.31} parent=5 // pred_check
        _
      $region10: #{generator_forward.31} parent=5 // pred_check_branch
        %140 = sbr.rel (%p137) target = $region12
      $region11: #{generator_forward.31} parent=5 // pred_region
        %s141 = ssub.s32 %s9, 1
        // Predicated region
        $region13: #{generator_forward.31} parent=11 // pred_check
          %p142 = pneg %p47
        $region14: #{generator_forward.31} parent=11 // pred_check_branch
          %144 = sbr.rel (%p142) target = $region16
        $region15: #{generator_forward.31} parent=11 // pred_region
          %s145 = smul.u32 2, %s18
          %p146 = scmp.lt.s32.totalorder %s145, 1
          %s147 = scalar_select %p146, %s145, 1
          %s148 = smul.addr %s147, 4
          %s149 = scalar_lea.vmem %s0, %s148
          %s150 = smul.u32 2, %s18
        $region16: #{generator_forward.31} parent=11 // pred_fallthru
          _
        // Predicated region
        $region17: #{generator_forward.31} parent=11 // pred_check
          %p151 = pneg %p99
        $region18: #{generator_forward.31} parent=11 // pred_check_branch
          %153 = sbr.rel (%p151) target = $region20
        $region19: #{generator_forward.31} parent=11 // pred_region
          %s154 = smul.u32 2, %s18
          %p155 = scmp.lt.s32.totalorder %s154, 1
          %s156 = scalar_select %p155, %s154, 1
          %s157 = smul.addr %s156, 8
          %s158 = scalar_lea.vmem %s2, %s157
          %s159 = smul.u32 2, %s18
        $region20: #{generator_forward.31} parent=11 // pred_fallthru
          _
      $region12: #{generator_forward.31} parent=5 // pred_fallthru
        _
      %p160 = scmp.lt.s32.totalorder %s9, 2
      // Predicated region
      $region21: #{generator_forward.31} parent=5 // pred_check
        %p161 = pneg %p160
      $region22: #{generator_forward.31} parent=5 // pred_check_branch
        %163 = sbr.rel (%p161) target = $region24
      $region23: #{generator_forward.31} parent=5 // pred_region
        // Predicated region
        $region25: #{generator_forward.31} parent=23 // pred_check
          %p164 = pneg %p67
        $region26: #{generator_forward.31} parent=23 // pred_check_branch
          %166 = sbr.rel (%p164) target = $region28
        $region27: #{generator_forward.31} parent=23 // pred_region
          %s167 = sand.u32 %s57, 1
          %s168 = sand.u32 %s57, 1
          %s169 = smul.addr %s168, 32
          %s170 = scalar_lea.vmem [#allocation2], %s169
          %s171 = smul.u32 2, %s17
          %s172 = smul.addr %s171, 4
          %s173 = scalar_lea.vmem %s1, %s172
          // Predicated region
          $region29: #{generator_forward.31} parent=27 // pred_check
            _
          $region30: #{generator_forward.31} parent=27 // pred_check_branch
            %175 = sbr.rel (0) target = $region32
          $region31: #{generator_forward.31} parent=27 // pred_region
            // Predicated region
            $region33: #{generator_forward.31} parent=31 // pred_check
              _
            $region34: #{generator_forward.31} parent=31 // pred_check_branch
              %177 = sbr.rel (0) target = $region36
            $region35: #{generator_forward.31} parent=31 // pred_region
              // Predicated region
              $region48: #{generator_forward.31} parent=35 // pred_check
                _
              $region49: #{generator_forward.31} parent=35 // pred_check_branch
                %199 = sbr.rel (0) target = $region51
              $region50: #{generator_forward.31} parent=35 // pred_region
                loop: start=0, step=1, limit=1
                $region52: #{generator_forward.31} parent=50 // loop_pre_header
                  _
                $region53: #{generator_forward.31} parent=50 // loop_header
                  %s201 = sphi 0, %s205
                  %p202 = scmp.ge.s32.totalorder %s201, 1
                  %s206 = sphi %s173, %s173
                  %s207 = sphi %s170, %s170
                $region54: #{generator_forward.31} parent=50 // loop_header_branch
                  %204 = sbr.rel (%p202) target = $region58
                $region55: #{generator_forward.31} parent=50 // loop_body
                  %v208 = vld [vmem:[%s206] sm:$0xff]
                  %209 = vst [vmem:[%s207] sm:$0xff] %v208
                  %v210 = vld [vmem:[%s206 + $0x10] sm:$0xff]
                  %211 = vst [vmem:[%s207 + $0x8] sm:$0xff] %v210
                  %v212 = vld [vmem:[%s206 + $0x20] sm:$0xff]
                  %213 = vst [vmem:[%s207 + $0x10] sm:$0xff] %v212
                  %v214 = vld [vmem:[%s206 + $0x30] sm:$0xff]
                  %215 = vst [vmem:[%s207 + $0x18] sm:$0xff] %v214
                $region56: #{generator_forward.31} parent=50 // loop_footer
                  %s205 = sadd.s32 1, %s201
                $region57: #{generator_forward.31} parent=50 // loop_footer_branch
                  %200 = sbr.rel target = $region53
                $region58: #{generator_forward.31} parent=50 // loop_exit
                  _
              $region51: #{generator_forward.31} parent=35 // pred_fallthru
                _
              // Predicated region
              $region59: #{generator_forward.31} parent=35 // pred_check
                _
              $region60: #{generator_forward.31} parent=35 // pred_check_branch
                %217 = sbr.rel target = $region62
              $region61: #{generator_forward.31} parent=35 // pred_region
                _
              $region62: #{generator_forward.31} parent=35 // pred_fallthru
                _
            $region36: #{generator_forward.31} parent=31 // pred_fallthru
              _
            // Predicated region
            $region37: #{generator_forward.31} parent=31 // pred_check
              _
            $region38: #{generator_forward.31} parent=31 // pred_check_branch
              %179 = sbr.rel target = $region40
            $region39: #{generator_forward.31} parent=31 // pred_region
              %s181 = ssub.s32 256, 1
              loop: start=0, step=1, limit=1
              $region41: #{generator_forward.31} parent=39 // loop_pre_header
                _
              $region42: #{generator_forward.31} parent=39 // loop_header
                %s183 = sphi 0, %s187
                %p184 = scmp.ge.s32.totalorder %s183, 1
                %s188 = sphi %s173, %s173
                %s189 = sphi %s170, %s170
              $region43: #{generator_forward.31} parent=39 // loop_header_branch
                %186 = sbr.rel (%p184) target = $region47
              $region44: #{generator_forward.31} parent=39 // loop_body
                %v190 = vld [vmem:[%s188] sm:%s181]
                %191 = vst [vmem:[%s189] sm:%s181] %v190
                %v192 = vld [vmem:[%s188 + $0x10] sm:%s181]
                %193 = vst [vmem:[%s189 + $0x8] sm:%s181] %v192
                %v194 = vld [vmem:[%s188 + $0x20] sm:%s181]
                %195 = vst [vmem:[%s189 + $0x10] sm:%s181] %v194
                %v196 = vld [vmem:[%s188 + $0x30] sm:%s181]
                %197 = vst [vmem:[%s189 + $0x18] sm:%s181] %v196
              $region45: #{generator_forward.31} parent=39 // loop_footer
                %s187 = sadd.s32 1, %s183
              $region46: #{generator_forward.31} parent=39 // loop_footer_branch
                %182 = sbr.rel target = $region42
              $region47: #{generator_forward.31} parent=39 // loop_exit
                _
            $region40: #{generator_forward.31} parent=31 // pred_fallthru
              _
          $region32: #{generator_forward.31} parent=27 // pred_fallthru
            _
          %218 = vnop
        $region28: #{generator_forward.31} parent=23 // pred_fallthru
          _
      $region24: #{generator_forward.31} parent=5 // pred_fallthru
        _
      %p219 = scmp.le.s32.totalorder 1, %s9
      %p220 = scmp.lt.s32.totalorder %s9, 3
      %p221 = pnand %p219, %p220
      %p222 = pneg %p221
      // Predicated region
      $region63: #{generator_forward.31} parent=5 // pred_check
        _
      $region64: #{generator_forward.31} parent=5 // pred_check_branch
        %224 = sbr.rel (%p221) target = $region66
      $region65: #{generator_forward.31} parent=5 // pred_region
        %s225 = ssub.s32 %s9, 1
        %s226 = sand.u32 %s60, 1
        %s227 = sand.u32 %s60, 1
        %s228 = smul.addr %s227, 32
        %s229 = scalar_lea.vmem [#allocation2], %s228
        // Predicated region
        $region67: #{generator_forward.31} parent=65 // pred_check
          %p230 = pneg %p73
        $region68: #{generator_forward.31} parent=65 // pred_check_branch
          %232 = sbr.rel (%p230) target = $region70
        $region69: #{generator_forward.31} parent=65 // pred_region
          _
        $region70: #{generator_forward.31} parent=65 // pred_fallthru
          _
        %s233 = smul.u32 2, %s18
        %p234 = scmp.lt.s32.totalorder %s233, 1
        %s235 = scalar_select %p234, %s233, 1
        %s236 = smul.addr %s235, 4
        %s237 = scalar_lea.vmem %s0, %s236
        %p238 = pneg %p47
        %p239 = pneg %p44
        %s240 = sand.u32 %s60, 1
        %s241 = sand.u32 %s60, 1
        %s242 = smul.addr %s241, 32
        %s243 = scalar_lea.vmem [#allocation2], %s242
        %p244 = pneg %p73
        %p245 = pneg %p70
        %s246 = smul.u32 2, %s18
        %p247 = scmp.lt.s32.totalorder %s246, 1
        %s248 = scalar_select %p247, %s246, 1
        %s249 = smul.addr %s248, 8
        %s250 = scalar_lea.vmem %s2, %s249
        %p251 = pneg %p99
        %p252 = pneg %p96
        %p253 = pneg %p127
        %p254 = pneg %p124
        %s255 = sand.u32 %s114, 1
        %s256 = sand.u32 %s114, 1
        %s257 = smul.addr %s256, 16
        %s258 = scalar_lea.vmem [#allocation3], %s257
        %s259 = smul.u32 2, %s18
        %p260 = scmp.lt.s32.totalorder %s259, 1
        %s261 = scalar_select %p260, %s259, 1
        %s262 = smul.addr %s261, 4
        %s263 = scalar_lea.vmem %s0, %s262
        %s264 = smul.u32 2, %s18
        %s265 = smul.u32 2, %s19
        %s266 = smul.u32 2, %s18
        %p267 = scmp.lt.s32.totalorder %s266, 1
        %s268 = scalar_select %p267, %s266, 1
        %s269 = smul.addr %s268, 8
        %s270 = scalar_lea.vmem %s2, %s269
        %s271 = smul.u32 2, %s18
        %s272 = smul.u32 2, %s18
        %s273 = smul.u32 2, %s19
        %v275 = vld [vmem:[%s263] sm:$0xf]
        %v276 = vld [vmem:[%s263 + $0x4] sm:$0xf]
        %v277 = vld [vmem:[%s229] sm:$0xff]
        %v278 = vld [vmem:[%s229 + $0x8] sm:$0xff]
        %v279 = vld [vmem:[%s229 + $0x10] sm:$0xff]
        %v280 = vld [vmem:[%s229 + $0x18] sm:$0xff]
        %v281 = vld [vmem:[%s270] sm:$0xff]
        %v282 = vld [vmem:[%s270 + $0x8] sm:$0xff]
        %284 = vset.pattern.permute.xlu0 0
        %285 = vperm.xlu0 %284, %v281
        %v286 = vpop.permute.xlu0 %285
        %289 = vset.pattern.permute.xlu0 0
        %290 = vperm.xlu0 %289, %v282
        %v291 = vpop.permute.xlu0 %290
        %v295 = vunpack.c.l.b16 %v275
        %v296 = vunpack.c.l.b16 %v276
        %v297 = vpack.c.b16 %v296, %v295
        %v302 = vunpack.c.l.b16 %v277
        %v303 = vunpack.c.h.b16 %v277
        %v304 = vunpack.c.l.b16 %v278
        %v305 = vunpack.c.h.b16 %v278
        %v306 = vunpack.c.l.b16 %v279
        %v307 = vunpack.c.h.b16 %v279
        %v308 = vunpack.c.l.b16 %v280
        %v309 = vunpack.c.h.b16 %v280
        %v310 = vpack.c.b16 %v304, %v302
        %v311 = vpack.c.b16 %v305, %v303
        %v312 = vpack.c.b16 %v308, %v306
        %v313 = vpack.c.b16 %v309, %v307
        %vm318 = vcmask 261120
        %v320 = vsel %vm318, %v297, 0
        %322 = vmatprep.subr.bf16.mxu0 0
        %323 = vmatpush1.bf16.msra.mxu0 0
        %324 = vmatprep.subr.bf16.mxu0 0
        %325 = vmatpush1.bf16.msra.mxu0 0
        %326 = vmatprep.subr.bf16.mxu0 0
        %327 = vmatpush1.bf16.msra.mxu0 0
        %328 = vmatprep.subr.bf16.mxu0 0
        %329 = vmatpush1.bf16.msra.mxu0 0
        %330 = vmatprep.subr.bf16.mxu0 0
        %331 = vmatpush1.bf16.msra.mxu0 0
        %332 = vmatprep.subr.bf16.mxu0 0
        %333 = vmatpush1.bf16.msra.mxu0 0
        %334 = vmatprep.subr.bf16.mxu0 %v313
        %335 = vmatpush1.bf16.msra.mxu0 %v312
        %336 = vmatprep.subr.bf16.mxu0 %v311
        %337 = vmatpush1.bf16.msra.mxu0 %v310
        %338 = vmatprep.subr.bf16.mxu0 0
        %339 = vmatpush2.bf16.msra.mxu0 0
        %340 = vmatprep.subr.bf16.mxu0 0
        %341 = vmatpush2.bf16.msra.mxu0 0
        %342 = vmatprep.subr.bf16.mxu0 0
        %343 = vmatpush2.bf16.msra.mxu0 0
        %344 = vmatprep.subr.bf16.mxu0 0
        %345 = vmatpush2.bf16.msra.mxu0 0
        %346 = vmatprep.subr.bf16.mxu0 0
        %347 = vmatpush2.bf16.msra.mxu0 0
        %348 = vmatprep.subr.bf16.mxu0 0
        %349 = vmatpush2.bf16.msra.mxu0 0
        %350 = vmatprep.subr.bf16.mxu0 0
        %351 = vmatpush2.bf16.msra.mxu0 0
        %352 = vmatprep.subr.bf16.mxu0 0
        %353 = vmatpush2.bf16.msra.mxu0 0
        %354 = vmatprep.mubr.bf16.mxu0 0
        %355 = vmatmul.mubr.bf16.gmra.mxu0 %v320
        %v356 = vpop.f32.mrf.mxu0
        %v357 = vadd.f32 %v286, %v356
        %v358 = vpop.f32.mrf.mxu0
        %v359 = vadd.f32 %v286, %v358
        %v360 = vpop.f32.mrf.mxu0
        %v361 = vadd.f32 %v291, %v360
        %v362 = vpop.f32.mrf.mxu0
        %v363 = vadd.f32 %v291, %v362
        %364 = vdwg.mxu0
        %v365 = vpack.c.bf16 %v361, %v357
        %v366 = vpack.c.bf16 %v363, %v359
        %v369 = vunpack.c.l.b16 %v365
        %v370 = vunpack.c.l.b16 %v366
        %v371 = vunpack.c.h.b16 %v365
        %v372 = vunpack.c.h.b16 %v366
        %v373 = vpack.c.b16 %v370, %v369
        %v374 = vpack.c.b16 %v372, %v371
        %377 = vst [vmem:[%s258] sm:$0xff] %v373
        %378 = vst [vmem:[%s258 + $0x8] sm:$0xff] %v374
        %s379 = sand.u32 %s114, 1
        %s380 = sand.u32 %s114, 1
        %s381 = smul.addr %s380, 16
        %s382 = scalar_lea.vmem [#allocation3], %s381
        // Predicated region
        $region71: #{generator_forward.31} parent=65 // pred_check
          %p383 = pneg %p124
        $region72: #{generator_forward.31} parent=65 // pred_check_branch
          %385 = sbr.rel (%p383) target = $region74
        $region73: #{generator_forward.31} parent=65 // pred_region
          %s386 = smul.u32 2, %s18
          %s387 = smul.u32 2, %s19
          %s388 = smul.addr %s386, 4
          %s389 = sadd.s32 %s387, %s388
          %s390 = smul.addr %s389, 4
          %s391 = scalar_lea.vmem %s3, %s390
          // Predicated region
          $region75: #{generator_forward.31} parent=73 // pred_check
            _
          $region76: #{generator_forward.31} parent=73 // pred_check_branch
            %393 = sbr.rel (0) target = $region78
          $region77: #{generator_forward.31} parent=73 // pred_region
            // Predicated region
            $region79: #{generator_forward.31} parent=77 // pred_check
              _
            $region80: #{generator_forward.31} parent=77 // pred_check_branch
              %395 = sbr.rel (0) target = $region82
            $region81: #{generator_forward.31} parent=77 // pred_region
              // Predicated region
              $region94: #{generator_forward.31} parent=81 // pred_check
                _
              $region95: #{generator_forward.31} parent=81 // pred_check_branch
                %413 = sbr.rel (0) target = $region97
              $region96: #{generator_forward.31} parent=81 // pred_region
                loop: start=0, step=1, limit=1
                $region98: #{generator_forward.31} parent=96 // loop_pre_header
                  _
                $region99: #{generator_forward.31} parent=96 // loop_header
                  %s415 = sphi 0, %s419
                  %p416 = scmp.ge.s32.totalorder %s415, 1
                  %s420 = sphi %s382, %s382
                  %s421 = sphi %s391, %s391
                $region100: #{generator_forward.31} parent=96 // loop_header_branch
                  %418 = sbr.rel (%p416) target = $region104
                $region101: #{generator_forward.31} parent=96 // loop_body
                  %v422 = vld [vmem:[%s420] sm:$0xff]
                  %423 = vst [vmem:[%s421] sm:$0xff] %v422
                  %v424 = vld [vmem:[%s420 + $0x8] sm:$0xff]
                  %425 = vst [vmem:[%s421 + $0x10] sm:$0xff] %v424
                $region102: #{generator_forward.31} parent=96 // loop_footer
                  %s419 = sadd.s32 1, %s415
                $region103: #{generator_forward.31} parent=96 // loop_footer_branch
                  %414 = sbr.rel target = $region99
                $region104: #{generator_forward.31} parent=96 // loop_exit
                  _
              $region97: #{generator_forward.31} parent=81 // pred_fallthru
                _
              // Predicated region
              $region105: #{generator_forward.31} parent=81 // pred_check
                _
              $region106: #{generator_forward.31} parent=81 // pred_check_branch
                %427 = sbr.rel target = $region108
              $region107: #{generator_forward.31} parent=81 // pred_region
                _
              $region108: #{generator_forward.31} parent=81 // pred_fallthru
                _
            $region82: #{generator_forward.31} parent=77 // pred_fallthru
              _
            // Predicated region
            $region83: #{generator_forward.31} parent=77 // pred_check
              _
            $region84: #{generator_forward.31} parent=77 // pred_check_branch
              %397 = sbr.rel target = $region86
            $region85: #{generator_forward.31} parent=77 // pred_region
              %s399 = ssub.s32 256, 1
              loop: start=0, step=1, limit=1
              $region87: #{generator_forward.31} parent=85 // loop_pre_header
                _
              $region88: #{generator_forward.31} parent=85 // loop_header
                %s401 = sphi 0, %s405
                %p402 = scmp.ge.s32.totalorder %s401, 1
                %s406 = sphi %s382, %s382
                %s407 = sphi %s391, %s391
              $region89: #{generator_forward.31} parent=85 // loop_header_branch
                %404 = sbr.rel (%p402) target = $region93
              $region90: #{generator_forward.31} parent=85 // loop_body
                %v408 = vld [vmem:[%s406] sm:%s399]
                %409 = vst [vmem:[%s407] sm:%s399] %v408
                %v410 = vld [vmem:[%s406 + $0x8] sm:%s399]
                %411 = vst [vmem:[%s407 + $0x10] sm:%s399] %v410
              $region91: #{generator_forward.31} parent=85 // loop_footer
                %s405 = sadd.s32 1, %s401
              $region92: #{generator_forward.31} parent=85 // loop_footer_branch
                %400 = sbr.rel target = $region88
              $region93: #{generator_forward.31} parent=85 // loop_exit
                _
            $region86: #{generator_forward.31} parent=77 // pred_fallthru
              _
          $region78: #{generator_forward.31} parent=73 // pred_fallthru
            _
          %428 = vnop
        $region74: #{generator_forward.31} parent=65 // pred_fallthru
          _
      $region66: #{generator_forward.31} parent=5 // pred_fallthru
        _
      %p429 = scmp.le.s32.totalorder 2, %s9
      // Predicated region
      $region109: #{generator_forward.31} parent=5 // pred_check
        %p430 = pneg %p429
      $region110: #{generator_forward.31} parent=5 // pred_check_branch
        %432 = sbr.rel (%p430) target = $region112
      $region111: #{generator_forward.31} parent=5 // pred_region
        %s433 = ssub.s32 %s9, 2
        // Predicated region
        $region113: #{generator_forward.31} parent=111 // pred_check
          %p434 = pneg %p130
        $region114: #{generator_forward.31} parent=111 // pred_check_branch
          %436 = sbr.rel (%p434) target = $region116
        $region115: #{generator_forward.31} parent=111 // pred_region
          %s437 = sand.u32 %s115, 1
          %s438 = sand.u32 %s115, 1
          %s439 = smul.addr %s438, 16
          %s440 = scalar_lea.vmem [#allocation3], %s439
        $region116: #{generator_forward.31} parent=111 // pred_fallthru
          _
      $region112: #{generator_forward.31} parent=5 // pred_fallthru
        _
    $region6: #{generator_forward.31} parent=1 // loop_footer
      %s13 = sadd.s32 1, %s9
    $region7: #{generator_forward.31} parent=1 // loop_footer_branch
      %8 = sbr.rel target = $region3
    $region8: #{generator_forward.31} parent=1 // loop_exit
      _

// kernel: generator_forward.30
$region0: #{generator_forward.30}
  #allocation0 [shape = 'u32[]', space=smem, size = 0x4, offset = 0x4, fixed_abs, tag = 'smem constant byte address 0x4 - core index']
  #allocation1 [shape = 'u32[144,128]{1,0:T(1,128)}', space=vmem, size = 0x12000, scoped, tag = 'internal scratch']
  %s0 = inlined_call_operand.vmem [shape: bf16[32,576], index: 0, kind: input, shape index: {}]
  %s1 = inlined_call_operand.vmem [shape: bf16[576,128], index: 1, kind: input, shape index: {}]
  %s2 = inlined_call_operand.vmem [shape: f32[32,1], index: 2, kind: input, shape index: {}]
  %s3 = inlined_call_operand.vmem [shape: bf16[32,128], index: 3, kind: output, shape index: {}]
  %s4 = sld [smem:[#allocation0]]
  $region22: #{generator_forward.30} parent=0
    _
  %s6 = ssub.s32 1, %s4
  %s7 = scalar_select 0, %s6, %s4
  // Predicated region
  $region2: #{generator_forward.30} parent=0 // pred_check
    _
  $region3: #{generator_forward.30} parent=0 // pred_check_branch
    %9 = sbr.rel (0) target = $region5
  $region4: #{generator_forward.30} parent=0 // pred_region
    _
  $region5: #{generator_forward.30} parent=0 // pred_fallthru
    _
  // Predicated region
  $region6: #{generator_forward.30} parent=0 // pred_check
    _
  $region7: #{generator_forward.30} parent=0 // pred_check_branch
    %11 = sbr.rel (0) target = $region9
  $region8: #{generator_forward.30} parent=0 // pred_region
    _
  $region9: #{generator_forward.30} parent=0 // pred_fallthru
    _
  // Predicated region
  $region10: #{generator_forward.30} parent=0 // pred_check
    _
  $region11: #{generator_forward.30} parent=0 // pred_check_branch
    %13 = sbr.rel (0) target = $region13
  $region12: #{generator_forward.30} parent=0 // pred_region
    _
  $region13: #{generator_forward.30} parent=0 // pred_fallthru
    _
  %v15 = vld [vmem:[%s0] sm:$0xff]
  %v16 = vld [vmem:[%s0 + $0x8] sm:$0xff]
  %v17 = vld [vmem:[%s0 + $0x10] sm:$0xf]
  %v18 = vld [vmem:[%s0 + $0x14] sm:$0xff]
  %v19 = vld [vmem:[%s0 + $0x1c] sm:$0xff]
  %v20 = vld [vmem:[%s0 + $0x24] sm:$0xf]
  %v21 = vld [vmem:[%s0 + $0x28] sm:$0xff]
  %v22 = vld [vmem:[%s0 + $0x30] sm:$0xff]
  %v23 = vld [vmem:[%s0 + $0x38] sm:$0xf]
  %v24 = vld [vmem:[%s0 + $0x3c] sm:$0xff]
  %v25 = vld [vmem:[%s0 + $0x44] sm:$0xff]
  %v26 = vld [vmem:[%s0 + $0x4c] sm:$0xf]
  %v27 = vld [vmem:[%s1] sm:$0xf]
  %v28 = vld [vmem:[%s1 + $0x4] sm:$0xf]
  %v29 = vld [vmem:[%s1 + $0x8] sm:$0xf]
  %v30 = vld [vmem:[%s1 + $0xc] sm:$0xf]
  %v31 = vld [vmem:[%s1 + $0x10] sm:$0xf]
  %v32 = vld [vmem:[%s1 + $0x14] sm:$0xf]
  %v33 = vld [vmem:[%s1 + $0x18] sm:$0xf]
  %v34 = vld [vmem:[%s1 + $0x1c] sm:$0xf]
  %v35 = vld [vmem:[%s1 + $0x20] sm:$0xf]
  %v36 = vld [vmem:[%s1 + $0x24] sm:$0xf]
  %v37 = vld [vmem:[%s1 + $0x28] sm:$0xf]
  %v38 = vld [vmem:[%s1 + $0x2c] sm:$0xf]
  %v39 = vld [vmem:[%s1 + $0x30] sm:$0xf]
  %v40 = vld [vmem:[%s1 + $0x34] sm:$0xf]
  %v41 = vld [vmem:[%s1 + $0x38] sm:$0xf]
  %v42 = vld [vmem:[%s1 + $0x3c] sm:$0xf]
  %v43 = vld [vmem:[%s1 + $0x40] sm:$0xf]
  %v44 = vld [vmem:[%s1 + $0x44] sm:$0xf]
  %v45 = vld [vmem:[%s1 + $0x48] sm:$0xf]
  %v46 = vld [vmem:[%s1 + $0x4c] sm:$0xf]
  %v47 = vld [vmem:[%s1 + $0x50] sm:$0xf]
  %v48 = vld [vmem:[%s1 + $0x54] sm:$0xf]
  %v49 = vld [vmem:[%s1 + $0x58] sm:$0xf]
  %v50 = vld [vmem:[%s1 + $0x5c] sm:$0xf]
  %v51 = vld [vmem:[%s1 + $0x60] sm:$0xf]
  %v52 = vld [vmem:[%s1 + $0x64] sm:$0xf]
  %v53 = vld [vmem:[%s1 + $0x68] sm:$0xf]
  %v54 = vld [vmem:[%s1 + $0x6c] sm:$0xf]
  %v55 = vld [vmem:[%s1 + $0x70] sm:$0xf]
  %v56 = vld [vmem:[%s1 + $0x74] sm:$0xf]
  %v57 = vld [vmem:[%s1 + $0x78] sm:$0xf]
  %v58 = vld [vmem:[%s1 + $0x7c] sm:$0xf]
  %v59 = vld [vmem:[%s1 + $0x80] sm:$0xf]
  %v60 = vld [vmem:[%s1 + $0x84] sm:$0xf]
  %v61 = vld [vmem:[%s1 + $0x88] sm:$0xf]
  %v62 = vld [vmem:[%s1 + $0x8c] sm:$0xf]
  %v63 = vld [vmem:[%s1 + $0x90] sm:$0xf]
  %v64 = vld [vmem:[%s1 + $0x94] sm:$0xf]
  %v65 = vld [vmem:[%s1 + $0x98] sm:$0xf]
  %v66 = vld [vmem:[%s1 + $0x9c] sm:$0xf]
  %v67 = vld [vmem:[%s1 + $0xa0] sm:$0xf]
  %v68 = vld [vmem:[%s1 + $0xa4] sm:$0xf]
  %v69 = vld [vmem:[%s1 + $0xa8] sm:$0xf]
  %v70 = vld [vmem:[%s1 + $0xac] sm:$0xf]
  %v71 = vld [vmem:[%s1 + $0xb0] sm:$0xf]
  %v72 = vld [vmem:[%s1 + $0xb4] sm:$0xf]
  %v73 = vld [vmem:[%s1 + $0xb8] sm:$0xf]
  %v74 = vld [vmem:[%s1 + $0xbc] sm:$0xf]
  %v75 = vld [vmem:[%s1 + $0xc0] sm:$0xf]
  %v76 = vld [vmem:[%s1 + $0xc4] sm:$0xf]
  %v77 = vld [vmem:[%s1 + $0xc8] sm:$0xf]
  %v78 = vld [vmem:[%s1 + $0xcc] sm:$0xf]
  %v79 = vld [vmem:[%s1 + $0xd0] sm:$0xf]
  %v80 = vld [vmem:[%s1 + $0xd4] sm:$0xf]
  %v81 = vld [vmem:[%s1 + $0xd8] sm:$0xf]
  %v82 = vld [vmem:[%s1 + $0xdc] sm:$0xf]
  %v83 = vld [vmem:[%s1 + $0xe0] sm:$0xf]
  %v84 = vld [vmem:[%s1 + $0xe4] sm:$0xf]
  %v85 = vld [vmem:[%s1 + $0xe8] sm:$0xf]
  %v86 = vld [vmem:[%s1 + $0xec] sm:$0xf]
  %v87 = vld [vmem:[%s1 + $0xf0] sm:$0xf]
  %v88 = vld [vmem:[%s1 + $0xf4] sm:$0xf]
  %v89 = vld [vmem:[%s1 + $0xf8] sm:$0xf]
  %v90 = vld [vmem:[%s1 + $0xfc] sm:$0xf]
  %v91 = vld [vmem:[%s1 + $0x100] sm:$0xf]
  %v92 = vld [vmem:[%s1 + $0x104] sm:$0xf]
  %v93 = vld [vmem:[%s1 + $0x108] sm:$0xf]
  %v94 = vld [vmem:[%s1 + $0x10c] sm:$0xf]
  %v95 = vld [vmem:[%s1 + $0x110] sm:$0xf]
  %v96 = vld [vmem:[%s1 + $0x114] sm:$0xf]
  %v97 = vld [vmem:[%s1 + $0x118] sm:$0xf]
  %v98 = vld [vmem:[%s1 + $0x11c] sm:$0xf]
  %v99 = vld [vmem:[%s2] sm:$0xff]
  %v100 = vld [vmem:[%s2 + $0x8] sm:$0xff]
  %v101 = vld [vmem:[%s2 + $0x10] sm:$0xff]
  %v102 = vld [vmem:[%s2 + $0x18] sm:$0xff]
  %104 = vset.pattern.permute.xlu0 0
  %105 = vperm.xlu0 %104, %v99
  %v106 = vpop.permute.xlu0 %105
  %109 = vset.pattern.permute.xlu0 0
  %110 = vperm.xlu0 %109, %v100
  %v111 = vpop.permute.xlu0 %110
  %114 = vset.pattern.permute.xlu0 0
  %115 = vperm.xlu0 %114, %v101
  %v116 = vpop.permute.xlu0 %115
  %119 = vset.pattern.permute.xlu0 0
  %120 = vperm.xlu0 %119, %v102
  %v121 = vpop.permute.xlu0 %120
  %v135 = vunpack.c.l.b16 %v15
  %v136 = vunpack.c.h.b16 %v15
  %v137 = vunpack.c.l.b16 %v16
  %v138 = vunpack.c.h.b16 %v16
  %v139 = vunpack.c.l.b16 %v17
  %v140 = vunpack.c.l.b16 %v18
  %v141 = vunpack.c.h.b16 %v18
  %v142 = vunpack.c.l.b16 %v19
  %v143 = vunpack.c.h.b16 %v19
  %v144 = vunpack.c.l.b16 %v20
  %v145 = vunpack.c.l.b16 %v21
  %v146 = vunpack.c.h.b16 %v21
  %v147 = vunpack.c.l.b16 %v22
  %v148 = vunpack.c.h.b16 %v22
  %v149 = vunpack.c.l.b16 %v23
  %v150 = vunpack.c.l.b16 %v24
  %v151 = vunpack.c.h.b16 %v24
  %v152 = vunpack.c.l.b16 %v25
  %v153 = vunpack.c.h.b16 %v25
  %v154 = vunpack.c.l.b16 %v26
  %v155 = vpack.c.b16 %v140, %v135
  %v156 = vpack.c.b16 %v141, %v136
  %v157 = vpack.c.b16 %v142, %v137
  %v158 = vpack.c.b16 %v143, %v138
  %v159 = vpack.c.b16 %v144, %v139
  %v160 = vpack.c.b16 %v150, %v145
  %v161 = vpack.c.b16 %v151, %v146
  %v162 = vpack.c.b16 %v152, %v147
  %v163 = vpack.c.b16 %v153, %v148
  %v164 = vpack.c.b16 %v154, %v149
  %v245 = vunpack.c.l.b16 %v27
  %v246 = vunpack.c.l.b16 %v28
  %v247 = vunpack.c.l.b16 %v29
  %v248 = vunpack.c.l.b16 %v30
  %v249 = vunpack.c.l.b16 %v31
  %v250 = vunpack.c.l.b16 %v32
  %v251 = vunpack.c.l.b16 %v33
  %v252 = vunpack.c.l.b16 %v34
  %v253 = vunpack.c.l.b16 %v35
  %v254 = vunpack.c.l.b16 %v36
  %v255 = vunpack.c.l.b16 %v37
  %v256 = vunpack.c.l.b16 %v38
  %v257 = vunpack.c.l.b16 %v39
  %v258 = vunpack.c.l.b16 %v40
  %v259 = vunpack.c.l.b16 %v41
  %v260 = vunpack.c.l.b16 %v42
  %v261 = vunpack.c.l.b16 %v43
  %v262 = vunpack.c.l.b16 %v44
  %v263 = vunpack.c.l.b16 %v45
  %v264 = vunpack.c.l.b16 %v46
  %v265 = vunpack.c.l.b16 %v47
  %v266 = vunpack.c.l.b16 %v48
  %v267 = vunpack.c.l.b16 %v49
  %v268 = vunpack.c.l.b16 %v50
  %v269 = vunpack.c.l.b16 %v51
  %v270 = vunpack.c.l.b16 %v52
  %v271 = vunpack.c.l.b16 %v53
  %v272 = vunpack.c.l.b16 %v54
  %v273 = vunpack.c.l.b16 %v55
  %v274 = vunpack.c.l.b16 %v56
  %v275 = vunpack.c.l.b16 %v57
  %v276 = vunpack.c.l.b16 %v58
  %v277 = vunpack.c.l.b16 %v59
  %v278 = vunpack.c.l.b16 %v60
  %v279 = vunpack.c.l.b16 %v61
  %v280 = vunpack.c.l.b16 %v62
  %v281 = vunpack.c.l.b16 %v63
  %v282 = vunpack.c.l.b16 %v64
  %v283 = vunpack.c.l.b16 %v65
  %v284 = vunpack.c.l.b16 %v66
  %v285 = vunpack.c.l.b16 %v67
  %v286 = vunpack.c.l.b16 %v68
  %v287 = vunpack.c.l.b16 %v69
  %v288 = vunpack.c.l.b16 %v70
  %v289 = vunpack.c.l.b16 %v71
  %v290 = vunpack.c.l.b16 %v72
  %v291 = vunpack.c.l.b16 %v73
  %v292 = vunpack.c.l.b16 %v74
  %v293 = vunpack.c.l.b16 %v75
  %v294 = vunpack.c.l.b16 %v76
  %v295 = vunpack.c.l.b16 %v77
  %v296 = vunpack.c.l.b16 %v78
  %v297 = vunpack.c.l.b16 %v79
  %v298 = vunpack.c.l.b16 %v80
  %v299 = vunpack.c.l.b16 %v81
  %v300 = vunpack.c.l.b16 %v82
  %v301 = vunpack.c.l.b16 %v83
  %v302 = vunpack.c.l.b16 %v84
  %v303 = vunpack.c.l.b16 %v85
  %v304 = vunpack.c.l.b16 %v86
  %v305 = vunpack.c.l.b16 %v87
  %v306 = vunpack.c.l.b16 %v88
  %v307 = vunpack.c.l.b16 %v89
  %v308 = vunpack.c.l.b16 %v90
  %v309 = vunpack.c.l.b16 %v91
  %v310 = vunpack.c.l.b16 %v92
  %v311 = vunpack.c.l.b16 %v93
  %v312 = vunpack.c.l.b16 %v94
  %v313 = vunpack.c.l.b16 %v95
  %v314 = vunpack.c.l.b16 %v96
  %v315 = vunpack.c.l.b16 %v97
  %v316 = vunpack.c.l.b16 %v98
  %v317 = vpack.c.b16 %v246, %v245
  %v318 = vpack.c.b16 %v248, %v247
  %v319 = vpack.c.b16 %v250, %v249
  %v320 = vpack.c.b16 %v252, %v251
  %v321 = vpack.c.b16 %v254, %v253
  %v322 = vpack.c.b16 %v256, %v255
  %v323 = vpack.c.b16 %v258, %v257
  %v324 = vpack.c.b16 %v260, %v259
  %v325 = vpack.c.b16 %v262, %v261
  %v326 = vpack.c.b16 %v264, %v263
  %v327 = vpack.c.b16 %v266, %v265
  %v328 = vpack.c.b16 %v268, %v267
  %v329 = vpack.c.b16 %v270, %v269
  %v330 = vpack.c.b16 %v272, %v271
  %v331 = vpack.c.b16 %v274, %v273
  %v332 = vpack.c.b16 %v276, %v275
  %v333 = vpack.c.b16 %v278, %v277
  %v334 = vpack.c.b16 %v280, %v279
  %v335 = vpack.c.b16 %v282, %v281
  %v336 = vpack.c.b16 %v284, %v283
  %v337 = vpack.c.b16 %v286, %v285
  %v338 = vpack.c.b16 %v288, %v287
  %v339 = vpack.c.b16 %v290, %v289
  %v340 = vpack.c.b16 %v292, %v291
  %v341 = vpack.c.b16 %v294, %v293
  %v342 = vpack.c.b16 %v296, %v295
  %v343 = vpack.c.b16 %v298, %v297
  %v344 = vpack.c.b16 %v300, %v299
  %v345 = vpack.c.b16 %v302, %v301
  %v346 = vpack.c.b16 %v304, %v303
  %v347 = vpack.c.b16 %v306, %v305
  %v348 = vpack.c.b16 %v308, %v307
  %v349 = vpack.c.b16 %v310, %v309
  %v350 = vpack.c.b16 %v312, %v311
  %v351 = vpack.c.b16 %v314, %v313
  %v352 = vpack.c.b16 %v316, %v315
  %vm389 = vcmask 523264
  %v391 = vsel %vm389, %v159, 0
  %v394 = vsel %vm389, %v164, 0
  %396 = vmatprep.subr.bf16.mxu0 0
  %397 = vmatpush1.bf16.msra.mxu0 %v324
  %398 = vmatprep.subr.bf16.mxu0 0
  %399 = vmatpush1.bf16.msra.mxu0 %v323
  %400 = vmatprep.subr.bf16.mxu0 0
  %401 = vmatpush1.bf16.msra.mxu0 %v322
  %402 = vmatprep.subr.bf16.mxu0 0
  %403 = vmatpush1.bf16.msra.mxu0 %v321
  %404 = vmatprep.subr.bf16.mxu0 0
  %405 = vmatpush1.bf16.msra.mxu0 %v320
  %406 = vmatprep.subr.bf16.mxu0 0
  %407 = vmatpush1.bf16.msra.mxu0 %v319
  %408 = vmatprep.subr.bf16.mxu0 0
  %409 = vmatpush1.bf16.msra.mxu0 %v318
  %410 = vmatprep.subr.bf16.mxu0 0
  %411 = vmatpush1.bf16.msra.mxu0 %v317
  %412 = vmatprep.subr.bf16.mxu0 0
  %413 = vmatpush2.bf16.msra.mxu0 %v332
  %414 = vmatprep.subr.bf16.mxu0 0
  %415 = vmatpush2.bf16.msra.mxu0 %v331
  %416 = vmatprep.subr.bf16.mxu0 0
  %417 = vmatpush2.bf16.msra.mxu0 %v330
  %418 = vmatprep.subr.bf16.mxu0 0
  %419 = vmatpush2.bf16.msra.mxu0 %v329
  %420 = vmatprep.subr.bf16.mxu0 0
  %421 = vmatpush2.bf16.msra.mxu0 %v328
  %422 = vmatprep.subr.bf16.mxu0 0
  %423 = vmatpush2.bf16.msra.mxu0 %v327
  %424 = vmatprep.subr.bf16.mxu0 0
  %425 = vmatpush2.bf16.msra.mxu0 %v326
  %426 = vmatprep.subr.bf16.mxu0 0
  %427 = vmatpush2.bf16.msra.mxu0 %v325
  %428 = vmatprep.mubr.bf16.mxu0 %v156
  %429 = vmatmul.mubr.bf16.gmra.mxu0 %v155
  %v430 = vpop.f32.mrf.mxu0
  %v431 = vadd.f32 %v106, %v430
  %v432 = vpop.f32.mrf.mxu0
  %v433 = vpop.f32.mrf.mxu0
  %v434 = vadd.f32 %v111, %v433
  %v435 = vpop.f32.mrf.mxu0
  %436 = vmatprep.mubr.bf16.mxu0 %v161
  %437 = vmatmul.mubr.bf16.gmra.mxu0 %v160
  %v438 = vpop.f32.mrf.mxu0
  %v439 = vadd.f32 %v116, %v438
  %v440 = vpop.f32.mrf.mxu0
  %v441 = vpop.f32.mrf.mxu0
  %v442 = vadd.f32 %v121, %v441
  %v443 = vpop.f32.mrf.mxu0
  %444 = vdwg.mxu0
  %445 = vmatprep.subr.bf16.mxu0 0
  %446 = vmatpush1.bf16.msra.mxu0 %v340
  %447 = vmatprep.subr.bf16.mxu0 0
  %448 = vmatpush1.bf16.msra.mxu0 %v339
  %449 = vmatprep.subr.bf16.mxu0 0
  %450 = vmatpush1.bf16.msra.mxu0 %v338
  %451 = vmatprep.subr.bf16.mxu0 0
  %452 = vmatpush1.bf16.msra.mxu0 %v337
  %453 = vmatprep.subr.bf16.mxu0 0
  %454 = vmatpush1.bf16.msra.mxu0 %v336
  %455 = vmatprep.subr.bf16.mxu0 0
  %456 = vmatpush1.bf16.msra.mxu0 %v335
  %457 = vmatprep.subr.bf16.mxu0 0
  %458 = vmatpush1.bf16.msra.mxu0 %v334
  %459 = vmatprep.subr.bf16.mxu0 0
  %460 = vmatpush1.bf16.msra.mxu0 %v333
  %461 = vmatprep.subr.bf16.mxu0 0
  %462 = vmatpush2.bf16.msra.mxu0 %v348
  %463 = vmatprep.subr.bf16.mxu0 0
  %464 = vmatpush2.bf16.msra.mxu0 %v347
  %465 = vmatprep.subr.bf16.mxu0 0
  %466 = vmatpush2.bf16.msra.mxu0 %v346
  %467 = vmatprep.subr.bf16.mxu0 0
  %468 = vmatpush2.bf16.msra.mxu0 %v345
  %469 = vmatprep.subr.bf16.mxu0 0
  %470 = vmatpush2.bf16.msra.mxu0 %v344
  %471 = vmatprep.subr.bf16.mxu0 0
  %472 = vmatpush2.bf16.msra.mxu0 %v343
  %473 = vmatprep.subr.bf16.mxu0 0
  %474 = vmatpush2.bf16.msra.mxu0 %v342
  %475 = vmatprep.subr.bf16.mxu0 0
  %476 = vmatpush2.bf16.msra.mxu0 %v341
  %477 = vmatprep.mubr.bf16.mxu0 %v158
  %478 = vmatmul.mubr.bf16.gmra.mxu0 %v157
  %v479 = vpop.f32.mrf.mxu0
  %v480 = vadd.f32 %v431, %v479
  %v481 = vpop.f32.mrf.mxu0
  %v482 = vpop.f32.mrf.mxu0
  %v483 = vadd.f32 %v434, %v482
  %v484 = vpop.f32.mrf.mxu0
  %485 = vmatprep.mubr.bf16.mxu0 %v163
  %486 = vmatmul.mubr.bf16.gmra.mxu0 %v162
  %v487 = vpop.f32.mrf.mxu0
  %v488 = vadd.f32 %v439, %v487
  %v489 = vpop.f32.mrf.mxu0
  %v490 = vpop.f32.mrf.mxu0
  %v491 = vadd.f32 %v442, %v490
  %v492 = vpop.f32.mrf.mxu0
  %493 = vdwg.mxu0
  %494 = vmatprep.subr.bf16.mxu0 0
  %495 = vmatpush1.bf16.msra.mxu0 0
  %496 = vmatprep.subr.bf16.mxu0 0
  %497 = vmatpush1.bf16.msra.mxu0 0
  %498 = vmatprep.subr.bf16.mxu0 0
  %499 = vmatpush1.bf16.msra.mxu0 0
  %500 = vmatprep.subr.bf16.mxu0 0
  %501 = vmatpush1.bf16.msra.mxu0 0
  %502 = vmatprep.subr.bf16.mxu0 0
  %503 = vmatpush1.bf16.msra.mxu0 %v352
  %504 = vmatprep.subr.bf16.mxu0 0
  %505 = vmatpush1.bf16.msra.mxu0 %v351
  %506 = vmatprep.subr.bf16.mxu0 0
  %507 = vmatpush1.bf16.msra.mxu0 %v350
  %508 = vmatprep.subr.bf16.mxu0 0
  %509 = vmatpush1.bf16.msra.mxu0 %v349
  %510 = vmatprep.subr.bf16.mxu0 0
  %511 = vmatpush2.bf16.msra.mxu0 0
  %512 = vmatprep.subr.bf16.mxu0 0
  %513 = vmatpush2.bf16.msra.mxu0 0
  %514 = vmatprep.subr.bf16.mxu0 0
  %515 = vmatpush2.bf16.msra.mxu0 0
  %516 = vmatprep.subr.bf16.mxu0 0
  %517 = vmatpush2.bf16.msra.mxu0 0
  %518 = vmatprep.subr.bf16.mxu0 0
  %519 = vmatpush2.bf16.msra.mxu0 0
  %520 = vmatprep.subr.bf16.mxu0 0
  %521 = vmatpush2.bf16.msra.mxu0 0
  %522 = vmatprep.subr.bf16.mxu0 0
  %523 = vmatpush2.bf16.msra.mxu0 0
  %524 = vmatprep.subr.bf16.mxu0 0
  %525 = vmatpush2.bf16.msra.mxu0 0
  %526 = vmatprep.mubr.bf16.mxu0 0
  %527 = vmatmul.mubr.bf16.gmra.mxu0 %v391
  %v528 = vpop.f32.mrf.mxu0
  %v529 = vadd.f32 %v480, %v528
  %v530 = vpop.f32.mrf.mxu0
  %v531 = vpop.f32.mrf.mxu0
  %v532 = vadd.f32 %v483, %v531
  %v533 = vpop.f32.mrf.mxu0
  %534 = vmatprep.mubr.bf16.mxu0 0
  %535 = vmatmul.mubr.bf16.gmra.mxu0 %v394
  %v536 = vpop.f32.mrf.mxu0
  %v537 = vadd.f32 %v488, %v536
  %v538 = vpop.f32.mrf.mxu0
  %v539 = vpop.f32.mrf.mxu0
  %v540 = vadd.f32 %v491, %v539
  %v541 = vpop.f32.mrf.mxu0
  %542 = vdwg.mxu0
  %vm543 = vcmp.ge.f32.partialorder %v529, 0.0
  %vm544 = vcmp.ge.f32.partialorder %v532, 0.0
  %vm545 = vcmp.ge.f32.partialorder %v537, 0.0
  %vm546 = vcmp.ge.f32.partialorder %v540, 0.0
  %v547 = vmul.f32 %v529, 0.2
  %v548 = vmul.f32 %v532, 0.2
  %v549 = vmul.f32 %v537, 0.2
  %v550 = vmul.f32 %v540, 0.2
  %v551 = vsel %vm543, %v529, %v547
  %v552 = vsel %vm544, %v532, %v548
  %v553 = vsel %vm545, %v537, %v549
  %v554 = vsel %vm546, %v540, %v550
  %v555 = vpack.c.bf16 %v552, %v551
  %v556 = vpack.c.bf16 %v554, %v553
  %v559 = vunpack.c.l.b16 %v555
  %v560 = vunpack.c.h.b16 %v555
  %v561 = vunpack.c.l.b16 %v556
  %v562 = vunpack.c.h.b16 %v556
  %v563 = vpack.c.b16 %v559, %v559
  %v564 = vpack.c.b16 %v560, %v560
  %v565 = vpack.c.b16 %v561, %v561
  %v566 = vpack.c.b16 %v562, %v562
  %571 = vst [vmem:[%s3] sm:$0xf] %v563
  %572 = vst [vmem:[%s3 + $0x4] sm:$0xf] %v564
  %573 = vst [vmem:[%s3 + $0x8] sm:$0xf] %v565
  %574 = vst [vmem:[%s3 + $0xc] sm:$0xf] %v566
  // Predicated region
  $region14: #{generator_forward.30} parent=0 // pred_check
    _
  $region15: #{generator_forward.30} parent=0 // pred_check_branch
    %576 = sbr.rel (0) target = $region17
  $region16: #{generator_forward.30} parent=0 // pred_region
    _
  $region17: #{generator_forward.30} parent=0 // pred_fallthru
    _
  // Predicated region
  $region18: #{generator_forward.30} parent=0 // pred_check
    _
  $region19: #{generator_forward.30} parent=0 // pred_check_branch
    %578 = sbr.rel (0) target = $region21
  $region20: #{generator_forward.30} parent=0 // pred_region
    _
  $region21: #{generator_forward.30} parent=0 // pred_fallthru
    _

// kernel: generator_forward.32
$region0: #{generator_forward.32}
  #allocation0 [shape = 'u32[]', space=smem, size = 0x4, offset = 0x4, fixed_abs, tag = 'smem constant byte address 0x4 - core index']
  #allocation1 [shape = 'u32[144,128]{1,0:T(1,128)}', space=vmem, size = 0x12000, scoped, tag = 'internal scratch']
  %s0 = inlined_call_operand.vmem [shape: bf16[16,32], index: 0, kind: input, shape index: {}]
  %s1 = inlined_call_operand.vmem [shape: bf16[32,512], index: 1, kind: input, shape index: {}]
  %s2 = inlined_call_operand.vmem [shape: f32[16,1], index: 2, kind: input, shape index: {}]
  %s3 = inlined_call_operand.vmem [shape: f32[16,512], index: 3, kind: output, shape index: {}]
  %s4 = sld [smem:[#allocation0]]
  $region102: #{generator_forward.32} parent=0
    _
  %s6 = ssub.s32 1, %s4
  %s7 = scalar_select 0, %s6, %s4
  $region1: #{generator_forward.32} parent=0
    #allocation2 [shape = 'u8[32768]{0}', space=vmem, size = 0x8000, scoped, tag = 'input window, operand 1']
    #allocation3 [shape = 'u8[32768]{0}', space=vmem, size = 0x8000, scoped, tag = 'output window, operand 0']
    loop: start=0, step=1, limit=4
    $region2: #{generator_forward.32} parent=1 // loop_pre_header
      _
    $region3: #{generator_forward.32} parent=1 // loop_header
      %s9 = sphi 0, %s13
      %p10 = scmp.ge.s32.totalorder %s9, 4
      %s16 = sphi 0, %s28
      %s17 = sphi 0, %s24
      %s18 = sphi 0, %s16
      %s19 = sphi 0, %s17
      %s20 = sphi 0, %s18
      %s21 = sphi 0, %s19
      %s31 = sphi 0, %s33
      %s34 = sphi 0, %s31
      %s35 = sphi 0, %s34
      %s51 = sphi 0, %s35
      %s57 = sphi 0, %s59
      %s60 = sphi 0, %s57
      %s61 = sphi 0, %s60
      %s77 = sphi 0, %s61
      %s83 = sphi 0, %s85
      %s86 = sphi 0, %s83
      %s87 = sphi 0, %s86
      %s103 = sphi 0, %s87
      %s111 = sphi 0, %s113
      %s114 = sphi 0, %s111
      %s115 = sphi 0, %s114
      %s131 = sphi 0, %s115
    $region4: #{generator_forward.32} parent=1 // loop_header_branch
      %12 = sbr.rel (%p10) target = $region8
    $region5: #{generator_forward.32} parent=1 // loop_body
      %s14 = ssub.s32 %s9, 1
      %s15 = ssub.s32 %s9, 2
      %s22 = sadd.s32 1, %s17
      %p23 = scmp.ge.s32.totalorder %s22, 2
      %s24 = scalar_select %p23, 0, %s22
      %s25 = sadd.s32 1, %s16
      %s26 = scalar_select %p23, %s25, %s16
      %p27 = scmp.ge.s32.totalorder %s26, 1
      %s28 = scalar_select %p27, 0, %s26
      %s29 = ssub.s32 %s16, %s28
      %p30 = scmp.eq.s32.totalorder %s29, 0
      %s32 = sadd.s32 %s31, 1
      %s33 = scalar_select %p30, %s31, %s32
      %p36 = pneg %p30
      %p37 = scmp.eq.s32.totalorder %s9, 1
      %p38 = por %p36, %p37
      %p39 = scmp.ne.s32.totalorder %s31, %s34
      %p40 = scmp.eq.s32.totalorder %s9, 0
      %p41 = por %p39, %p40
      %p42 = scmp.ne.s32.totalorder %s31, %s34
      %p43 = scmp.eq.s32.totalorder %s14, 1
      %p44 = por %p42, %p43
      %p45 = scmp.ne.s32.totalorder %s34, %s35
      %p46 = scmp.eq.s32.totalorder %s14, 0
      %p47 = por %p45, %p46
      %p48 = scmp.ne.s32.totalorder %s34, %s35
      %p49 = scmp.eq.s32.totalorder %s15, 1
      %p50 = por %p48, %p49
      %p52 = scmp.ne.s32.totalorder %s35, %s51
      %p53 = scmp.eq.s32.totalorder %s15, 0
      %p54 = por %p52, %p53
      %s55 = ssub.s32 %s17, %s24
      %p56 = scmp.eq.s32.totalorder %s55, 0
      %s58 = sadd.s32 %s57, 1
      %s59 = scalar_select %p56, %s57, %s58
      %p62 = pneg %p56
      %p63 = scmp.eq.s32.totalorder %s9, 1
      %p64 = por %p62, %p63
      %p65 = scmp.ne.s32.totalorder %s57, %s60
      %p66 = scmp.eq.s32.totalorder %s9, 0
      %p67 = por %p65, %p66
      %p68 = scmp.ne.s32.totalorder %s57, %s60
      %p69 = scmp.eq.s32.totalorder %s14, 1
      %p70 = por %p68, %p69
      %p71 = scmp.ne.s32.totalorder %s60, %s61
      %p72 = scmp.eq.s32.totalorder %s14, 0
      %p73 = por %p71, %p72
      %p74 = scmp.ne.s32.totalorder %s60, %s61
      %p75 = scmp.eq.s32.totalorder %s15, 1
      %p76 = por %p74, %p75
      %p78 = scmp.ne.s32.totalorder %s61, %s77
      %p79 = scmp.eq.s32.totalorder %s15, 0
      %p80 = por %p78, %p79
      %s81 = ssub.s32 %s16, %s28
      %p82 = scmp.eq.s32.totalorder %s81, 0
      %s84 = sadd.s32 %s83, 1
      %s85 = scalar_select %p82, %s83, %s84
      %p88 = pneg %p82
      %p89 = scmp.eq.s32.totalorder %s9, 1
      %p90 = por %p88, %p89
      %p91 = scmp.ne.s32.totalorder %s83, %s86
      %p92 = scmp.eq.s32.totalorder %s9, 0
      %p93 = por %p91, %p92
      %p94 = scmp.ne.s32.totalorder %s83, %s86
      %p95 = scmp.eq.s32.totalorder %s14, 1
      %p96 = por %p94, %p95
      %p97 = scmp.ne.s32.totalorder %s86, %s87
      %p98 = scmp.eq.s32.totalorder %s14, 0
      %p99 = por %p97, %p98
      %p100 = scmp.ne.s32.totalorder %s86, %s87
      %p101 = scmp.eq.s32.totalorder %s15, 1
      %p102 = por %p100, %p101
      %p104 = scmp.ne.s32.totalorder %s87, %s103
      %p105 = scmp.eq.s32.totalorder %s15, 0
      %p106 = por %p104, %p105
      %s107 = ssub.s32 %s16, %s28
      %s108 = ssub.s32 %s17, %s24
      %s109 = sor.u32 %s107, %s108
      %p110 = scmp.eq.s32.totalorder %s109, 0
      %s112 = sadd.s32 %s111, 1
      %s113 = scalar_select %p110, %s111, %s112
      %p116 = pneg %p110
      %p117 = scmp.eq.s32.totalorder %s9, 1
      %p118 = por %p116, %p117
      %p119 = scmp.ne.s32.totalorder %s111, %s114
      %p120 = scmp.eq.s32.totalorder %s9, 0
      %p121 = por %p119, %p120
      %p122 = scmp.ne.s32.totalorder %s111, %s114
      %p123 = scmp.eq.s32.totalorder %s14, 1
      %p124 = por %p122, %p123
      %p125 = scmp.ne.s32.totalorder %s114, %s115
      %p126 = scmp.eq.s32.totalorder %s14, 0
      %p127 = por %p125, %p126
      %p128 = scmp.ne.s32.totalorder %s114, %s115
      %p129 = scmp.eq.s32.totalorder %s15, 1
      %p130 = por %p128, %p129
      %p132 = scmp.ne.s32.totalorder %s115, %s131
      %p133 = scmp.eq.s32.totalorder %s15, 0
      %p134 = por %p132, %p133
      %p135 = scmp.le.s32.totalorder 1, %s9
      %p136 = scmp.lt.s32.totalorder %s9, 3
      %p137 = pnand %p135, %p136
      %p138 = pneg %p137
      // Predicated region
      $region9: #{generator_forward.32} parent=5 // pred_check
        _
      $region10: #{generator_forward.32} parent=5 // pred_check_branch
        %140 = sbr.rel (%p137) target = $region12
      $region11: #{generator_forward.32} parent=5 // pred_region
        %s141 = ssub.s32 %s9, 1
        // Predicated region
        $region13: #{generator_forward.32} parent=11 // pred_check
          %p142 = pneg %p47
        $region14: #{generator_forward.32} parent=11 // pred_check_branch
          %144 = sbr.rel (%p142) target = $region16
        $region15: #{generator_forward.32} parent=11 // pred_region
          %s145 = smul.u32 2, %s18
          %p146 = scmp.lt.s32.totalorder %s145, 1
          %s147 = scalar_select %p146, %s145, 1
          %s148 = smul.addr %s147, 4
          %s149 = scalar_lea.vmem %s0, %s148
          %s150 = smul.u32 2, %s18
        $region16: #{generator_forward.32} parent=11 // pred_fallthru
          _
        // Predicated region
        $region17: #{generator_forward.32} parent=11 // pred_check
          %p151 = pneg %p99
        $region18: #{generator_forward.32} parent=11 // pred_check_branch
          %153 = sbr.rel (%p151) target = $region20
        $region19: #{generator_forward.32} parent=11 // pred_region
          %s154 = smul.u32 2, %s18
          %p155 = scmp.lt.s32.totalorder %s154, 1
          %s156 = scalar_select %p155, %s154, 1
          %s157 = smul.addr %s156, 8
          %s158 = scalar_lea.vmem %s2, %s157
          %s159 = smul.u32 2, %s18
        $region20: #{generator_forward.32} parent=11 // pred_fallthru
          _
      $region12: #{generator_forward.32} parent=5 // pred_fallthru
        _
      %p160 = scmp.lt.s32.totalorder %s9, 2
      // Predicated region
      $region21: #{generator_forward.32} parent=5 // pred_check
        %p161 = pneg %p160
      $region22: #{generator_forward.32} parent=5 // pred_check_branch
        %163 = sbr.rel (%p161) target = $region24
      $region23: #{generator_forward.32} parent=5 // pred_region
        // Predicated region
        $region25: #{generator_forward.32} parent=23 // pred_check
          %p164 = pneg %p67
        $region26: #{generator_forward.32} parent=23 // pred_check_branch
          %166 = sbr.rel (%p164) target = $region28
        $region27: #{generator_forward.32} parent=23 // pred_region
          %s167 = sand.u32 %s57, 1
          %s168 = sand.u32 %s57, 1
          %s169 = smul.addr %s168, 32
          %s170 = scalar_lea.vmem [#allocation2], %s169
          %s171 = smul.u32 2, %s17
          %s172 = smul.addr %s171, 4
          %s173 = scalar_lea.vmem %s1, %s172
          // Predicated region
          $region29: #{generator_forward.32} parent=27 // pred_check
            _
          $region30: #{generator_forward.32} parent=27 // pred_check_branch
            %175 = sbr.rel (0) target = $region32
          $region31: #{generator_forward.32} parent=27 // pred_region
            // Predicated region
            $region33: #{generator_forward.32} parent=31 // pred_check
              _
            $region34: #{generator_forward.32} parent=31 // pred_check_branch
              %177 = sbr.rel (0) target = $region36
            $region35: #{generator_forward.32} parent=31 // pred_region
              // Predicated region
              $region48: #{generator_forward.32} parent=35 // pred_check
                _
              $region49: #{generator_forward.32} parent=35 // pred_check_branch
                %199 = sbr.rel (0) target = $region51
              $region50: #{generator_forward.32} parent=35 // pred_region
                loop: start=0, step=1, limit=1
                $region52: #{generator_forward.32} parent=50 // loop_pre_header
                  _
                $region53: #{generator_forward.32} parent=50 // loop_header
                  %s201 = sphi 0, %s205
                  %p202 = scmp.ge.s32.totalorder %s201, 1
                  %s206 = sphi %s173, %s173
                  %s207 = sphi %s170, %s170
                $region54: #{generator_forward.32} parent=50 // loop_header_branch
                  %204 = sbr.rel (%p202) target = $region58
                $region55: #{generator_forward.32} parent=50 // loop_body
                  %v208 = vld [vmem:[%s206] sm:$0xff]
                  %209 = vst [vmem:[%s207] sm:$0xff] %v208
                  %v210 = vld [vmem:[%s206 + $0x10] sm:$0xff]
                  %211 = vst [vmem:[%s207 + $0x8] sm:$0xff] %v210
                  %v212 = vld [vmem:[%s206 + $0x20] sm:$0xff]
                  %213 = vst [vmem:[%s207 + $0x10] sm:$0xff] %v212
                  %v214 = vld [vmem:[%s206 + $0x30] sm:$0xff]
                  %215 = vst [vmem:[%s207 + $0x18] sm:$0xff] %v214
                $region56: #{generator_forward.32} parent=50 // loop_footer
                  %s205 = sadd.s32 1, %s201
                $region57: #{generator_forward.32} parent=50 // loop_footer_branch
                  %200 = sbr.rel target = $region53
                $region58: #{generator_forward.32} parent=50 // loop_exit
                  _
              $region51: #{generator_forward.32} parent=35 // pred_fallthru
                _
              // Predicated region
              $region59: #{generator_forward.32} parent=35 // pred_check
                _
              $region60: #{generator_forward.32} parent=35 // pred_check_branch
                %217 = sbr.rel target = $region62
              $region61: #{generator_forward.32} parent=35 // pred_region
                _
              $region62: #{generator_forward.32} parent=35 // pred_fallthru
                _
            $region36: #{generator_forward.32} parent=31 // pred_fallthru
              _
            // Predicated region
            $region37: #{generator_forward.32} parent=31 // pred_check
              _
            $region38: #{generator_forward.32} parent=31 // pred_check_branch
              %179 = sbr.rel target = $region40
            $region39: #{generator_forward.32} parent=31 // pred_region
              %s181 = ssub.s32 256, 1
              loop: start=0, step=1, limit=1
              $region41: #{generator_forward.32} parent=39 // loop_pre_header
                _
              $region42: #{generator_forward.32} parent=39 // loop_header
                %s183 = sphi 0, %s187
                %p184 = scmp.ge.s32.totalorder %s183, 1
                %s188 = sphi %s173, %s173
                %s189 = sphi %s170, %s170
              $region43: #{generator_forward.32} parent=39 // loop_header_branch
                %186 = sbr.rel (%p184) target = $region47
              $region44: #{generator_forward.32} parent=39 // loop_body
                %v190 = vld [vmem:[%s188] sm:%s181]
                %191 = vst [vmem:[%s189] sm:%s181] %v190
                %v192 = vld [vmem:[%s188 + $0x10] sm:%s181]
                %193 = vst [vmem:[%s189 + $0x8] sm:%s181] %v192
                %v194 = vld [vmem:[%s188 + $0x20] sm:%s181]
                %195 = vst [vmem:[%s189 + $0x10] sm:%s181] %v194
                %v196 = vld [vmem:[%s188 + $0x30] sm:%s181]
                %197 = vst [vmem:[%s189 + $0x18] sm:%s181] %v196
              $region45: #{generator_forward.32} parent=39 // loop_footer
                %s187 = sadd.s32 1, %s183
              $region46: #{generator_forward.32} parent=39 // loop_footer_branch
                %182 = sbr.rel target = $region42
              $region47: #{generator_forward.32} parent=39 // loop_exit
                _
            $region40: #{generator_forward.32} parent=31 // pred_fallthru
              _
          $region32: #{generator_forward.32} parent=27 // pred_fallthru
            _
          %218 = vnop
        $region28: #{generator_forward.32} parent=23 // pred_fallthru
          _
      $region24: #{generator_forward.32} parent=5 // pred_fallthru
        _
      %p219 = scmp.le.s32.totalorder 1, %s9
      %p220 = scmp.lt.s32.totalorder %s9, 3
      %p221 = pnand %p219, %p220
      %p222 = pneg %p221
      // Predicated region
      $region63: #{generator_forward.32} parent=5 // pred_check
        _
      $region64: #{generator_forward.32} parent=5 // pred_check_branch
        %224 = sbr.rel (%p221) target = $region66
      $region65: #{generator_forward.32} parent=5 // pred_region
        %s225 = ssub.s32 %s9, 1
        %s226 = sand.u32 %s60, 1
        %s227 = sand.u32 %s60, 1
        %s228 = smul.addr %s227, 32
        %s229 = scalar_lea.vmem [#allocation2], %s228
        // Predicated region
        $region67: #{generator_forward.32} parent=65 // pred_check
          %p230 = pneg %p73
        $region68: #{generator_forward.32} parent=65 // pred_check_branch
          %232 = sbr.rel (%p230) target = $region70
        $region69: #{generator_forward.32} parent=65 // pred_region
          _
        $region70: #{generator_forward.32} parent=65 // pred_fallthru
          _
        %s233 = smul.u32 2, %s18
        %p234 = scmp.lt.s32.totalorder %s233, 1
        %s235 = scalar_select %p234, %s233, 1
        %s236 = smul.addr %s235, 4
        %s237 = scalar_lea.vmem %s0, %s236
        %p238 = pneg %p47
        %p239 = pneg %p44
        %s240 = sand.u32 %s60, 1
        %s241 = sand.u32 %s60, 1
        %s242 = smul.addr %s241, 32
        %s243 = scalar_lea.vmem [#allocation2], %s242
        %p244 = pneg %p73
        %p245 = pneg %p70
        %s246 = smul.u32 2, %s18
        %p247 = scmp.lt.s32.totalorder %s246, 1
        %s248 = scalar_select %p247, %s246, 1
        %s249 = smul.addr %s248, 8
        %s250 = scalar_lea.vmem %s2, %s249
        %p251 = pneg %p99
        %p252 = pneg %p96
        %p253 = pneg %p127
        %p254 = pneg %p124
        %s255 = sand.u32 %s114, 1
        %s256 = sand.u32 %s114, 1
        %s257 = smul.addr %s256, 32
        %s258 = scalar_lea.vmem [#allocation3], %s257
        %s259 = smul.u32 2, %s18
        %p260 = scmp.lt.s32.totalorder %s259, 1
        %s261 = scalar_select %p260, %s259, 1
        %s262 = smul.addr %s261, 4
        %s263 = scalar_lea.vmem %s0, %s262
        %s264 = smul.u32 2, %s18
        %s265 = smul.u32 2, %s19
        %s266 = smul.u32 2, %s18
        %p267 = scmp.lt.s32.totalorder %s266, 1
        %s268 = scalar_select %p267, %s266, 1
        %s269 = smul.addr %s268, 8
        %s270 = scalar_lea.vmem %s2, %s269
        %s271 = smul.u32 2, %s18
        %s272 = smul.u32 2, %s18
        %s273 = smul.u32 2, %s19
        %v275 = vld [vmem:[%s263] sm:$0xf]
        %v276 = vld [vmem:[%s263 + $0x4] sm:$0xf]
        %v277 = vld [vmem:[%s229] sm:$0xff]
        %v278 = vld [vmem:[%s229 + $0x8] sm:$0xff]
        %v279 = vld [vmem:[%s229 + $0x10] sm:$0xff]
        %v280 = vld [vmem:[%s229 + $0x18] sm:$0xff]
        %v281 = vld [vmem:[%s270] sm:$0xff]
        %v282 = vld [vmem:[%s270 + $0x8] sm:$0xff]
        %284 = vset.pattern.permute.xlu0 0
        %285 = vperm.xlu0 %284, %v281
        %v286 = vpop.permute.xlu0 %285
        %289 = vset.pattern.permute.xlu0 0
        %290 = vperm.xlu0 %289, %v282
        %v291 = vpop.permute.xlu0 %290
        %v295 = vunpack.c.l.b16 %v275
        %v296 = vunpack.c.l.b16 %v276
        %v297 = vpack.c.b16 %v296, %v295
        %v302 = vunpack.c.l.b16 %v277
        %v303 = vunpack.c.h.b16 %v277
        %v304 = vunpack.c.l.b16 %v278
        %v305 = vunpack.c.h.b16 %v278
        %v306 = vunpack.c.l.b16 %v279
        %v307 = vunpack.c.h.b16 %v279
        %v308 = vunpack.c.l.b16 %v280
        %v309 = vunpack.c.h.b16 %v280
        %v310 = vpack.c.b16 %v304, %v302
        %v311 = vpack.c.b16 %v305, %v303
        %v312 = vpack.c.b16 %v308, %v306
        %v313 = vpack.c.b16 %v309, %v307
        %vm318 = vcmask 261120
        %v320 = vsel %vm318, %v297, 0
        %322 = vmatprep.subr.bf16.mxu0 0
        %323 = vmatpush1.bf16.msra.mxu0 0
        %324 = vmatprep.subr.bf16.mxu0 0
        %325 = vmatpush1.bf16.msra.mxu0 0
        %326 = vmatprep.subr.bf16.mxu0 0
        %327 = vmatpush1.bf16.msra.mxu0 0
        %328 = vmatprep.subr.bf16.mxu0 0
        %329 = vmatpush1.bf16.msra.mxu0 0
        %330 = vmatprep.subr.bf16.mxu0 0
        %331 = vmatpush1.bf16.msra.mxu0 0
        %332 = vmatprep.subr.bf16.mxu0 0
        %333 = vmatpush1.bf16.msra.mxu0 0
        %334 = vmatprep.subr.bf16.mxu0 %v313
        %335 = vmatpush1.bf16.msra.mxu0 %v312
        %336 = vmatprep.subr.bf16.mxu0 %v311
        %337 = vmatpush1.bf16.msra.mxu0 %v310
        %338 = vmatprep.subr.bf16.mxu0 0
        %339 = vmatpush2.bf16.msra.mxu0 0
        %340 = vmatprep.subr.bf16.mxu0 0
        %341 = vmatpush2.bf16.msra.mxu0 0
        %342 = vmatprep.subr.bf16.mxu0 0
        %343 = vmatpush2.bf16.msra.mxu0 0
        %344 = vmatprep.subr.bf16.mxu0 0
        %345 = vmatpush2.bf16.msra.mxu0 0
        %346 = vmatprep.subr.bf16.mxu0 0
        %347 = vmatpush2.bf16.msra.mxu0 0
        %348 = vmatprep.subr.bf16.mxu0 0
        %349 = vmatpush2.bf16.msra.mxu0 0
        %350 = vmatprep.subr.bf16.mxu0 0
        %351 = vmatpush2.bf16.msra.mxu0 0
        %352 = vmatprep.subr.bf16.mxu0 0
        %353 = vmatpush2.bf16.msra.mxu0 0
        %354 = vmatprep.mubr.bf16.mxu0 0
        %355 = vmatmul.mubr.bf16.gmra.mxu0 %v320
        %v356 = vpop.f32.mrf.mxu0
        %v357 = vadd.f32 %v286, %v356
        %v358 = vpop.f32.mrf.mxu0
        %v359 = vadd.f32 %v286, %v358
        %v360 = vpop.f32.mrf.mxu0
        %v361 = vadd.f32 %v291, %v360
        %v362 = vpop.f32.mrf.mxu0
        %v363 = vadd.f32 %v291, %v362
        %364 = vdwg.mxu0
        %365 = vst [vmem:[%s258] sm:$0xff] %v357
        %366 = vst [vmem:[%s258 + $0x8] sm:$0xff] %v359
        %367 = vst [vmem:[%s258 + $0x10] sm:$0xff] %v361
        %368 = vst [vmem:[%s258 + $0x18] sm:$0xff] %v363
        %s369 = sand.u32 %s114, 1
        %s370 = sand.u32 %s114, 1
        %s371 = smul.addr %s370, 32
        %s372 = scalar_lea.vmem [#allocation3], %s371
        // Predicated region
        $region71: #{generator_forward.32} parent=65 // pred_check
          %p373 = pneg %p124
        $region72: #{generator_forward.32} parent=65 // pred_check_branch
          %375 = sbr.rel (%p373) target = $region74
        $region73: #{generator_forward.32} parent=65 // pred_region
          %s376 = smul.u32 2, %s18
          %s377 = smul.u32 2, %s19
          %s378 = smul.addr %s376, 4
          %s379 = sadd.s32 %s377, %s378
          %s380 = smul.addr %s379, 8
          %s381 = scalar_lea.vmem %s3, %s380
          // Predicated region
          $region75: #{generator_forward.32} parent=73 // pred_check
            _
          $region76: #{generator_forward.32} parent=73 // pred_check_branch
            %383 = sbr.rel (0) target = $region78
          $region77: #{generator_forward.32} parent=73 // pred_region
            // Predicated region
            $region79: #{generator_forward.32} parent=77 // pred_check
              _
            $region80: #{generator_forward.32} parent=77 // pred_check_branch
              %385 = sbr.rel (0) target = $region82
            $region81: #{generator_forward.32} parent=77 // pred_region
              loop: start=0, step=1, limit=1
              $region83: #{generator_forward.32} parent=81 // loop_pre_header
                _
              $region84: #{generator_forward.32} parent=81 // loop_header
                %s387 = sphi 0, %s391
                %p388 = scmp.ge.s32.totalorder %s387, 1
                %s392 = sphi %s372, %s372
                %s393 = sphi %s381, %s381
              $region85: #{generator_forward.32} parent=81 // loop_header_branch
                %390 = sbr.rel (%p388) target = $region89
              $region86: #{generator_forward.32} parent=81 // loop_body
                %v394 = vld [vmem:[%s392] sm:$0xff]
                %395 = vst [vmem:[%s393] sm:$0xff] %v394
                %v396 = vld [vmem:[%s392 + $0x8] sm:$0xff]
                %397 = vst [vmem:[%s393 + $0x8] sm:$0xff] %v396
                %v398 = vld [vmem:[%s392 + $0x10] sm:$0xff]
                %399 = vst [vmem:[%s393 + $0x20] sm:$0xff] %v398
                %v400 = vld [vmem:[%s392 + $0x18] sm:$0xff]
                %401 = vst [vmem:[%s393 + $0x28] sm:$0xff] %v400
              $region87: #{generator_forward.32} parent=81 // loop_footer
                %s391 = sadd.s32 1, %s387
              $region88: #{generator_forward.32} parent=81 // loop_footer_branch
                %386 = sbr.rel target = $region84
              $region89: #{generator_forward.32} parent=81 // loop_exit
                _
            $region82: #{generator_forward.32} parent=77 // pred_fallthru
              _
            // Predicated region
            $region90: #{generator_forward.32} parent=77 // pred_check
              _
            $region91: #{generator_forward.32} parent=77 // pred_check_branch
              %403 = sbr.rel target = $region93
            $region92: #{generator_forward.32} parent=77 // pred_region
              _
            $region93: #{generator_forward.32} parent=77 // pred_fallthru
              _
          $region78: #{generator_forward.32} parent=73 // pred_fallthru
            _
          %404 = vnop
        $region74: #{generator_forward.32} parent=65 // pred_fallthru
          _
      $region66: #{generator_forward.32} parent=5 // pred_fallthru
        _
      %p405 = scmp.le.s32.totalorder 2, %s9
      // Predicated region
      $region94: #{generator_forward.32} parent=5 // pred_check
        %p406 = pneg %p405
      $region95: #{generator_forward.32} parent=5 // pred_check_branch
        %408 = sbr.rel (%p406) target = $region97
      $region96: #{generator_forward.32} parent=5 // pred_region
        %s409 = ssub.s32 %s9, 2
        // Predicated region
        $region98: #{generator_forward.32} parent=96 // pred_check
          %p410 = pneg %p130
        $region99: #{generator_forward.32} parent=96 // pred_check_branch
          %412 = sbr.rel (%p410) target = $region101
        $region100: #{generator_forward.32} parent=96 // pred_region
          %s413 = sand.u32 %s115, 1
          %s414 = sand.u32 %s115, 1
          %s415 = smul.addr %s414, 32
          %s416 = scalar_lea.vmem [#allocation3], %s415
        $region101: #{generator_forward.32} parent=96 // pred_fallthru
          _
      $region97: #{generator_forward.32} parent=5 // pred_fallthru
        _
    $region6: #{generator_forward.32} parent=1 // loop_footer
      %s13 = sadd.s32 1, %s9
    $region7: #{generator_forward.32} parent=1 // loop_footer_branch
      %8 = sbr.rel target = $region3
    $region8: #{generator_forward.32} parent=1 // loop_exit
      _

// kernel: mul.61
$region0: #{mul.61}
  #allocation0 [shape = 's32[1]{0}', space=sflag, size = 0x4, scoped, tag = 'scoped memory for mul.61']
  %s0 = inlined_call_operand.vmem [shape: f32[16,2], index: 0, kind: input, shape index: {}]
  %s1 = inlined_call_operand.vmem [shape: f32[16,2,16,16], index: 1, kind: output, shape index: {}]
  // Predicated region
  $region2: #{mul.61} parent=0 // pred_check
    _
  $region3: #{mul.61} parent=0 // pred_check_branch
    %3 = sbr.rel (0) target = $region5
  $region4: #{mul.61} parent=0 // pred_region
    _
  $region5: #{mul.61} parent=0 // pred_fallthru
    _
  %v4 = vld [vmem:[%s0] ss:$0 sm:$0xff]
  %5 = vst [vmem:[%s1] sm:$0xff] %v4
  %s6 = scalar_lea.vmem %s0, 1
  %v7 = vld [vmem:[%s6] ss:$0 sm:$0xff]
  %s8 = scalar_lea.vmem %s1, 256
  %9 = vst [vmem:[%s8] sm:$0xff] %v7
  %s10 = scalar_lea.vmem %s1, 16
  %11 = vst [vmem:[%s10] sm:$0xff] %v4
  %s12 = scalar_lea.vmem %s1, 272
  %13 = vst [vmem:[%s12] sm:$0xff] %v7
  %s14 = scalar_lea.vmem %s1, 32
  %15 = vst [vmem:[%s14] sm:$0xff] %v4
  %s16 = scalar_lea.vmem %s1, 288
  %17 = vst [vmem:[%s16] sm:$0xff] %v7
  %s18 = scalar_lea.vmem %s1, 48
  %19 = vst [vmem:[%s18] sm:$0xff] %v4
  %s20 = scalar_lea.vmem %s1, 304
  %21 = vst [vmem:[%s20] sm:$0xff] %v7
  %s22 = scalar_lea.vmem %s1, 64
  %23 = vst [vmem:[%s22] sm:$0xff] %v4
  %s24 = scalar_lea.vmem %s1, 320
  %25 = vst [vmem:[%s24] sm:$0xff] %v7
  %s26 = scalar_lea.vmem %s1, 80
  %27 = vst [vmem:[%s26] sm:$0xff] %v4
  %s28 = scalar_lea.vmem %s1, 336
  %29 = vst [vmem:[%s28] sm:$0xff] %v7
  %s30 = scalar_lea.vmem %s1, 96
  %31 = vst [vmem:[%s30] sm:$0xff] %v4
  %s32 = scalar_lea.vmem %s1, 352
  %33 = vst [vmem:[%s32] sm:$0xff] %v7
  %s34 = scalar_lea.vmem %s1, 112
  %35 = vst [vmem:[%s34] sm:$0xff] %v4
  %s36 = scalar_lea.vmem %s1, 368
  %37 = vst [vmem:[%s36] sm:$0xff] %v7
  %s38 = scalar_lea.vmem %s1, 128
  %39 = vst [vmem:[%s38] sm:$0xff] %v4
  %s40 = scalar_lea.vmem %s1, 384
  %41 = vst [vmem:[%s40] sm:$0xff] %v7
  %s42 = scalar_lea.vmem %s1, 144
  %43 = vst [vmem:[%s42] sm:$0xff] %v4
  %s44 = scalar_lea.vmem %s1, 400
  %45 = vst [vmem:[%s44] sm:$0xff] %v7
  %s46 = scalar_lea.vmem %s1, 160
  %47 = vst [vmem:[%s46] sm:$0xff] %v4
  %s48 = scalar_lea.vmem %s1, 416
  %49 = vst [vmem:[%s48] sm:$0xff] %v7
  %s50 = scalar_lea.vmem %s1, 176
  %51 = vst [vmem:[%s50] sm:$0xff] %v4
  %s52 = scalar_lea.vmem %s1, 432
  %53 = vst [vmem:[%s52] sm:$0xff] %v7
  %s54 = scalar_lea.vmem %s1, 192
  %55 = vst [vmem:[%s54] sm:$0xff] %v4
  %s56 = scalar_lea.vmem %s1, 448
  %57 = vst [vmem:[%s56] sm:$0xff] %v7
  %s58 = scalar_lea.vmem %s1, 208
  %59 = vst [vmem:[%s58] sm:$0xff] %v4
  %s60 = scalar_lea.vmem %s1, 464
  %61 = vst [vmem:[%s60] sm:$0xff] %v7
  %s62 = scalar_lea.vmem %s1, 224
  %63 = vst [vmem:[%s62] sm:$0xff] %v4
  %s64 = scalar_lea.vmem %s1, 480
  %65 = vst [vmem:[%s64] sm:$0xff] %v7
  %s66 = scalar_lea.vmem %s1, 240
  %67 = vst [vmem:[%s66] sm:$0xff] %v4
  %s68 = scalar_lea.vmem %s1, 496
  %69 = vst [vmem:[%s68] sm:$0xff] %v7
  %s70 = scalar_lea.vmem %s1, 8
  %71 = vst [vmem:[%s70] sm:$0xff] %v4
  %s72 = scalar_lea.vmem %s1, 264
  %73 = vst [vmem:[%s72] sm:$0xff] %v7
  %s74 = scalar_lea.vmem %s1, 24
  %75 = vst [vmem:[%s74] sm:$0xff] %v4
  %s76 = scalar_lea.vmem %s1, 280
  %77 = vst [vmem:[%s76] sm:$0xff] %v7
  %s78 = scalar_lea.vmem %s1, 40
  %79 = vst [vmem:[%s78] sm:$0xff] %v4
  %s80 = scalar_lea.vmem %s1, 296
  %81 = vst [vmem:[%s80] sm:$0xff] %v7
  %s82 = scalar_lea.vmem %s1, 56
  %83 = vst [vmem:[%s82] sm:$0xff] %v4
  %s84 = scalar_lea.vmem %s1, 312
  %85 = vst [vmem:[%s84] sm:$0xff] %v7
  %s86 = scalar_lea.vmem %s1, 72
  %87 = vst [vmem:[%s86] sm:$0xff] %v4
  %s88 = scalar_lea.vmem %s1, 328
  %89 = vst [vmem:[%s88] sm:$0xff] %v7
  %s90 = scalar_lea.vmem %s1, 88
  %91 = vst [vmem:[%s90] sm:$0xff] %v4
  %s92 = scalar_lea.vmem %s1, 344
  %93 = vst [vmem:[%s92] sm:$0xff] %v7
  %s94 = scalar_lea.vmem %s1, 104
  %95 = vst [vmem:[%s94] sm:$0xff] %v4
  %s96 = scalar_lea.vmem %s1, 360
  %97 = vst [vmem:[%s96] sm:$0xff] %v7
  %s98 = scalar_lea.vmem %s1, 120
  %99 = vst [vmem:[%s98] sm:$0xff] %v4
  %s100 = scalar_lea.vmem %s1, 376
  %101 = vst [vmem:[%s100] sm:$0xff] %v7
  %s102 = scalar_lea.vmem %s1, 136
  %103 = vst [vmem:[%s102] sm:$0xff] %v4
  %s104 = scalar_lea.vmem %s1, 392
  %105 = vst [vmem:[%s104] sm:$0xff] %v7
  %s106 = scalar_lea.vmem %s1, 152
  %107 = vst [vmem:[%s106] sm:$0xff] %v4
  %s108 = scalar_lea.vmem %s1, 408
  %109 = vst [vmem:[%s108] sm:$0xff] %v7
  %s110 = scalar_lea.vmem %s1, 168
  %111 = vst [vmem:[%s110] sm:$0xff] %v4
  %s112 = scalar_lea.vmem %s1, 424
  %113 = vst [vmem:[%s112] sm:$0xff] %v7
  %s114 = scalar_lea.vmem %s1, 184
  %115 = vst [vmem:[%s114] sm:$0xff] %v4
  %s116 = scalar_lea.vmem %s1, 440
  %117 = vst [vmem:[%s116] sm:$0xff] %v7
  %s118 = scalar_lea.vmem %s1, 200
  %119 = vst [vmem:[%s118] sm:$0xff] %v4
  %s120 = scalar_lea.vmem %s1, 456
  %121 = vst [vmem:[%s120] sm:$0xff] %v7
  %s122 = scalar_lea.vmem %s1, 216
  %123 = vst [vmem:[%s122] sm:$0xff] %v4
  %s124 = scalar_lea.vmem %s1, 472
  %125 = vst [vmem:[%s124] sm:$0xff] %v7
  %s126 = scalar_lea.vmem %s1, 232
  %127 = vst [vmem:[%s126] sm:$0xff] %v4
  %s128 = scalar_lea.vmem %s1, 488
  %129 = vst [vmem:[%s128] sm:$0xff] %v7
  %s130 = scalar_lea.vmem %s1, 248
  %131 = vst [vmem:[%s130] sm:$0xff] %v4
  %s132 = scalar_lea.vmem %s1, 504
  %133 = vst [vmem:[%s132] sm:$0xff] %v7

// kernel: generator_forward.33
$region0: #{generator_forward.33}
  #allocation0 [shape = 'u32[]', space=smem, size = 0x4, offset = 0x4, fixed_abs, tag = 'smem constant byte address 0x4 - core index']
  #allocation1 [shape = 'u32[144,128]{1,0:T(1,128)}', space=vmem, size = 0x12000, scoped, tag = 'internal scratch']
  %s0 = inlined_call_operand.vmem [shape: bf16[16,288], index: 0, kind: input, shape index: {}]
  %s1 = inlined_call_operand.vmem [shape: bf16[288,512], index: 1, kind: input, shape index: {}]
  %s2 = inlined_call_operand.vmem [shape: f32[16,1], index: 2, kind: input, shape index: {}]
  %s3 = inlined_call_operand.vmem [shape: bf16[16,512], index: 3, kind: output, shape index: {}]
  %s4 = sld [smem:[#allocation0]]
  $region117: #{generator_forward.33} parent=0
    _
  %s6 = ssub.s32 1, %s4
  %s7 = scalar_select 0, %s6, %s4
  $region1: #{generator_forward.33} parent=0
    #allocation2 [shape = 'u8[294912]{0}', space=vmem, size = 0x48000, scoped, tag = 'input window, operand 1']
    #allocation3 [shape = 'u8[16384]{0}', space=vmem, size = 0x4000, scoped, tag = 'output window, operand 0']
    loop: start=0, step=1, limit=4
    $region2: #{generator_forward.33} parent=1 // loop_pre_header
      _
    $region3: #{generator_forward.33} parent=1 // loop_header
      %s9 = sphi 0, %s13
      %p10 = scmp.ge.s32.totalorder %s9, 4
      %s16 = sphi 0, %s28
      %s17 = sphi 0, %s24
      %s18 = sphi 0, %s16
      %s19 = sphi 0, %s17
      %s20 = sphi 0, %s18
      %s21 = sphi 0, %s19
      %s31 = sphi 0, %s33
      %s34 = sphi 0, %s31
      %s35 = sphi 0, %s34
      %s51 = sphi 0, %s35
      %s57 = sphi 0, %s59
      %s60 = sphi 0, %s57
      %s61 = sphi 0, %s60
      %s77 = sphi 0, %s61
      %s83 = sphi 0, %s85
      %s86 = sphi 0, %s83
      %s87 = sphi 0, %s86
      %s103 = sphi 0, %s87
      %s111 = sphi 0, %s113
      %s114 = sphi 0, %s111
      %s115 = sphi 0, %s114
      %s131 = sphi 0, %s115
    $region4: #{generator_forward.33} parent=1 // loop_header_branch
      %12 = sbr.rel (%p10) target = $region8
    $region5: #{generator_forward.33} parent=1 // loop_body
      %s14 = ssub.s32 %s9, 1
      %s15 = ssub.s32 %s9, 2
      %s22 = sadd.s32 1, %s17
      %p23 = scmp.ge.s32.totalorder %s22, 2
      %s24 = scalar_select %p23, 0, %s22
      %s25 = sadd.s32 1, %s16
      %s26 = scalar_select %p23, %s25, %s16
      %p27 = scmp.ge.s32.totalorder %s26, 1
      %s28 = scalar_select %p27, 0, %s26
      %s29 = ssub.s32 %s16, %s28
      %p30 = scmp.eq.s32.totalorder %s29, 0
      %s32 = sadd.s32 %s31, 1
      %s33 = scalar_select %p30, %s31, %s32
      %p36 = pneg %p30
      %p37 = scmp.eq.s32.totalorder %s9, 1
      %p38 = por %p36, %p37
      %p39 = scmp.ne.s32.totalorder %s31, %s34
      %p40 = scmp.eq.s32.totalorder %s9, 0
      %p41 = por %p39, %p40
      %p42 = scmp.ne.s32.totalorder %s31, %s34
      %p43 = scmp.eq.s32.totalorder %s14, 1
      %p44 = por %p42, %p43
      %p45 = scmp.ne.s32.totalorder %s34, %s35
      %p46 = scmp.eq.s32.totalorder %s14, 0
      %p47 = por %p45, %p46
      %p48 = scmp.ne.s32.totalorder %s34, %s35
      %p49 = scmp.eq.s32.totalorder %s15, 1
      %p50 = por %p48, %p49
      %p52 = scmp.ne.s32.totalorder %s35, %s51
      %p53 = scmp.eq.s32.totalorder %s15, 0
      %p54 = por %p52, %p53
      %s55 = ssub.s32 %s17, %s24
      %p56 = scmp.eq.s32.totalorder %s55, 0
      %s58 = sadd.s32 %s57, 1
      %s59 = scalar_select %p56, %s57, %s58
      %p62 = pneg %p56
      %p63 = scmp.eq.s32.totalorder %s9, 1
      %p64 = por %p62, %p63
      %p65 = scmp.ne.s32.totalorder %s57, %s60
      %p66 = scmp.eq.s32.totalorder %s9, 0
      %p67 = por %p65, %p66
      %p68 = scmp.ne.s32.totalorder %s57, %s60
      %p69 = scmp.eq.s32.totalorder %s14, 1
      %p70 = por %p68, %p69
      %p71 = scmp.ne.s32.totalorder %s60, %s61
      %p72 = scmp.eq.s32.totalorder %s14, 0
      %p73 = por %p71, %p72
      %p74 = scmp.ne.s32.totalorder %s60, %s61
      %p75 = scmp.eq.s32.totalorder %s15, 1
      %p76 = por %p74, %p75
      %p78 = scmp.ne.s32.totalorder %s61, %s77
      %p79 = scmp.eq.s32.totalorder %s15, 0
      %p80 = por %p78, %p79
      %s81 = ssub.s32 %s16, %s28
      %p82 = scmp.eq.s32.totalorder %s81, 0
      %s84 = sadd.s32 %s83, 1
      %s85 = scalar_select %p82, %s83, %s84
      %p88 = pneg %p82
      %p89 = scmp.eq.s32.totalorder %s9, 1
      %p90 = por %p88, %p89
      %p91 = scmp.ne.s32.totalorder %s83, %s86
      %p92 = scmp.eq.s32.totalorder %s9, 0
      %p93 = por %p91, %p92
      %p94 = scmp.ne.s32.totalorder %s83, %s86
      %p95 = scmp.eq.s32.totalorder %s14, 1
      %p96 = por %p94, %p95
      %p97 = scmp.ne.s32.totalorder %s86, %s87
      %p98 = scmp.eq.s32.totalorder %s14, 0
      %p99 = por %p97, %p98
      %p100 = scmp.ne.s32.totalorder %s86, %s87
      %p101 = scmp.eq.s32.totalorder %s15, 1
      %p102 = por %p100, %p101
      %p104 = scmp.ne.s32.totalorder %s87, %s103
      %p105 = scmp.eq.s32.totalorder %s15, 0
      %p106 = por %p104, %p105
      %s107 = ssub.s32 %s16, %s28
      %s108 = ssub.s32 %s17, %s24
      %s109 = sor.u32 %s107, %s108
      %p110 = scmp.eq.s32.totalorder %s109, 0
      %s112 = sadd.s32 %s111, 1
      %s113 = scalar_select %p110, %s111, %s112
      %p116 = pneg %p110
      %p117 = scmp.eq.s32.totalorder %s9, 1
      %p118 = por %p116, %p117
      %p119 = scmp.ne.s32.totalorder %s111, %s114
      %p120 = scmp.eq.s32.totalorder %s9, 0
      %p121 = por %p119, %p120
      %p122 = scmp.ne.s32.totalorder %s111, %s114
      %p123 = scmp.eq.s32.totalorder %s14, 1
      %p124 = por %p122, %p123
      %p125 = scmp.ne.s32.totalorder %s114, %s115
      %p126 = scmp.eq.s32.totalorder %s14, 0
      %p127 = por %p125, %p126
      %p128 = scmp.ne.s32.totalorder %s114, %s115
      %p129 = scmp.eq.s32.totalorder %s15, 1
      %p130 = por %p128, %p129
      %p132 = scmp.ne.s32.totalorder %s115, %s131
      %p133 = scmp.eq.s32.totalorder %s15, 0
      %p134 = por %p132, %p133
      %p135 = scmp.le.s32.totalorder 1, %s9
      %p136 = scmp.lt.s32.totalorder %s9, 3
      %p137 = pnand %p135, %p136
      %p138 = pneg %p137
      // Predicated region
      $region9: #{generator_forward.33} parent=5 // pred_check
        _
      $region10: #{generator_forward.33} parent=5 // pred_check_branch
        %140 = sbr.rel (%p137) target = $region12
      $region11: #{generator_forward.33} parent=5 // pred_region
        %s141 = ssub.s32 %s9, 1
        // Predicated region
        $region13: #{generator_forward.33} parent=11 // pred_check
          %p142 = pneg %p47
        $region14: #{generator_forward.33} parent=11 // pred_check_branch
          %144 = sbr.rel (%p142) target = $region16
        $region15: #{generator_forward.33} parent=11 // pred_region
          %s145 = smul.u32 2, %s18
          %p146 = scmp.lt.s32.totalorder %s145, 1
          %s147 = scalar_select %p146, %s145, 1
          %s148 = smul.addr %s147, 3
          %s149 = smul.addr %s148, 4
          %s150 = scalar_lea.vmem %s0, %s149
          %s151 = smul.u32 2, %s18
        $region16: #{generator_forward.33} parent=11 // pred_fallthru
          _
        // Predicated region
        $region17: #{generator_forward.33} parent=11 // pred_check
          %p152 = pneg %p99
        $region18: #{generator_forward.33} parent=11 // pred_check_branch
          %154 = sbr.rel (%p152) target = $region20
        $region19: #{generator_forward.33} parent=11 // pred_region
          %s155 = smul.u32 2, %s18
          %p156 = scmp.lt.s32.totalorder %s155, 1
          %s157 = scalar_select %p156, %s155, 1
          %s158 = smul.addr %s157, 8
          %s159 = scalar_lea.vmem %s2, %s158
          %s160 = smul.u32 2, %s18
        $region20: #{generator_forward.33} parent=11 // pred_fallthru
          _
      $region12: #{generator_forward.33} parent=5 // pred_fallthru
        _
      %p161 = scmp.lt.s32.totalorder %s9, 2
      // Predicated region
      $region21: #{generator_forward.33} parent=5 // pred_check
        %p162 = pneg %p161
      $region22: #{generator_forward.33} parent=5 // pred_check_branch
        %164 = sbr.rel (%p162) target = $region24
      $region23: #{generator_forward.33} parent=5 // pred_region
        // Predicated region
        $region25: #{generator_forward.33} parent=23 // pred_check
          %p165 = pneg %p67
        $region26: #{generator_forward.33} parent=23 // pred_check_branch
          %167 = sbr.rel (%p165) target = $region28
        $region27: #{generator_forward.33} parent=23 // pred_region
          %s168 = sand.u32 %s57, 1
          %s169 = sand.u32 %s57, 1
          %s170 = smul.addr %s169, 288
          %s171 = scalar_lea.vmem [#allocation2], %s170
          %s172 = smul.u32 2, %s17
          %s173 = smul.addr %s172, 4
          %s174 = scalar_lea.vmem %s1, %s173
          // Predicated region
          $region29: #{generator_forward.33} parent=27 // pred_check
            _
          $region30: #{generator_forward.33} parent=27 // pred_check_branch
            %176 = sbr.rel (0) target = $region32
          $region31: #{generator_forward.33} parent=27 // pred_region
            // Predicated region
            $region33: #{generator_forward.33} parent=31 // pred_check
              _
            $region34: #{generator_forward.33} parent=31 // pred_check_branch
              %178 = sbr.rel (0) target = $region36
            $region35: #{generator_forward.33} parent=31 // pred_region
              // Predicated region
              $region48: #{generator_forward.33} parent=35 // pred_check
                _
              $region49: #{generator_forward.33} parent=35 // pred_check_branch
                %264 = sbr.rel (0) target = $region51
              $region50: #{generator_forward.33} parent=35 // pred_region
                loop: start=0, step=1, limit=1
                $region52: #{generator_forward.33} parent=50 // loop_pre_header
                  _
                $region53: #{generator_forward.33} parent=50 // loop_header
                  %s266 = sphi 0, %s270
                  %p267 = scmp.ge.s32.totalorder %s266, 1
                  %s271 = sphi %s174, %s174
                  %s272 = sphi %s171, %s171
                $region54: #{generator_forward.33} parent=50 // loop_header_branch
                  %269 = sbr.rel (%p267) target = $region58
                $region55: #{generator_forward.33} parent=50 // loop_body
                  %v273 = vld [vmem:[%s271] sm:$0xff]
                  %274 = vst [vmem:[%s272] sm:$0xff] %v273
                  %v275 = vld [vmem:[%s271 + $0x10] sm:$0xff]
                  %276 = vst [vmem:[%s272 + $0x8] sm:$0xff] %v275
                  %v277 = vld [vmem:[%s271 + $0x20] sm:$0xff]
                  %278 = vst [vmem:[%s272 + $0x10] sm:$0xff] %v277
                  %v279 = vld [vmem:[%s271 + $0x30] sm:$0xff]
                  %280 = vst [vmem:[%s272 + $0x18] sm:$0xff] %v279
                  %v281 = vld [vmem:[%s271 + $0x40] sm:$0xff]
                  %282 = vst [vmem:[%s272 + $0x20] sm:$0xff] %v281
                  %v283 = vld [vmem:[%s271 + $0x50] sm:$0xff]
                  %284 = vst [vmem:[%s272 + $0x28] sm:$0xff] %v283
                  %v285 = vld [vmem:[%s271 + $0x60] sm:$0xff]
                  %286 = vst [vmem:[%s272 + $0x30] sm:$0xff] %v285
                  %v287 = vld [vmem:[%s271 + $0x70] sm:$0xff]
                  %288 = vst [vmem:[%s272 + $0x38] sm:$0xff] %v287
                  %v289 = vld [vmem:[%s271 + $0x80] sm:$0xff]
                  %290 = vst [vmem:[%s272 + $0x40] sm:$0xff] %v289
                  %v291 = vld [vmem:[%s271 + $0x90] sm:$0xff]
                  %292 = vst [vmem:[%s272 + $0x48] sm:$0xff] %v291
                  %v293 = vld [vmem:[%s271 + $0xa0] sm:$0xff]
                  %294 = vst [vmem:[%s272 + $0x50] sm:$0xff] %v293
                  %v295 = vld [vmem:[%s271 + $0xb0] sm:$0xff]
                  %296 = vst [vmem:[%s272 + $0x58] sm:$0xff] %v295
                  %v297 = vld [vmem:[%s271 + $0xc0] sm:$0xff]
                  %298 = vst [vmem:[%s272 + $0x60] sm:$0xff] %v297
                  %v299 = vld [vmem:[%s271 + $0xd0] sm:$0xff]
                  %300 = vst [vmem:[%s272 + $0x68] sm:$0xff] %v299
                  %v301 = vld [vmem:[%s271 + $0xe0] sm:$0xff]
                  %302 = vst [vmem:[%s272 + $0x70] sm:$0xff] %v301
                  %v303 = vld [vmem:[%s271 + $0xf0] sm:$0xff]
                  %304 = vst [vmem:[%s272 + $0x78] sm:$0xff] %v303
                  %v305 = vld [vmem:[%s271 + $0x100] sm:$0xff]
                  %306 = vst [vmem:[%s272 + $0x80] sm:$0xff] %v305
                  %v307 = vld [vmem:[%s271 + $0x110] sm:$0xff]
                  %308 = vst [vmem:[%s272 + $0x88] sm:$0xff] %v307
                  %v309 = vld [vmem:[%s271 + $0x120] sm:$0xff]
                  %310 = vst [vmem:[%s272 + $0x90] sm:$0xff] %v309
                  %v311 = vld [vmem:[%s271 + $0x130] sm:$0xff]
                  %312 = vst [vmem:[%s272 + $0x98] sm:$0xff] %v311
                  %v313 = vld [vmem:[%s271 + $0x140] sm:$0xff]
                  %314 = vst [vmem:[%s272 + $0xa0] sm:$0xff] %v313
                  %v315 = vld [vmem:[%s271 + $0x150] sm:$0xff]
                  %316 = vst [vmem:[%s272 + $0xa8] sm:$0xff] %v315
                  %v317 = vld [vmem:[%s271 + $0x160] sm:$0xff]
                  %318 = vst [vmem:[%s272 + $0xb0] sm:$0xff] %v317
                  %v319 = vld [vmem:[%s271 + $0x170] sm:$0xff]
                  %320 = vst [vmem:[%s272 + $0xb8] sm:$0xff] %v319
                  %v321 = vld [vmem:[%s271 + $0x180] sm:$0xff]
                  %322 = vst [vmem:[%s272 + $0xc0] sm:$0xff] %v321
                  %v323 = vld [vmem:[%s271 + $0x190] sm:$0xff]
                  %324 = vst [vmem:[%s272 + $0xc8] sm:$0xff] %v323
                  %v325 = vld [vmem:[%s271 + $0x1a0] sm:$0xff]
                  %326 = vst [vmem:[%s272 + $0xd0] sm:$0xff] %v325
                  %v327 = vld [vmem:[%s271 + $0x1b0] sm:$0xff]
                  %328 = vst [vmem:[%s272 + $0xd8] sm:$0xff] %v327
                  %v329 = vld [vmem:[%s271 + $0x1c0] sm:$0xff]
                  %330 = vst [vmem:[%s272 + $0xe0] sm:$0xff] %v329
                  %v331 = vld [vmem:[%s271 + $0x1d0] sm:$0xff]
                  %332 = vst [vmem:[%s272 + $0xe8] sm:$0xff] %v331
                  %v333 = vld [vmem:[%s271 + $0x1e0] sm:$0xff]
                  %334 = vst [vmem:[%s272 + $0xf0] sm:$0xff] %v333
                  %v335 = vld [vmem:[%s271 + $0x1f0] sm:$0xff]
                  %336 = vst [vmem:[%s272 + $0xf8] sm:$0xff] %v335
                  %v337 = vld [vmem:[%s271 + $0x200] sm:$0xff]
                  %338 = vst [vmem:[%s272 + $0x100] sm:$0xff] %v337
                  %v339 = vld [vmem:[%s271 + $0x210] sm:$0xff]
                  %340 = vst [vmem:[%s272 + $0x108] sm:$0xff] %v339
                  %v341 = vld [vmem:[%s271 + $0x220] sm:$0xff]
                  %342 = vst [vmem:[%s272 + $0x110] sm:$0xff] %v341
                  %v343 = vld [vmem:[%s271 + $0x230] sm:$0xff]
                  %344 = vst [vmem:[%s272 + $0x118] sm:$0xff] %v343
                $region56: #{generator_forward.33} parent=50 // loop_footer
                  %s270 = sadd.s32 1, %s266
                $region57: #{generator_forward.33} parent=50 // loop_footer_branch
                  %265 = sbr.rel target = $region53
                $region58: #{generator_forward.33} parent=50 // loop_exit
                  _
              $region51: #{generator_forward.33} parent=35 // pred_fallthru
                _
              // Predicated region
              $region59: #{generator_forward.33} parent=35 // pred_check
                _
              $region60: #{generator_forward.33} parent=35 // pred_check_branch
                %346 = sbr.rel target = $region62
              $region61: #{generator_forward.33} parent=35 // pred_region
                _
              $region62: #{generator_forward.33} parent=35 // pred_fallthru
                _
            $region36: #{generator_forward.33} parent=31 // pred_fallthru
              _
            // Predicated region
            $region37: #{generator_forward.33} parent=31 // pred_check
              _
            $region38: #{generator_forward.33} parent=31 // pred_check_branch
              %180 = sbr.rel target = $region40
            $region39: #{generator_forward.33} parent=31 // pred_region
              %s182 = ssub.s32 256, 1
              loop: start=0, step=1, limit=1
              $region41: #{generator_forward.33} parent=39 // loop_pre_header
                _
              $region42: #{generator_forward.33} parent=39 // loop_header
                %s184 = sphi 0, %s188
                %p185 = scmp.ge.s32.totalorder %s184, 1
                %s189 = sphi %s174, %s174
                %s190 = sphi %s171, %s171
              $region43: #{generator_forward.33} parent=39 // loop_header_branch
                %187 = sbr.rel (%p185) target = $region47
              $region44: #{generator_forward.33} parent=39 // loop_body
                %v191 = vld [vmem:[%s189] sm:%s182]
                %192 = vst [vmem:[%s190] sm:%s182] %v191
                %v193 = vld [vmem:[%s189 + $0x10] sm:%s182]
                %194 = vst [vmem:[%s190 + $0x8] sm:%s182] %v193
                %v195 = vld [vmem:[%s189 + $0x20] sm:%s182]
                %196 = vst [vmem:[%s190 + $0x10] sm:%s182] %v195
                %v197 = vld [vmem:[%s189 + $0x30] sm:%s182]
                %198 = vst [vmem:[%s190 + $0x18] sm:%s182] %v197
                %v199 = vld [vmem:[%s189 + $0x40] sm:%s182]
                %200 = vst [vmem:[%s190 + $0x20] sm:%s182] %v199
                %v201 = vld [vmem:[%s189 + $0x50] sm:%s182]
                %202 = vst [vmem:[%s190 + $0x28] sm:%s182] %v201
                %v203 = vld [vmem:[%s189 + $0x60] sm:%s182]
                %204 = vst [vmem:[%s190 + $0x30] sm:%s182] %v203
                %v205 = vld [vmem:[%s189 + $0x70] sm:%s182]
                %206 = vst [vmem:[%s190 + $0x38] sm:%s182] %v205
                %v207 = vld [vmem:[%s189 + $0x80] sm:%s182]
                %208 = vst [vmem:[%s190 + $0x40] sm:%s182] %v207
                %v209 = vld [vmem:[%s189 + $0x90] sm:%s182]
                %210 = vst [vmem:[%s190 + $0x48] sm:%s182] %v209
                %v211 = vld [vmem:[%s189 + $0xa0] sm:%s182]
                %212 = vst [vmem:[%s190 + $0x50] sm:%s182] %v211
                %v213 = vld [vmem:[%s189 + $0xb0] sm:%s182]
                %214 = vst [vmem:[%s190 + $0x58] sm:%s182] %v213
                %v215 = vld [vmem:[%s189 + $0xc0] sm:%s182]
                %216 = vst [vmem:[%s190 + $0x60] sm:%s182] %v215
                %v217 = vld [vmem:[%s189 + $0xd0] sm:%s182]
                %218 = vst [vmem:[%s190 + $0x68] sm:%s182] %v217
                %v219 = vld [vmem:[%s189 + $0xe0] sm:%s182]
                %220 = vst [vmem:[%s190 + $0x70] sm:%s182] %v219
                %v221 = vld [vmem:[%s189 + $0xf0] sm:%s182]
                %222 = vst [vmem:[%s190 + $0x78] sm:%s182] %v221
                %v223 = vld [vmem:[%s189 + $0x100] sm:%s182]
                %224 = vst [vmem:[%s190 + $0x80] sm:%s182] %v223
                %v225 = vld [vmem:[%s189 + $0x110] sm:%s182]
                %226 = vst [vmem:[%s190 + $0x88] sm:%s182] %v225
                %v227 = vld [vmem:[%s189 + $0x120] sm:%s182]
                %228 = vst [vmem:[%s190 + $0x90] sm:%s182] %v227
                %v229 = vld [vmem:[%s189 + $0x130] sm:%s182]
                %230 = vst [vmem:[%s190 + $0x98] sm:%s182] %v229
                %v231 = vld [vmem:[%s189 + $0x140] sm:%s182]
                %232 = vst [vmem:[%s190 + $0xa0] sm:%s182] %v231
                %v233 = vld [vmem:[%s189 + $0x150] sm:%s182]
                %234 = vst [vmem:[%s190 + $0xa8] sm:%s182] %v233
                %v235 = vld [vmem:[%s189 + $0x160] sm:%s182]
                %236 = vst [vmem:[%s190 + $0xb0] sm:%s182] %v235
                %v237 = vld [vmem:[%s189 + $0x170] sm:%s182]
                %238 = vst [vmem:[%s190 + $0xb8] sm:%s182] %v237
                %v239 = vld [vmem:[%s189 + $0x180] sm:%s182]
                %240 = vst [vmem:[%s190 + $0xc0] sm:%s182] %v239
                %v241 = vld [vmem:[%s189 + $0x190] sm:%s182]
                %242 = vst [vmem:[%s190 + $0xc8] sm:%s182] %v241
                %v243 = vld [vmem:[%s189 + $0x1a0] sm:%s182]
                %244 = vst [vmem:[%s190 + $0xd0] sm:%s182] %v243
                %v245 = vld [vmem:[%s189 + $0x1b0] sm:%s182]
                %246 = vst [vmem:[%s190 + $0xd8] sm:%s182] %v245
                %v247 = vld [vmem:[%s189 + $0x1c0] sm:%s182]
                %248 = vst [vmem:[%s190 + $0xe0] sm:%s182] %v247
                %v249 = vld [vmem:[%s189 + $0x1d0] sm:%s182]
                %250 = vst [vmem:[%s190 + $0xe8] sm:%s182] %v249
                %v251 = vld [vmem:[%s189 + $0x1e0] sm:%s182]
                %252 = vst [vmem:[%s190 + $0xf0] sm:%s182] %v251
                %v253 = vld [vmem:[%s189 + $0x1f0] sm:%s182]
                %254 = vst [vmem:[%s190 + $0xf8] sm:%s182] %v253
                %v255 = vld [vmem:[%s189 + $0x200] sm:%s182]
                %256 = vst [vmem:[%s190 + $0x100] sm:%s182] %v255
                %v257 = vld [vmem:[%s189 + $0x210] sm:%s182]
                %258 = vst [vmem:[%s190 + $0x108] sm:%s182] %v257
                %v259 = vld [vmem:[%s189 + $0x220] sm:%s182]
                %260 = vst [vmem:[%s190 + $0x110] sm:%s182] %v259
                %v261 = vld [vmem:[%s189 + $0x230] sm:%s182]
                %262 = vst [vmem:[%s190 + $0x118] sm:%s182] %v261
              $region45: #{generator_forward.33} parent=39 // loop_footer
                %s188 = sadd.s32 1, %s184
              $region46: #{generator_forward.33} parent=39 // loop_footer_branch
                %183 = sbr.rel target = $region42
              $region47: #{generator_forward.33} parent=39 // loop_exit
                _
            $region40: #{generator_forward.33} parent=31 // pred_fallthru
              _
          $region32: #{generator_forward.33} parent=27 // pred_fallthru
            _
          %347 = vnop
        $region28: #{generator_forward.33} parent=23 // pred_fallthru
          _
      $region24: #{generator_forward.33} parent=5 // pred_fallthru
        _
      %p348 = scmp.le.s32.totalorder 1, %s9
      %p349 = scmp.lt.s32.totalorder %s9, 3
      %p350 = pnand %p348, %p349
      %p351 = pneg %p350
      // Predicated region
      $region63: #{generator_forward.33} parent=5 // pred_check
        _
      $region64: #{generator_forward.33} parent=5 // pred_check_branch
        %353 = sbr.rel (%p350) target = $region66
      $region65: #{generator_forward.33} parent=5 // pred_region
        %s354 = ssub.s32 %s9, 1
        %s355 = sand.u32 %s60, 1
        %s356 = sand.u32 %s60, 1
        %s357 = smul.addr %s356, 288
        %s358 = scalar_lea.vmem [#allocation2], %s357
        // Predicated region
        $region67: #{generator_forward.33} parent=65 // pred_check
          %p359 = pneg %p73
        $region68: #{generator_forward.33} parent=65 // pred_check_branch
          %361 = sbr.rel (%p359) target = $region70
        $region69: #{generator_forward.33} parent=65 // pred_region
          _
        $region70: #{generator_forward.33} parent=65 // pred_fallthru
          _
        %s362 = smul.u32 2, %s18
        %p363 = scmp.lt.s32.totalorder %s362, 1
        %s364 = scalar_select %p363, %s362, 1
        %s365 = smul.addr %s364, 3
        %s366 = smul.addr %s365, 4
        %s367 = scalar_lea.vmem %s0, %s366
        %p368 = pneg %p47
        %p369 = pneg %p44
        %s370 = sand.u32 %s60, 1
        %s371 = sand.u32 %s60, 1
        %s372 = smul.addr %s371, 288
        %s373 = scalar_lea.vmem [#allocation2], %s372
        %p374 = pneg %p73
        %p375 = pneg %p70
        %s376 = smul.u32 2, %s18
        %p377 = scmp.lt.s32.totalorder %s376, 1
        %s378 = scalar_select %p377, %s376, 1
        %s379 = smul.addr %s378, 8
        %s380 = scalar_lea.vmem %s2, %s379
        %p381 = pneg %p99
        %p382 = pneg %p96
        %p383 = pneg %p127
        %p384 = pneg %p124
        %s385 = sand.u32 %s114, 1
        %s386 = sand.u32 %s114, 1
        %s387 = smul.addr %s386, 16
        %s388 = scalar_lea.vmem [#allocation3], %s387
        %s389 = smul.u32 2, %s18
        %p390 = scmp.lt.s32.totalorder %s389, 1
        %s391 = scalar_select %p390, %s389, 1
        %s392 = smul.addr %s391, 3
        %s393 = smul.addr %s392, 4
        %s394 = scalar_lea.vmem %s0, %s393
        %s395 = smul.u32 2, %s18
        %s396 = smul.u32 2, %s19
        %s397 = smul.u32 2, %s18
        %p398 = scmp.lt.s32.totalorder %s397, 1
        %s399 = scalar_select %p398, %s397, 1
        %s400 = smul.addr %s399, 8
        %s401 = scalar_lea.vmem %s2, %s400
        %s402 = smul.u32 2, %s18
        %s403 = smul.u32 2, %s18
        %s404 = smul.u32 2, %s19
        %v406 = vld [vmem:[%s394] sm:$0xff]
        %v407 = vld [vmem:[%s394 + $0x8] sm:$0xf]
        %v408 = vld [vmem:[%s394 + $0xc] sm:$0xff]
        %v409 = vld [vmem:[%s394 + $0x14] sm:$0xf]
        %v410 = vld [vmem:[%s358] sm:$0xff]
        %v411 = vld [vmem:[%s358 + $0x8] sm:$0xff]
        %v412 = vld [vmem:[%s358 + $0x10] sm:$0xff]
        %v413 = vld [vmem:[%s358 + $0x18] sm:$0xff]
        %v414 = vld [vmem:[%s358 + $0x20] sm:$0xff]
        %v415 = vld [vmem:[%s358 + $0x28] sm:$0xff]
        %v416 = vld [vmem:[%s358 + $0x30] sm:$0xff]
        %v417 = vld [vmem:[%s358 + $0x38] sm:$0xff]
        %v418 = vld [vmem:[%s358 + $0x40] sm:$0xff]
        %v419 = vld [vmem:[%s358 + $0x48] sm:$0xff]
        %v420 = vld [vmem:[%s358 + $0x50] sm:$0xff]
        %v421 = vld [vmem:[%s358 + $0x58] sm:$0xff]
        %v422 = vld [vmem:[%s358 + $0x60] sm:$0xff]
        %v423 = vld [vmem:[%s358 + $0x68] sm:$0xff]
        %v424 = vld [vmem:[%s358 + $0x70] sm:$0xff]
        %v425 = vld [vmem:[%s358 + $0x78] sm:$0xff]
        %v426 = vld [vmem:[%s358 + $0x80] sm:$0xff]
        %v427 = vld [vmem:[%s358 + $0x88] sm:$0xff]
        %v428 = vld [vmem:[%s358 + $0x90] sm:$0xff]
        %v429 = vld [vmem:[%s358 + $0x98] sm:$0xff]
        %v430 = vld [vmem:[%s358 + $0xa0] sm:$0xff]
        %v431 = vld [vmem:[%s358 + $0xa8] sm:$0xff]
        %v432 = vld [vmem:[%s358 + $0xb0] sm:$0xff]
        %v433 = vld [vmem:[%s358 + $0xb8] sm:$0xff]
        %v434 = vld [vmem:[%s358 + $0xc0] sm:$0xff]
        %v435 = vld [vmem:[%s358 + $0xc8] sm:$0xff]
        %v436 = vld [vmem:[%s358 + $0xd0] sm:$0xff]
        %v437 = vld [vmem:[%s358 + $0xd8] sm:$0xff]
        %v438 = vld [vmem:[%s358 + $0xe0] sm:$0xff]
        %v439 = vld [vmem:[%s358 + $0xe8] sm:$0xff]
        %v440 = vld [vmem:[%s358 + $0xf0] sm:$0xff]
        %v441 = vld [vmem:[%s358 + $0xf8] sm:$0xff]
        %v442 = vld [vmem:[%s358 + $0x100] sm:$0xff]
        %v443 = vld [vmem:[%s358 + $0x108] sm:$0xff]
        %v444 = vld [vmem:[%s358 + $0x110] sm:$0xff]
        %v445 = vld [vmem:[%s358 + $0x118] sm:$0xff]
        %v446 = vld [vmem:[%s401] sm:$0xff]
        %v447 = vld [vmem:[%s401 + $0x8] sm:$0xff]
        %449 = vset.pattern.permute.xlu0 0
        %450 = vperm.xlu0 %449, %v446
        %v451 = vpop.permute.xlu0 %450
        %454 = vset.pattern.permute.xlu0 0
        %455 = vperm.xlu0 %454, %v447
        %v456 = vpop.permute.xlu0 %455
        %v462 = vunpack.c.l.b16 %v406
        %v463 = vunpack.c.h.b16 %v406
        %v464 = vunpack.c.l.b16 %v407
        %v465 = vunpack.c.l.b16 %v408
        %v466 = vunpack.c.h.b16 %v408
        %v467 = vunpack.c.l.b16 %v409
        %v468 = vpack.c.b16 %v465, %v462
        %v469 = vpack.c.b16 %v466, %v463
        %v470 = vpack.c.b16 %v467, %v464
        %v509 = vunpack.c.l.b16 %v410
        %v510 = vunpack.c.h.b16 %v410
        %v511 = vunpack.c.l.b16 %v411
        %v512 = vunpack.c.h.b16 %v411
        %v513 = vunpack.c.l.b16 %v412
        %v514 = vunpack.c.h.b16 %v412
        %v515 = vunpack.c.l.b16 %v413
        %v516 = vunpack.c.h.b16 %v413
        %v517 = vunpack.c.l.b16 %v414
        %v518 = vunpack.c.h.b16 %v414
        %v519 = vunpack.c.l.b16 %v415
        %v520 = vunpack.c.h.b16 %v415
        %v521 = vunpack.c.l.b16 %v416
        %v522 = vunpack.c.h.b16 %v416
        %v523 = vunpack.c.l.b16 %v417
        %v524 = vunpack.c.h.b16 %v417
        %v525 = vunpack.c.l.b16 %v418
        %v526 = vunpack.c.h.b16 %v418
        %v527 = vunpack.c.l.b16 %v419
        %v528 = vunpack.c.h.b16 %v419
        %v529 = vunpack.c.l.b16 %v420
        %v530 = vunpack.c.h.b16 %v420
        %v531 = vunpack.c.l.b16 %v421
        %v532 = vunpack.c.h.b16 %v421
        %v533 = vunpack.c.l.b16 %v422
        %v534 = vunpack.c.h.b16 %v422
        %v535 = vunpack.c.l.b16 %v423
        %v536 = vunpack.c.h.b16 %v423
        %v537 = vunpack.c.l.b16 %v424
        %v538 = vunpack.c.h.b16 %v424
        %v539 = vunpack.c.l.b16 %v425
        %v540 = vunpack.c.h.b16 %v425
        %v541 = vunpack.c.l.b16 %v426
        %v542 = vunpack.c.h.b16 %v426
        %v543 = vunpack.c.l.b16 %v427
        %v544 = vunpack.c.h.b16 %v427
        %v545 = vunpack.c.l.b16 %v428
        %v546 = vunpack.c.h.b16 %v428
        %v547 = vunpack.c.l.b16 %v429
        %v548 = vunpack.c.h.b16 %v429
        %v549 = vunpack.c.l.b16 %v430
        %v550 = vunpack.c.h.b16 %v430
        %v551 = vunpack.c.l.b16 %v431
        %v552 = vunpack.c.h.b16 %v431
        %v553 = vunpack.c.l.b16 %v432
        %v554 = vunpack.c.h.b16 %v432
        %v555 = vunpack.c.l.b16 %v433
        %v556 = vunpack.c.h.b16 %v433
        %v557 = vunpack.c.l.b16 %v434
        %v558 = vunpack.c.h.b16 %v434
        %v559 = vunpack.c.l.b16 %v435
        %v560 = vunpack.c.h.b16 %v435
        %v561 = vunpack.c.l.b16 %v436
        %v562 = vunpack.c.h.b16 %v436
        %v563 = vunpack.c.l.b16 %v437
        %v564 = vunpack.c.h.b16 %v437
        %v565 = vunpack.c.l.b16 %v438
        %v566 = vunpack.c.h.b16 %v438
        %v567 = vunpack.c.l.b16 %v439
        %v568 = vunpack.c.h.b16 %v439
        %v569 = vunpack.c.l.b16 %v440
        %v570 = vunpack.c.h.b16 %v440
        %v571 = vunpack.c.l.b16 %v441
        %v572 = vunpack.c.h.b16 %v441
        %v573 = vunpack.c.l.b16 %v442
        %v574 = vunpack.c.h.b16 %v442
        %v575 = vunpack.c.l.b16 %v443
        %v576 = vunpack.c.h.b16 %v443
        %v577 = vunpack.c.l.b16 %v444
        %v578 = vunpack.c.h.b16 %v444
        %v579 = vunpack.c.l.b16 %v445
        %v580 = vunpack.c.h.b16 %v445
        %v581 = vpack.c.b16 %v511, %v509
        %v582 = vpack.c.b16 %v512, %v510
        %v583 = vpack.c.b16 %v515, %v513
        %v584 = vpack.c.b16 %v516, %v514
        %v585 = vpack.c.b16 %v519, %v517
        %v586 = vpack.c.b16 %v520, %v518
        %v587 = vpack.c.b16 %v523, %v521
        %v588 = vpack.c.b16 %v524, %v522
        %v589 = vpack.c.b16 %v527, %v525
        %v590 = vpack.c.b16 %v528, %v526
        %v591 = vpack.c.b16 %v531, %v529
        %v592 = vpack.c.b16 %v532, %v530
        %v593 = vpack.c.b16 %v535, %v533
        %v594 = vpack.c.b16 %v536, %v534
        %v595 = vpack.c.b16 %v539, %v537
        %v596 = vpack.c.b16 %v540, %v538
        %v597 = vpack.c.b16 %v543, %v541
        %v598 = vpack.c.b16 %v544, %v542
        %v599 = vpack.c.b16 %v547, %v545
        %v600 = vpack.c.b16 %v548, %v546
        %v601 = vpack.c.b16 %v551, %v549
        %v602 = vpack.c.b16 %v552, %v550
        %v603 = vpack.c.b16 %v555, %v553
        %v604 = vpack.c.b16 %v556, %v554
        %v605 = vpack.c.b16 %v559, %v557
        %v606 = vpack.c.b16 %v560, %v558
        %v607 = vpack.c.b16 %v563, %v561
        %v608 = vpack.c.b16 %v564, %v562
        %v609 = vpack.c.b16 %v567, %v565
        %v610 = vpack.c.b16 %v568, %v566
        %v611 = vpack.c.b16 %v571, %v569
        %v612 = vpack.c.b16 %v572, %v570
        %v613 = vpack.c.b16 %v575, %v573
        %v614 = vpack.c.b16 %v576, %v574
        %v615 = vpack.c.b16 %v579, %v577
        %v616 = vpack.c.b16 %v580, %v578
        %vm653 = vcmask 261120
        %v655 = vsel %vm653, %v470, 0
        %657 = vmatprep.subr.bf16.mxu0 %v596
        %658 = vmatpush1.bf16.msra.mxu0 %v595
        %659 = vmatprep.subr.bf16.mxu0 %v594
        %660 = vmatpush1.bf16.msra.mxu0 %v593
        %661 = vmatprep.subr.bf16.mxu0 %v592
        %662 = vmatpush1.bf16.msra.mxu0 %v591
        %663 = vmatprep.subr.bf16.mxu0 %v590
        %664 = vmatpush1.bf16.msra.mxu0 %v589
        %665 = vmatprep.subr.bf16.mxu0 %v588
        %666 = vmatpush1.bf16.msra.mxu0 %v587
        %667 = vmatprep.subr.bf16.mxu0 %v586
        %668 = vmatpush1.bf16.msra.mxu0 %v585
        %669 = vmatprep.subr.bf16.mxu0 %v584
        %670 = vmatpush1.bf16.msra.mxu0 %v583
        %671 = vmatprep.subr.bf16.mxu0 %v582
        %672 = vmatpush1.bf16.msra.mxu0 %v581
        %673 = vmatprep.subr.bf16.mxu0 %v612
        %674 = vmatpush2.bf16.msra.mxu0 %v611
        %675 = vmatprep.subr.bf16.mxu0 %v610
        %676 = vmatpush2.bf16.msra.mxu0 %v609
        %677 = vmatprep.subr.bf16.mxu0 %v608
        %678 = vmatpush2.bf16.msra.mxu0 %v607
        %679 = vmatprep.subr.bf16.mxu0 %v606
        %680 = vmatpush2.bf16.msra.mxu0 %v605
        %681 = vmatprep.subr.bf16.mxu0 %v604
        %682 = vmatpush2.bf16.msra.mxu0 %v603
        %683 = vmatprep.subr.bf16.mxu0 %v602
        %684 = vmatpush2.bf16.msra.mxu0 %v601
        %685 = vmatprep.subr.bf16.mxu0 %v600
        %686 = vmatpush2.bf16.msra.mxu0 %v599
        %687 = vmatprep.subr.bf16.mxu0 %v598
        %688 = vmatpush2.bf16.msra.mxu0 %v597
        %689 = vmatprep.mubr.bf16.mxu0 %v469
        %690 = vmatmul.mubr.bf16.gmra.mxu0 %v468
        %v691 = vpop.f32.mrf.mxu0
        %v692 = vadd.f32 %v451, %v691
        %v693 = vpop.f32.mrf.mxu0
        %v694 = vadd.f32 %v451, %v693
        %v695 = vpop.f32.mrf.mxu0
        %v696 = vadd.f32 %v456, %v695
        %v697 = vpop.f32.mrf.mxu0
        %v698 = vadd.f32 %v456, %v697
        %699 = vdwg.mxu0
        %700 = vmatprep.subr.bf16.mxu0 0
        %701 = vmatpush1.bf16.msra.mxu0 0
        %702 = vmatprep.subr.bf16.mxu0 0
        %703 = vmatpush1.bf16.msra.mxu0 0
        %704 = vmatprep.subr.bf16.mxu0 0
        %705 = vmatpush1.bf16.msra.mxu0 0
        %706 = vmatprep.subr.bf16.mxu0 0
        %707 = vmatpush1.bf16.msra.mxu0 0
        %708 = vmatprep.subr.bf16.mxu0 0
        %709 = vmatpush1.bf16.msra.mxu0 0
        %710 = vmatprep.subr.bf16.mxu0 0
        %711 = vmatpush1.bf16.msra.mxu0 0
        %712 = vmatprep.subr.bf16.mxu0 %v616
        %713 = vmatpush1.bf16.msra.mxu0 %v615
        %714 = vmatprep.subr.bf16.mxu0 %v614
        %715 = vmatpush1.bf16.msra.mxu0 %v613
        %716 = vmatprep.subr.bf16.mxu0 0
        %717 = vmatpush2.bf16.msra.mxu0 0
        %718 = vmatprep.subr.bf16.mxu0 0
        %719 = vmatpush2.bf16.msra.mxu0 0
        %720 = vmatprep.subr.bf16.mxu0 0
        %721 = vmatpush2.bf16.msra.mxu0 0
        %722 = vmatprep.subr.bf16.mxu0 0
        %723 = vmatpush2.bf16.msra.mxu0 0
        %724 = vmatprep.subr.bf16.mxu0 0
        %725 = vmatpush2.bf16.msra.mxu0 0
        %726 = vmatprep.subr.bf16.mxu0 0
        %727 = vmatpush2.bf16.msra.mxu0 0
        %728 = vmatprep.subr.bf16.mxu0 0
        %729 = vmatpush2.bf16.msra.mxu0 0
        %730 = vmatprep.subr.bf16.mxu0 0
        %731 = vmatpush2.bf16.msra.mxu0 0
        %732 = vmatprep.mubr.bf16.mxu0 0
        %733 = vmatmul.mubr.bf16.gmra.mxu0 %v655
        %v734 = vpop.f32.mrf.mxu0
        %v735 = vadd.f32 %v692, %v734
        %v736 = vpop.f32.mrf.mxu0
        %v737 = vadd.f32 %v694, %v736
        %v738 = vpop.f32.mrf.mxu0
        %v739 = vadd.f32 %v696, %v738
        %v740 = vpop.f32.mrf.mxu0
        %v741 = vadd.f32 %v698, %v740
        %742 = vdwg.mxu0
        %vm743 = vcmp.ge.f32.partialorder %v735, 0.0
        %vm744 = vcmp.ge.f32.partialorder %v737, 0.0
        %vm745 = vcmp.ge.f32.partialorder %v739, 0.0
        %vm746 = vcmp.ge.f32.partialorder %v741, 0.0
        %v747 = vmul.f32 %v735, 0.2
        %v748 = vmul.f32 %v737, 0.2
        %v749 = vmul.f32 %v739, 0.2
        %v750 = vmul.f32 %v741, 0.2
        %v751 = vsel %vm743, %v735, %v747
        %v752 = vsel %vm744, %v737, %v748
        %v753 = vsel %vm745, %v739, %v749
        %v754 = vsel %vm746, %v741, %v750
        %v755 = vpack.c.bf16 %v753, %v751
        %v756 = vpack.c.bf16 %v754, %v752
        %v759 = vunpack.c.l.b16 %v755
        %v760 = vunpack.c.l.b16 %v756
        %v761 = vunpack.c.h.b16 %v755
        %v762 = vunpack.c.h.b16 %v756
        %v763 = vpack.c.b16 %v760, %v759
        %v764 = vpack.c.b16 %v762, %v761
        %767 = vst [vmem:[%s388] sm:$0xff] %v763
        %768 = vst [vmem:[%s388 + $0x8] sm:$0xff] %v764
        %s769 = sand.u32 %s114, 1
        %s770 = sand.u32 %s114, 1
        %s771 = smul.addr %s770, 16
        %s772 = scalar_lea.vmem [#allocation3], %s771
        // Predicated region
        $region71: #{generator_forward.33} parent=65 // pred_check
          %p773 = pneg %p124
        $region72: #{generator_forward.33} parent=65 // pred_check_branch
          %775 = sbr.rel (%p773) target = $region74
        $region73: #{generator_forward.33} parent=65 // pred_region
          %s776 = smul.u32 2, %s18
          %s777 = smul.u32 2, %s19
          %s778 = smul.addr %s776, 4
          %s779 = sadd.s32 %s777, %s778
          %s780 = smul.addr %s779, 4
          %s781 = scalar_lea.vmem %s3, %s780
          // Predicated region
          $region75: #{generator_forward.33} parent=73 // pred_check
            _
          $region76: #{generator_forward.33} parent=73 // pred_check_branch
            %783 = sbr.rel (0) target = $region78
          $region77: #{generator_forward.33} parent=73 // pred_region
            // Predicated region
            $region79: #{generator_forward.33} parent=77 // pred_check
              _
            $region80: #{generator_forward.33} parent=77 // pred_check_branch
              %785 = sbr.rel (0) target = $region82
            $region81: #{generator_forward.33} parent=77 // pred_region
              // Predicated region
              $region94: #{generator_forward.33} parent=81 // pred_check
                _
              $region95: #{generator_forward.33} parent=81 // pred_check_branch
                %803 = sbr.rel (0) target = $region97
              $region96: #{generator_forward.33} parent=81 // pred_region
                loop: start=0, step=1, limit=1
                $region98: #{generator_forward.33} parent=96 // loop_pre_header
                  _
                $region99: #{generator_forward.33} parent=96 // loop_header
                  %s805 = sphi 0, %s809
                  %p806 = scmp.ge.s32.totalorder %s805, 1
                  %s810 = sphi %s772, %s772
                  %s811 = sphi %s781, %s781
                $region100: #{generator_forward.33} parent=96 // loop_header_branch
                  %808 = sbr.rel (%p806) target = $region104
                $region101: #{generator_forward.33} parent=96 // loop_body
                  %v812 = vld [vmem:[%s810] sm:$0xff]
                  %813 = vst [vmem:[%s811] sm:$0xff] %v812
                  %v814 = vld [vmem:[%s810 + $0x8] sm:$0xff]
                  %815 = vst [vmem:[%s811 + $0x10] sm:$0xff] %v814
                $region102: #{generator_forward.33} parent=96 // loop_footer
                  %s809 = sadd.s32 1, %s805
                $region103: #{generator_forward.33} parent=96 // loop_footer_branch
                  %804 = sbr.rel target = $region99
                $region104: #{generator_forward.33} parent=96 // loop_exit
                  _
              $region97: #{generator_forward.33} parent=81 // pred_fallthru
                _
              // Predicated region
              $region105: #{generator_forward.33} parent=81 // pred_check
                _
              $region106: #{generator_forward.33} parent=81 // pred_check_branch
                %817 = sbr.rel target = $region108
              $region107: #{generator_forward.33} parent=81 // pred_region
                _
              $region108: #{generator_forward.33} parent=81 // pred_fallthru
                _
            $region82: #{generator_forward.33} parent=77 // pred_fallthru
              _
            // Predicated region
            $region83: #{generator_forward.33} parent=77 // pred_check
              _
            $region84: #{generator_forward.33} parent=77 // pred_check_branch
              %787 = sbr.rel target = $region86
            $region85: #{generator_forward.33} parent=77 // pred_region
              %s789 = ssub.s32 256, 1
              loop: start=0, step=1, limit=1
              $region87: #{generator_forward.33} parent=85 // loop_pre_header
                _
              $region88: #{generator_forward.33} parent=85 // loop_header
                %s791 = sphi 0, %s795
                %p792 = scmp.ge.s32.totalorder %s791, 1
                %s796 = sphi %s772, %s772
                %s797 = sphi %s781, %s781
              $region89: #{generator_forward.33} parent=85 // loop_header_branch
                %794 = sbr.rel (%p792) target = $region93
              $region90: #{generator_forward.33} parent=85 // loop_body
                %v798 = vld [vmem:[%s796] sm:%s789]
                %799 = vst [vmem:[%s797] sm:%s789] %v798
                %v800 = vld [vmem:[%s796 + $0x8] sm:%s789]
                %801 = vst [vmem:[%s797 + $0x10] sm:%s789] %v800
              $region91: #{generator_forward.33} parent=85 // loop_footer
                %s795 = sadd.s32 1, %s791
              $region92: #{generator_forward.33} parent=85 // loop_footer_branch
                %790 = sbr.rel target = $region88
              $region93: #{generator_forward.33} parent=85 // loop_exit
                _
            $region86: #{generator_forward.33} parent=77 // pred_fallthru
              _
          $region78: #{generator_forward.33} parent=73 // pred_fallthru
            _
          %818 = vnop
        $region74: #{generator_forward.33} parent=65 // pred_fallthru
          _
      $region66: #{generator_forward.33} parent=5 // pred_fallthru
        _
      %p819 = scmp.le.s32.totalorder 2, %s9
      // Predicated region
      $region109: #{generator_forward.33} parent=5 // pred_check
        %p820 = pneg %p819
      $region110: #{generator_forward.33} parent=5 // pred_check_branch
        %822 = sbr.rel (%p820) target = $region112
      $region111: #{generator_forward.33} parent=5 // pred_region
        %s823 = ssub.s32 %s9, 2
        // Predicated region
        $region113: #{generator_forward.33} parent=111 // pred_check
          %p824 = pneg %p130
        $region114: #{generator_forward.33} parent=111 // pred_check_branch
          %826 = sbr.rel (%p824) target = $region116
        $region115: #{generator_forward.33} parent=111 // pred_region
          %s827 = sand.u32 %s115, 1
          %s828 = sand.u32 %s115, 1
          %s829 = smul.addr %s828, 16
          %s830 = scalar_lea.vmem [#allocation3], %s829
        $region116: #{generator_forward.33} parent=111 // pred_fallthru
          _
      $region112: #{generator_forward.33} parent=5 // pred_fallthru
        _
    $region6: #{generator_forward.33} parent=1 // loop_footer
      %s13 = sadd.s32 1, %s9
    $region7: #{generator_forward.33} parent=1 // loop_footer_branch
      %8 = sbr.rel target = $region3
    $region8: #{generator_forward.33} parent=1 // loop_exit
      _

// kernel: generator_forward.34
$region0: #{generator_forward.34}
  #allocation0 [shape = 'u32[]', space=smem, size = 0x4, offset = 0x4, fixed_abs, tag = 'smem constant byte address 0x4 - core index']
  #allocation1 [shape = 'u32[144,128]{1,0:T(1,128)}', space=vmem, size = 0x12000, scoped, tag = 'internal scratch']
  %s0 = inlined_call_operand.vmem [shape: bf16[8,16], index: 0, kind: input, shape index: {}]
  %s1 = inlined_call_operand.vmem [shape: bf16[16,2048], index: 1, kind: input, shape index: {}]
  %s2 = inlined_call_operand.vmem [shape: f32[8,1], index: 2, kind: input, shape index: {}]
  %s3 = inlined_call_operand.vmem [shape: bf16[8,2048], index: 3, kind: output, shape index: {}]
  %s4 = sld [smem:[#allocation0]]
  $region83: #{generator_forward.34} parent=0
    _
  %s6 = ssub.s32 1, %s4
  %s7 = scalar_select 0, %s6, %s4
  $region1: #{generator_forward.34} parent=0
    #allocation2 [shape = 'u8[16384]{0}', space=vmem, size = 0x4000, scoped, tag = 'input window, operand 1']
    loop: start=0, step=1, limit=10
    $region2: #{generator_forward.34} parent=1 // loop_pre_header
      _
    $region3: #{generator_forward.34} parent=1 // loop_header
      %s9 = sphi 0, %s13
      %p10 = scmp.ge.s32.totalorder %s9, 10
      %s16 = sphi 0, %s28
      %s17 = sphi 0, %s24
      %s18 = sphi 0, %s16
      %s19 = sphi 0, %s17
      %s20 = sphi 0, %s18
      %s21 = sphi 0, %s19
      %s31 = sphi 0, %s33
      %s34 = sphi 0, %s31
      %s35 = sphi 0, %s34
      %s51 = sphi 0, %s35
      %s57 = sphi 0, %s59
      %s60 = sphi 0, %s57
      %s61 = sphi 0, %s60
      %s77 = sphi 0, %s61
      %s83 = sphi 0, %s85
      %s86 = sphi 0, %s83
      %s87 = sphi 0, %s86
      %s103 = sphi 0, %s87
      %s111 = sphi 0, %s113
      %s114 = sphi 0, %s111
      %s115 = sphi 0, %s114
      %s131 = sphi 0, %s115
    $region4: #{generator_forward.34} parent=1 // loop_header_branch
      %12 = sbr.rel (%p10) target = $region8
    $region5: #{generator_forward.34} parent=1 // loop_body
      %s14 = ssub.s32 %s9, 1
      %s15 = ssub.s32 %s9, 2
      %s22 = sadd.s32 1, %s17
      %p23 = scmp.ge.s32.totalorder %s22, 8
      %s24 = scalar_select %p23, 0, %s22
      %s25 = sadd.s32 1, %s16
      %s26 = scalar_select %p23, %s25, %s16
      %p27 = scmp.ge.s32.totalorder %s26, 1
      %s28 = scalar_select %p27, 0, %s26
      %s29 = ssub.s32 %s16, %s28
      %p30 = scmp.eq.s32.totalorder %s29, 0
      %s32 = sadd.s32 %s31, 1
      %s33 = scalar_select %p30, %s31, %s32
      %p36 = pneg %p30
      %p37 = scmp.eq.s32.totalorder %s9, 7
      %p38 = por %p36, %p37
      %p39 = scmp.ne.s32.totalorder %s31, %s34
      %p40 = scmp.eq.s32.totalorder %s9, 0
      %p41 = por %p39, %p40
      %p42 = scmp.ne.s32.totalorder %s31, %s34
      %p43 = scmp.eq.s32.totalorder %s14, 7
      %p44 = por %p42, %p43
      %p45 = scmp.ne.s32.totalorder %s34, %s35
      %p46 = scmp.eq.s32.totalorder %s14, 0
      %p47 = por %p45, %p46
      %p48 = scmp.ne.s32.totalorder %s34, %s35
      %p49 = scmp.eq.s32.totalorder %s15, 7
      %p50 = por %p48, %p49
      %p52 = scmp.ne.s32.totalorder %s35, %s51
      %p53 = scmp.eq.s32.totalorder %s15, 0
      %p54 = por %p52, %p53
      %s55 = ssub.s32 %s17, %s24
      %p56 = scmp.eq.s32.totalorder %s55, 0
      %s58 = sadd.s32 %s57, 1
      %s59 = scalar_select %p56, %s57, %s58
      %p62 = pneg %p56
      %p63 = scmp.eq.s32.totalorder %s9, 7
      %p64 = por %p62, %p63
      %p65 = scmp.ne.s32.totalorder %s57, %s60
      %p66 = scmp.eq.s32.totalorder %s9, 0
      %p67 = por %p65, %p66
      %p68 = scmp.ne.s32.totalorder %s57, %s60
      %p69 = scmp.eq.s32.totalorder %s14, 7
      %p70 = por %p68, %p69
      %p71 = scmp.ne.s32.totalorder %s60, %s61
      %p72 = scmp.eq.s32.totalorder %s14, 0
      %p73 = por %p71, %p72
      %p74 = scmp.ne.s32.totalorder %s60, %s61
      %p75 = scmp.eq.s32.totalorder %s15, 7
      %p76 = por %p74, %p75
      %p78 = scmp.ne.s32.totalorder %s61, %s77
      %p79 = scmp.eq.s32.totalorder %s15, 0
      %p80 = por %p78, %p79
      %s81 = ssub.s32 %s16, %s28
      %p82 = scmp.eq.s32.totalorder %s81, 0
      %s84 = sadd.s32 %s83, 1
      %s85 = scalar_select %p82, %s83, %s84
      %p88 = pneg %p82
      %p89 = scmp.eq.s32.totalorder %s9, 7
      %p90 = por %p88, %p89
      %p91 = scmp.ne.s32.totalorder %s83, %s86
      %p92 = scmp.eq.s32.totalorder %s9, 0
      %p93 = por %p91, %p92
      %p94 = scmp.ne.s32.totalorder %s83, %s86
      %p95 = scmp.eq.s32.totalorder %s14, 7
      %p96 = por %p94, %p95
      %p97 = scmp.ne.s32.totalorder %s86, %s87
      %p98 = scmp.eq.s32.totalorder %s14, 0
      %p99 = por %p97, %p98
      %p100 = scmp.ne.s32.totalorder %s86, %s87
      %p101 = scmp.eq.s32.totalorder %s15, 7
      %p102 = por %p100, %p101
      %p104 = scmp.ne.s32.totalorder %s87, %s103
      %p105 = scmp.eq.s32.totalorder %s15, 0
      %p106 = por %p104, %p105
      %s107 = ssub.s32 %s16, %s28
      %s108 = ssub.s32 %s17, %s24
      %s109 = sor.u32 %s107, %s108
      %p110 = scmp.eq.s32.totalorder %s109, 0
      %s112 = sadd.s32 %s111, 1
      %s113 = scalar_select %p110, %s111, %s112
      %p116 = pneg %p110
      %p117 = scmp.eq.s32.totalorder %s9, 7
      %p118 = por %p116, %p117
      %p119 = scmp.ne.s32.totalorder %s111, %s114
      %p120 = scmp.eq.s32.totalorder %s9, 0
      %p121 = por %p119, %p120
      %p122 = scmp.ne.s32.totalorder %s111, %s114
      %p123 = scmp.eq.s32.totalorder %s14, 7
      %p124 = por %p122, %p123
      %p125 = scmp.ne.s32.totalorder %s114, %s115
      %p126 = scmp.eq.s32.totalorder %s14, 0
      %p127 = por %p125, %p126
      %p128 = scmp.ne.s32.totalorder %s114, %s115
      %p129 = scmp.eq.s32.totalorder %s15, 7
      %p130 = por %p128, %p129
      %p132 = scmp.ne.s32.totalorder %s115, %s131
      %p133 = scmp.eq.s32.totalorder %s15, 0
      %p134 = por %p132, %p133
      %p135 = scmp.le.s32.totalorder 1, %s9
      %p136 = scmp.lt.s32.totalorder %s9, 9
      %p137 = pnand %p135, %p136
      %p138 = pneg %p137
      // Predicated region
      $region9: #{generator_forward.34} parent=5 // pred_check
        _
      $region10: #{generator_forward.34} parent=5 // pred_check_branch
        %140 = sbr.rel (%p137) target = $region12
      $region11: #{generator_forward.34} parent=5 // pred_region
        %s141 = ssub.s32 %s9, 1
        // Predicated region
        $region13: #{generator_forward.34} parent=11 // pred_check
          %p142 = pneg %p47
        $region14: #{generator_forward.34} parent=11 // pred_check_branch
          %144 = sbr.rel (%p142) target = $region16
        $region15: #{generator_forward.34} parent=11 // pred_region
          %p145 = scmp.lt.s32.totalorder %s18, 0
          %s146 = scalar_select %p145, %s18, 0
          %s147 = smul.addr %s146, 4
          %s148 = scalar_lea.vmem %s0, %s147
        $region16: #{generator_forward.34} parent=11 // pred_fallthru
          _
        // Predicated region
        $region17: #{generator_forward.34} parent=11 // pred_check
          %p149 = pneg %p99
        $region18: #{generator_forward.34} parent=11 // pred_check_branch
          %151 = sbr.rel (%p149) target = $region20
        $region19: #{generator_forward.34} parent=11 // pred_region
          %p152 = scmp.lt.s32.totalorder %s18, 0
          %s153 = scalar_select %p152, %s18, 0
          %s154 = smul.addr %s153, 8
          %s155 = scalar_lea.vmem %s2, %s154
        $region20: #{generator_forward.34} parent=11 // pred_fallthru
          _
      $region12: #{generator_forward.34} parent=5 // pred_fallthru
        _
      %p156 = scmp.lt.s32.totalorder %s9, 8
      // Predicated region
      $region21: #{generator_forward.34} parent=5 // pred_check
        %p157 = pneg %p156
      $region22: #{generator_forward.34} parent=5 // pred_check_branch
        %159 = sbr.rel (%p157) target = $region24
      $region23: #{generator_forward.34} parent=5 // pred_region
        // Predicated region
        $region25: #{generator_forward.34} parent=23 // pred_check
          %p160 = pneg %p67
        $region26: #{generator_forward.34} parent=23 // pred_check_branch
          %162 = sbr.rel (%p160) target = $region28
        $region27: #{generator_forward.34} parent=23 // pred_region
          %s163 = sand.u32 %s57, 1
          %s164 = sand.u32 %s57, 1
          %s165 = smul.addr %s164, 16
          %s166 = scalar_lea.vmem [#allocation2], %s165
          %s167 = smul.u32 2, %s17
          %s168 = smul.addr %s167, 4
          %s169 = scalar_lea.vmem %s1, %s168
          // Predicated region
          $region29: #{generator_forward.34} parent=27 // pred_check
            _
          $region30: #{generator_forward.34} parent=27 // pred_check_branch
            %171 = sbr.rel (0) target = $region32
          $region31: #{generator_forward.34} parent=27 // pred_region
            // Predicated region
            $region33: #{generator_forward.34} parent=31 // pred_check
              _
            $region34: #{generator_forward.34} parent=31 // pred_check_branch
              %173 = sbr.rel (0) target = $region36
            $region35: #{generator_forward.34} parent=31 // pred_region
              // Predicated region
              $region48: #{generator_forward.34} parent=35 // pred_check
                _
              $region49: #{generator_forward.34} parent=35 // pred_check_branch
                %191 = sbr.rel (0) target = $region51
              $region50: #{generator_forward.34} parent=35 // pred_region
                loop: start=0, step=1, limit=1
                $region52: #{generator_forward.34} parent=50 // loop_pre_header
                  _
                $region53: #{generator_forward.34} parent=50 // loop_header
                  %s193 = sphi 0, %s197
                  %p194 = scmp.ge.s32.totalorder %s193, 1
                  %s198 = sphi %s169, %s169
                  %s199 = sphi %s166, %s166
                $region54: #{generator_forward.34} parent=50 // loop_header_branch
                  %196 = sbr.rel (%p194) target = $region58
                $region55: #{generator_forward.34} parent=50 // loop_body
                  %v200 = vld [vmem:[%s198] sm:$0xff]
                  %201 = vst [vmem:[%s199] sm:$0xff] %v200
                  %v202 = vld [vmem:[%s198 + $0x40] sm:$0xff]
                  %203 = vst [vmem:[%s199 + $0x8] sm:$0xff] %v202
                $region56: #{generator_forward.34} parent=50 // loop_footer
                  %s197 = sadd.s32 1, %s193
                $region57: #{generator_forward.34} parent=50 // loop_footer_branch
                  %192 = sbr.rel target = $region53
                $region58: #{generator_forward.34} parent=50 // loop_exit
                  _
              $region51: #{generator_forward.34} parent=35 // pred_fallthru
                _
              // Predicated region
              $region59: #{generator_forward.34} parent=35 // pred_check
                _
              $region60: #{generator_forward.34} parent=35 // pred_check_branch
                %205 = sbr.rel target = $region62
              $region61: #{generator_forward.34} parent=35 // pred_region
                _
              $region62: #{generator_forward.34} parent=35 // pred_fallthru
                _
            $region36: #{generator_forward.34} parent=31 // pred_fallthru
              _
            // Predicated region
            $region37: #{generator_forward.34} parent=31 // pred_check
              _
            $region38: #{generator_forward.34} parent=31 // pred_check_branch
              %175 = sbr.rel target = $region40
            $region39: #{generator_forward.34} parent=31 // pred_region
              %s177 = ssub.s32 256, 1
              loop: start=0, step=1, limit=1
              $region41: #{generator_forward.34} parent=39 // loop_pre_header
                _
              $region42: #{generator_forward.34} parent=39 // loop_header
                %s179 = sphi 0, %s183
                %p180 = scmp.ge.s32.totalorder %s179, 1
                %s184 = sphi %s169, %s169
                %s185 = sphi %s166, %s166
              $region43: #{generator_forward.34} parent=39 // loop_header_branch
                %182 = sbr.rel (%p180) target = $region47
              $region44: #{generator_forward.34} parent=39 // loop_body
                %v186 = vld [vmem:[%s184] sm:%s177]
                %187 = vst [vmem:[%s185] sm:%s177] %v186
                %v188 = vld [vmem:[%s184 + $0x40] sm:%s177]
                %189 = vst [vmem:[%s185 + $0x8] sm:%s177] %v188
              $region45: #{generator_forward.34} parent=39 // loop_footer
                %s183 = sadd.s32 1, %s179
              $region46: #{generator_forward.34} parent=39 // loop_footer_branch
                %178 = sbr.rel target = $region42
              $region47: #{generator_forward.34} parent=39 // loop_exit
                _
            $region40: #{generator_forward.34} parent=31 // pred_fallthru
              _
          $region32: #{generator_forward.34} parent=27 // pred_fallthru
            _
          %206 = vnop
        $region28: #{generator_forward.34} parent=23 // pred_fallthru
          _
      $region24: #{generator_forward.34} parent=5 // pred_fallthru
        _
      %p207 = scmp.le.s32.totalorder 1, %s9
      %p208 = scmp.lt.s32.totalorder %s9, 9
      %p209 = pnand %p207, %p208
      %p210 = pneg %p209
      // Predicated region
      $region63: #{generator_forward.34} parent=5 // pred_check
        _
      $region64: #{generator_forward.34} parent=5 // pred_check_branch
        %212 = sbr.rel (%p209) target = $region66
      $region65: #{generator_forward.34} parent=5 // pred_region
        %s213 = ssub.s32 %s9, 1
        %s214 = sand.u32 %s60, 1
        %s215 = sand.u32 %s60, 1
        %s216 = smul.addr %s215, 16
        %s217 = scalar_lea.vmem [#allocation2], %s216
        // Predicated region
        $region67: #{generator_forward.34} parent=65 // pred_check
          %p218 = pneg %p73
        $region68: #{generator_forward.34} parent=65 // pred_check_branch
          %220 = sbr.rel (%p218) target = $region70
        $region69: #{generator_forward.34} parent=65 // pred_region
          _
        $region70: #{generator_forward.34} parent=65 // pred_fallthru
          _
        %p221 = scmp.lt.s32.totalorder %s18, 0
        %s222 = scalar_select %p221, %s18, 0
        %s223 = smul.addr %s222, 4
        %s224 = scalar_lea.vmem %s0, %s223
        %p225 = pneg %p47
        %p226 = pneg %p44
        %s227 = sand.u32 %s60, 1
        %s228 = sand.u32 %s60, 1
        %s229 = smul.addr %s228, 16
        %s230 = scalar_lea.vmem [#allocation2], %s229
        %p231 = pneg %p73
        %p232 = pneg %p70
        %p233 = scmp.lt.s32.totalorder %s18, 0
        %s234 = scalar_select %p233, %s18, 0
        %s235 = smul.addr %s234, 8
        %s236 = scalar_lea.vmem %s2, %s235
        %p237 = pneg %p99
        %p238 = pneg %p96
        %p239 = pneg %p127
        %p240 = pneg %p124
        %s241 = smul.u32 2, %s19
        %p242 = scmp.lt.s32.totalorder %s18, 0
        %s243 = scalar_select %p242, %s18, 0
        %p244 = scmp.lt.s32.totalorder %s241, 15
        %s245 = scalar_select %p244, %s241, 15
        %s246 = smul.addr %s243, 16
        %s247 = sadd.s32 %s245, %s246
        %s248 = smul.addr %s247, 4
        %s249 = scalar_lea.vmem %s3, %s248
        %p250 = scmp.lt.s32.totalorder %s18, 0
        %s251 = scalar_select %p250, %s18, 0
        %s252 = smul.addr %s251, 4
        %s253 = scalar_lea.vmem %s0, %s252
        %s254 = smul.u32 2, %s19
        %p255 = scmp.lt.s32.totalorder %s18, 0
        %s256 = scalar_select %p255, %s18, 0
        %s257 = smul.addr %s256, 8
        %s258 = scalar_lea.vmem %s2, %s257
        %s259 = smul.u32 2, %s19
        %p260 = scmp.lt.s32.totalorder %s18, 0
        %s261 = scalar_select %p260, %s18, 0
        %p262 = scmp.lt.s32.totalorder %s259, 15
        %s263 = scalar_select %p262, %s259, 15
        %s264 = smul.addr %s261, 16
        %s265 = sadd.s32 %s263, %s264
        %s266 = smul.addr %s265, 4
        %s267 = scalar_lea.vmem %s3, %s266
        %s268 = smul.u32 2, %s19
        %v270 = vld [vmem:[%s253] sm:$0xf]
        %v271 = vld [vmem:[%s217] sm:$0xff]
        %v272 = vld [vmem:[%s217 + $0x8] sm:$0xff]
        %v273 = vld [vmem:[%s258] sm:$0xff]
        %275 = vset.pattern.permute.xlu0 0
        %276 = vperm.xlu0 %275, %v273
        %v277 = vpop.permute.xlu0 %276
        %v281 = vunpack.c.l.b16 %v271
        %v282 = vunpack.c.h.b16 %v271
        %v283 = vunpack.c.l.b16 %v272
        %v284 = vunpack.c.h.b16 %v272
        %v285 = vpack.c.b16 %v283, %v281
        %v286 = vpack.c.b16 %v284, %v282
        %vm289 = vcmask 130048
        %v291 = vsel %vm289, %v270, 0
        %293 = vmatprep.subr.bf16.mxu0 0
        %294 = vmatpush1.bf16.msra.mxu0 0
        %295 = vmatprep.subr.bf16.mxu0 0
        %296 = vmatpush1.bf16.msra.mxu0 0
        %297 = vmatprep.subr.bf16.mxu0 0
        %298 = vmatpush1.bf16.msra.mxu0 0
        %299 = vmatprep.subr.bf16.mxu0 0
        %300 = vmatpush1.bf16.msra.mxu0 0
        %301 = vmatprep.subr.bf16.mxu0 0
        %302 = vmatpush1.bf16.msra.mxu0 0
        %303 = vmatprep.subr.bf16.mxu0 0
        %304 = vmatpush1.bf16.msra.mxu0 0
        %305 = vmatprep.subr.bf16.mxu0 0
        %306 = vmatpush1.bf16.msra.mxu0 0
        %307 = vmatprep.subr.bf16.mxu0 %v286
        %308 = vmatpush1.bf16.msra.mxu0 %v285
        %309 = vmatprep.subr.bf16.mxu0 0
        %310 = vmatpush2.bf16.msra.mxu0 0
        %311 = vmatprep.subr.bf16.mxu0 0
        %312 = vmatpush2.bf16.msra.mxu0 0
        %313 = vmatprep.subr.bf16.mxu0 0
        %314 = vmatpush2.bf16.msra.mxu0 0
        %315 = vmatprep.subr.bf16.mxu0 0
        %316 = vmatpush2.bf16.msra.mxu0 0
        %317 = vmatprep.subr.bf16.mxu0 0
        %318 = vmatpush2.bf16.msra.mxu0 0
        %319 = vmatprep.subr.bf16.mxu0 0
        %320 = vmatpush2.bf16.msra.mxu0 0
        %321 = vmatprep.subr.bf16.mxu0 0
        %322 = vmatpush2.bf16.msra.mxu0 0
        %323 = vmatprep.subr.bf16.mxu0 0
        %324 = vmatpush2.bf16.msra.mxu0 0
        %325 = vmatprep.mubr.bf16.mxu0 0
        %326 = vmatmul.mubr.bf16.gmra.mxu0 %v291
        %v327 = vpop.f32.mrf.mxu0
        %v328 = vadd.f32 %v277, %v327
        %v329 = vpop.f32.mrf.mxu0
        %v330 = vadd.f32 %v277, %v329
        %v331 = vpop.f32.mrf.mxu0
        %v332 = vpop.f32.mrf.mxu0
        %333 = vdwg.mxu0
        %v334 = vpack.c.bf16 %v328, %v328
        %v335 = vpack.c.bf16 %v330, %v330
        %v338 = vunpack.c.l.b16 %v334
        %v339 = vunpack.c.l.b16 %v335
        %v340 = vpack.c.b16 %v339, %v338
        %342 = vst [vmem:[%s267] sm:$0xff] %v340
        %s343 = smul.u32 2, %s19
        %p344 = scmp.lt.s32.totalorder %s18, 0
        %s345 = scalar_select %p344, %s18, 0
        %p346 = scmp.lt.s32.totalorder %s343, 15
        %s347 = scalar_select %p346, %s343, 15
        %s348 = smul.addr %s345, 16
        %s349 = sadd.s32 %s347, %s348
        %s350 = smul.addr %s349, 4
        %s351 = scalar_lea.vmem %s3, %s350
        // Predicated region
        $region71: #{generator_forward.34} parent=65 // pred_check
          %p352 = pneg %p124
        $region72: #{generator_forward.34} parent=65 // pred_check_branch
          %354 = sbr.rel (%p352) target = $region74
        $region73: #{generator_forward.34} parent=65 // pred_region
          %s355 = smul.u32 2, %s19
        $region74: #{generator_forward.34} parent=65 // pred_fallthru
          _
      $region66: #{generator_forward.34} parent=5 // pred_fallthru
        _
      %p356 = scmp.le.s32.totalorder 2, %s9
      // Predicated region
      $region75: #{generator_forward.34} parent=5 // pred_check
        %p357 = pneg %p356
      $region76: #{generator_forward.34} parent=5 // pred_check_branch
        %359 = sbr.rel (%p357) target = $region78
      $region77: #{generator_forward.34} parent=5 // pred_region
        %s360 = ssub.s32 %s9, 2
        // Predicated region
        $region79: #{generator_forward.34} parent=77 // pred_check
          %p361 = pneg %p130
        $region80: #{generator_forward.34} parent=77 // pred_check_branch
          %363 = sbr.rel (%p361) target = $region82
        $region81: #{generator_forward.34} parent=77 // pred_region
          %s364 = smul.u32 2, %s21
          %p365 = scmp.lt.s32.totalorder %s20, 0
          %s366 = scalar_select %p365, %s20, 0
          %p367 = scmp.lt.s32.totalorder %s364, 15
          %s368 = scalar_select %p367, %s364, 15
          %s369 = smul.addr %s366, 16
          %s370 = sadd.s32 %s368, %s369
          %s371 = smul.addr %s370, 4
          %s372 = scalar_lea.vmem %s3, %s371
        $region82: #{generator_forward.34} parent=77 // pred_fallthru
          _
      $region78: #{generator_forward.34} parent=5 // pred_fallthru
        _
    $region6: #{generator_forward.34} parent=1 // loop_footer
      %s13 = sadd.s32 1, %s9
    $region7: #{generator_forward.34} parent=1 // loop_footer_branch
      %8 = sbr.rel target = $region3
    $region8: #{generator_forward.34} parent=1 // loop_exit
      _

// kernel: generator_forward.35
$region0: #{generator_forward.35}
  #allocation0 [shape = 'u32[]', space=smem, size = 0x4, offset = 0x4, fixed_abs, tag = 'smem constant byte address 0x4 - core index']
  #allocation1 [shape = 'u32[144,128]{1,0:T(1,128)}', space=vmem, size = 0x12000, scoped, tag = 'internal scratch']
  %s0 = inlined_call_operand.vmem [shape: bf16[8,16], index: 0, kind: input, shape index: {}]
  %s1 = inlined_call_operand.vmem [shape: bf16[16,2048], index: 1, kind: input, shape index: {}]
  %s2 = inlined_call_operand.vmem [shape: f32[8,1], index: 2, kind: input, shape index: {}]
  %s3 = inlined_call_operand.vmem [shape: f32[8,2048], index: 3, kind: output, shape index: {}]
  %s4 = sld [smem:[#allocation0]]
  $region83: #{generator_forward.35} parent=0
    _
  %s6 = ssub.s32 1, %s4
  %s7 = scalar_select 0, %s6, %s4
  $region1: #{generator_forward.35} parent=0
    #allocation2 [shape = 'u8[16384]{0}', space=vmem, size = 0x4000, scoped, tag = 'input window, operand 1']
    loop: start=0, step=1, limit=10
    $region2: #{generator_forward.35} parent=1 // loop_pre_header
      _
    $region3: #{generator_forward.35} parent=1 // loop_header
      %s9 = sphi 0, %s13
      %p10 = scmp.ge.s32.totalorder %s9, 10
      %s16 = sphi 0, %s28
      %s17 = sphi 0, %s24
      %s18 = sphi 0, %s16
      %s19 = sphi 0, %s17
      %s20 = sphi 0, %s18
      %s21 = sphi 0, %s19
      %s31 = sphi 0, %s33
      %s34 = sphi 0, %s31
      %s35 = sphi 0, %s34
      %s51 = sphi 0, %s35
      %s57 = sphi 0, %s59
      %s60 = sphi 0, %s57
      %s61 = sphi 0, %s60
      %s77 = sphi 0, %s61
      %s83 = sphi 0, %s85
      %s86 = sphi 0, %s83
      %s87 = sphi 0, %s86
      %s103 = sphi 0, %s87
      %s111 = sphi 0, %s113
      %s114 = sphi 0, %s111
      %s115 = sphi 0, %s114
      %s131 = sphi 0, %s115
    $region4: #{generator_forward.35} parent=1 // loop_header_branch
      %12 = sbr.rel (%p10) target = $region8
    $region5: #{generator_forward.35} parent=1 // loop_body
      %s14 = ssub.s32 %s9, 1
      %s15 = ssub.s32 %s9, 2
      %s22 = sadd.s32 1, %s17
      %p23 = scmp.ge.s32.totalorder %s22, 8
      %s24 = scalar_select %p23, 0, %s22
      %s25 = sadd.s32 1, %s16
      %s26 = scalar_select %p23, %s25, %s16
      %p27 = scmp.ge.s32.totalorder %s26, 1
      %s28 = scalar_select %p27, 0, %s26
      %s29 = ssub.s32 %s16, %s28
      %p30 = scmp.eq.s32.totalorder %s29, 0
      %s32 = sadd.s32 %s31, 1
      %s33 = scalar_select %p30, %s31, %s32
      %p36 = pneg %p30
      %p37 = scmp.eq.s32.totalorder %s9, 7
      %p38 = por %p36, %p37
      %p39 = scmp.ne.s32.totalorder %s31, %s34
      %p40 = scmp.eq.s32.totalorder %s9, 0
      %p41 = por %p39, %p40
      %p42 = scmp.ne.s32.totalorder %s31, %s34
      %p43 = scmp.eq.s32.totalorder %s14, 7
      %p44 = por %p42, %p43
      %p45 = scmp.ne.s32.totalorder %s34, %s35
      %p46 = scmp.eq.s32.totalorder %s14, 0
      %p47 = por %p45, %p46
      %p48 = scmp.ne.s32.totalorder %s34, %s35
      %p49 = scmp.eq.s32.totalorder %s15, 7
      %p50 = por %p48, %p49
      %p52 = scmp.ne.s32.totalorder %s35, %s51
      %p53 = scmp.eq.s32.totalorder %s15, 0
      %p54 = por %p52, %p53
      %s55 = ssub.s32 %s17, %s24
      %p56 = scmp.eq.s32.totalorder %s55, 0
      %s58 = sadd.s32 %s57, 1
      %s59 = scalar_select %p56, %s57, %s58
      %p62 = pneg %p56
      %p63 = scmp.eq.s32.totalorder %s9, 7
      %p64 = por %p62, %p63
      %p65 = scmp.ne.s32.totalorder %s57, %s60
      %p66 = scmp.eq.s32.totalorder %s9, 0
      %p67 = por %p65, %p66
      %p68 = scmp.ne.s32.totalorder %s57, %s60
      %p69 = scmp.eq.s32.totalorder %s14, 7
      %p70 = por %p68, %p69
      %p71 = scmp.ne.s32.totalorder %s60, %s61
      %p72 = scmp.eq.s32.totalorder %s14, 0
      %p73 = por %p71, %p72
      %p74 = scmp.ne.s32.totalorder %s60, %s61
      %p75 = scmp.eq.s32.totalorder %s15, 7
      %p76 = por %p74, %p75
      %p78 = scmp.ne.s32.totalorder %s61, %s77
      %p79 = scmp.eq.s32.totalorder %s15, 0
      %p80 = por %p78, %p79
      %s81 = ssub.s32 %s16, %s28
      %p82 = scmp.eq.s32.totalorder %s81, 0
      %s84 = sadd.s32 %s83, 1
      %s85 = scalar_select %p82, %s83, %s84
      %p88 = pneg %p82
      %p89 = scmp.eq.s32.totalorder %s9, 7
      %p90 = por %p88, %p89
      %p91 = scmp.ne.s32.totalorder %s83, %s86
      %p92 = scmp.eq.s32.totalorder %s9, 0
      %p93 = por %p91, %p92
      %p94 = scmp.ne.s32.totalorder %s83, %s86
      %p95 = scmp.eq.s32.totalorder %s14, 7
      %p96 = por %p94, %p95
      %p97 = scmp.ne.s32.totalorder %s86, %s87
      %p98 = scmp.eq.s32.totalorder %s14, 0
      %p99 = por %p97, %p98
      %p100 = scmp.ne.s32.totalorder %s86, %s87
      %p101 = scmp.eq.s32.totalorder %s15, 7
      %p102 = por %p100, %p101
      %p104 = scmp.ne.s32.totalorder %s87, %s103
      %p105 = scmp.eq.s32.totalorder %s15, 0
      %p106 = por %p104, %p105
      %s107 = ssub.s32 %s16, %s28
      %s108 = ssub.s32 %s17, %s24
      %s109 = sor.u32 %s107, %s108
      %p110 = scmp.eq.s32.totalorder %s109, 0
      %s112 = sadd.s32 %s111, 1
      %s113 = scalar_select %p110, %s111, %s112
      %p116 = pneg %p110
      %p117 = scmp.eq.s32.totalorder %s9, 7
      %p118 = por %p116, %p117
      %p119 = scmp.ne.s32.totalorder %s111, %s114
      %p120 = scmp.eq.s32.totalorder %s9, 0
      %p121 = por %p119, %p120
      %p122 = scmp.ne.s32.totalorder %s111, %s114
      %p123 = scmp.eq.s32.totalorder %s14, 7
      %p124 = por %p122, %p123
      %p125 = scmp.ne.s32.totalorder %s114, %s115
      %p126 = scmp.eq.s32.totalorder %s14, 0
      %p127 = por %p125, %p126
      %p128 = scmp.ne.s32.totalorder %s114, %s115
      %p129 = scmp.eq.s32.totalorder %s15, 7
      %p130 = por %p128, %p129
      %p132 = scmp.ne.s32.totalorder %s115, %s131
      %p133 = scmp.eq.s32.totalorder %s15, 0
      %p134 = por %p132, %p133
      %p135 = scmp.le.s32.totalorder 1, %s9
      %p136 = scmp.lt.s32.totalorder %s9, 9
      %p137 = pnand %p135, %p136
      %p138 = pneg %p137
      // Predicated region
      $region9: #{generator_forward.35} parent=5 // pred_check
        _
      $region10: #{generator_forward.35} parent=5 // pred_check_branch
        %140 = sbr.rel (%p137) target = $region12
      $region11: #{generator_forward.35} parent=5 // pred_region
        %s141 = ssub.s32 %s9, 1
        // Predicated region
        $region13: #{generator_forward.35} parent=11 // pred_check
          %p142 = pneg %p47
        $region14: #{generator_forward.35} parent=11 // pred_check_branch
          %144 = sbr.rel (%p142) target = $region16
        $region15: #{generator_forward.35} parent=11 // pred_region
          %p145 = scmp.lt.s32.totalorder %s18, 0
          %s146 = scalar_select %p145, %s18, 0
          %s147 = smul.addr %s146, 4
          %s148 = scalar_lea.vmem %s0, %s147
        $region16: #{generator_forward.35} parent=11 // pred_fallthru
          _
        // Predicated region
        $region17: #{generator_forward.35} parent=11 // pred_check
          %p149 = pneg %p99
        $region18: #{generator_forward.35} parent=11 // pred_check_branch
          %151 = sbr.rel (%p149) target = $region20
        $region19: #{generator_forward.35} parent=11 // pred_region
          %p152 = scmp.lt.s32.totalorder %s18, 0
          %s153 = scalar_select %p152, %s18, 0
          %s154 = smul.addr %s153, 8
          %s155 = scalar_lea.vmem %s2, %s154
        $region20: #{generator_forward.35} parent=11 // pred_fallthru
          _
      $region12: #{generator_forward.35} parent=5 // pred_fallthru
        _
      %p156 = scmp.lt.s32.totalorder %s9, 8
      // Predicated region
      $region21: #{generator_forward.35} parent=5 // pred_check
        %p157 = pneg %p156
      $region22: #{generator_forward.35} parent=5 // pred_check_branch
        %159 = sbr.rel (%p157) target = $region24
      $region23: #{generator_forward.35} parent=5 // pred_region
        // Predicated region
        $region25: #{generator_forward.35} parent=23 // pred_check
          %p160 = pneg %p67
        $region26: #{generator_forward.35} parent=23 // pred_check_branch
          %162 = sbr.rel (%p160) target = $region28
        $region27: #{generator_forward.35} parent=23 // pred_region
          %s163 = sand.u32 %s57, 1
          %s164 = sand.u32 %s57, 1
          %s165 = smul.addr %s164, 16
          %s166 = scalar_lea.vmem [#allocation2], %s165
          %s167 = smul.u32 2, %s17
          %s168 = smul.addr %s167, 4
          %s169 = scalar_lea.vmem %s1, %s168
          // Predicated region
          $region29: #{generator_forward.35} parent=27 // pred_check
            _
          $region30: #{generator_forward.35} parent=27 // pred_check_branch
            %171 = sbr.rel (0) target = $region32
          $region31: #{generator_forward.35} parent=27 // pred_region
            // Predicated region
            $region33: #{generator_forward.35} parent=31 // pred_check
              _
            $region34: #{generator_forward.35} parent=31 // pred_check_branch
              %173 = sbr.rel (0) target = $region36
            $region35: #{generator_forward.35} parent=31 // pred_region
              // Predicated region
              $region48: #{generator_forward.35} parent=35 // pred_check
                _
              $region49: #{generator_forward.35} parent=35 // pred_check_branch
                %191 = sbr.rel (0) target = $region51
              $region50: #{generator_forward.35} parent=35 // pred_region
                loop: start=0, step=1, limit=1
                $region52: #{generator_forward.35} parent=50 // loop_pre_header
                  _
                $region53: #{generator_forward.35} parent=50 // loop_header
                  %s193 = sphi 0, %s197
                  %p194 = scmp.ge.s32.totalorder %s193, 1
                  %s198 = sphi %s169, %s169
                  %s199 = sphi %s166, %s166
                $region54: #{generator_forward.35} parent=50 // loop_header_branch
                  %196 = sbr.rel (%p194) target = $region58
                $region55: #{generator_forward.35} parent=50 // loop_body
                  %v200 = vld [vmem:[%s198] sm:$0xff]
                  %201 = vst [vmem:[%s199] sm:$0xff] %v200
                  %v202 = vld [vmem:[%s198 + $0x40] sm:$0xff]
                  %203 = vst [vmem:[%s199 + $0x8] sm:$0xff] %v202
                $region56: #{generator_forward.35} parent=50 // loop_footer
                  %s197 = sadd.s32 1, %s193
                $region57: #{generator_forward.35} parent=50 // loop_footer_branch
                  %192 = sbr.rel target = $region53
                $region58: #{generator_forward.35} parent=50 // loop_exit
                  _
              $region51: #{generator_forward.35} parent=35 // pred_fallthru
                _
              // Predicated region
              $region59: #{generator_forward.35} parent=35 // pred_check
                _
              $region60: #{generator_forward.35} parent=35 // pred_check_branch
                %205 = sbr.rel target = $region62
              $region61: #{generator_forward.35} parent=35 // pred_region
                _
              $region62: #{generator_forward.35} parent=35 // pred_fallthru
                _
            $region36: #{generator_forward.35} parent=31 // pred_fallthru
              _
            // Predicated region
            $region37: #{generator_forward.35} parent=31 // pred_check
              _
            $region38: #{generator_forward.35} parent=31 // pred_check_branch
              %175 = sbr.rel target = $region40
            $region39: #{generator_forward.35} parent=31 // pred_region
              %s177 = ssub.s32 256, 1
              loop: start=0, step=1, limit=1
              $region41: #{generator_forward.35} parent=39 // loop_pre_header
                _
              $region42: #{generator_forward.35} parent=39 // loop_header
                %s179 = sphi 0, %s183
                %p180 = scmp.ge.s32.totalorder %s179, 1
                %s184 = sphi %s169, %s169
                %s185 = sphi %s166, %s166
              $region43: #{generator_forward.35} parent=39 // loop_header_branch
                %182 = sbr.rel (%p180) target = $region47
              $region44: #{generator_forward.35} parent=39 // loop_body
                %v186 = vld [vmem:[%s184] sm:%s177]
                %187 = vst [vmem:[%s185] sm:%s177] %v186
                %v188 = vld [vmem:[%s184 + $0x40] sm:%s177]
                %189 = vst [vmem:[%s185 + $0x8] sm:%s177] %v188
              $region45: #{generator_forward.35} parent=39 // loop_footer
                %s183 = sadd.s32 1, %s179
              $region46: #{generator_forward.35} parent=39 // loop_footer_branch
                %178 = sbr.rel target = $region42
              $region47: #{generator_forward.35} parent=39 // loop_exit
                _
            $region40: #{generator_forward.35} parent=31 // pred_fallthru
              _
          $region32: #{generator_forward.35} parent=27 // pred_fallthru
            _
          %206 = vnop
        $region28: #{generator_forward.35} parent=23 // pred_fallthru
          _
      $region24: #{generator_forward.35} parent=5 // pred_fallthru
        _
      %p207 = scmp.le.s32.totalorder 1, %s9
      %p208 = scmp.lt.s32.totalorder %s9, 9
      %p209 = pnand %p207, %p208
      %p210 = pneg %p209
      // Predicated region
      $region63: #{generator_forward.35} parent=5 // pred_check
        _
      $region64: #{generator_forward.35} parent=5 // pred_check_branch
        %212 = sbr.rel (%p209) target = $region66
      $region65: #{generator_forward.35} parent=5 // pred_region
        %s213 = ssub.s32 %s9, 1
        %s214 = sand.u32 %s60, 1
        %s215 = sand.u32 %s60, 1
        %s216 = smul.addr %s215, 16
        %s217 = scalar_lea.vmem [#allocation2], %s216
        // Predicated region
        $region67: #{generator_forward.35} parent=65 // pred_check
          %p218 = pneg %p73
        $region68: #{generator_forward.35} parent=65 // pred_check_branch
          %220 = sbr.rel (%p218) target = $region70
        $region69: #{generator_forward.35} parent=65 // pred_region
          _
        $region70: #{generator_forward.35} parent=65 // pred_fallthru
          _
        %p221 = scmp.lt.s32.totalorder %s18, 0
        %s222 = scalar_select %p221, %s18, 0
        %s223 = smul.addr %s222, 4
        %s224 = scalar_lea.vmem %s0, %s223
        %p225 = pneg %p47
        %p226 = pneg %p44
        %s227 = sand.u32 %s60, 1
        %s228 = sand.u32 %s60, 1
        %s229 = smul.addr %s228, 16
        %s230 = scalar_lea.vmem [#allocation2], %s229
        %p231 = pneg %p73
        %p232 = pneg %p70
        %p233 = scmp.lt.s32.totalorder %s18, 0
        %s234 = scalar_select %p233, %s18, 0
        %s235 = smul.addr %s234, 8
        %s236 = scalar_lea.vmem %s2, %s235
        %p237 = pneg %p99
        %p238 = pneg %p96
        %p239 = pneg %p127
        %p240 = pneg %p124
        %s241 = smul.u32 2, %s19
        %p242 = scmp.lt.s32.totalorder %s18, 0
        %s243 = scalar_select %p242, %s18, 0
        %p244 = scmp.lt.s32.totalorder %s241, 15
        %s245 = scalar_select %p244, %s241, 15
        %s246 = smul.addr %s243, 16
        %s247 = sadd.s32 %s245, %s246
        %s248 = smul.addr %s247, 8
        %s249 = scalar_lea.vmem %s3, %s248
        %p250 = scmp.lt.s32.totalorder %s18, 0
        %s251 = scalar_select %p250, %s18, 0
        %s252 = smul.addr %s251, 4
        %s253 = scalar_lea.vmem %s0, %s252
        %s254 = smul.u32 2, %s19
        %p255 = scmp.lt.s32.totalorder %s18, 0
        %s256 = scalar_select %p255, %s18, 0
        %s257 = smul.addr %s256, 8
        %s258 = scalar_lea.vmem %s2, %s257
        %s259 = smul.u32 2, %s19
        %p260 = scmp.lt.s32.totalorder %s18, 0
        %s261 = scalar_select %p260, %s18, 0
        %p262 = scmp.lt.s32.totalorder %s259, 15
        %s263 = scalar_select %p262, %s259, 15
        %s264 = smul.addr %s261, 16
        %s265 = sadd.s32 %s263, %s264
        %s266 = smul.addr %s265, 8
        %s267 = scalar_lea.vmem %s3, %s266
        %s268 = smul.u32 2, %s19
        %v270 = vld [vmem:[%s253] sm:$0xf]
        %v271 = vld [vmem:[%s217] sm:$0xff]
        %v272 = vld [vmem:[%s217 + $0x8] sm:$0xff]
        %v273 = vld [vmem:[%s258] sm:$0xff]
        %275 = vset.pattern.permute.xlu0 0
        %276 = vperm.xlu0 %275, %v273
        %v277 = vpop.permute.xlu0 %276
        %v281 = vunpack.c.l.b16 %v271
        %v282 = vunpack.c.h.b16 %v271
        %v283 = vunpack.c.l.b16 %v272
        %v284 = vunpack.c.h.b16 %v272
        %v285 = vpack.c.b16 %v283, %v281
        %v286 = vpack.c.b16 %v284, %v282
        %vm289 = vcmask 130048
        %v291 = vsel %vm289, %v270, 0
        %293 = vmatprep.subr.bf16.mxu0 0
        %294 = vmatpush1.bf16.msra.mxu0 0
        %295 = vmatprep.subr.bf16.mxu0 0
        %296 = vmatpush1.bf16.msra.mxu0 0
        %297 = vmatprep.subr.bf16.mxu0 0
        %298 = vmatpush1.bf16.msra.mxu0 0
        %299 = vmatprep.subr.bf16.mxu0 0
        %300 = vmatpush1.bf16.msra.mxu0 0
        %301 = vmatprep.subr.bf16.mxu0 0
        %302 = vmatpush1.bf16.msra.mxu0 0
        %303 = vmatprep.subr.bf16.mxu0 0
        %304 = vmatpush1.bf16.msra.mxu0 0
        %305 = vmatprep.subr.bf16.mxu0 0
        %306 = vmatpush1.bf16.msra.mxu0 0
        %307 = vmatprep.subr.bf16.mxu0 %v286
        %308 = vmatpush1.bf16.msra.mxu0 %v285
        %309 = vmatprep.subr.bf16.mxu0 0
        %310 = vmatpush2.bf16.msra.mxu0 0
        %311 = vmatprep.subr.bf16.mxu0 0
        %312 = vmatpush2.bf16.msra.mxu0 0
        %313 = vmatprep.subr.bf16.mxu0 0
        %314 = vmatpush2.bf16.msra.mxu0 0
        %315 = vmatprep.subr.bf16.mxu0 0
        %316 = vmatpush2.bf16.msra.mxu0 0
        %317 = vmatprep.subr.bf16.mxu0 0
        %318 = vmatpush2.bf16.msra.mxu0 0
        %319 = vmatprep.subr.bf16.mxu0 0
        %320 = vmatpush2.bf16.msra.mxu0 0
        %321 = vmatprep.subr.bf16.mxu0 0
        %322 = vmatpush2.bf16.msra.mxu0 0
        %323 = vmatprep.subr.bf16.mxu0 0
        %324 = vmatpush2.bf16.msra.mxu0 0
        %325 = vmatprep.mubr.bf16.mxu0 0
        %326 = vmatmul.mubr.bf16.gmra.mxu0 %v291
        %v327 = vpop.f32.mrf.mxu0
        %v328 = vadd.f32 %v277, %v327
        %v329 = vpop.f32.mrf.mxu0
        %v330 = vadd.f32 %v277, %v329
        %v331 = vpop.f32.mrf.mxu0
        %v332 = vpop.f32.mrf.mxu0
        %333 = vdwg.mxu0
        %334 = vst [vmem:[%s267] sm:$0xff] %v328
        %335 = vst [vmem:[%s267 + $0x8] sm:$0xff] %v330
        %s336 = smul.u32 2, %s19
        %p337 = scmp.lt.s32.totalorder %s18, 0
        %s338 = scalar_select %p337, %s18, 0
        %p339 = scmp.lt.s32.totalorder %s336, 15
        %s340 = scalar_select %p339, %s336, 15
        %s341 = smul.addr %s338, 16
        %s342 = sadd.s32 %s340, %s341
        %s343 = smul.addr %s342, 8
        %s344 = scalar_lea.vmem %s3, %s343
        // Predicated region
        $region71: #{generator_forward.35} parent=65 // pred_check
          %p345 = pneg %p124
        $region72: #{generator_forward.35} parent=65 // pred_check_branch
          %347 = sbr.rel (%p345) target = $region74
        $region73: #{generator_forward.35} parent=65 // pred_region
          %s348 = smul.u32 2, %s19
        $region74: #{generator_forward.35} parent=65 // pred_fallthru
          _
      $region66: #{generator_forward.35} parent=5 // pred_fallthru
        _
      %p349 = scmp.le.s32.totalorder 2, %s9
      // Predicated region
      $region75: #{generator_forward.35} parent=5 // pred_check
        %p350 = pneg %p349
      $region76: #{generator_forward.35} parent=5 // pred_check_branch
        %352 = sbr.rel (%p350) target = $region78
      $region77: #{generator_forward.35} parent=5 // pred_region
        %s353 = ssub.s32 %s9, 2
        // Predicated region
        $region79: #{generator_forward.35} parent=77 // pred_check
          %p354 = pneg %p130
        $region80: #{generator_forward.35} parent=77 // pred_check_branch
          %356 = sbr.rel (%p354) target = $region82
        $region81: #{generator_forward.35} parent=77 // pred_region
          %s357 = smul.u32 2, %s21
          %p358 = scmp.lt.s32.totalorder %s20, 0
          %s359 = scalar_select %p358, %s20, 0
          %p360 = scmp.lt.s32.totalorder %s357, 15
          %s361 = scalar_select %p360, %s357, 15
          %s362 = smul.addr %s359, 16
          %s363 = sadd.s32 %s361, %s362
          %s364 = smul.addr %s363, 8
          %s365 = scalar_lea.vmem %s3, %s364
        $region82: #{generator_forward.35} parent=77 // pred_fallthru
          _
      $region78: #{generator_forward.35} parent=5 // pred_fallthru
        _
    $region6: #{generator_forward.35} parent=1 // loop_footer
      %s13 = sadd.s32 1, %s9
    $region7: #{generator_forward.35} parent=1 // loop_footer_branch
      %8 = sbr.rel target = $region3
    $region8: #{generator_forward.35} parent=1 // loop_exit
      _

// kernel: mul.65
$region0: #{mul.65}
  #allocation0 [shape = 's32[1]{0}', space=sflag, size = 0x4, scoped, tag = 'scoped memory for mul.65']
  %s0 = inlined_call_operand.vmem [shape: f32[8,2], index: 0, kind: input, shape index: {}]
  %s1 = inlined_call_operand.vmem [shape: f32[8,2,32,32], index: 1, kind: output, shape index: {}]
  // Predicated region
  $region2: #{mul.65} parent=0 // pred_check
    _
  $region3: #{mul.65} parent=0 // pred_check_branch
    %3 = sbr.rel (0) target = $region5
  $region4: #{mul.65} parent=0 // pred_region
    _
  $region5: #{mul.65} parent=0 // pred_fallthru
    _
  %v4 = vld [vmem:[%s0] ss:$0 sm:$0xff]
  %5 = vbcast.lane.b32.xlu0 %v4, 0
  %v6 = vpop.permute.xlu0 %5
  %7 = vst [vmem:[%s1] sm:$0xff] %v6
  %s8 = scalar_lea.vmem %s0, 1
  %v9 = vld [vmem:[%s8] ss:$0 sm:$0xff]
  %10 = vbcast.lane.b32.xlu0 %v9, 0
  %v11 = vpop.permute.xlu0 %10
  %s12 = scalar_lea.vmem %s1, 64
  %13 = vst [vmem:[%s12] sm:$0xff] %v11
  %s14 = scalar_lea.vmem %s0, 2
  %v15 = vld [vmem:[%s14] ss:$0 sm:$0xff]
  %16 = vbcast.lane.b32.xlu0 %v15, 0
  %v17 = vpop.permute.xlu0 %16
  %s18 = scalar_lea.vmem %s1, 128
  %19 = vst [vmem:[%s18] sm:$0xff] %v17
  %s20 = scalar_lea.vmem %s0, 3
  %v21 = vld [vmem:[%s20] ss:$0 sm:$0xff]
  %22 = vbcast.lane.b32.xlu0 %v21, 0
  %v23 = vpop.permute.xlu0 %22
  %s24 = scalar_lea.vmem %s1, 192
  %25 = vst [vmem:[%s24] sm:$0xff] %v23
  %s26 = scalar_lea.vmem %s0, 4
  %v27 = vld [vmem:[%s26] ss:$0 sm:$0xff]
  %28 = vbcast.lane.b32.xlu0 %v27, 0
  %v29 = vpop.permute.xlu0 %28
  %s30 = scalar_lea.vmem %s1, 256
  %31 = vst [vmem:[%s30] sm:$0xff] %v29
  %s32 = scalar_lea.vmem %s0, 5
  %v33 = vld [vmem:[%s32] ss:$0 sm:$0xff]
  %34 = vbcast.lane.b32.xlu0 %v33, 0
  %v35 = vpop.permute.xlu0 %34
  %s36 = scalar_lea.vmem %s1, 320
  %37 = vst [vmem:[%s36] sm:$0xff] %v35
  %s38 = scalar_lea.vmem %s0, 6
  %v39 = vld [vmem:[%s38] ss:$0 sm:$0xff]
  %40 = vbcast.lane.b32.xlu0 %v39, 0
  %v41 = vpop.permute.xlu0 %40
  %s42 = scalar_lea.vmem %s1, 384
  %43 = vst [vmem:[%s42] sm:$0xff] %v41
  %s44 = scalar_lea.vmem %s0, 7
  %v45 = vld [vmem:[%s44] ss:$0 sm:$0xff]
  %46 = vbcast.lane.b32.xlu0 %v45, 0
  %v47 = vpop.permute.xlu0 %46
  %s48 = scalar_lea.vmem %s1, 448
  %49 = vst [vmem:[%s48] sm:$0xff] %v47
  %v50 = vld [vmem:[%s0] ss:$0 sm:$0xff]
  %51 = vbcast.lane.b32.xlu0 %v50, 1
  %v52 = vpop.permute.xlu0 %51
  %s53 = scalar_lea.vmem %s1, 32
  %54 = vst [vmem:[%s53] sm:$0xff] %v52
  %s55 = scalar_lea.vmem %s0, 1
  %v56 = vld [vmem:[%s55] ss:$0 sm:$0xff]
  %57 = vbcast.lane.b32.xlu0 %v56, 1
  %v58 = vpop.permute.xlu0 %57
  %s59 = scalar_lea.vmem %s1, 96
  %60 = vst [vmem:[%s59] sm:$0xff] %v58
  %s61 = scalar_lea.vmem %s0, 2
  %v62 = vld [vmem:[%s61] ss:$0 sm:$0xff]
  %63 = vbcast.lane.b32.xlu0 %v62, 1
  %v64 = vpop.permute.xlu0 %63
  %s65 = scalar_lea.vmem %s1, 160
  %66 = vst [vmem:[%s65] sm:$0xff] %v64
  %s67 = scalar_lea.vmem %s0, 3
  %v68 = vld [vmem:[%s67] ss:$0 sm:$0xff]
  %69 = vbcast.lane.b32.xlu0 %v68, 1
  %v70 = vpop.permute.xlu0 %69
  %s71 = scalar_lea.vmem %s1, 224
  %72 = vst [vmem:[%s71] sm:$0xff] %v70
  %s73 = scalar_lea.vmem %s0, 4
  %v74 = vld [vmem:[%s73] ss:$0 sm:$0xff]
  %75 = vbcast.lane.b32.xlu0 %v74, 1
  %v76 = vpop.permute.xlu0 %75
  %s77 = scalar_lea.vmem %s1, 288
  %78 = vst [vmem:[%s77] sm:$0xff] %v76
  %s79 = scalar_lea.vmem %s0, 5
  %v80 = vld [vmem:[%s79] ss:$0 sm:$0xff]
  %81 = vbcast.lane.b32.xlu0 %v80, 1
  %v82 = vpop.permute.xlu0 %81
  %s83 = scalar_lea.vmem %s1, 352
  %84 = vst [vmem:[%s83] sm:$0xff] %v82
  %s85 = scalar_lea.vmem %s0, 6
  %v86 = vld [vmem:[%s85] ss:$0 sm:$0xff]
  %87 = vbcast.lane.b32.xlu0 %v86, 1
  %v88 = vpop.permute.xlu0 %87
  %s89 = scalar_lea.vmem %s1, 416
  %90 = vst [vmem:[%s89] sm:$0xff] %v88
  %s91 = scalar_lea.vmem %s0, 7
  %v92 = vld [vmem:[%s91] ss:$0 sm:$0xff]
  %93 = vbcast.lane.b32.xlu0 %v92, 1
  %v94 = vpop.permute.xlu0 %93
  %s95 = scalar_lea.vmem %s1, 480
  %96 = vst [vmem:[%s95] sm:$0xff] %v94
  %s97 = scalar_lea.vmem %s1, 8
  %98 = vst [vmem:[%s97] sm:$0xff] %v6
  %s99 = scalar_lea.vmem %s1, 72
  %100 = vst [vmem:[%s99] sm:$0xff] %v11
  %s101 = scalar_lea.vmem %s1, 136
  %102 = vst [vmem:[%s101] sm:$0xff] %v17
  %s103 = scalar_lea.vmem %s1, 200
  %104 = vst [vmem:[%s103] sm:$0xff] %v23
  %s105 = scalar_lea.vmem %s1, 264
  %106 = vst [vmem:[%s105] sm:$0xff] %v29
  %s107 = scalar_lea.vmem %s1, 328
  %108 = vst [vmem:[%s107] sm:$0xff] %v35
  %s109 = scalar_lea.vmem %s1, 392
  %110 = vst [vmem:[%s109] sm:$0xff] %v41
  %s111 = scalar_lea.vmem %s1, 456
  %112 = vst [vmem:[%s111] sm:$0xff] %v47
  %s113 = scalar_lea.vmem %s1, 40
  %114 = vst [vmem:[%s113] sm:$0xff] %v52
  %s115 = scalar_lea.vmem %s1, 104
  %116 = vst [vmem:[%s115] sm:$0xff] %v58
  %s117 = scalar_lea.vmem %s1, 168
  %118 = vst [vmem:[%s117] sm:$0xff] %v64
  %s119 = scalar_lea.vmem %s1, 232
  %120 = vst [vmem:[%s119] sm:$0xff] %v70
  %s121 = scalar_lea.vmem %s1, 296
  %122 = vst [vmem:[%s121] sm:$0xff] %v76
  %s123 = scalar_lea.vmem %s1, 360
  %124 = vst [vmem:[%s123] sm:$0xff] %v82
  %s125 = scalar_lea.vmem %s1, 424
  %126 = vst [vmem:[%s125] sm:$0xff] %v88
  %s127 = scalar_lea.vmem %s1, 488
  %128 = vst [vmem:[%s127] sm:$0xff] %v94
  %s129 = scalar_lea.vmem %s1, 16
  %130 = vst [vmem:[%s129] sm:$0xff] %v6
  %s131 = scalar_lea.vmem %s1, 80
  %132 = vst [vmem:[%s131] sm:$0xff] %v11
  %s133 = scalar_lea.vmem %s1, 144
  %134 = vst [vmem:[%s133] sm:$0xff] %v17
  %s135 = scalar_lea.vmem %s1, 208
  %136 = vst [vmem:[%s135] sm:$0xff] %v23
  %s137 = scalar_lea.vmem %s1, 272
  %138 = vst [vmem:[%s137] sm:$0xff] %v29
  %s139 = scalar_lea.vmem %s1, 336
  %140 = vst [vmem:[%s139] sm:$0xff] %v35
  %s141 = scalar_lea.vmem %s1, 400
  %142 = vst [vmem:[%s141] sm:$0xff] %v41
  %s143 = scalar_lea.vmem %s1, 464
  %144 = vst [vmem:[%s143] sm:$0xff] %v47
  %s145 = scalar_lea.vmem %s1, 48
  %146 = vst [vmem:[%s145] sm:$0xff] %v52
  %s147 = scalar_lea.vmem %s1, 112
  %148 = vst [vmem:[%s147] sm:$0xff] %v58
  %s149 = scalar_lea.vmem %s1, 176
  %150 = vst [vmem:[%s149] sm:$0xff] %v64
  %s151 = scalar_lea.vmem %s1, 240
  %152 = vst [vmem:[%s151] sm:$0xff] %v70
  %s153 = scalar_lea.vmem %s1, 304
  %154 = vst [vmem:[%s153] sm:$0xff] %v76
  %s155 = scalar_lea.vmem %s1, 368
  %156 = vst [vmem:[%s155] sm:$0xff] %v82
  %s157 = scalar_lea.vmem %s1, 432
  %158 = vst [vmem:[%s157] sm:$0xff] %v88
  %s159 = scalar_lea.vmem %s1, 496
  %160 = vst [vmem:[%s159] sm:$0xff] %v94
  %s161 = scalar_lea.vmem %s1, 24
  %162 = vst [vmem:[%s161] sm:$0xff] %v6
  %s163 = scalar_lea.vmem %s1, 88
  %164 = vst [vmem:[%s163] sm:$0xff] %v11
  %s165 = scalar_lea.vmem %s1, 152
  %166 = vst [vmem:[%s165] sm:$0xff] %v17
  %s167 = scalar_lea.vmem %s1, 216
  %168 = vst [vmem:[%s167] sm:$0xff] %v23
  %s169 = scalar_lea.vmem %s1, 280
  %170 = vst [vmem:[%s169] sm:$0xff] %v29
  %s171 = scalar_lea.vmem %s1, 344
  %172 = vst [vmem:[%s171] sm:$0xff] %v35
  %s173 = scalar_lea.vmem %s1, 408
  %174 = vst [vmem:[%s173] sm:$0xff] %v41
  %s175 = scalar_lea.vmem %s1, 472
  %176 = vst [vmem:[%s175] sm:$0xff] %v47
  %s177 = scalar_lea.vmem %s1, 56
  %178 = vst [vmem:[%s177] sm:$0xff] %v52
  %s179 = scalar_lea.vmem %s1, 120
  %180 = vst [vmem:[%s179] sm:$0xff] %v58
  %s181 = scalar_lea.vmem %s1, 184
  %182 = vst [vmem:[%s181] sm:$0xff] %v64
  %s183 = scalar_lea.vmem %s1, 248
  %184 = vst [vmem:[%s183] sm:$0xff] %v70
  %s185 = scalar_lea.vmem %s1, 312
  %186 = vst [vmem:[%s185] sm:$0xff] %v76
  %s187 = scalar_lea.vmem %s1, 376
  %188 = vst [vmem:[%s187] sm:$0xff] %v82
  %s189 = scalar_lea.vmem %s1, 440
  %190 = vst [vmem:[%s189] sm:$0xff] %v88
  %s191 = scalar_lea.vmem %s1, 504
  %192 = vst [vmem:[%s191] sm:$0xff] %v94

// kernel: generator_forward.36
$region0: #{generator_forward.36}
  #allocation0 [shape = 'u32[]', space=smem, size = 0x4, offset = 0x4, fixed_abs, tag = 'smem constant byte address 0x4 - core index']
  #allocation1 [shape = 'u32[144,128]{1,0:T(1,128)}', space=vmem, size = 0x12000, scoped, tag = 'internal scratch']
  %s0 = inlined_call_operand.vmem [shape: bf16[8,144], index: 0, kind: input, shape index: {}]
  %s1 = inlined_call_operand.vmem [shape: bf16[144,2048], index: 1, kind: input, shape index: {}]
  %s2 = inlined_call_operand.vmem [shape: f32[8,1], index: 2, kind: input, shape index: {}]
  %s3 = inlined_call_operand.vmem [shape: bf16[8,2048], index: 3, kind: output, shape index: {}]
  %s4 = sld [smem:[#allocation0]]
  $region83: #{generator_forward.36} parent=0
    _
  %s6 = ssub.s32 1, %s4
  %s7 = scalar_select 0, %s6, %s4
  $region1: #{generator_forward.36} parent=0
    #allocation2 [shape = 'u8[147456]{0}', space=vmem, size = 0x24000, scoped, tag = 'input window, operand 1']
    loop: start=0, step=1, limit=10
    $region2: #{generator_forward.36} parent=1 // loop_pre_header
      _
    $region3: #{generator_forward.36} parent=1 // loop_header
      %s9 = sphi 0, %s13
      %p10 = scmp.ge.s32.totalorder %s9, 10
      %s16 = sphi 0, %s28
      %s17 = sphi 0, %s24
      %s18 = sphi 0, %s16
      %s19 = sphi 0, %s17
      %s20 = sphi 0, %s18
      %s21 = sphi 0, %s19
      %s31 = sphi 0, %s33
      %s34 = sphi 0, %s31
      %s35 = sphi 0, %s34
      %s51 = sphi 0, %s35
      %s57 = sphi 0, %s59
      %s60 = sphi 0, %s57
      %s61 = sphi 0, %s60
      %s77 = sphi 0, %s61
      %s83 = sphi 0, %s85
      %s86 = sphi 0, %s83
      %s87 = sphi 0, %s86
      %s103 = sphi 0, %s87
      %s111 = sphi 0, %s113
      %s114 = sphi 0, %s111
      %s115 = sphi 0, %s114
      %s131 = sphi 0, %s115
    $region4: #{generator_forward.36} parent=1 // loop_header_branch
      %12 = sbr.rel (%p10) target = $region8
    $region5: #{generator_forward.36} parent=1 // loop_body
      %s14 = ssub.s32 %s9, 1
      %s15 = ssub.s32 %s9, 2
      %s22 = sadd.s32 1, %s17
      %p23 = scmp.ge.s32.totalorder %s22, 8
      %s24 = scalar_select %p23, 0, %s22
      %s25 = sadd.s32 1, %s16
      %s26 = scalar_select %p23, %s25, %s16
      %p27 = scmp.ge.s32.totalorder %s26, 1
      %s28 = scalar_select %p27, 0, %s26
      %s29 = ssub.s32 %s16, %s28
      %p30 = scmp.eq.s32.totalorder %s29, 0
      %s32 = sadd.s32 %s31, 1
      %s33 = scalar_select %p30, %s31, %s32
      %p36 = pneg %p30
      %p37 = scmp.eq.s32.totalorder %s9, 7
      %p38 = por %p36, %p37
      %p39 = scmp.ne.s32.totalorder %s31, %s34
      %p40 = scmp.eq.s32.totalorder %s9, 0
      %p41 = por %p39, %p40
      %p42 = scmp.ne.s32.totalorder %s31, %s34
      %p43 = scmp.eq.s32.totalorder %s14, 7
      %p44 = por %p42, %p43
      %p45 = scmp.ne.s32.totalorder %s34, %s35
      %p46 = scmp.eq.s32.totalorder %s14, 0
      %p47 = por %p45, %p46
      %p48 = scmp.ne.s32.totalorder %s34, %s35
      %p49 = scmp.eq.s32.totalorder %s15, 7
      %p50 = por %p48, %p49
      %p52 = scmp.ne.s32.totalorder %s35, %s51
      %p53 = scmp.eq.s32.totalorder %s15, 0
      %p54 = por %p52, %p53
      %s55 = ssub.s32 %s17, %s24
      %p56 = scmp.eq.s32.totalorder %s55, 0
      %s58 = sadd.s32 %s57, 1
      %s59 = scalar_select %p56, %s57, %s58
      %p62 = pneg %p56
      %p63 = scmp.eq.s32.totalorder %s9, 7
      %p64 = por %p62, %p63
      %p65 = scmp.ne.s32.totalorder %s57, %s60
      %p66 = scmp.eq.s32.totalorder %s9, 0
      %p67 = por %p65, %p66
      %p68 = scmp.ne.s32.totalorder %s57, %s60
      %p69 = scmp.eq.s32.totalorder %s14, 7
      %p70 = por %p68, %p69
      %p71 = scmp.ne.s32.totalorder %s60, %s61
      %p72 = scmp.eq.s32.totalorder %s14, 0
      %p73 = por %p71, %p72
      %p74 = scmp.ne.s32.totalorder %s60, %s61
      %p75 = scmp.eq.s32.totalorder %s15, 7
      %p76 = por %p74, %p75
      %p78 = scmp.ne.s32.totalorder %s61, %s77
      %p79 = scmp.eq.s32.totalorder %s15, 0
      %p80 = por %p78, %p79
      %s81 = ssub.s32 %s16, %s28
      %p82 = scmp.eq.s32.totalorder %s81, 0
      %s84 = sadd.s32 %s83, 1
      %s85 = scalar_select %p82, %s83, %s84
      %p88 = pneg %p82
      %p89 = scmp.eq.s32.totalorder %s9, 7
      %p90 = por %p88, %p89
      %p91 = scmp.ne.s32.totalorder %s83, %s86
      %p92 = scmp.eq.s32.totalorder %s9, 0
      %p93 = por %p91, %p92
      %p94 = scmp.ne.s32.totalorder %s83, %s86
      %p95 = scmp.eq.s32.totalorder %s14, 7
      %p96 = por %p94, %p95
      %p97 = scmp.ne.s32.totalorder %s86, %s87
      %p98 = scmp.eq.s32.totalorder %s14, 0
      %p99 = por %p97, %p98
      %p100 = scmp.ne.s32.totalorder %s86, %s87
      %p101 = scmp.eq.s32.totalorder %s15, 7
      %p102 = por %p100, %p101
      %p104 = scmp.ne.s32.totalorder %s87, %s103
      %p105 = scmp.eq.s32.totalorder %s15, 0
      %p106 = por %p104, %p105
      %s107 = ssub.s32 %s16, %s28
      %s108 = ssub.s32 %s17, %s24
      %s109 = sor.u32 %s107, %s108
      %p110 = scmp.eq.s32.totalorder %s109, 0
      %s112 = sadd.s32 %s111, 1
      %s113 = scalar_select %p110, %s111, %s112
      %p116 = pneg %p110
      %p117 = scmp.eq.s32.totalorder %s9, 7
      %p118 = por %p116, %p117
      %p119 = scmp.ne.s32.totalorder %s111, %s114
      %p120 = scmp.eq.s32.totalorder %s9, 0
      %p121 = por %p119, %p120
      %p122 = scmp.ne.s32.totalorder %s111, %s114
      %p123 = scmp.eq.s32.totalorder %s14, 7
      %p124 = por %p122, %p123
      %p125 = scmp.ne.s32.totalorder %s114, %s115
      %p126 = scmp.eq.s32.totalorder %s14, 0
      %p127 = por %p125, %p126
      %p128 = scmp.ne.s32.totalorder %s114, %s115
      %p129 = scmp.eq.s32.totalorder %s15, 7
      %p130 = por %p128, %p129
      %p132 = scmp.ne.s32.totalorder %s115, %s131
      %p133 = scmp.eq.s32.totalorder %s15, 0
      %p134 = por %p132, %p133
      %p135 = scmp.le.s32.totalorder 1, %s9
      %p136 = scmp.lt.s32.totalorder %s9, 9
      %p137 = pnand %p135, %p136
      %p138 = pneg %p137
      // Predicated region
      $region9: #{generator_forward.36} parent=5 // pred_check
        _
      $region10: #{generator_forward.36} parent=5 // pred_check_branch
        %140 = sbr.rel (%p137) target = $region12
      $region11: #{generator_forward.36} parent=5 // pred_region
        %s141 = ssub.s32 %s9, 1
        // Predicated region
        $region13: #{generator_forward.36} parent=11 // pred_check
          %p142 = pneg %p47
        $region14: #{generator_forward.36} parent=11 // pred_check_branch
          %144 = sbr.rel (%p142) target = $region16
        $region15: #{generator_forward.36} parent=11 // pred_region
          %p145 = scmp.lt.s32.totalorder %s18, 0
          %s146 = scalar_select %p145, %s18, 0
          %s147 = smul.addr %s146, 2
          %s148 = smul.addr %s147, 4
          %s149 = scalar_lea.vmem %s0, %s148
        $region16: #{generator_forward.36} parent=11 // pred_fallthru
          _
        // Predicated region
        $region17: #{generator_forward.36} parent=11 // pred_check
          %p150 = pneg %p99
        $region18: #{generator_forward.36} parent=11 // pred_check_branch
          %152 = sbr.rel (%p150) target = $region20
        $region19: #{generator_forward.36} parent=11 // pred_region
          %p153 = scmp.lt.s32.totalorder %s18, 0
          %s154 = scalar_select %p153, %s18, 0
          %s155 = smul.addr %s154, 8
          %s156 = scalar_lea.vmem %s2, %s155
        $region20: #{generator_forward.36} parent=11 // pred_fallthru
          _
      $region12: #{generator_forward.36} parent=5 // pred_fallthru
        _
      %p157 = scmp.lt.s32.totalorder %s9, 8
      // Predicated region
      $region21: #{generator_forward.36} parent=5 // pred_check
        %p158 = pneg %p157
      $region22: #{generator_forward.36} parent=5 // pred_check_branch
        %160 = sbr.rel (%p158) target = $region24
      $region23: #{generator_forward.36} parent=5 // pred_region
        // Predicated region
        $region25: #{generator_forward.36} parent=23 // pred_check
          %p161 = pneg %p67
        $region26: #{generator_forward.36} parent=23 // pred_check_branch
          %163 = sbr.rel (%p161) target = $region28
        $region27: #{generator_forward.36} parent=23 // pred_region
          %s164 = sand.u32 %s57, 1
          %s165 = sand.u32 %s57, 1
          %s166 = smul.addr %s165, 144
          %s167 = scalar_lea.vmem [#allocation2], %s166
          %s168 = smul.u32 2, %s17
          %s169 = smul.addr %s168, 4
          %s170 = scalar_lea.vmem %s1, %s169
          // Predicated region
          $region29: #{generator_forward.36} parent=27 // pred_check
            _
          $region30: #{generator_forward.36} parent=27 // pred_check_branch
            %172 = sbr.rel (0) target = $region32
          $region31: #{generator_forward.36} parent=27 // pred_region
            // Predicated region
            $region33: #{generator_forward.36} parent=31 // pred_check
              _
            $region34: #{generator_forward.36} parent=31 // pred_check_branch
              %174 = sbr.rel (0) target = $region36
            $region35: #{generator_forward.36} parent=31 // pred_region
              // Predicated region
              $region48: #{generator_forward.36} parent=35 // pred_check
                _
              $region49: #{generator_forward.36} parent=35 // pred_check_branch
                %224 = sbr.rel (0) target = $region51
              $region50: #{generator_forward.36} parent=35 // pred_region
                loop: start=0, step=1, limit=1
                $region52: #{generator_forward.36} parent=50 // loop_pre_header
                  _
                $region53: #{generator_forward.36} parent=50 // loop_header
                  %s226 = sphi 0, %s230
                  %p227 = scmp.ge.s32.totalorder %s226, 1
                  %s231 = sphi %s170, %s170
                  %s232 = sphi %s167, %s167
                $region54: #{generator_forward.36} parent=50 // loop_header_branch
                  %229 = sbr.rel (%p227) target = $region58
                $region55: #{generator_forward.36} parent=50 // loop_body
                  %v233 = vld [vmem:[%s231] sm:$0xff]
                  %234 = vst [vmem:[%s232] sm:$0xff] %v233
                  %v235 = vld [vmem:[%s231 + $0x40] sm:$0xff]
                  %236 = vst [vmem:[%s232 + $0x8] sm:$0xff] %v235
                  %v237 = vld [vmem:[%s231 + $0x80] sm:$0xff]
                  %238 = vst [vmem:[%s232 + $0x10] sm:$0xff] %v237
                  %v239 = vld [vmem:[%s231 + $0xc0] sm:$0xff]
                  %240 = vst [vmem:[%s232 + $0x18] sm:$0xff] %v239
                  %v241 = vld [vmem:[%s231 + $0x100] sm:$0xff]
                  %242 = vst [vmem:[%s232 + $0x20] sm:$0xff] %v241
                  %v243 = vld [vmem:[%s231 + $0x140] sm:$0xff]
                  %244 = vst [vmem:[%s232 + $0x28] sm:$0xff] %v243
                  %v245 = vld [vmem:[%s231 + $0x180] sm:$0xff]
                  %246 = vst [vmem:[%s232 + $0x30] sm:$0xff] %v245
                  %v247 = vld [vmem:[%s231 + $0x1c0] sm:$0xff]
                  %248 = vst [vmem:[%s232 + $0x38] sm:$0xff] %v247
                  %v249 = vld [vmem:[%s231 + $0x200] sm:$0xff]
                  %250 = vst [vmem:[%s232 + $0x40] sm:$0xff] %v249
                  %v251 = vld [vmem:[%s231 + $0x240] sm:$0xff]
                  %252 = vst [vmem:[%s232 + $0x48] sm:$0xff] %v251
                  %v253 = vld [vmem:[%s231 + $0x280] sm:$0xff]
                  %254 = vst [vmem:[%s232 + $0x50] sm:$0xff] %v253
                  %v255 = vld [vmem:[%s231 + $0x2c0] sm:$0xff]
                  %256 = vst [vmem:[%s232 + $0x58] sm:$0xff] %v255
                  %v257 = vld [vmem:[%s231 + $0x300] sm:$0xff]
                  %258 = vst [vmem:[%s232 + $0x60] sm:$0xff] %v257
                  %v259 = vld [vmem:[%s231 + $0x340] sm:$0xff]
                  %260 = vst [vmem:[%s232 + $0x68] sm:$0xff] %v259
                  %v261 = vld [vmem:[%s231 + $0x380] sm:$0xff]
                  %262 = vst [vmem:[%s232 + $0x70] sm:$0xff] %v261
                  %v263 = vld [vmem:[%s231 + $0x3c0] sm:$0xff]
                  %264 = vst [vmem:[%s232 + $0x78] sm:$0xff] %v263
                  %v265 = vld [vmem:[%s231 + $0x400] sm:$0xff]
                  %266 = vst [vmem:[%s232 + $0x80] sm:$0xff] %v265
                  %v267 = vld [vmem:[%s231 + $0x440] sm:$0xff]
                  %268 = vst [vmem:[%s232 + $0x88] sm:$0xff] %v267
                $region56: #{generator_forward.36} parent=50 // loop_footer
                  %s230 = sadd.s32 1, %s226
                $region57: #{generator_forward.36} parent=50 // loop_footer_branch
                  %225 = sbr.rel target = $region53
                $region58: #{generator_forward.36} parent=50 // loop_exit
                  _
              $region51: #{generator_forward.36} parent=35 // pred_fallthru
                _
              // Predicated region
              $region59: #{generator_forward.36} parent=35 // pred_check
                _
              $region60: #{generator_forward.36} parent=35 // pred_check_branch
                %270 = sbr.rel target = $region62
              $region61: #{generator_forward.36} parent=35 // pred_region
                _
              $region62: #{generator_forward.36} parent=35 // pred_fallthru
                _
            $region36: #{generator_forward.36} parent=31 // pred_fallthru
              _
            // Predicated region
            $region37: #{generator_forward.36} parent=31 // pred_check
              _
            $region38: #{generator_forward.36} parent=31 // pred_check_branch
              %176 = sbr.rel target = $region40
            $region39: #{generator_forward.36} parent=31 // pred_region
              %s178 = ssub.s32 256, 1
              loop: start=0, step=1, limit=1
              $region41: #{generator_forward.36} parent=39 // loop_pre_header
                _
              $region42: #{generator_forward.36} parent=39 // loop_header
                %s180 = sphi 0, %s184
                %p181 = scmp.ge.s32.totalorder %s180, 1
                %s185 = sphi %s170, %s170
                %s186 = sphi %s167, %s167
              $region43: #{generator_forward.36} parent=39 // loop_header_branch
                %183 = sbr.rel (%p181) target = $region47
              $region44: #{generator_forward.36} parent=39 // loop_body
                %v187 = vld [vmem:[%s185] sm:%s178]
                %188 = vst [vmem:[%s186] sm:%s178] %v187
                %v189 = vld [vmem:[%s185 + $0x40] sm:%s178]
                %190 = vst [vmem:[%s186 + $0x8] sm:%s178] %v189
                %v191 = vld [vmem:[%s185 + $0x80] sm:%s178]
                %192 = vst [vmem:[%s186 + $0x10] sm:%s178] %v191
                %v193 = vld [vmem:[%s185 + $0xc0] sm:%s178]
                %194 = vst [vmem:[%s186 + $0x18] sm:%s178] %v193
                %v195 = vld [vmem:[%s185 + $0x100] sm:%s178]
                %196 = vst [vmem:[%s186 + $0x20] sm:%s178] %v195
                %v197 = vld [vmem:[%s185 + $0x140] sm:%s178]
                %198 = vst [vmem:[%s186 + $0x28] sm:%s178] %v197
                %v199 = vld [vmem:[%s185 + $0x180] sm:%s178]
                %200 = vst [vmem:[%s186 + $0x30] sm:%s178] %v199
                %v201 = vld [vmem:[%s185 + $0x1c0] sm:%s178]
                %202 = vst [vmem:[%s186 + $0x38] sm:%s178] %v201
                %v203 = vld [vmem:[%s185 + $0x200] sm:%s178]
                %204 = vst [vmem:[%s186 + $0x40] sm:%s178] %v203
                %v205 = vld [vmem:[%s185 + $0x240] sm:%s178]
                %206 = vst [vmem:[%s186 + $0x48] sm:%s178] %v205
                %v207 = vld [vmem:[%s185 + $0x280] sm:%s178]
                %208 = vst [vmem:[%s186 + $0x50] sm:%s178] %v207
                %v209 = vld [vmem:[%s185 + $0x2c0] sm:%s178]
                %210 = vst [vmem:[%s186 + $0x58] sm:%s178] %v209
                %v211 = vld [vmem:[%s185 + $0x300] sm:%s178]
                %212 = vst [vmem:[%s186 + $0x60] sm:%s178] %v211
                %v213 = vld [vmem:[%s185 + $0x340] sm:%s178]
                %214 = vst [vmem:[%s186 + $0x68] sm:%s178] %v213
                %v215 = vld [vmem:[%s185 + $0x380] sm:%s178]
                %216 = vst [vmem:[%s186 + $0x70] sm:%s178] %v215
                %v217 = vld [vmem:[%s185 + $0x3c0] sm:%s178]
                %218 = vst [vmem:[%s186 + $0x78] sm:%s178] %v217
                %v219 = vld [vmem:[%s185 + $0x400] sm:%s178]
                %220 = vst [vmem:[%s186 + $0x80] sm:%s178] %v219
                %v221 = vld [vmem:[%s185 + $0x440] sm:%s178]
                %222 = vst [vmem:[%s186 + $0x88] sm:%s178] %v221
              $region45: #{generator_forward.36} parent=39 // loop_footer
                %s184 = sadd.s32 1, %s180
              $region46: #{generator_forward.36} parent=39 // loop_footer_branch
                %179 = sbr.rel target = $region42
              $region47: #{generator_forward.36} parent=39 // loop_exit
                _
            $region40: #{generator_forward.36} parent=31 // pred_fallthru
              _
          $region32: #{generator_forward.36} parent=27 // pred_fallthru
            _
          %271 = vnop
        $region28: #{generator_forward.36} parent=23 // pred_fallthru
          _
      $region24: #{generator_forward.36} parent=5 // pred_fallthru
        _
      %p272 = scmp.le.s32.totalorder 1, %s9
      %p273 = scmp.lt.s32.totalorder %s9, 9
      %p274 = pnand %p272, %p273
      %p275 = pneg %p274
      // Predicated region
      $region63: #{generator_forward.36} parent=5 // pred_check
        _
      $region64: #{generator_forward.36} parent=5 // pred_check_branch
        %277 = sbr.rel (%p274) target = $region66
      $region65: #{generator_forward.36} parent=5 // pred_region
        %s278 = ssub.s32 %s9, 1
        %s279 = sand.u32 %s60, 1
        %s280 = sand.u32 %s60, 1
        %s281 = smul.addr %s280, 144
        %s282 = scalar_lea.vmem [#allocation2], %s281
        // Predicated region
        $region67: #{generator_forward.36} parent=65 // pred_check
          %p283 = pneg %p73
        $region68: #{generator_forward.36} parent=65 // pred_check_branch
          %285 = sbr.rel (%p283) target = $region70
        $region69: #{generator_forward.36} parent=65 // pred_region
          _
        $region70: #{generator_forward.36} parent=65 // pred_fallthru
          _
        %p286 = scmp.lt.s32.totalorder %s18, 0
        %s287 = scalar_select %p286, %s18, 0
        %s288 = smul.addr %s287, 2
        %s289 = smul.addr %s288, 4
        %s290 = scalar_lea.vmem %s0, %s289
        %p291 = pneg %p47
        %p292 = pneg %p44
        %s293 = sand.u32 %s60, 1
        %s294 = sand.u32 %s60, 1
        %s295 = smul.addr %s294, 144
        %s296 = scalar_lea.vmem [#allocation2], %s295
        %p297 = pneg %p73
        %p298 = pneg %p70
        %p299 = scmp.lt.s32.totalorder %s18, 0
        %s300 = scalar_select %p299, %s18, 0
        %s301 = smul.addr %s300, 8
        %s302 = scalar_lea.vmem %s2, %s301
        %p303 = pneg %p99
        %p304 = pneg %p96
        %p305 = pneg %p127
        %p306 = pneg %p124
        %s307 = smul.u32 2, %s19
        %p308 = scmp.lt.s32.totalorder %s18, 0
        %s309 = scalar_select %p308, %s18, 0
        %p310 = scmp.lt.s32.totalorder %s307, 15
        %s311 = scalar_select %p310, %s307, 15
        %s312 = smul.addr %s309, 16
        %s313 = sadd.s32 %s311, %s312
        %s314 = smul.addr %s313, 4
        %s315 = scalar_lea.vmem %s3, %s314
        %p316 = scmp.lt.s32.totalorder %s18, 0
        %s317 = scalar_select %p316, %s18, 0
        %s318 = smul.addr %s317, 2
        %s319 = smul.addr %s318, 4
        %s320 = scalar_lea.vmem %s0, %s319
        %s321 = smul.u32 2, %s19
        %p322 = scmp.lt.s32.totalorder %s18, 0
        %s323 = scalar_select %p322, %s18, 0
        %s324 = smul.addr %s323, 8
        %s325 = scalar_lea.vmem %s2, %s324
        %s326 = smul.u32 2, %s19
        %p327 = scmp.lt.s32.totalorder %s18, 0
        %s328 = scalar_select %p327, %s18, 0
        %p329 = scmp.lt.s32.totalorder %s326, 15
        %s330 = scalar_select %p329, %s326, 15
        %s331 = smul.addr %s328, 16
        %s332 = sadd.s32 %s330, %s331
        %s333 = smul.addr %s332, 4
        %s334 = scalar_lea.vmem %s3, %s333
        %s335 = smul.u32 2, %s19
        %v337 = vld [vmem:[%s320] sm:$0xff]
        %v338 = vld [vmem:[%s282] sm:$0xff]
        %v339 = vld [vmem:[%s282 + $0x8] sm:$0xff]
        %v340 = vld [vmem:[%s282 + $0x10] sm:$0xff]
        %v341 = vld [vmem:[%s282 + $0x18] sm:$0xff]
        %v342 = vld [vmem:[%s282 + $0x20] sm:$0xff]
        %v343 = vld [vmem:[%s282 + $0x28] sm:$0xff]
        %v344 = vld [vmem:[%s282 + $0x30] sm:$0xff]
        %v345 = vld [vmem:[%s282 + $0x38] sm:$0xff]
        %v346 = vld [vmem:[%s282 + $0x40] sm:$0xff]
        %v347 = vld [vmem:[%s282 + $0x48] sm:$0xff]
        %v348 = vld [vmem:[%s282 + $0x50] sm:$0xff]
        %v349 = vld [vmem:[%s282 + $0x58] sm:$0xff]
        %v350 = vld [vmem:[%s282 + $0x60] sm:$0xff]
        %v351 = vld [vmem:[%s282 + $0x68] sm:$0xff]
        %v352 = vld [vmem:[%s282 + $0x70] sm:$0xff]
        %v353 = vld [vmem:[%s282 + $0x78] sm:$0xff]
        %v354 = vld [vmem:[%s282 + $0x80] sm:$0xff]
        %v355 = vld [vmem:[%s282 + $0x88] sm:$0xff]
        %v356 = vld [vmem:[%s325] sm:$0xff]
        %358 = vset.pattern.permute.xlu0 0
        %359 = vperm.xlu0 %358, %v356
        %v360 = vpop.permute.xlu0 %359
        %v363 = vunpack.c.l.b16 %v337
        %v364 = vunpack.c.h.b16 %v337
        %v365 = vpack.c.b16 %v363, %v363
        %v366 = vpack.c.b16 %v364, %v364
        %v386 = vunpack.c.l.b16 %v338
        %v387 = vunpack.c.h.b16 %v338
        %v388 = vunpack.c.l.b16 %v339
        %v389 = vunpack.c.h.b16 %v339
        %v390 = vunpack.c.l.b16 %v340
        %v391 = vunpack.c.h.b16 %v340
        %v392 = vunpack.c.l.b16 %v341
        %v393 = vunpack.c.h.b16 %v341
        %v394 = vunpack.c.l.b16 %v342
        %v395 = vunpack.c.h.b16 %v342
        %v396 = vunpack.c.l.b16 %v343
        %v397 = vunpack.c.h.b16 %v343
        %v398 = vunpack.c.l.b16 %v344
        %v399 = vunpack.c.h.b16 %v344
        %v400 = vunpack.c.l.b16 %v345
        %v401 = vunpack.c.h.b16 %v345
        %v402 = vunpack.c.l.b16 %v346
        %v403 = vunpack.c.h.b16 %v346
        %v404 = vunpack.c.l.b16 %v347
        %v405 = vunpack.c.h.b16 %v347
        %v406 = vunpack.c.l.b16 %v348
        %v407 = vunpack.c.h.b16 %v348
        %v408 = vunpack.c.l.b16 %v349
        %v409 = vunpack.c.h.b16 %v349
        %v410 = vunpack.c.l.b16 %v350
        %v411 = vunpack.c.h.b16 %v350
        %v412 = vunpack.c.l.b16 %v351
        %v413 = vunpack.c.h.b16 %v351
        %v414 = vunpack.c.l.b16 %v352
        %v415 = vunpack.c.h.b16 %v352
        %v416 = vunpack.c.l.b16 %v353
        %v417 = vunpack.c.h.b16 %v353
        %v418 = vunpack.c.l.b16 %v354
        %v419 = vunpack.c.h.b16 %v354
        %v420 = vunpack.c.l.b16 %v355
        %v421 = vunpack.c.h.b16 %v355
        %v422 = vpack.c.b16 %v388, %v386
        %v423 = vpack.c.b16 %v389, %v387
        %v424 = vpack.c.b16 %v392, %v390
        %v425 = vpack.c.b16 %v393, %v391
        %v426 = vpack.c.b16 %v396, %v394
        %v427 = vpack.c.b16 %v397, %v395
        %v428 = vpack.c.b16 %v400, %v398
        %v429 = vpack.c.b16 %v401, %v399
        %v430 = vpack.c.b16 %v404, %v402
        %v431 = vpack.c.b16 %v405, %v403
        %v432 = vpack.c.b16 %v408, %v406
        %v433 = vpack.c.b16 %v409, %v407
        %v434 = vpack.c.b16 %v412, %v410
        %v435 = vpack.c.b16 %v413, %v411
        %v436 = vpack.c.b16 %v416, %v414
        %v437 = vpack.c.b16 %v417, %v415
        %v438 = vpack.c.b16 %v420, %v418
        %v439 = vpack.c.b16 %v421, %v419
        %vm458 = vcmask 130048
        %v460 = vsel %vm458, %v366, 0
        %462 = vmatprep.subr.bf16.mxu0 %v437
        %463 = vmatpush1.bf16.msra.mxu0 %v436
        %464 = vmatprep.subr.bf16.mxu0 %v435
        %465 = vmatpush1.bf16.msra.mxu0 %v434
        %466 = vmatprep.subr.bf16.mxu0 %v433
        %467 = vmatpush1.bf16.msra.mxu0 %v432
        %468 = vmatprep.subr.bf16.mxu0 %v431
        %469 = vmatpush1.bf16.msra.mxu0 %v430
        %470 = vmatprep.subr.bf16.mxu0 %v429
        %471 = vmatpush1.bf16.msra.mxu0 %v428
        %472 = vmatprep.subr.bf16.mxu0 %v427
        %473 = vmatpush1.bf16.msra.mxu0 %v426
        %474 = vmatprep.subr.bf16.mxu0 %v425
        %475 = vmatpush1.bf16.msra.mxu0 %v424
        %476 = vmatprep.subr.bf16.mxu0 %v423
        %477 = vmatpush1.bf16.msra.mxu0 %v422
        %478 = vmatprep.subr.bf16.mxu0 0
        %479 = vmatpush2.bf16.msra.mxu0 0
        %480 = vmatprep.subr.bf16.mxu0 0
        %481 = vmatpush2.bf16.msra.mxu0 0
        %482 = vmatprep.subr.bf16.mxu0 0
        %483 = vmatpush2.bf16.msra.mxu0 0
        %484 = vmatprep.subr.bf16.mxu0 0
        %485 = vmatpush2.bf16.msra.mxu0 0
        %486 = vmatprep.subr.bf16.mxu0 0
        %487 = vmatpush2.bf16.msra.mxu0 0
        %488 = vmatprep.subr.bf16.mxu0 0
        %489 = vmatpush2.bf16.msra.mxu0 0
        %490 = vmatprep.subr.bf16.mxu0 0
        %491 = vmatpush2.bf16.msra.mxu0 0
        %492 = vmatprep.subr.bf16.mxu0 %v439
        %493 = vmatpush2.bf16.msra.mxu0 %v438
        %494 = vmatprep.mubr.bf16.mxu0 %v460
        %495 = vmatmul.mubr.bf16.gmra.mxu0 %v365
        %v496 = vpop.f32.mrf.mxu0
        %v497 = vadd.f32 %v360, %v496
        %v498 = vpop.f32.mrf.mxu0
        %v499 = vadd.f32 %v360, %v498
        %v500 = vpop.f32.mrf.mxu0
        %v501 = vpop.f32.mrf.mxu0
        %502 = vdwg.mxu0
        %vm503 = vcmp.ge.f32.partialorder %v497, 0.0
        %vm504 = vcmp.ge.f32.partialorder %v499, 0.0
        %v505 = vmul.f32 %v497, 0.2
        %v506 = vmul.f32 %v499, 0.2
        %v507 = vsel %vm503, %v497, %v505
        %v508 = vsel %vm504, %v499, %v506
        %v509 = vpack.c.bf16 %v507, %v507
        %v510 = vpack.c.bf16 %v508, %v508
        %v513 = vunpack.c.l.b16 %v509
        %v514 = vunpack.c.l.b16 %v510
        %v515 = vpack.c.b16 %v514, %v513
        %517 = vst [vmem:[%s334] sm:$0xff] %v515
        %s518 = smul.u32 2, %s19
        %p519 = scmp.lt.s32.totalorder %s18, 0
        %s520 = scalar_select %p519, %s18, 0
        %p521 = scmp.lt.s32.totalorder %s518, 15
        %s522 = scalar_select %p521, %s518, 15
        %s523 = smul.addr %s520, 16
        %s524 = sadd.s32 %s522, %s523
        %s525 = smul.addr %s524, 4
        %s526 = scalar_lea.vmem %s3, %s525
        // Predicated region
        $region71: #{generator_forward.36} parent=65 // pred_check
          %p527 = pneg %p124
        $region72: #{generator_forward.36} parent=65 // pred_check_branch
          %529 = sbr.rel (%p527) target = $region74
        $region73: #{generator_forward.36} parent=65 // pred_region
          %s530 = smul.u32 2, %s19
        $region74: #{generator_forward.36} parent=65 // pred_fallthru
          _
      $region66: #{generator_forward.36} parent=5 // pred_fallthru
        _
      %p531 = scmp.le.s32.totalorder 2, %s9
      // Predicated region
      $region75: #{generator_forward.36} parent=5 // pred_check
        %p532 = pneg %p531
      $region76: #{generator_forward.36} parent=5 // pred_check_branch
        %534 = sbr.rel (%p532) target = $region78
      $region77: #{generator_forward.36} parent=5 // pred_region
        %s535 = ssub.s32 %s9, 2
        // Predicated region
        $region79: #{generator_forward.36} parent=77 // pred_check
          %p536 = pneg %p130
        $region80: #{generator_forward.36} parent=77 // pred_check_branch
          %538 = sbr.rel (%p536) target = $region82
        $region81: #{generator_forward.36} parent=77 // pred_region
          %s539 = smul.u32 2, %s21
          %p540 = scmp.lt.s32.totalorder %s20, 0
          %s541 = scalar_select %p540, %s20, 0
          %p542 = scmp.lt.s32.totalorder %s539, 15
          %s543 = scalar_select %p542, %s539, 15
          %s544 = smul.addr %s541, 16
          %s545 = sadd.s32 %s543, %s544
          %s546 = smul.addr %s545, 4
          %s547 = scalar_lea.vmem %s3, %s546
        $region82: #{generator_forward.36} parent=77 // pred_fallthru
          _
      $region78: #{generator_forward.36} parent=5 // pred_fallthru
        _
    $region6: #{generator_forward.36} parent=1 // loop_footer
      %s13 = sadd.s32 1, %s9
    $region7: #{generator_forward.36} parent=1 // loop_footer_branch
      %8 = sbr.rel target = $region3
    $region8: #{generator_forward.36} parent=1 // loop_exit
      _

// kernel: generator_forward.48
$region0: #{generator_forward.48}
  #allocation0 [shape = 'u32[]', space=smem, size = 0x4, offset = 0x4, fixed_abs, tag = 'smem constant byte address 0x4 - core index']
  #allocation1 [shape = 'u32[144,128]{1,0:T(1,128)}', space=vmem, size = 0x12000, scoped, tag = 'internal scratch']
  %s0 = inlined_call_operand.vmem [shape: bf16[8,80], index: 0, kind: input, shape index: {}]
  %s1 = inlined_call_operand.vmem [shape: bf16[80,2048], index: 1, kind: input, shape index: {}]
  %s2 = inlined_call_operand.vmem [shape: f32[8,1], index: 2, kind: input, shape index: {}]
  %s3 = inlined_call_operand.vmem [shape: bf16[8,2048], index: 3, kind: output, shape index: {}]
  %s4 = sld [smem:[#allocation0]]
  $region83: #{generator_forward.48} parent=0
    _
  %s6 = ssub.s32 1, %s4
  %s7 = scalar_select 0, %s6, %s4
  $region1: #{generator_forward.48} parent=0
    #allocation2 [shape = 'u8[81920]{0}', space=vmem, size = 0x14000, scoped, tag = 'input window, operand 1']
    loop: start=0, step=1, limit=10
    $region2: #{generator_forward.48} parent=1 // loop_pre_header
      _
    $region3: #{generator_forward.48} parent=1 // loop_header
      %s9 = sphi 0, %s13
      %p10 = scmp.ge.s32.totalorder %s9, 10
      %s16 = sphi 0, %s28
      %s17 = sphi 0, %s24
      %s18 = sphi 0, %s16
      %s19 = sphi 0, %s17
      %s20 = sphi 0, %s18
      %s21 = sphi 0, %s19
      %s31 = sphi 0, %s33
      %s34 = sphi 0, %s31
      %s35 = sphi 0, %s34
      %s51 = sphi 0, %s35
      %s57 = sphi 0, %s59
      %s60 = sphi 0, %s57
      %s61 = sphi 0, %s60
      %s77 = sphi 0, %s61
      %s83 = sphi 0, %s85
      %s86 = sphi 0, %s83
      %s87 = sphi 0, %s86
      %s103 = sphi 0, %s87
      %s111 = sphi 0, %s113
      %s114 = sphi 0, %s111
      %s115 = sphi 0, %s114
      %s131 = sphi 0, %s115
    $region4: #{generator_forward.48} parent=1 // loop_header_branch
      %12 = sbr.rel (%p10) target = $region8
    $region5: #{generator_forward.48} parent=1 // loop_body
      %s14 = ssub.s32 %s9, 1
      %s15 = ssub.s32 %s9, 2
      %s22 = sadd.s32 1, %s17
      %p23 = scmp.ge.s32.totalorder %s22, 8
      %s24 = scalar_select %p23, 0, %s22
      %s25 = sadd.s32 1, %s16
      %s26 = scalar_select %p23, %s25, %s16
      %p27 = scmp.ge.s32.totalorder %s26, 1
      %s28 = scalar_select %p27, 0, %s26
      %s29 = ssub.s32 %s16, %s28
      %p30 = scmp.eq.s32.totalorder %s29, 0
      %s32 = sadd.s32 %s31, 1
      %s33 = scalar_select %p30, %s31, %s32
      %p36 = pneg %p30
      %p37 = scmp.eq.s32.totalorder %s9, 7
      %p38 = por %p36, %p37
      %p39 = scmp.ne.s32.totalorder %s31, %s34
      %p40 = scmp.eq.s32.totalorder %s9, 0
      %p41 = por %p39, %p40
      %p42 = scmp.ne.s32.totalorder %s31, %s34
      %p43 = scmp.eq.s32.totalorder %s14, 7
      %p44 = por %p42, %p43
      %p45 = scmp.ne.s32.totalorder %s34, %s35
      %p46 = scmp.eq.s32.totalorder %s14, 0
      %p47 = por %p45, %p46
      %p48 = scmp.ne.s32.totalorder %s34, %s35
      %p49 = scmp.eq.s32.totalorder %s15, 7
      %p50 = por %p48, %p49
      %p52 = scmp.ne.s32.totalorder %s35, %s51
      %p53 = scmp.eq.s32.totalorder %s15, 0
      %p54 = por %p52, %p53
      %s55 = ssub.s32 %s17, %s24
      %p56 = scmp.eq.s32.totalorder %s55, 0
      %s58 = sadd.s32 %s57, 1
      %s59 = scalar_select %p56, %s57, %s58
      %p62 = pneg %p56
      %p63 = scmp.eq.s32.totalorder %s9, 7
      %p64 = por %p62, %p63
      %p65 = scmp.ne.s32.totalorder %s57, %s60
      %p66 = scmp.eq.s32.totalorder %s9, 0
      %p67 = por %p65, %p66
      %p68 = scmp.ne.s32.totalorder %s57, %s60
      %p69 = scmp.eq.s32.totalorder %s14, 7
      %p70 = por %p68, %p69
      %p71 = scmp.ne.s32.totalorder %s60, %s61
      %p72 = scmp.eq.s32.totalorder %s14, 0
      %p73 = por %p71, %p72
      %p74 = scmp.ne.s32.totalorder %s60, %s61
      %p75 = scmp.eq.s32.totalorder %s15, 7
      %p76 = por %p74, %p75
      %p78 = scmp.ne.s32.totalorder %s61, %s77
      %p79 = scmp.eq.s32.totalorder %s15, 0
      %p80 = por %p78, %p79
      %s81 = ssub.s32 %s16, %s28
      %p82 = scmp.eq.s32.totalorder %s81, 0
      %s84 = sadd.s32 %s83, 1
      %s85 = scalar_select %p82, %s83, %s84
      %p88 = pneg %p82
      %p89 = scmp.eq.s32.totalorder %s9, 7
      %p90 = por %p88, %p89
      %p91 = scmp.ne.s32.totalorder %s83, %s86
      %p92 = scmp.eq.s32.totalorder %s9, 0
      %p93 = por %p91, %p92
      %p94 = scmp.ne.s32.totalorder %s83, %s86
      %p95 = scmp.eq.s32.totalorder %s14, 7
      %p96 = por %p94, %p95
      %p97 = scmp.ne.s32.totalorder %s86, %s87
      %p98 = scmp.eq.s32.totalorder %s14, 0
      %p99 = por %p97, %p98
      %p100 = scmp.ne.s32.totalorder %s86, %s87
      %p101 = scmp.eq.s32.totalorder %s15, 7
      %p102 = por %p100, %p101
      %p104 = scmp.ne.s32.totalorder %s87, %s103
      %p105 = scmp.eq.s32.totalorder %s15, 0
      %p106 = por %p104, %p105
      %s107 = ssub.s32 %s16, %s28
      %s108 = ssub.s32 %s17, %s24
      %s109 = sor.u32 %s107, %s108
      %p110 = scmp.eq.s32.totalorder %s109, 0
      %s112 = sadd.s32 %s111, 1
      %s113 = scalar_select %p110, %s111, %s112
      %p116 = pneg %p110
      %p117 = scmp.eq.s32.totalorder %s9, 7
      %p118 = por %p116, %p117
      %p119 = scmp.ne.s32.totalorder %s111, %s114
      %p120 = scmp.eq.s32.totalorder %s9, 0
      %p121 = por %p119, %p120
      %p122 = scmp.ne.s32.totalorder %s111, %s114
      %p123 = scmp.eq.s32.totalorder %s14, 7
      %p124 = por %p122, %p123
      %p125 = scmp.ne.s32.totalorder %s114, %s115
      %p126 = scmp.eq.s32.totalorder %s14, 0
      %p127 = por %p125, %p126
      %p128 = scmp.ne.s32.totalorder %s114, %s115
      %p129 = scmp.eq.s32.totalorder %s15, 7
      %p130 = por %p128, %p129
      %p132 = scmp.ne.s32.totalorder %s115, %s131
      %p133 = scmp.eq.s32.totalorder %s15, 0
      %p134 = por %p132, %p133
      %p135 = scmp.le.s32.totalorder 1, %s9
      %p136 = scmp.lt.s32.totalorder %s9, 9
      %p137 = pnand %p135, %p136
      %p138 = pneg %p137
      // Predicated region
      $region9: #{generator_forward.48} parent=5 // pred_check
        _
      $region10: #{generator_forward.48} parent=5 // pred_check_branch
        %140 = sbr.rel (%p137) target = $region12
      $region11: #{generator_forward.48} parent=5 // pred_region
        %s141 = ssub.s32 %s9, 1
        // Predicated region
        $region13: #{generator_forward.48} parent=11 // pred_check
          %p142 = pneg %p47
        $region14: #{generator_forward.48} parent=11 // pred_check_branch
          %144 = sbr.rel (%p142) target = $region16
        $region15: #{generator_forward.48} parent=11 // pred_region
          %p145 = scmp.lt.s32.totalorder %s18, 0
          %s146 = scalar_select %p145, %s18, 0
          %s147 = smul.addr %s146, 4
          %s148 = scalar_lea.vmem %s0, %s147
        $region16: #{generator_forward.48} parent=11 // pred_fallthru
          _
        // Predicated region
        $region17: #{generator_forward.48} parent=11 // pred_check
          %p149 = pneg %p99
        $region18: #{generator_forward.48} parent=11 // pred_check_branch
          %151 = sbr.rel (%p149) target = $region20
        $region19: #{generator_forward.48} parent=11 // pred_region
          %p152 = scmp.lt.s32.totalorder %s18, 0
          %s153 = scalar_select %p152, %s18, 0
          %s154 = smul.addr %s153, 8
          %s155 = scalar_lea.vmem %s2, %s154
        $region20: #{generator_forward.48} parent=11 // pred_fallthru
          _
      $region12: #{generator_forward.48} parent=5 // pred_fallthru
        _
      %p156 = scmp.lt.s32.totalorder %s9, 8
      // Predicated region
      $region21: #{generator_forward.48} parent=5 // pred_check
        %p157 = pneg %p156
      $region22: #{generator_forward.48} parent=5 // pred_check_branch
        %159 = sbr.rel (%p157) target = $region24
      $region23: #{generator_forward.48} parent=5 // pred_region
        // Predicated region
        $region25: #{generator_forward.48} parent=23 // pred_check
          %p160 = pneg %p67
        $region26: #{generator_forward.48} parent=23 // pred_check_branch
          %162 = sbr.rel (%p160) target = $region28
        $region27: #{generator_forward.48} parent=23 // pred_region
          %s163 = sand.u32 %s57, 1
          %s164 = sand.u32 %s57, 1
          %s165 = smul.addr %s164, 80
          %s166 = scalar_lea.vmem [#allocation2], %s165
          %s167 = smul.u32 2, %s17
          %s168 = smul.addr %s167, 4
          %s169 = scalar_lea.vmem %s1, %s168
          // Predicated region
          $region29: #{generator_forward.48} parent=27 // pred_check
            _
          $region30: #{generator_forward.48} parent=27 // pred_check_branch
            %171 = sbr.rel (0) target = $region32
          $region31: #{generator_forward.48} parent=27 // pred_region
            // Predicated region
            $region33: #{generator_forward.48} parent=31 // pred_check
              _
            $region34: #{generator_forward.48} parent=31 // pred_check_branch
              %173 = sbr.rel (0) target = $region36
            $region35: #{generator_forward.48} parent=31 // pred_region
              // Predicated region
              $region48: #{generator_forward.48} parent=35 // pred_check
                _
              $region49: #{generator_forward.48} parent=35 // pred_check_branch
                %207 = sbr.rel (0) target = $region51
              $region50: #{generator_forward.48} parent=35 // pred_region
                loop: start=0, step=1, limit=1
                $region52: #{generator_forward.48} parent=50 // loop_pre_header
                  _
                $region53: #{generator_forward.48} parent=50 // loop_header
                  %s209 = sphi 0, %s213
                  %p210 = scmp.ge.s32.totalorder %s209, 1
                  %s214 = sphi %s169, %s169
                  %s215 = sphi %s166, %s166
                $region54: #{generator_forward.48} parent=50 // loop_header_branch
                  %212 = sbr.rel (%p210) target = $region58
                $region55: #{generator_forward.48} parent=50 // loop_body
                  %v216 = vld [vmem:[%s214] sm:$0xff]
                  %217 = vst [vmem:[%s215] sm:$0xff] %v216
                  %v218 = vld [vmem:[%s214 + $0x40] sm:$0xff]
                  %219 = vst [vmem:[%s215 + $0x8] sm:$0xff] %v218
                  %v220 = vld [vmem:[%s214 + $0x80] sm:$0xff]
                  %221 = vst [vmem:[%s215 + $0x10] sm:$0xff] %v220
                  %v222 = vld [vmem:[%s214 + $0xc0] sm:$0xff]
                  %223 = vst [vmem:[%s215 + $0x18] sm:$0xff] %v222
                  %v224 = vld [vmem:[%s214 + $0x100] sm:$0xff]
                  %225 = vst [vmem:[%s215 + $0x20] sm:$0xff] %v224
                  %v226 = vld [vmem:[%s214 + $0x140] sm:$0xff]
                  %227 = vst [vmem:[%s215 + $0x28] sm:$0xff] %v226
                  %v228 = vld [vmem:[%s214 + $0x180] sm:$0xff]
                  %229 = vst [vmem:[%s215 + $0x30] sm:$0xff] %v228
                  %v230 = vld [vmem:[%s214 + $0x1c0] sm:$0xff]
                  %231 = vst [vmem:[%s215 + $0x38] sm:$0xff] %v230
                  %v232 = vld [vmem:[%s214 + $0x200] sm:$0xff]
                  %233 = vst [vmem:[%s215 + $0x40] sm:$0xff] %v232
                  %v234 = vld [vmem:[%s214 + $0x240] sm:$0xff]
                  %235 = vst [vmem:[%s215 + $0x48] sm:$0xff] %v234
                $region56: #{generator_forward.48} parent=50 // loop_footer
                  %s213 = sadd.s32 1, %s209
                $region57: #{generator_forward.48} parent=50 // loop_footer_branch
                  %208 = sbr.rel target = $region53
                $region58: #{generator_forward.48} parent=50 // loop_exit
                  _
              $region51: #{generator_forward.48} parent=35 // pred_fallthru
                _
              // Predicated region
              $region59: #{generator_forward.48} parent=35 // pred_check
                _
              $region60: #{generator_forward.48} parent=35 // pred_check_branch
                %237 = sbr.rel target = $region62
              $region61: #{generator_forward.48} parent=35 // pred_region
                _
              $region62: #{generator_forward.48} parent=35 // pred_fallthru
                _
            $region36: #{generator_forward.48} parent=31 // pred_fallthru
              _
            // Predicated region
            $region37: #{generator_forward.48} parent=31 // pred_check
              _
            $region38: #{generator_forward.48} parent=31 // pred_check_branch
              %175 = sbr.rel target = $region40
            $region39: #{generator_forward.48} parent=31 // pred_region
              %s177 = ssub.s32 256, 1
              loop: start=0, step=1, limit=1
              $region41: #{generator_forward.48} parent=39 // loop_pre_header
                _
              $region42: #{generator_forward.48} parent=39 // loop_header
                %s179 = sphi 0, %s183
                %p180 = scmp.ge.s32.totalorder %s179, 1
                %s184 = sphi %s169, %s169
                %s185 = sphi %s166, %s166
              $region43: #{generator_forward.48} parent=39 // loop_header_branch
                %182 = sbr.rel (%p180) target = $region47
              $region44: #{generator_forward.48} parent=39 // loop_body
                %v186 = vld [vmem:[%s184] sm:%s177]
                %187 = vst [vmem:[%s185] sm:%s177] %v186
                %v188 = vld [vmem:[%s184 + $0x40] sm:%s177]
                %189 = vst [vmem:[%s185 + $0x8] sm:%s177] %v188
                %v190 = vld [vmem:[%s184 + $0x80] sm:%s177]
                %191 = vst [vmem:[%s185 + $0x10] sm:%s177] %v190
                %v192 = vld [vmem:[%s184 + $0xc0] sm:%s177]
                %193 = vst [vmem:[%s185 + $0x18] sm:%s177] %v192
                %v194 = vld [vmem:[%s184 + $0x100] sm:%s177]
                %195 = vst [vmem:[%s185 + $0x20] sm:%s177] %v194
                %v196 = vld [vmem:[%s184 + $0x140] sm:%s177]
                %197 = vst [vmem:[%s185 + $0x28] sm:%s177] %v196
                %v198 = vld [vmem:[%s184 + $0x180] sm:%s177]
                %199 = vst [vmem:[%s185 + $0x30] sm:%s177] %v198
                %v200 = vld [vmem:[%s184 + $0x1c0] sm:%s177]
                %201 = vst [vmem:[%s185 + $0x38] sm:%s177] %v200
                %v202 = vld [vmem:[%s184 + $0x200] sm:%s177]
                %203 = vst [vmem:[%s185 + $0x40] sm:%s177] %v202
                %v204 = vld [vmem:[%s184 + $0x240] sm:%s177]
                %205 = vst [vmem:[%s185 + $0x48] sm:%s177] %v204
              $region45: #{generator_forward.48} parent=39 // loop_footer
                %s183 = sadd.s32 1, %s179
              $region46: #{generator_forward.48} parent=39 // loop_footer_branch
                %178 = sbr.rel target = $region42
              $region47: #{generator_forward.48} parent=39 // loop_exit
                _
            $region40: #{generator_forward.48} parent=31 // pred_fallthru
              _
          $region32: #{generator_forward.48} parent=27 // pred_fallthru
            _
          %238 = vnop
        $region28: #{generator_forward.48} parent=23 // pred_fallthru
          _
      $region24: #{generator_forward.48} parent=5 // pred_fallthru
        _
      %p239 = scmp.le.s32.totalorder 1, %s9
      %p240 = scmp.lt.s32.totalorder %s9, 9
      %p241 = pnand %p239, %p240
      %p242 = pneg %p241
      // Predicated region
      $region63: #{generator_forward.48} parent=5 // pred_check
        _
      $region64: #{generator_forward.48} parent=5 // pred_check_branch
        %244 = sbr.rel (%p241) target = $region66
      $region65: #{generator_forward.48} parent=5 // pred_region
        %s245 = ssub.s32 %s9, 1
        %s246 = sand.u32 %s60, 1
        %s247 = sand.u32 %s60, 1
        %s248 = smul.addr %s247, 80
        %s249 = scalar_lea.vmem [#allocation2], %s248
        // Predicated region
        $region67: #{generator_forward.48} parent=65 // pred_check
          %p250 = pneg %p73
        $region68: #{generator_forward.48} parent=65 // pred_check_branch
          %252 = sbr.rel (%p250) target = $region70
        $region69: #{generator_forward.48} parent=65 // pred_region
          _
        $region70: #{generator_forward.48} parent=65 // pred_fallthru
          _
        %p253 = scmp.lt.s32.totalorder %s18, 0
        %s254 = scalar_select %p253, %s18, 0
        %s255 = smul.addr %s254, 4
        %s256 = scalar_lea.vmem %s0, %s255
        %p257 = pneg %p47
        %p258 = pneg %p44
        %s259 = sand.u32 %s60, 1
        %s260 = sand.u32 %s60, 1
        %s261 = smul.addr %s260, 80
        %s262 = scalar_lea.vmem [#allocation2], %s261
        %p263 = pneg %p73
        %p264 = pneg %p70
        %p265 = scmp.lt.s32.totalorder %s18, 0
        %s266 = scalar_select %p265, %s18, 0
        %s267 = smul.addr %s266, 8
        %s268 = scalar_lea.vmem %s2, %s267
        %p269 = pneg %p99
        %p270 = pneg %p96
        %p271 = pneg %p127
        %p272 = pneg %p124
        %s273 = smul.u32 2, %s19
        %p274 = scmp.lt.s32.totalorder %s18, 0
        %s275 = scalar_select %p274, %s18, 0
        %p276 = scmp.lt.s32.totalorder %s273, 15
        %s277 = scalar_select %p276, %s273, 15
        %s278 = smul.addr %s275, 16
        %s279 = sadd.s32 %s277, %s278
        %s280 = smul.addr %s279, 4
        %s281 = scalar_lea.vmem %s3, %s280
        %p282 = scmp.lt.s32.totalorder %s18, 0
        %s283 = scalar_select %p282, %s18, 0
        %s284 = smul.addr %s283, 4
        %s285 = scalar_lea.vmem %s0, %s284
        %s286 = smul.u32 2, %s19
        %p287 = scmp.lt.s32.totalorder %s18, 0
        %s288 = scalar_select %p287, %s18, 0
        %s289 = smul.addr %s288, 8
        %s290 = scalar_lea.vmem %s2, %s289
        %s291 = smul.u32 2, %s19
        %p292 = scmp.lt.s32.totalorder %s18, 0
        %s293 = scalar_select %p292, %s18, 0
        %p294 = scmp.lt.s32.totalorder %s291, 15
        %s295 = scalar_select %p294, %s291, 15
        %s296 = smul.addr %s293, 16
        %s297 = sadd.s32 %s295, %s296
        %s298 = smul.addr %s297, 4
        %s299 = scalar_lea.vmem %s3, %s298
        %s300 = smul.u32 2, %s19
        %v302 = vld [vmem:[%s285] sm:$0xf]
        %v303 = vld [vmem:[%s249] sm:$0xff]
        %v304 = vld [vmem:[%s249 + $0x8] sm:$0xff]
        %v305 = vld [vmem:[%s249 + $0x10] sm:$0xff]
        %v306 = vld [vmem:[%s249 + $0x18] sm:$0xff]
        %v307 = vld [vmem:[%s249 + $0x20] sm:$0xff]
        %v308 = vld [vmem:[%s249 + $0x28] sm:$0xff]
        %v309 = vld [vmem:[%s249 + $0x30] sm:$0xff]
        %v310 = vld [vmem:[%s249 + $0x38] sm:$0xff]
        %v311 = vld [vmem:[%s249 + $0x40] sm:$0xff]
        %v312 = vld [vmem:[%s249 + $0x48] sm:$0xff]
        %v313 = vld [vmem:[%s290] sm:$0xff]
        %315 = vset.pattern.permute.xlu0 0
        %316 = vperm.xlu0 %315, %v313
        %v317 = vpop.permute.xlu0 %316
        %v329 = vunpack.c.l.b16 %v303
        %v330 = vunpack.c.h.b16 %v303
        %v331 = vunpack.c.l.b16 %v304
        %v332 = vunpack.c.h.b16 %v304
        %v333 = vunpack.c.l.b16 %v305
        %v334 = vunpack.c.h.b16 %v305
        %v335 = vunpack.c.l.b16 %v306
        %v336 = vunpack.c.h.b16 %v306
        %v337 = vunpack.c.l.b16 %v307
        %v338 = vunpack.c.h.b16 %v307
        %v339 = vunpack.c.l.b16 %v308
        %v340 = vunpack.c.h.b16 %v308
        %v341 = vunpack.c.l.b16 %v309
        %v342 = vunpack.c.h.b16 %v309
        %v343 = vunpack.c.l.b16 %v310
        %v344 = vunpack.c.h.b16 %v310
        %v345 = vunpack.c.l.b16 %v311
        %v346 = vunpack.c.h.b16 %v311
        %v347 = vunpack.c.l.b16 %v312
        %v348 = vunpack.c.h.b16 %v312
        %v349 = vpack.c.b16 %v331, %v329
        %v350 = vpack.c.b16 %v332, %v330
        %v351 = vpack.c.b16 %v335, %v333
        %v352 = vpack.c.b16 %v336, %v334
        %v353 = vpack.c.b16 %v339, %v337
        %v354 = vpack.c.b16 %v340, %v338
        %v355 = vpack.c.b16 %v343, %v341
        %v356 = vpack.c.b16 %v344, %v342
        %v357 = vpack.c.b16 %v347, %v345
        %v358 = vpack.c.b16 %v348, %v346
        %vm369 = vcmask 654336
        %v371 = vsel %vm369, %v302, 0
        %373 = vmatprep.subr.bf16.mxu0 0
        %374 = vmatpush1.bf16.msra.mxu0 0
        %375 = vmatprep.subr.bf16.mxu0 0
        %376 = vmatpush1.bf16.msra.mxu0 0
        %377 = vmatprep.subr.bf16.mxu0 0
        %378 = vmatpush1.bf16.msra.mxu0 0
        %379 = vmatprep.subr.bf16.mxu0 %v358
        %380 = vmatpush1.bf16.msra.mxu0 %v357
        %381 = vmatprep.subr.bf16.mxu0 %v356
        %382 = vmatpush1.bf16.msra.mxu0 %v355
        %383 = vmatprep.subr.bf16.mxu0 %v354
        %384 = vmatpush1.bf16.msra.mxu0 %v353
        %385 = vmatprep.subr.bf16.mxu0 %v352
        %386 = vmatpush1.bf16.msra.mxu0 %v351
        %387 = vmatprep.subr.bf16.mxu0 %v350
        %388 = vmatpush1.bf16.msra.mxu0 %v349
        %389 = vmatprep.subr.bf16.mxu0 0
        %390 = vmatpush2.bf16.msra.mxu0 0
        %391 = vmatprep.subr.bf16.mxu0 0
        %392 = vmatpush2.bf16.msra.mxu0 0
        %393 = vmatprep.subr.bf16.mxu0 0
        %394 = vmatpush2.bf16.msra.mxu0 0
        %395 = vmatprep.subr.bf16.mxu0 0
        %396 = vmatpush2.bf16.msra.mxu0 0
        %397 = vmatprep.subr.bf16.mxu0 0
        %398 = vmatpush2.bf16.msra.mxu0 0
        %399 = vmatprep.subr.bf16.mxu0 0
        %400 = vmatpush2.bf16.msra.mxu0 0
        %401 = vmatprep.subr.bf16.mxu0 0
        %402 = vmatpush2.bf16.msra.mxu0 0
        %403 = vmatprep.subr.bf16.mxu0 0
        %404 = vmatpush2.bf16.msra.mxu0 0
        %405 = vmatprep.mubr.bf16.mxu0 0
        %406 = vmatmul.mubr.bf16.gmra.mxu0 %v371
        %v407 = vpop.f32.mrf.mxu0
        %v408 = vadd.f32 %v317, %v407
        %v409 = vpop.f32.mrf.mxu0
        %v410 = vadd.f32 %v317, %v409
        %v411 = vpop.f32.mrf.mxu0
        %v412 = vpop.f32.mrf.mxu0
        %413 = vdwg.mxu0
        %v414 = vpack.c.bf16 %v408, %v408
        %v415 = vpack.c.bf16 %v410, %v410
        %v418 = vunpack.c.l.b16 %v414
        %v419 = vunpack.c.l.b16 %v415
        %v420 = vpack.c.b16 %v419, %v418
        %422 = vst [vmem:[%s299] sm:$0xff] %v420
        %s423 = smul.u32 2, %s19
        %p424 = scmp.lt.s32.totalorder %s18, 0
        %s425 = scalar_select %p424, %s18, 0
        %p426 = scmp.lt.s32.totalorder %s423, 15
        %s427 = scalar_select %p426, %s423, 15
        %s428 = smul.addr %s425, 16
        %s429 = sadd.s32 %s427, %s428
        %s430 = smul.addr %s429, 4
        %s431 = scalar_lea.vmem %s3, %s430
        // Predicated region
        $region71: #{generator_forward.48} parent=65 // pred_check
          %p432 = pneg %p124
        $region72: #{generator_forward.48} parent=65 // pred_check_branch
          %434 = sbr.rel (%p432) target = $region74
        $region73: #{generator_forward.48} parent=65 // pred_region
          %s435 = smul.u32 2, %s19
        $region74: #{generator_forward.48} parent=65 // pred_fallthru
          _
      $region66: #{generator_forward.48} parent=5 // pred_fallthru
        _
      %p436 = scmp.le.s32.totalorder 2, %s9
      // Predicated region
      $region75: #{generator_forward.48} parent=5 // pred_check
        %p437 = pneg %p436
      $region76: #{generator_forward.48} parent=5 // pred_check_branch
        %439 = sbr.rel (%p437) target = $region78
      $region77: #{generator_forward.48} parent=5 // pred_region
        %s440 = ssub.s32 %s9, 2
        // Predicated region
        $region79: #{generator_forward.48} parent=77 // pred_check
          %p441 = pneg %p130
        $region80: #{generator_forward.48} parent=77 // pred_check_branch
          %443 = sbr.rel (%p441) target = $region82
        $region81: #{generator_forward.48} parent=77 // pred_region
          %s444 = smul.u32 2, %s21
          %p445 = scmp.lt.s32.totalorder %s20, 0
          %s446 = scalar_select %p445, %s20, 0
          %p447 = scmp.lt.s32.totalorder %s444, 15
          %s448 = scalar_select %p447, %s444, 15
          %s449 = smul.addr %s446, 16
          %s450 = sadd.s32 %s448, %s449
          %s451 = smul.addr %s450, 4
          %s452 = scalar_lea.vmem %s3, %s451
        $region82: #{generator_forward.48} parent=77 // pred_fallthru
          _
      $region78: #{generator_forward.48} parent=5 // pred_fallthru
        _
    $region6: #{generator_forward.48} parent=1 // loop_footer
      %s13 = sadd.s32 1, %s9
    $region7: #{generator_forward.48} parent=1 // loop_footer_branch
      %8 = sbr.rel target = $region3
    $region8: #{generator_forward.48} parent=1 // loop_exit
      _

// kernel: generator_forward.49
$region0: #{generator_forward.49}
  #allocation0 [shape = 'u32[]', space=smem, size = 0x4, offset = 0x4, fixed_abs, tag = 'smem constant byte address 0x4 - core index']
  #allocation1 [shape = 'u32[144,128]{1,0:T(1,128)}', space=vmem, size = 0x12000, scoped, tag = 'internal scratch']
  %s0 = inlined_call_operand.vmem [shape: bf16[8,400], index: 0, kind: input, shape index: {}]
  %s1 = inlined_call_operand.vmem [shape: bf16[400,2048], index: 1, kind: input, shape index: {}]
  %s2 = inlined_call_operand.vmem [shape: f32[8,1], index: 2, kind: input, shape index: {}]
  %s3 = inlined_call_operand.vmem [shape: f32[8,2048], index: 3, kind: output, shape index: {}]
  %s4 = sld [smem:[#allocation0]]
  $region83: #{generator_forward.49} parent=0
    _
  %s6 = ssub.s32 1, %s4
  %s7 = scalar_select 0, %s6, %s4
  $region1: #{generator_forward.49} parent=0
    #allocation2 [shape = 'u8[409600]{0}', space=vmem, size = 0x64000, scoped, tag = 'input window, operand 1']
    loop: start=0, step=1, limit=10
    $region2: #{generator_forward.49} parent=1 // loop_pre_header
      _
    $region3: #{generator_forward.49} parent=1 // loop_header
      %s9 = sphi 0, %s13
      %p10 = scmp.ge.s32.totalorder %s9, 10
      %s16 = sphi 0, %s28
      %s17 = sphi 0, %s24
      %s18 = sphi 0, %s16
      %s19 = sphi 0, %s17
      %s20 = sphi 0, %s18
      %s21 = sphi 0, %s19
      %s31 = sphi 0, %s33
      %s34 = sphi 0, %s31
      %s35 = sphi 0, %s34
      %s51 = sphi 0, %s35
      %s57 = sphi 0, %s59
      %s60 = sphi 0, %s57
      %s61 = sphi 0, %s60
      %s77 = sphi 0, %s61
      %s83 = sphi 0, %s85
      %s86 = sphi 0, %s83
      %s87 = sphi 0, %s86
      %s103 = sphi 0, %s87
      %s111 = sphi 0, %s113
      %s114 = sphi 0, %s111
      %s115 = sphi 0, %s114
      %s131 = sphi 0, %s115
    $region4: #{generator_forward.49} parent=1 // loop_header_branch
      %12 = sbr.rel (%p10) target = $region8
    $region5: #{generator_forward.49} parent=1 // loop_body
      %s14 = ssub.s32 %s9, 1
      %s15 = ssub.s32 %s9, 2
      %s22 = sadd.s32 1, %s17
      %p23 = scmp.ge.s32.totalorder %s22, 8
      %s24 = scalar_select %p23, 0, %s22
      %s25 = sadd.s32 1, %s16
      %s26 = scalar_select %p23, %s25, %s16
      %p27 = scmp.ge.s32.totalorder %s26, 1
      %s28 = scalar_select %p27, 0, %s26
      %s29 = ssub.s32 %s16, %s28
      %p30 = scmp.eq.s32.totalorder %s29, 0
      %s32 = sadd.s32 %s31, 1
      %s33 = scalar_select %p30, %s31, %s32
      %p36 = pneg %p30
      %p37 = scmp.eq.s32.totalorder %s9, 7
      %p38 = por %p36, %p37
      %p39 = scmp.ne.s32.totalorder %s31, %s34
      %p40 = scmp.eq.s32.totalorder %s9, 0
      %p41 = por %p39, %p40
      %p42 = scmp.ne.s32.totalorder %s31, %s34
      %p43 = scmp.eq.s32.totalorder %s14, 7
      %p44 = por %p42, %p43
      %p45 = scmp.ne.s32.totalorder %s34, %s35
      %p46 = scmp.eq.s32.totalorder %s14, 0
      %p47 = por %p45, %p46
      %p48 = scmp.ne.s32.totalorder %s34, %s35
      %p49 = scmp.eq.s32.totalorder %s15, 7
      %p50 = por %p48, %p49
      %p52 = scmp.ne.s32.totalorder %s35, %s51
      %p53 = scmp.eq.s32.totalorder %s15, 0
      %p54 = por %p52, %p53
      %s55 = ssub.s32 %s17, %s24
      %p56 = scmp.eq.s32.totalorder %s55, 0
      %s58 = sadd.s32 %s57, 1
      %s59 = scalar_select %p56, %s57, %s58
      %p62 = pneg %p56
      %p63 = scmp.eq.s32.totalorder %s9, 7
      %p64 = por %p62, %p63
      %p65 = scmp.ne.s32.totalorder %s57, %s60
      %p66 = scmp.eq.s32.totalorder %s9, 0
      %p67 = por %p65, %p66
      %p68 = scmp.ne.s32.totalorder %s57, %s60
      %p69 = scmp.eq.s32.totalorder %s14, 7
      %p70 = por %p68, %p69
      %p71 = scmp.ne.s32.totalorder %s60, %s61
      %p72 = scmp.eq.s32.totalorder %s14, 0
      %p73 = por %p71, %p72
      %p74 = scmp.ne.s32.totalorder %s60, %s61
      %p75 = scmp.eq.s32.totalorder %s15, 7
      %p76 = por %p74, %p75
      %p78 = scmp.ne.s32.totalorder %s61, %s77
      %p79 = scmp.eq.s32.totalorder %s15, 0
      %p80 = por %p78, %p79
      %s81 = ssub.s32 %s16, %s28
      %p82 = scmp.eq.s32.totalorder %s81, 0
      %s84 = sadd.s32 %s83, 1
      %s85 = scalar_select %p82, %s83, %s84
      %p88 = pneg %p82
      %p89 = scmp.eq.s32.totalorder %s9, 7
      %p90 = por %p88, %p89
      %p91 = scmp.ne.s32.totalorder %s83, %s86
      %p92 = scmp.eq.s32.totalorder %s9, 0
      %p93 = por %p91, %p92
      %p94 = scmp.ne.s32.totalorder %s83, %s86
      %p95 = scmp.eq.s32.totalorder %s14, 7
      %p96 = por %p94, %p95
      %p97 = scmp.ne.s32.totalorder %s86, %s87
      %p98 = scmp.eq.s32.totalorder %s14, 0
      %p99 = por %p97, %p98
      %p100 = scmp.ne.s32.totalorder %s86, %s87
      %p101 = scmp.eq.s32.totalorder %s15, 7
      %p102 = por %p100, %p101
      %p104 = scmp.ne.s32.totalorder %s87, %s103
      %p105 = scmp.eq.s32.totalorder %s15, 0
      %p106 = por %p104, %p105
      %s107 = ssub.s32 %s16, %s28
      %s108 = ssub.s32 %s17, %s24
      %s109 = sor.u32 %s107, %s108
      %p110 = scmp.eq.s32.totalorder %s109, 0
      %s112 = sadd.s32 %s111, 1
      %s113 = scalar_select %p110, %s111, %s112
      %p116 = pneg %p110
      %p117 = scmp.eq.s32.totalorder %s9, 7
      %p118 = por %p116, %p117
      %p119 = scmp.ne.s32.totalorder %s111, %s114
      %p120 = scmp.eq.s32.totalorder %s9, 0
      %p121 = por %p119, %p120
      %p122 = scmp.ne.s32.totalorder %s111, %s114
      %p123 = scmp.eq.s32.totalorder %s14, 7
      %p124 = por %p122, %p123
      %p125 = scmp.ne.s32.totalorder %s114, %s115
      %p126 = scmp.eq.s32.totalorder %s14, 0
      %p127 = por %p125, %p126
      %p128 = scmp.ne.s32.totalorder %s114, %s115
      %p129 = scmp.eq.s32.totalorder %s15, 7
      %p130 = por %p128, %p129
      %p132 = scmp.ne.s32.totalorder %s115, %s131
      %p133 = scmp.eq.s32.totalorder %s15, 0
      %p134 = por %p132, %p133
      %p135 = scmp.le.s32.totalorder 1, %s9
      %p136 = scmp.lt.s32.totalorder %s9, 9
      %p137 = pnand %p135, %p136
      %p138 = pneg %p137
      // Predicated region
      $region9: #{generator_forward.49} parent=5 // pred_check
        _
      $region10: #{generator_forward.49} parent=5 // pred_check_branch
        %140 = sbr.rel (%p137) target = $region12
      $region11: #{generator_forward.49} parent=5 // pred_region
        %s141 = ssub.s32 %s9, 1
        // Predicated region
        $region13: #{generator_forward.49} parent=11 // pred_check
          %p142 = pneg %p47
        $region14: #{generator_forward.49} parent=11 // pred_check_branch
          %144 = sbr.rel (%p142) target = $region16
        $region15: #{generator_forward.49} parent=11 // pred_region
          %p145 = scmp.lt.s32.totalorder %s18, 0
          %s146 = scalar_select %p145, %s18, 0
          %s147 = smul.addr %s146, 4
          %s148 = smul.addr %s147, 4
          %s149 = scalar_lea.vmem %s0, %s148
        $region16: #{generator_forward.49} parent=11 // pred_fallthru
          _
        // Predicated region
        $region17: #{generator_forward.49} parent=11 // pred_check
          %p150 = pneg %p99
        $region18: #{generator_forward.49} parent=11 // pred_check_branch
          %152 = sbr.rel (%p150) target = $region20
        $region19: #{generator_forward.49} parent=11 // pred_region
          %p153 = scmp.lt.s32.totalorder %s18, 0
          %s154 = scalar_select %p153, %s18, 0
          %s155 = smul.addr %s154, 8
          %s156 = scalar_lea.vmem %s2, %s155
        $region20: #{generator_forward.49} parent=11 // pred_fallthru
          _
      $region12: #{generator_forward.49} parent=5 // pred_fallthru
        _
      %p157 = scmp.lt.s32.totalorder %s9, 8
      // Predicated region
      $region21: #{generator_forward.49} parent=5 // pred_check
        %p158 = pneg %p157
      $region22: #{generator_forward.49} parent=5 // pred_check_branch
        %160 = sbr.rel (%p158) target = $region24
      $region23: #{generator_forward.49} parent=5 // pred_region
        // Predicated region
        $region25: #{generator_forward.49} parent=23 // pred_check
          %p161 = pneg %p67
        $region26: #{generator_forward.49} parent=23 // pred_check_branch
          %163 = sbr.rel (%p161) target = $region28
        $region27: #{generator_forward.49} parent=23 // pred_region
          %s164 = sand.u32 %s57, 1
          %s165 = sand.u32 %s57, 1
          %s166 = smul.addr %s165, 400
          %s167 = scalar_lea.vmem [#allocation2], %s166
          %s168 = smul.u32 2, %s17
          %s169 = smul.addr %s168, 4
          %s170 = scalar_lea.vmem %s1, %s169
          // Predicated region
          $region29: #{generator_forward.49} parent=27 // pred_check
            _
          $region30: #{generator_forward.49} parent=27 // pred_check_branch
            %172 = sbr.rel (0) target = $region32
          $region31: #{generator_forward.49} parent=27 // pred_region
            // Predicated region
            $region33: #{generator_forward.49} parent=31 // pred_check
              _
            $region34: #{generator_forward.49} parent=31 // pred_check_branch
              %174 = sbr.rel (0) target = $region36
            $region35: #{generator_forward.49} parent=31 // pred_region
              // Predicated region
              $region48: #{generator_forward.49} parent=35 // pred_check
                _
              $region49: #{generator_forward.49} parent=35 // pred_check_branch
                %288 = sbr.rel (0) target = $region51
              $region50: #{generator_forward.49} parent=35 // pred_region
                loop: start=0, step=1, limit=1
                $region52: #{generator_forward.49} parent=50 // loop_pre_header
                  _
                $region53: #{generator_forward.49} parent=50 // loop_header
                  %s290 = sphi 0, %s294
                  %p291 = scmp.ge.s32.totalorder %s290, 1
                  %s295 = sphi %s170, %s170
                  %s296 = sphi %s167, %s167
                $region54: #{generator_forward.49} parent=50 // loop_header_branch
                  %293 = sbr.rel (%p291) target = $region58
                $region55: #{generator_forward.49} parent=50 // loop_body
                  %v297 = vld [vmem:[%s295] sm:$0xff]
                  %298 = vst [vmem:[%s296] sm:$0xff] %v297
                  %v299 = vld [vmem:[%s295 + $0x40] sm:$0xff]
                  %300 = vst [vmem:[%s296 + $0x8] sm:$0xff] %v299
                  %v301 = vld [vmem:[%s295 + $0x80] sm:$0xff]
                  %302 = vst [vmem:[%s296 + $0x10] sm:$0xff] %v301
                  %v303 = vld [vmem:[%s295 + $0xc0] sm:$0xff]
                  %304 = vst [vmem:[%s296 + $0x18] sm:$0xff] %v303
                  %v305 = vld [vmem:[%s295 + $0x100] sm:$0xff]
                  %306 = vst [vmem:[%s296 + $0x20] sm:$0xff] %v305
                  %v307 = vld [vmem:[%s295 + $0x140] sm:$0xff]
                  %308 = vst [vmem:[%s296 + $0x28] sm:$0xff] %v307
                  %v309 = vld [vmem:[%s295 + $0x180] sm:$0xff]
                  %310 = vst [vmem:[%s296 + $0x30] sm:$0xff] %v309
                  %v311 = vld [vmem:[%s295 + $0x1c0] sm:$0xff]
                  %312 = vst [vmem:[%s296 + $0x38] sm:$0xff] %v311
                  %v313 = vld [vmem:[%s295 + $0x200] sm:$0xff]
                  %314 = vst [vmem:[%s296 + $0x40] sm:$0xff] %v313
                  %v315 = vld [vmem:[%s295 + $0x240] sm:$0xff]
                  %316 = vst [vmem:[%s296 + $0x48] sm:$0xff] %v315
                  %v317 = vld [vmem:[%s295 + $0x280] sm:$0xff]
                  %318 = vst [vmem:[%s296 + $0x50] sm:$0xff] %v317
                  %v319 = vld [vmem:[%s295 + $0x2c0] sm:$0xff]
                  %320 = vst [vmem:[%s296 + $0x58] sm:$0xff] %v319
                  %v321 = vld [vmem:[%s295 + $0x300] sm:$0xff]
                  %322 = vst [vmem:[%s296 + $0x60] sm:$0xff] %v321
                  %v323 = vld [vmem:[%s295 + $0x340] sm:$0xff]
                  %324 = vst [vmem:[%s296 + $0x68] sm:$0xff] %v323
                  %v325 = vld [vmem:[%s295 + $0x380] sm:$0xff]
                  %326 = vst [vmem:[%s296 + $0x70] sm:$0xff] %v325
                  %v327 = vld [vmem:[%s295 + $0x3c0] sm:$0xff]
                  %328 = vst [vmem:[%s296 + $0x78] sm:$0xff] %v327
                  %v329 = vld [vmem:[%s295 + $0x400] sm:$0xff]
                  %330 = vst [vmem:[%s296 + $0x80] sm:$0xff] %v329
                  %v331 = vld [vmem:[%s295 + $0x440] sm:$0xff]
                  %332 = vst [vmem:[%s296 + $0x88] sm:$0xff] %v331
                  %v333 = vld [vmem:[%s295 + $0x480] sm:$0xff]
                  %334 = vst [vmem:[%s296 + $0x90] sm:$0xff] %v333
                  %v335 = vld [vmem:[%s295 + $0x4c0] sm:$0xff]
                  %336 = vst [vmem:[%s296 + $0x98] sm:$0xff] %v335
                  %v337 = vld [vmem:[%s295 + $0x500] sm:$0xff]
                  %338 = vst [vmem:[%s296 + $0xa0] sm:$0xff] %v337
                  %v339 = vld [vmem:[%s295 + $0x540] sm:$0xff]
                  %340 = vst [vmem:[%s296 + $0xa8] sm:$0xff] %v339
                  %v341 = vld [vmem:[%s295 + $0x580] sm:$0xff]
                  %342 = vst [vmem:[%s296 + $0xb0] sm:$0xff] %v341
                  %v343 = vld [vmem:[%s295 + $0x5c0] sm:$0xff]
                  %344 = vst [vmem:[%s296 + $0xb8] sm:$0xff] %v343
                  %v345 = vld [vmem:[%s295 + $0x600] sm:$0xff]
                  %346 = vst [vmem:[%s296 + $0xc0] sm:$0xff] %v345
                  %v347 = vld [vmem:[%s295 + $0x640] sm:$0xff]
                  %348 = vst [vmem:[%s296 + $0xc8] sm:$0xff] %v347
                  %v349 = vld [vmem:[%s295 + $0x680] sm:$0xff]
                  %350 = vst [vmem:[%s296 + $0xd0] sm:$0xff] %v349
                  %v351 = vld [vmem:[%s295 + $0x6c0] sm:$0xff]
                  %352 = vst [vmem:[%s296 + $0xd8] sm:$0xff] %v351
                  %v353 = vld [vmem:[%s295 + $0x700] sm:$0xff]
                  %354 = vst [vmem:[%s296 + $0xe0] sm:$0xff] %v353
                  %v355 = vld [vmem:[%s295 + $0x740] sm:$0xff]
                  %356 = vst [vmem:[%s296 + $0xe8] sm:$0xff] %v355
                  %v357 = vld [vmem:[%s295 + $0x780] sm:$0xff]
                  %358 = vst [vmem:[%s296 + $0xf0] sm:$0xff] %v357
                  %v359 = vld [vmem:[%s295 + $0x7c0] sm:$0xff]
                  %360 = vst [vmem:[%s296 + $0xf8] sm:$0xff] %v359
                  %v361 = vld [vmem:[%s295 + $0x800] sm:$0xff]
                  %362 = vst [vmem:[%s296 + $0x100] sm:$0xff] %v361
                  %v363 = vld [vmem:[%s295 + $0x840] sm:$0xff]
                  %364 = vst [vmem:[%s296 + $0x108] sm:$0xff] %v363
                  %v365 = vld [vmem:[%s295 + $0x880] sm:$0xff]
                  %366 = vst [vmem:[%s296 + $0x110] sm:$0xff] %v365
                  %v367 = vld [vmem:[%s295 + $0x8c0] sm:$0xff]
                  %368 = vst [vmem:[%s296 + $0x118] sm:$0xff] %v367
                  %v369 = vld [vmem:[%s295 + $0x900] sm:$0xff]
                  %370 = vst [vmem:[%s296 + $0x120] sm:$0xff] %v369
                  %v371 = vld [vmem:[%s295 + $0x940] sm:$0xff]
                  %372 = vst [vmem:[%s296 + $0x128] sm:$0xff] %v371
                  %v373 = vld [vmem:[%s295 + $0x980] sm:$0xff]
                  %374 = vst [vmem:[%s296 + $0x130] sm:$0xff] %v373
                  %v375 = vld [vmem:[%s295 + $0x9c0] sm:$0xff]
                  %376 = vst [vmem:[%s296 + $0x138] sm:$0xff] %v375
                  %v377 = vld [vmem:[%s295 + $0xa00] sm:$0xff]
                  %378 = vst [vmem:[%s296 + $0x140] sm:$0xff] %v377
                  %v379 = vld [vmem:[%s295 + $0xa40] sm:$0xff]
                  %380 = vst [vmem:[%s296 + $0x148] sm:$0xff] %v379
                  %v381 = vld [vmem:[%s295 + $0xa80] sm:$0xff]
                  %382 = vst [vmem:[%s296 + $0x150] sm:$0xff] %v381
                  %v383 = vld [vmem:[%s295 + $0xac0] sm:$0xff]
                  %384 = vst [vmem:[%s296 + $0x158] sm:$0xff] %v383
                  %v385 = vld [vmem:[%s295 + $0xb00] sm:$0xff]
                  %386 = vst [vmem:[%s296 + $0x160] sm:$0xff] %v385
                  %v387 = vld [vmem:[%s295 + $0xb40] sm:$0xff]
                  %388 = vst [vmem:[%s296 + $0x168] sm:$0xff] %v387
                  %v389 = vld [vmem:[%s295 + $0xb80] sm:$0xff]
                  %390 = vst [vmem:[%s296 + $0x170] sm:$0xff] %v389
                  %v391 = vld [vmem:[%s295 + $0xbc0] sm:$0xff]
                  %392 = vst [vmem:[%s296 + $0x178] sm:$0xff] %v391
                  %v393 = vld [vmem:[%s295 + $0xc00] sm:$0xff]
                  %394 = vst [vmem:[%s296 + $0x180] sm:$0xff] %v393
                  %v395 = vld [vmem:[%s295 + $0xc40] sm:$0xff]
                  %396 = vst [vmem:[%s296 + $0x188] sm:$0xff] %v395
                $region56: #{generator_forward.49} parent=50 // loop_footer
                  %s294 = sadd.s32 1, %s290
                $region57: #{generator_forward.49} parent=50 // loop_footer_branch
                  %289 = sbr.rel target = $region53
                $region58: #{generator_forward.49} parent=50 // loop_exit
                  _
              $region51: #{generator_forward.49} parent=35 // pred_fallthru
                _
              // Predicated region
              $region59: #{generator_forward.49} parent=35 // pred_check
                _
              $region60: #{generator_forward.49} parent=35 // pred_check_branch
                %398 = sbr.rel target = $region62
              $region61: #{generator_forward.49} parent=35 // pred_region
                _
              $region62: #{generator_forward.49} parent=35 // pred_fallthru
                _
            $region36: #{generator_forward.49} parent=31 // pred_fallthru
              _
            // Predicated region
            $region37: #{generator_forward.49} parent=31 // pred_check
              _
            $region38: #{generator_forward.49} parent=31 // pred_check_branch
              %176 = sbr.rel target = $region40
            $region39: #{generator_forward.49} parent=31 // pred_region
              %s178 = ssub.s32 256, 1
              loop: start=0, step=1, limit=1
              $region41: #{generator_forward.49} parent=39 // loop_pre_header
                _
              $region42: #{generator_forward.49} parent=39 // loop_header
                %s180 = sphi 0, %s184
                %p181 = scmp.ge.s32.totalorder %s180, 1
                %s185 = sphi %s170, %s170
                %s186 = sphi %s167, %s167
              $region43: #{generator_forward.49} parent=39 // loop_header_branch
                %183 = sbr.rel (%p181) target = $region47
              $region44: #{generator_forward.49} parent=39 // loop_body
                %v187 = vld [vmem:[%s185] sm:%s178]
                %188 = vst [vmem:[%s186] sm:%s178] %v187
                %v189 = vld [vmem:[%s185 + $0x40] sm:%s178]
                %190 = vst [vmem:[%s186 + $0x8] sm:%s178] %v189
                %v191 = vld [vmem:[%s185 + $0x80] sm:%s178]
                %192 = vst [vmem:[%s186 + $0x10] sm:%s178] %v191
                %v193 = vld [vmem:[%s185 + $0xc0] sm:%s178]
                %194 = vst [vmem:[%s186 + $0x18] sm:%s178] %v193
                %v195 = vld [vmem:[%s185 + $0x100] sm:%s178]
                %196 = vst [vmem:[%s186 + $0x20] sm:%s178] %v195
                %v197 = vld [vmem:[%s185 + $0x140] sm:%s178]
                %198 = vst [vmem:[%s186 + $0x28] sm:%s178] %v197
                %v199 = vld [vmem:[%s185 + $0x180] sm:%s178]
                %200 = vst [vmem:[%s186 + $0x30] sm:%s178] %v199
                %v201 = vld [vmem:[%s185 + $0x1c0] sm:%s178]
                %202 = vst [vmem:[%s186 + $0x38] sm:%s178] %v201
                %v203 = vld [vmem:[%s185 + $0x200] sm:%s178]
                %204 = vst [vmem:[%s186 + $0x40] sm:%s178] %v203
                %v205 = vld [vmem:[%s185 + $0x240] sm:%s178]
                %206 = vst [vmem:[%s186 + $0x48] sm:%s178] %v205
                %v207 = vld [vmem:[%s185 + $0x280] sm:%s178]
                %208 = vst [vmem:[%s186 + $0x50] sm:%s178] %v207
                %v209 = vld [vmem:[%s185 + $0x2c0] sm:%s178]
                %210 = vst [vmem:[%s186 + $0x58] sm:%s178] %v209
                %v211 = vld [vmem:[%s185 + $0x300] sm:%s178]
                %212 = vst [vmem:[%s186 + $0x60] sm:%s178] %v211
                %v213 = vld [vmem:[%s185 + $0x340] sm:%s178]
                %214 = vst [vmem:[%s186 + $0x68] sm:%s178] %v213
                %v215 = vld [vmem:[%s185 + $0x380] sm:%s178]
                %216 = vst [vmem:[%s186 + $0x70] sm:%s178] %v215
                %v217 = vld [vmem:[%s185 + $0x3c0] sm:%s178]
                %218 = vst [vmem:[%s186 + $0x78] sm:%s178] %v217
                %v219 = vld [vmem:[%s185 + $0x400] sm:%s178]
                %220 = vst [vmem:[%s186 + $0x80] sm:%s178] %v219
                %v221 = vld [vmem:[%s185 + $0x440] sm:%s178]
                %222 = vst [vmem:[%s186 + $0x88] sm:%s178] %v221
                %v223 = vld [vmem:[%s185 + $0x480] sm:%s178]
                %224 = vst [vmem:[%s186 + $0x90] sm:%s178] %v223
                %v225 = vld [vmem:[%s185 + $0x4c0] sm:%s178]
                %226 = vst [vmem:[%s186 + $0x98] sm:%s178] %v225
                %v227 = vld [vmem:[%s185 + $0x500] sm:%s178]
                %228 = vst [vmem:[%s186 + $0xa0] sm:%s178] %v227
                %v229 = vld [vmem:[%s185 + $0x540] sm:%s178]
                %230 = vst [vmem:[%s186 + $0xa8] sm:%s178] %v229
                %v231 = vld [vmem:[%s185 + $0x580] sm:%s178]
                %232 = vst [vmem:[%s186 + $0xb0] sm:%s178] %v231
                %v233 = vld [vmem:[%s185 + $0x5c0] sm:%s178]
                %234 = vst [vmem:[%s186 + $0xb8] sm:%s178] %v233
                %v235 = vld [vmem:[%s185 + $0x600] sm:%s178]
                %236 = vst [vmem:[%s186 + $0xc0] sm:%s178] %v235
                %v237 = vld [vmem:[%s185 + $0x640] sm:%s178]
                %238 = vst [vmem:[%s186 + $0xc8] sm:%s178] %v237
                %v239 = vld [vmem:[%s185 + $0x680] sm:%s178]
                %240 = vst [vmem:[%s186 + $0xd0] sm:%s178] %v239
                %v241 = vld [vmem:[%s185 + $0x6c0] sm:%s178]
                %242 = vst [vmem:[%s186 + $0xd8] sm:%s178] %v241
                %v243 = vld [vmem:[%s185 + $0x700] sm:%s178]
                %244 = vst [vmem:[%s186 + $0xe0] sm:%s178] %v243
                %v245 = vld [vmem:[%s185 + $0x740] sm:%s178]
                %246 = vst [vmem:[%s186 + $0xe8] sm:%s178] %v245
                %v247 = vld [vmem:[%s185 + $0x780] sm:%s178]
                %248 = vst [vmem:[%s186 + $0xf0] sm:%s178] %v247
                %v249 = vld [vmem:[%s185 + $0x7c0] sm:%s178]
                %250 = vst [vmem:[%s186 + $0xf8] sm:%s178] %v249
                %v251 = vld [vmem:[%s185 + $0x800] sm:%s178]
                %252 = vst [vmem:[%s186 + $0x100] sm:%s178] %v251
                %v253 = vld [vmem:[%s185 + $0x840] sm:%s178]
                %254 = vst [vmem:[%s186 + $0x108] sm:%s178] %v253
                %v255 = vld [vmem:[%s185 + $0x880] sm:%s178]
                %256 = vst [vmem:[%s186 + $0x110] sm:%s178] %v255
                %v257 = vld [vmem:[%s185 + $0x8c0] sm:%s178]
                %258 = vst [vmem:[%s186 + $0x118] sm:%s178] %v257
                %v259 = vld [vmem:[%s185 + $0x900] sm:%s178]
                %260 = vst [vmem:[%s186 + $0x120] sm:%s178] %v259
                %v261 = vld [vmem:[%s185 + $0x940] sm:%s178]
                %262 = vst [vmem:[%s186 + $0x128] sm:%s178] %v261
                %v263 = vld [vmem:[%s185 + $0x980] sm:%s178]
                %264 = vst [vmem:[%s186 + $0x130] sm:%s178] %v263
                %v265 = vld [vmem:[%s185 + $0x9c0] sm:%s178]
                %266 = vst [vmem:[%s186 + $0x138] sm:%s178] %v265
                %v267 = vld [vmem:[%s185 + $0xa00] sm:%s178]
                %268 = vst [vmem:[%s186 + $0x140] sm:%s178] %v267
                %v269 = vld [vmem:[%s185 + $0xa40] sm:%s178]
                %270 = vst [vmem:[%s186 + $0x148] sm:%s178] %v269
                %v271 = vld [vmem:[%s185 + $0xa80] sm:%s178]
                %272 = vst [vmem:[%s186 + $0x150] sm:%s178] %v271
                %v273 = vld [vmem:[%s185 + $0xac0] sm:%s178]
                %274 = vst [vmem:[%s186 + $0x158] sm:%s178] %v273
                %v275 = vld [vmem:[%s185 + $0xb00] sm:%s178]
                %276 = vst [vmem:[%s186 + $0x160] sm:%s178] %v275
                %v277 = vld [vmem:[%s185 + $0xb40] sm:%s178]
                %278 = vst [vmem:[%s186 + $0x168] sm:%s178] %v277
                %v279 = vld [vmem:[%s185 + $0xb80] sm:%s178]
                %280 = vst [vmem:[%s186 + $0x170] sm:%s178] %v279
                %v281 = vld [vmem:[%s185 + $0xbc0] sm:%s178]
                %282 = vst [vmem:[%s186 + $0x178] sm:%s178] %v281
                %v283 = vld [vmem:[%s185 + $0xc00] sm:%s178]
                %284 = vst [vmem:[%s186 + $0x180] sm:%s178] %v283
                %v285 = vld [vmem:[%s185 + $0xc40] sm:%s178]
                %286 = vst [vmem:[%s186 + $0x188] sm:%s178] %v285
              $region45: #{generator_forward.49} parent=39 // loop_footer
                %s184 = sadd.s32 1, %s180
              $region46: #{generator_forward.49} parent=39 // loop_footer_branch
                %179 = sbr.rel target = $region42
              $region47: #{generator_forward.49} parent=39 // loop_exit
                _
            $region40: #{generator_forward.49} parent=31 // pred_fallthru
              _
          $region32: #{generator_forward.49} parent=27 // pred_fallthru
            _
          %399 = vnop
        $region28: #{generator_forward.49} parent=23 // pred_fallthru
          _
      $region24: #{generator_forward.49} parent=5 // pred_fallthru
        _
      %p400 = scmp.le.s32.totalorder 1, %s9
      %p401 = scmp.lt.s32.totalorder %s9, 9
      %p402 = pnand %p400, %p401
      %p403 = pneg %p402
      // Predicated region
      $region63: #{generator_forward.49} parent=5 // pred_check
        _
      $region64: #{generator_forward.49} parent=5 // pred_check_branch
        %405 = sbr.rel (%p402) target = $region66
      $region65: #{generator_forward.49} parent=5 // pred_region
        %s406 = ssub.s32 %s9, 1
        %s407 = sand.u32 %s60, 1
        %s408 = sand.u32 %s60, 1
        %s409 = smul.addr %s408, 400
        %s410 = scalar_lea.vmem [#allocation2], %s409
        // Predicated region
        $region67: #{generator_forward.49} parent=65 // pred_check
          %p411 = pneg %p73
        $region68: #{generator_forward.49} parent=65 // pred_check_branch
          %413 = sbr.rel (%p411) target = $region70
        $region69: #{generator_forward.49} parent=65 // pred_region
          _
        $region70: #{generator_forward.49} parent=65 // pred_fallthru
          _
        %p414 = scmp.lt.s32.totalorder %s18, 0
        %s415 = scalar_select %p414, %s18, 0
        %s416 = smul.addr %s415, 4
        %s417 = smul.addr %s416, 4
        %s418 = scalar_lea.vmem %s0, %s417
        %p419 = pneg %p47
        %p420 = pneg %p44
        %s421 = sand.u32 %s60, 1
        %s422 = sand.u32 %s60, 1
        %s423 = smul.addr %s422, 400
        %s424 = scalar_lea.vmem [#allocation2], %s423
        %p425 = pneg %p73
        %p426 = pneg %p70
        %p427 = scmp.lt.s32.totalorder %s18, 0
        %s428 = scalar_select %p427, %s18, 0
        %s429 = smul.addr %s428, 8
        %s430 = scalar_lea.vmem %s2, %s429
        %p431 = pneg %p99
        %p432 = pneg %p96
        %p433 = pneg %p127
        %p434 = pneg %p124
        %s435 = smul.u32 2, %s19
        %p436 = scmp.lt.s32.totalorder %s18, 0
        %s437 = scalar_select %p436, %s18, 0
        %p438 = scmp.lt.s32.totalorder %s435, 15
        %s439 = scalar_select %p438, %s435, 15
        %s440 = smul.addr %s437, 16
        %s441 = sadd.s32 %s439, %s440
        %s442 = smul.addr %s441, 8
        %s443 = scalar_lea.vmem %s3, %s442
        %p444 = scmp.lt.s32.totalorder %s18, 0
        %s445 = scalar_select %p444, %s18, 0
        %s446 = smul.addr %s445, 4
        %s447 = smul.addr %s446, 4
        %s448 = scalar_lea.vmem %s0, %s447
        %s449 = smul.u32 2, %s19
        %p450 = scmp.lt.s32.totalorder %s18, 0
        %s451 = scalar_select %p450, %s18, 0
        %s452 = smul.addr %s451, 8
        %s453 = scalar_lea.vmem %s2, %s452
        %s454 = smul.u32 2, %s19
        %p455 = scmp.lt.s32.totalorder %s18, 0
        %s456 = scalar_select %p455, %s18, 0
        %p457 = scmp.lt.s32.totalorder %s454, 15
        %s458 = scalar_select %p457, %s454, 15
        %s459 = smul.addr %s456, 16
        %s460 = sadd.s32 %s458, %s459
        %s461 = smul.addr %s460, 8
        %s462 = scalar_lea.vmem %s3, %s461
        %s463 = smul.u32 2, %s19
        %v465 = vld [vmem:[%s448] sm:$0xff]
        %v466 = vld [vmem:[%s448 + $0x8] sm:$0xff]
        %v467 = vld [vmem:[%s410] sm:$0xff]
        %v468 = vld [vmem:[%s410 + $0x8] sm:$0xff]
        %v469 = vld [vmem:[%s410 + $0x10] sm:$0xff]
        %v470 = vld [vmem:[%s410 + $0x18] sm:$0xff]
        %v471 = vld [vmem:[%s410 + $0x20] sm:$0xff]
        %v472 = vld [vmem:[%s410 + $0x28] sm:$0xff]
        %v473 = vld [vmem:[%s410 + $0x30] sm:$0xff]
        %v474 = vld [vmem:[%s410 + $0x38] sm:$0xff]
        %v475 = vld [vmem:[%s410 + $0x40] sm:$0xff]
        %v476 = vld [vmem:[%s410 + $0x48] sm:$0xff]
        %v477 = vld [vmem:[%s410 + $0x50] sm:$0xff]
        %v478 = vld [vmem:[%s410 + $0x58] sm:$0xff]
        %v479 = vld [vmem:[%s410 + $0x60] sm:$0xff]
        %v480 = vld [vmem:[%s410 + $0x68] sm:$0xff]
        %v481 = vld [vmem:[%s410 + $0x70] sm:$0xff]
        %v482 = vld [vmem:[%s410 + $0x78] sm:$0xff]
        %v483 = vld [vmem:[%s410 + $0x80] sm:$0xff]
        %v484 = vld [vmem:[%s410 + $0x88] sm:$0xff]
        %v485 = vld [vmem:[%s410 + $0x90] sm:$0xff]
        %v486 = vld [vmem:[%s410 + $0x98] sm:$0xff]
        %v487 = vld [vmem:[%s410 + $0xa0] sm:$0xff]
        %v488 = vld [vmem:[%s410 + $0xa8] sm:$0xff]
        %v489 = vld [vmem:[%s410 + $0xb0] sm:$0xff]
        %v490 = vld [vmem:[%s410 + $0xb8] sm:$0xff]
        %v491 = vld [vmem:[%s410 + $0xc0] sm:$0xff]
        %v492 = vld [vmem:[%s410 + $0xc8] sm:$0xff]
        %v493 = vld [vmem:[%s410 + $0xd0] sm:$0xff]
        %v494 = vld [vmem:[%s410 + $0xd8] sm:$0xff]
        %v495 = vld [vmem:[%s410 + $0xe0] sm:$0xff]
        %v496 = vld [vmem:[%s410 + $0xe8] sm:$0xff]
        %v497 = vld [vmem:[%s410 + $0xf0] sm:$0xff]
        %v498 = vld [vmem:[%s410 + $0xf8] sm:$0xff]
        %v499 = vld [vmem:[%s410 + $0x100] sm:$0xff]
        %v500 = vld [vmem:[%s410 + $0x108] sm:$0xff]
        %v501 = vld [vmem:[%s410 + $0x110] sm:$0xff]
        %v502 = vld [vmem:[%s410 + $0x118] sm:$0xff]
        %v503 = vld [vmem:[%s410 + $0x120] sm:$0xff]
        %v504 = vld [vmem:[%s410 + $0x128] sm:$0xff]
        %v505 = vld [vmem:[%s410 + $0x130] sm:$0xff]
        %v506 = vld [vmem:[%s410 + $0x138] sm:$0xff]
        %v507 = vld [vmem:[%s410 + $0x140] sm:$0xff]
        %v508 = vld [vmem:[%s410 + $0x148] sm:$0xff]
        %v509 = vld [vmem:[%s410 + $0x150] sm:$0xff]
        %v510 = vld [vmem:[%s410 + $0x158] sm:$0xff]
        %v511 = vld [vmem:[%s410 + $0x160] sm:$0xff]
        %v512 = vld [vmem:[%s410 + $0x168] sm:$0xff]
        %v513 = vld [vmem:[%s410 + $0x170] sm:$0xff]
        %v514 = vld [vmem:[%s410 + $0x178] sm:$0xff]
        %v515 = vld [vmem:[%s410 + $0x180] sm:$0xff]
        %v516 = vld [vmem:[%s410 + $0x188] sm:$0xff]
        %v517 = vld [vmem:[%s453] sm:$0xff]
        %519 = vset.pattern.permute.xlu0 0
        %520 = vperm.xlu0 %519, %v517
        %v521 = vpop.permute.xlu0 %520
        %v525 = vunpack.c.l.b16 %v465
        %v526 = vunpack.c.h.b16 %v465
        %v527 = vunpack.c.l.b16 %v466
        %v528 = vunpack.c.h.b16 %v466
        %v529 = vpack.c.b16 %v525, %v525
        %v530 = vpack.c.b16 %v526, %v526
        %v531 = vpack.c.b16 %v527, %v527
        %v532 = vpack.c.b16 %v528, %v528
        %v586 = vunpack.c.l.b16 %v467
        %v587 = vunpack.c.h.b16 %v467
        %v588 = vunpack.c.l.b16 %v468
        %v589 = vunpack.c.h.b16 %v468
        %v590 = vunpack.c.l.b16 %v469
        %v591 = vunpack.c.h.b16 %v469
        %v592 = vunpack.c.l.b16 %v470
        %v593 = vunpack.c.h.b16 %v470
        %v594 = vunpack.c.l.b16 %v471
        %v595 = vunpack.c.h.b16 %v471
        %v596 = vunpack.c.l.b16 %v472
        %v597 = vunpack.c.h.b16 %v472
        %v598 = vunpack.c.l.b16 %v473
        %v599 = vunpack.c.h.b16 %v473
        %v600 = vunpack.c.l.b16 %v474
        %v601 = vunpack.c.h.b16 %v474
        %v602 = vunpack.c.l.b16 %v475
        %v603 = vunpack.c.h.b16 %v475
        %v604 = vunpack.c.l.b16 %v476
        %v605 = vunpack.c.h.b16 %v476
        %v606 = vunpack.c.l.b16 %v477
        %v607 = vunpack.c.h.b16 %v477
        %v608 = vunpack.c.l.b16 %v478
        %v609 = vunpack.c.h.b16 %v478
        %v610 = vunpack.c.l.b16 %v479
        %v611 = vunpack.c.h.b16 %v479
        %v612 = vunpack.c.l.b16 %v480
        %v613 = vunpack.c.h.b16 %v480
        %v614 = vunpack.c.l.b16 %v481
        %v615 = vunpack.c.h.b16 %v481
        %v616 = vunpack.c.l.b16 %v482
        %v617 = vunpack.c.h.b16 %v482
        %v618 = vunpack.c.l.b16 %v483
        %v619 = vunpack.c.h.b16 %v483
        %v620 = vunpack.c.l.b16 %v484
        %v621 = vunpack.c.h.b16 %v484
        %v622 = vunpack.c.l.b16 %v485
        %v623 = vunpack.c.h.b16 %v485
        %v624 = vunpack.c.l.b16 %v486
        %v625 = vunpack.c.h.b16 %v486
        %v626 = vunpack.c.l.b16 %v487
        %v627 = vunpack.c.h.b16 %v487
        %v628 = vunpack.c.l.b16 %v488
        %v629 = vunpack.c.h.b16 %v488
        %v630 = vunpack.c.l.b16 %v489
        %v631 = vunpack.c.h.b16 %v489
        %v632 = vunpack.c.l.b16 %v490
        %v633 = vunpack.c.h.b16 %v490
        %v634 = vunpack.c.l.b16 %v491
        %v635 = vunpack.c.h.b16 %v491
        %v636 = vunpack.c.l.b16 %v492
        %v637 = vunpack.c.h.b16 %v492
        %v638 = vunpack.c.l.b16 %v493
        %v639 = vunpack.c.h.b16 %v493
        %v640 = vunpack.c.l.b16 %v494
        %v641 = vunpack.c.h.b16 %v494
        %v642 = vunpack.c.l.b16 %v495
        %v643 = vunpack.c.h.b16 %v495
        %v644 = vunpack.c.l.b16 %v496
        %v645 = vunpack.c.h.b16 %v496
        %v646 = vunpack.c.l.b16 %v497
        %v647 = vunpack.c.h.b16 %v497
        %v648 = vunpack.c.l.b16 %v498
        %v649 = vunpack.c.h.b16 %v498
        %v650 = vunpack.c.l.b16 %v499
        %v651 = vunpack.c.h.b16 %v499
        %v652 = vunpack.c.l.b16 %v500
        %v653 = vunpack.c.h.b16 %v500
        %v654 = vunpack.c.l.b16 %v501
        %v655 = vunpack.c.h.b16 %v501
        %v656 = vunpack.c.l.b16 %v502
        %v657 = vunpack.c.h.b16 %v502
        %v658 = vunpack.c.l.b16 %v503
        %v659 = vunpack.c.h.b16 %v503
        %v660 = vunpack.c.l.b16 %v504
        %v661 = vunpack.c.h.b16 %v504
        %v662 = vunpack.c.l.b16 %v505
        %v663 = vunpack.c.h.b16 %v505
        %v664 = vunpack.c.l.b16 %v506
        %v665 = vunpack.c.h.b16 %v506
        %v666 = vunpack.c.l.b16 %v507
        %v667 = vunpack.c.h.b16 %v507
        %v668 = vunpack.c.l.b16 %v508
        %v669 = vunpack.c.h.b16 %v508
        %v670 = vunpack.c.l.b16 %v509
        %v671 = vunpack.c.h.b16 %v509
        %v672 = vunpack.c.l.b16 %v510
        %v673 = vunpack.c.h.b16 %v510
        %v674 = vunpack.c.l.b16 %v511
        %v675 = vunpack.c.h.b16 %v511
        %v676 = vunpack.c.l.b16 %v512
        %v677 = vunpack.c.h.b16 %v512
        %v678 = vunpack.c.l.b16 %v513
        %v679 = vunpack.c.h.b16 %v513
        %v680 = vunpack.c.l.b16 %v514
        %v681 = vunpack.c.h.b16 %v514
        %v682 = vunpack.c.l.b16 %v515
        %v683 = vunpack.c.h.b16 %v515
        %v684 = vunpack.c.l.b16 %v516
        %v685 = vunpack.c.h.b16 %v516
        %v686 = vpack.c.b16 %v588, %v586
        %v687 = vpack.c.b16 %v589, %v587
        %v688 = vpack.c.b16 %v592, %v590
        %v689 = vpack.c.b16 %v593, %v591
        %v690 = vpack.c.b16 %v596, %v594
        %v691 = vpack.c.b16 %v597, %v595
        %v692 = vpack.c.b16 %v600, %v598
        %v693 = vpack.c.b16 %v601, %v599
        %v694 = vpack.c.b16 %v604, %v602
        %v695 = vpack.c.b16 %v605, %v603
        %v696 = vpack.c.b16 %v608, %v606
        %v697 = vpack.c.b16 %v609, %v607
        %v698 = vpack.c.b16 %v612, %v610
        %v699 = vpack.c.b16 %v613, %v611
        %v700 = vpack.c.b16 %v616, %v614
        %v701 = vpack.c.b16 %v617, %v615
        %v702 = vpack.c.b16 %v620, %v618
        %v703 = vpack.c.b16 %v621, %v619
        %v704 = vpack.c.b16 %v624, %v622
        %v705 = vpack.c.b16 %v625, %v623
        %v706 = vpack.c.b16 %v628, %v626
        %v707 = vpack.c.b16 %v629, %v627
        %v708 = vpack.c.b16 %v632, %v630
        %v709 = vpack.c.b16 %v633, %v631
        %v710 = vpack.c.b16 %v636, %v634
        %v711 = vpack.c.b16 %v637, %v635
        %v712 = vpack.c.b16 %v640, %v638
        %v713 = vpack.c.b16 %v641, %v639
        %v714 = vpack.c.b16 %v644, %v642
        %v715 = vpack.c.b16 %v645, %v643
        %v716 = vpack.c.b16 %v648, %v646
        %v717 = vpack.c.b16 %v649, %v647
        %v718 = vpack.c.b16 %v652, %v650
        %v719 = vpack.c.b16 %v653, %v651
        %v720 = vpack.c.b16 %v656, %v654
        %v721 = vpack.c.b16 %v657, %v655
        %v722 = vpack.c.b16 %v660, %v658
        %v723 = vpack.c.b16 %v661, %v659
        %v724 = vpack.c.b16 %v664, %v662
        %v725 = vpack.c.b16 %v665, %v663
        %v726 = vpack.c.b16 %v668, %v666
        %v727 = vpack.c.b16 %v669, %v667
        %v728 = vpack.c.b16 %v672, %v670
        %v729 = vpack.c.b16 %v673, %v671
        %v730 = vpack.c.b16 %v676, %v674
        %v731 = vpack.c.b16 %v677, %v675
        %v732 = vpack.c.b16 %v680, %v678
        %v733 = vpack.c.b16 %v681, %v679
        %v734 = vpack.c.b16 %v684, %v682
        %v735 = vpack.c.b16 %v685, %v683
        %vm786 = vcmask 130048
        %v788 = vsel %vm786, %v532, 0
        %790 = vmatprep.subr.bf16.mxu0 %v701
        %791 = vmatpush1.bf16.msra.mxu0 %v700
        %792 = vmatprep.subr.bf16.mxu0 %v699
        %793 = vmatpush1.bf16.msra.mxu0 %v698
        %794 = vmatprep.subr.bf16.mxu0 %v697
        %795 = vmatpush1.bf16.msra.mxu0 %v696
        %796 = vmatprep.subr.bf16.mxu0 %v695
        %797 = vmatpush1.bf16.msra.mxu0 %v694
        %798 = vmatprep.subr.bf16.mxu0 %v693
        %799 = vmatpush1.bf16.msra.mxu0 %v692
        %800 = vmatprep.subr.bf16.mxu0 %v691
        %801 = vmatpush1.bf16.msra.mxu0 %v690
        %802 = vmatprep.subr.bf16.mxu0 %v689
        %803 = vmatpush1.bf16.msra.mxu0 %v688
        %804 = vmatprep.subr.bf16.mxu0 %v687
        %805 = vmatpush1.bf16.msra.mxu0 %v686
        %806 = vmatprep.subr.bf16.mxu0 %v717
        %807 = vmatpush2.bf16.msra.mxu0 %v716
        %808 = vmatprep.subr.bf16.mxu0 %v715
        %809 = vmatpush2.bf16.msra.mxu0 %v714
        %810 = vmatprep.subr.bf16.mxu0 %v713
        %811 = vmatpush2.bf16.msra.mxu0 %v712
        %812 = vmatprep.subr.bf16.mxu0 %v711
        %813 = vmatpush2.bf16.msra.mxu0 %v710
        %814 = vmatprep.subr.bf16.mxu0 %v709
        %815 = vmatpush2.bf16.msra.mxu0 %v708
        %816 = vmatprep.subr.bf16.mxu0 %v707
        %817 = vmatpush2.bf16.msra.mxu0 %v706
        %818 = vmatprep.subr.bf16.mxu0 %v705
        %819 = vmatpush2.bf16.msra.mxu0 %v704
        %820 = vmatprep.subr.bf16.mxu0 %v703
        %821 = vmatpush2.bf16.msra.mxu0 %v702
        %822 = vmatprep.mubr.bf16.mxu0 %v530
        %823 = vmatmul.mubr.bf16.gmra.mxu0 %v529
        %v824 = vpop.f32.mrf.mxu0
        %v825 = vadd.f32 %v521, %v824
        %v826 = vpop.f32.mrf.mxu0
        %v827 = vadd.f32 %v521, %v826
        %v828 = vpop.f32.mrf.mxu0
        %v829 = vpop.f32.mrf.mxu0
        %830 = vdwg.mxu0
        %831 = vmatprep.subr.bf16.mxu0 %v733
        %832 = vmatpush1.bf16.msra.mxu0 %v732
        %833 = vmatprep.subr.bf16.mxu0 %v731
        %834 = vmatpush1.bf16.msra.mxu0 %v730
        %835 = vmatprep.subr.bf16.mxu0 %v729
        %836 = vmatpush1.bf16.msra.mxu0 %v728
        %837 = vmatprep.subr.bf16.mxu0 %v727
        %838 = vmatpush1.bf16.msra.mxu0 %v726
        %839 = vmatprep.subr.bf16.mxu0 %v725
        %840 = vmatpush1.bf16.msra.mxu0 %v724
        %841 = vmatprep.subr.bf16.mxu0 %v723
        %842 = vmatpush1.bf16.msra.mxu0 %v722
        %843 = vmatprep.subr.bf16.mxu0 %v721
        %844 = vmatpush1.bf16.msra.mxu0 %v720
        %845 = vmatprep.subr.bf16.mxu0 %v719
        %846 = vmatpush1.bf16.msra.mxu0 %v718
        %847 = vmatprep.subr.bf16.mxu0 0
        %848 = vmatpush2.bf16.msra.mxu0 0
        %849 = vmatprep.subr.bf16.mxu0 0
        %850 = vmatpush2.bf16.msra.mxu0 0
        %851 = vmatprep.subr.bf16.mxu0 0
        %852 = vmatpush2.bf16.msra.mxu0 0
        %853 = vmatprep.subr.bf16.mxu0 0
        %854 = vmatpush2.bf16.msra.mxu0 0
        %855 = vmatprep.subr.bf16.mxu0 0
        %856 = vmatpush2.bf16.msra.mxu0 0
        %857 = vmatprep.subr.bf16.mxu0 0
        %858 = vmatpush2.bf16.msra.mxu0 0
        %859 = vmatprep.subr.bf16.mxu0 0
        %860 = vmatpush2.bf16.msra.mxu0 0
        %861 = vmatprep.subr.bf16.mxu0 %v735
        %862 = vmatpush2.bf16.msra.mxu0 %v734
        %863 = vmatprep.mubr.bf16.mxu0 %v788
        %864 = vmatmul.mubr.bf16.gmra.mxu0 %v531
        %v865 = vpop.f32.mrf.mxu0
        %v866 = vadd.f32 %v825, %v865
        %v867 = vpop.f32.mrf.mxu0
        %v868 = vadd.f32 %v827, %v867
        %v869 = vpop.f32.mrf.mxu0
        %v870 = vpop.f32.mrf.mxu0
        %871 = vdwg.mxu0
        %v872 = vxor.u32 %v866, 2147483648
        %v873 = vxor.u32 %v868, 2147483648
        %v874 = vmul.f32 %v872, 1.442695
        %v875 = vpow.pop %v874
        %v876 = vmul.f32 %v873, 1.442695
        %v877 = vpow.pop %v876
        %v878 = vadd.f32 %v875, 1.0
        %v879 = vadd.f32 %v877, 1.0
        %v880 = vrcp.pop %v878
        %v881 = vmul.f32 1.0, %v880
        %v882 = vrcp.pop %v879
        %v883 = vmul.f32 1.0, %v882
        %884 = vst [vmem:[%s462] sm:$0xff] %v881
        %885 = vst [vmem:[%s462 + $0x8] sm:$0xff] %v883
        %s886 = smul.u32 2, %s19
        %p887 = scmp.lt.s32.totalorder %s18, 0
        %s888 = scalar_select %p887, %s18, 0
        %p889 = scmp.lt.s32.totalorder %s886, 15
        %s890 = scalar_select %p889, %s886, 15
        %s891 = smul.addr %s888, 16
        %s892 = sadd.s32 %s890, %s891
        %s893 = smul.addr %s892, 8
        %s894 = scalar_lea.vmem %s3, %s893
        // Predicated region
        $region71: #{generator_forward.49} parent=65 // pred_check
          %p895 = pneg %p124
        $region72: #{generator_forward.49} parent=65 // pred_check_branch
          %897 = sbr.rel (%p895) target = $region74
        $region73: #{generator_forward.49} parent=65 // pred_region
          %s898 = smul.u32 2, %s19
        $region74: #{generator_forward.49} parent=65 // pred_fallthru
          _
      $region66: #{generator_forward.49} parent=5 // pred_fallthru
        _
      %p899 = scmp.le.s32.totalorder 2, %s9
      // Predicated region
      $region75: #{generator_forward.49} parent=5 // pred_check
        %p900 = pneg %p899
      $region76: #{generator_forward.49} parent=5 // pred_check_branch
        %902 = sbr.rel (%p900) target = $region78
      $region77: #{generator_forward.49} parent=5 // pred_region
        %s903 = ssub.s32 %s9, 2
        // Predicated region
        $region79: #{generator_forward.49} parent=77 // pred_check
          %p904 = pneg %p130
        $region80: #{generator_forward.49} parent=77 // pred_check_branch
          %906 = sbr.rel (%p904) target = $region82
        $region81: #{generator_forward.49} parent=77 // pred_region
          %s907 = smul.u32 2, %s21
          %p908 = scmp.lt.s32.totalorder %s20, 0
          %s909 = scalar_select %p908, %s20, 0
          %p910 = scmp.lt.s32.totalorder %s907, 15
          %s911 = scalar_select %p910, %s907, 15
          %s912 = smul.addr %s909, 16
          %s913 = sadd.s32 %s911, %s912
          %s914 = smul.addr %s913, 8
          %s915 = scalar_lea.vmem %s3, %s914
        $region82: #{generator_forward.49} parent=77 // pred_fallthru
          _
      $region78: #{generator_forward.49} parent=5 // pred_fallthru
        _
    $region6: #{generator_forward.49} parent=1 // loop_footer
      %s13 = sadd.s32 1, %s9
    $region7: #{generator_forward.49} parent=1 // loop_footer_branch
      %8 = sbr.rel target = $region3
    $region8: #{generator_forward.49} parent=1 // loop_exit
      _

</llo_original>
